<compile_context>
chip_gen: v7x
topology: tpu7x:2x2x1
jax: 0.10.0
libtpu: 0.0.40
codegen_flags: <defaults>
</compile_context>

<pallas_src>
import math
from functools import partial

import jax
import jax.numpy as jnp
from jax.experimental import pallas as pl
from jax.experimental.pallas import tpu as pltpu

LANES = 128  # lane width: key*head packing width and padded head-output width


# ----------------------------- Pallas kernel --------------------------------

def _layernorm(v, g, b, eps=1e-5):
    # centered two-pass variance (matches torch.nn.LayerNorm numerics)
    mu = jnp.mean(v, axis=-1, keepdims=True)
    c = v - mu
    var = jnp.mean(c * c, axis=-1, keepdims=True)
    return c * jax.lax.rsqrt(var + eps) * g + b


def ppo_policy_kernel(x_ref, vec_ref, wA_ref, wB_ref, out_ref, *, S, D, H, A):
    f32 = jnp.float32
    TB = x_ref.shape[0]          # sequences in this tile
    R = TB * S                   # rows fed to every matmul
    SD = S * D                   # == LANES (asserted in wrapper)
    NHP = LANES                  # lane-padded fused head width

    # ---- vector parameters: static row slices of one resident slab ----
    g0 = vec_ref[0:1, 0:D];   be0 = vec_ref[1:2, 0:D]
    b_qkv = vec_ref[2:3, 0:3 * D]
    b_o = vec_ref[3:4, 0:D]
    g1 = vec_ref[4:5, 0:D];   be1 = vec_ref[5:6, 0:D]
    b1 = vec_ref[6:7, 0:H];   b2 = vec_ref[7:8, 0:H];   b3 = vec_ref[8:9, 0:D]
    g2 = vec_ref[9:10, 0:D];  be2 = vec_ref[10:11, 0:D]
    b_h = vec_ref[11:12, 0:NHP]

    # ---- weight slabs: segments lane-aligned to 128 ----
    w_qkv = wA_ref[:, 0:3 * D]                         # (D, 3D)
    w_o = wA_ref[:, LANES:LANES + D]                   # (D, D)
    w_h = wA_ref[:, 2 * LANES:2 * LANES + NHP]         # (D, 128) zero-padded beyond A+A*A
    w1 = wB_ref[0:D, 0:H]                              # (D, H)
    w2 = wB_ref[D:D + H, 0:H]                          # (H, H)
    w3 = wB_ref[D + H:D + 2 * H, 0:D]                  # (H, D)

    x = x_ref[...].astype(f32).reshape(R, D)

    # --- self.norm ---
    x = _layernorm(x, g0, be0)

    # --- MultiHeadAttention(d_model=D, num_heads=D) => d_k = 1, scale = 1 ---
    qkv = jnp.dot(x, w_qkv, preferred_element_type=f32) + b_qkv        # (R, 3D)
    q = qkv[:, 0:D].reshape(TB, S, D)
    k = qkv[:, D:2 * D].reshape(TB, S, D)
    v = qkv[:, 2 * D:3 * D].reshape(TB, S, D)

    # Lane packing: lane index = j*D + h (key j, head h); S*D == 128 -> fully lane-dense.
    q3 = jnp.concatenate([q] * S, axis=2)                              # (TB, S, 128): q[b,i,h] at every j
    k3 = jnp.concatenate([k[:, j:j + 1, :] for j in range(S)], axis=2)  # (TB, 1, 128): k[b,j,h]
    v3 = jnp.concatenate([v[:, j:j + 1, :] for j in range(S)], axis=2)  # (TB, 1, 128): v[b,j,h]

    scores = q3 * k3                                                   # scores[b,i,j*D+h] = q*k

    # softmax over the key axis j == circular lane reduce over stride-D groups (XLU slot)
    shifts = [D << t for t in range(S.bit_length() - 1)]               # D, 2D, 4D, ...
    m = scores
    for sh in shifts:
        m = jnp.maximum(m, pltpu.roll(m, sh, axis=2))                  # per-head max, broadcast to all j
    p = jnp.exp(scores - m)                                            # EUP, lane-dense
    l = p
    w = p * v3
    for sh in shifts:
        l = l + pltpu.roll(l, sh, axis=2)                              # per-head sum_j exp
        w = w + pltpu.roll(w, sh, axis=2)                              # per-head sum_j exp * v
    # lanes 0..D-1 now hold the full reductions for heads 0..D-1.
    # NOTE: approx reciprocal => softmax sums to 1 only to ~1e-3; fine for PPO rollouts.
    attn = w[:, :, 0:D] * pl.reciprocal(l[:, :, 0:D], approx=True)     # (TB, S, D)
    attn = attn.reshape(R, D)
    attn = jnp.dot(attn, w_o, preferred_element_type=f32) + b_o

    # --- residual + norm1 (dropout = identity, eval mode) ---
    x = _layernorm(x + attn, g1, be1)

    # --- feed-forward: Linear/ReLU/Linear/ReLU/Linear ---
    h = jnp.maximum(jnp.dot(x, w1, preferred_element_type=f32) + b1, 0.0)
    h = jnp.maximum(jnp.dot(h, w2, preferred_element_type=f32) + b2, 0.0)
    ff = jnp.dot(h, w3, preferred_element_type=f32) + b3

    # --- residual + norm2 ---
    x = _layernorm(x + ff, g2, be2)

    # --- fused heads: [tanh(mu) | cov_flat | zero pad] over 128 lanes (unmasked stores) ---
    heads = jnp.dot(x, w_h, preferred_element_type=f32) + b_h          # (R, 128)
    lane = jax.lax.broadcasted_iota(jnp.int32, heads.shape, 1)
    heads = jnp.where(lane < A, jnp.tanh(heads), heads)

    out_ref[...] = heads.reshape(TB, S, NHP)


def run_policy_block(x, vec, wA, wB, *, S, D, H, A, seq_tile):
    """x: (B, S, D) -> lane-padded fused head output (B, S, 128)."""
    B = x.shape[0]
    TB = min(seq_tile, B)
    assert B % TB == 0, f"batch {B} must be divisible by seq_tile {TB}"
    assert S * D == LANES, "attention lane packing requires S * D == 128"
    assert S >= 1 and (S & (S - 1)) == 0, "S must be a power of two"
    assert 3 * D <= LANES and (A + A * A) <= LANES and H >= D
    kernel = partial(ppo_policy_kernel, S=S, D=D, H=H, A=A)
    return pl.pallas_call(
        kernel,
        out_shape=jax.ShapeDtypeStruct((B, S, LANES), jnp.float32),
        grid_spec=pltpu.PrefetchScalarGridSpec(
            num_scalar_prefetch=0,
            grid=(B // TB,),
            in_specs=[
                pl.BlockSpec((TB, S, D), lambda i: (i, 0, 0)),
                pl.BlockSpec(vec.shape, lambda i: (0, 0)),   # resident across grid steps
                pl.BlockSpec(wA.shape, lambda i: (0, 0)),
                pl.BlockSpec(wB.shape, lambda i: (0, 0)),
            ],
            out_specs=pl.BlockSpec((TB, S, LANES), lambda i: (i, 0, 0)),
        ),
        compiler_params=pltpu.CompilerParams(
            dimension_semantics=("parallel",)),               # shards tiles across v7x's 2 TCs
    )(x, vec, wA, wB)


# ------------------------------ JAX glue -------------------------------------

@partial(jax.jit, static_argnames=("S", "D", "H", "A", "seq_tile"))
def ppo_policy_pred_forward(x, vec, wA, wB, sample_key, *, S, D, H, A, seq_tile):
    B = x.shape[0]
    NH = A + A * A
    heads = run_policy_block(x, vec, wA, wB, S=S, D=D, H=H, A=A, seq_tile=seq_tile)
    heads = heads.reshape(B * S, LANES)
    loc = heads[:, :A]            # tanh already applied in-kernel
    cov_flat = heads[:, A:NH]
    R = B * S

    # cov = M @ M^T * 0.001 + 1e-5*I, fully unrolled per-column elementwise (A is tiny &
    # static) so the whole cov/Cholesky/sample/log-prob tail stays one XLA elementwise fusion.
    def Mc(i, j):
        return cov_flat[:, i * A + j]

    cov = [[None] * A for _ in range(A)]
    for i in range(A):
        for kk in range(i + 1):
            s = sum(Mc(i, j) * Mc(kk, j) for j in range(A)) * 0.001
            if i == kk:
                s = s + 1e-5
            cov[i][kk] = s
            cov[kk][i] = s

    # Unrolled closed-form Cholesky with sqrt clamp (no batched LAPACK-style loop).
    L = [[None] * A for _ in range(A)]
    for i in range(A):
        for j in range(i + 1):
            s = cov[i][j]
            for t in range(j):
                s = s - L[i][t] * L[j][t]
            if i == j:
                L[i][j] = jnp.sqrt(jnp.maximum(s, 1e-12))
            else:
                L[i][j] = s / L[j][j]

    # MultivariateNormal(loc, cov): rsample + log_prob (matches torch reference:
    # correction uses the unsquashed sample and the unsquashed sample is returned).
    eps = jax.random.normal(sample_key, (R, A), dtype=jnp.float32)
    act_cols = []
    for i in range(A):
        ai = loc[:, i]
        for j in range(i + 1):
            ai = ai + L[i][j] * eps[:, j]
        act_cols.append(ai)
    action = jnp.stack(act_cols, axis=-1)                           # (R, A)

    maha = jnp.sum(eps * eps, axis=-1)                              # (R,)
    logdet = 2.0 * sum(jnp.log(L[i][i]) for i in range(A))
    log_prob = -0.5 * (A * jnp.log(2.0 * jnp.pi) + logdet + maha)
    log_prob = log_prob[:, None]                                    # (R, 1)

    correction = (2.0 * (jnp.log(2.0) - action
                         - jax.nn.softplus(-2.0 * action))).sum(-1, keepdims=True)
    log_prob = log_prob - correction
    return log_prob.reshape(B, S, 1), action.reshape(B, S, A)


# --------------------------- parameter init / packing ------------------------

def _linear_params(key, fan_in, fan_out):
    # PyTorch default Linear init: U(-1/sqrt(fan_in), 1/sqrt(fan_in)).
    kw, kb = jax.random.split(key)
    bound = 1.0 / math.sqrt(fan_in)
    W = jax.random.uniform(kw, (fan_in, fan_out), jnp.float32, -bound, bound)
    b = jax.random.uniform(kb, (1, fan_out), jnp.float32, -bound, bound)
    return W, b


def init_params(key, input_dim, hidden_size, action_dim):
    D, H, A = input_dim, hidden_size, action_dim
    keys = jax.random.split(key, 16)
    p = {}
    p["g0"], p["be0"] = jnp.ones((1, D), jnp.float32), jnp.zeros((1, D), jnp.float32)
    p["W_q"], p["b_q"] = _linear_params(keys[0], D, D)
    p["W_k"], p["b_k"] = _linear_params(keys[1], D, D)
    p["W_v"], p["b_v"] = _linear_params(keys[2], D, D)
    p["W_o"], p["b_o"] = _linear_params(keys[3], D, D)
    p["g1"], p["be1"] = jnp.ones((1, D), jnp.float32), jnp.zeros((1, D), jnp.float32)
    p["W1"], p["b1"] = _linear_params(keys[4], D, H)
    p["W2"], p["b2"] = _linear_params(keys[5], H, H)
    p["W3"], p["b3"] = _linear_params(keys[6], H, D)
    p["g2"], p["be2"] = jnp.ones((1, D), jnp.float32), jnp.zeros((1, D), jnp.float32)
    p["W_mu"], p["b_mu"] = _linear_params(keys[7], D, A)
    p["W_cov"], p["b_cov"] = _linear_params(keys[8], D, A * A)
    return p


def pack_params(p, D, H, A):
    """Pack 25 small parameters into 3 slabs (vec, wA, wB) for the kernel."""
    assert H >= D
    NH = A + A * A
    assert 3 * D <= LANES and NH <= LANES
    VW = max(3 * D, H, LANES)

    def row(v):
        v = jnp.asarray(v, jnp.float32).reshape(-1)
        return jnp.pad(v, (0, VW - v.shape[0]))

    b_qkv = jnp.concatenate(
        [p["b_q"].reshape(-1), p["b_k"].reshape(-1), p["b_v"].reshape(-1)])
    b_heads = jnp.concatenate([p["b_mu"].reshape(-1), p["b_cov"].reshape(-1)])
    vec = jnp.stack([
        row(p["g0"]), row(p["be0"]),
        row(b_qkv), row(p["b_o"]),
        row(p["g1"]), row(p["be1"]),
        row(p["b1"]), row(p["b2"]), row(p["b3"]),
        row(p["g2"]), row(p["be2"]),
        row(b_heads),
    ])                                                         # (12, VW)

    def seg(w):
        # pad a (D, n) weight segment to (D, 128) so each segment is lane-aligned
        w = jnp.asarray(w, jnp.float32)
        return jnp.pad(w, ((0, 0), (0, LANES - w.shape[1])))

    w_qkv = jnp.concatenate([p["W_q"], p["W_k"], p["W_v"]], axis=1)    # (D, 3D)
    w_heads = jnp.concatenate([p["W_mu"], p["W_cov"]], axis=1)         # (D, NH)
    wA = jnp.concatenate([seg(w_qkv), seg(p["W_o"]), seg(w_heads)], axis=1)  # (D, 3*128)

    wB = jnp.concatenate([
        p["W1"],                                               # (D, H)
        p["W2"],                                               # (H, H)
        jnp.pad(p["W3"], ((0, 0), (0, H - D))),                # (H, H), W3 padded on lanes
    ], axis=0)                                                 # (D + 2H, H)
    return vec, wA, wB


def pick_seq_tile(B):
    """Single grid step on single-TC chips; split in two on v7x (2 TensorCores)."""
    try:
        kind = jax.devices()[0].device_kind.lower()
    except Exception:
        kind = ""
    if ("v7" in kind or "7x" in kind) and B % 2 == 0:
        return max(B // 2, 1)
    return B


# --------------------------------- main ---------------------------------------

if __name__ == "__main__":
    SEQ = 8           # seq_length (tokens per observation)
    INPUT_DIM = 16    # input_dim == d_model == num_heads  (d_k = 1); SEQ*INPUT_DIM == 128
    HIDDEN = 32       # hidden_size
    ACTION_DIM = 4    # action_dim
    BATCH = 32        # rollout observations batched through the grid

    root = jax.random.PRNGKey(0)
    k_x, k_params, k_sample = jax.random.split(root, 3)

    x = jax.random.normal(k_x, (BATCH, SEQ, INPUT_DIM), dtype=jnp.float32)
    raw = init_params(k_params, INPUT_DIM, HIDDEN, ACTION_DIM)
    vec, wA, wB = pack_params(raw, INPUT_DIM, HIDDEN, ACTION_DIM)

    seq_tile = pick_seq_tile(BATCH)
    log_prob, action = ppo_policy_pred_forward(
        x, vec, wA, wB, k_sample,
        S=SEQ, D=INPUT_DIM, H=HIDDEN, A=ACTION_DIM, seq_tile=seq_tile)
    jax.block_until_ready((log_prob, action))

    assert log_prob.shape == (BATCH, SEQ, 1), log_prob.shape
    assert action.shape == (BATCH, SEQ, ACTION_DIM), action.shape
    assert bool(jnp.all(jnp.isfinite(log_prob))) and bool(jnp.all(jnp.isfinite(action)))
    print("KERNEL_OK")
</pallas_src>

<mosaic_0001>
module attributes {stable_mosaic.version = 11 : i64} {
  func.func @ppo_policy_kernel(%arg0: i32, %arg1: memref<32x8x16xf32, #tpu.memory_space<vmem>>, %arg2: memref<12x128xf32, #tpu.memory_space<vmem>>, %arg3: memref<16x384xf32, #tpu.memory_space<vmem>>, %arg4: memref<80x32xf32, #tpu.memory_space<vmem>>, %arg5: memref<32x8x128xf32, #tpu.memory_space<vmem>>) attributes {dimension_semantics = [#tpu.dimension_semantics<parallel>], iteration_bounds = array<i64: 1>, scalar_prefetch = 0 : i64, scratch_operands = 0 : i64, tpu.core_type = #tpu.core_type<tc>, window_params = [{transform_indices = @transform_0, window_bounds = array<i64: 32, 8, 16>}, {pipeline_mode = #tpu.pipeline_mode<synchronous>, transform_indices = @transform_1, window_bounds = array<i64: 12, 128>}, {pipeline_mode = #tpu.pipeline_mode<synchronous>, transform_indices = @transform_2, window_bounds = array<i64: 16, 384>}, {pipeline_mode = #tpu.pipeline_mode<synchronous>, transform_indices = @transform_3, window_bounds = array<i64: 80, 32>}, {transform_indices = @transform_4, window_bounds = array<i64: 32, 8, 128>}]} {
    %c0 = arith.constant 0 : index
    %c0_0 = arith.constant 0 : index
    %0 = vector.load %arg2[%c0, %c0_0] : memref<12x128xf32, #tpu.memory_space<vmem>>, vector<1x16xf32>
    %c1 = arith.constant 1 : index
    %c0_1 = arith.constant 0 : index
    %1 = vector.load %arg2[%c1, %c0_1] : memref<12x128xf32, #tpu.memory_space<vmem>>, vector<1x16xf32>
    %c2 = arith.constant 2 : index
    %c0_2 = arith.constant 0 : index
    %2 = vector.load %arg2[%c2, %c0_2] : memref<12x128xf32, #tpu.memory_space<vmem>>, vector<1x48xf32>
    %c3 = arith.constant 3 : index
    %c0_3 = arith.constant 0 : index
    %3 = vector.load %arg2[%c3, %c0_3] : memref<12x128xf32, #tpu.memory_space<vmem>>, vector<1x16xf32>
    %c4 = arith.constant 4 : index
    %c0_4 = arith.constant 0 : index
    %4 = vector.load %arg2[%c4, %c0_4] : memref<12x128xf32, #tpu.memory_space<vmem>>, vector<1x16xf32>
    %c5 = arith.constant 5 : index
    %c0_5 = arith.constant 0 : index
    %5 = vector.load %arg2[%c5, %c0_5] : memref<12x128xf32, #tpu.memory_space<vmem>>, vector<1x16xf32>
    %c6 = arith.constant 6 : index
    %c0_6 = arith.constant 0 : index
    %6 = vector.load %arg2[%c6, %c0_6] : memref<12x128xf32, #tpu.memory_space<vmem>>, vector<1x32xf32>
    %c7 = arith.constant 7 : index
    %c0_7 = arith.constant 0 : index
    %7 = vector.load %arg2[%c7, %c0_7] : memref<12x128xf32, #tpu.memory_space<vmem>>, vector<1x32xf32>
    %c8 = arith.constant 8 : index
    %c0_8 = arith.constant 0 : index
    %8 = vector.load %arg2[%c8, %c0_8] : memref<12x128xf32, #tpu.memory_space<vmem>>, vector<1x16xf32>
    %c9 = arith.constant 9 : index
    %c0_9 = arith.constant 0 : index
    %9 = vector.load %arg2[%c9, %c0_9] : memref<12x128xf32, #tpu.memory_space<vmem>>, vector<1x16xf32>
    %c10 = arith.constant 10 : index
    %c0_10 = arith.constant 0 : index
    %10 = vector.load %arg2[%c10, %c0_10] : memref<12x128xf32, #tpu.memory_space<vmem>>, vector<1x16xf32>
    %c11 = arith.constant 11 : index
    %c0_11 = arith.constant 0 : index
    %11 = vector.load %arg2[%c11, %c0_11] : memref<12x128xf32, #tpu.memory_space<vmem>>, vector<1x128xf32>
    %c0_12 = arith.constant 0 : index
    %c0_13 = arith.constant 0 : index
    %12 = vector.load %arg3[%c0_12, %c0_13] : memref<16x384xf32, #tpu.memory_space<vmem>>, vector<16x48xf32>
    %c0_14 = arith.constant 0 : index
    %c128 = arith.constant 128 : index
    %13 = vector.load %arg3[%c0_14, %c128] : memref<16x384xf32, #tpu.memory_space<vmem>>, vector<16x16xf32>
    %c0_15 = arith.constant 0 : index
    %c256 = arith.constant 256 : index
    %14 = vector.load %arg3[%c0_15, %c256] : memref<16x384xf32, #tpu.memory_space<vmem>>, vector<16x128xf32>
    %c0_16 = arith.constant 0 : index
    %c0_17 = arith.constant 0 : index
    %15 = vector.load %arg4[%c0_16, %c0_17] : memref<80x32xf32, #tpu.memory_space<vmem>>, vector<16x32xf32>
    %c16 = arith.constant 16 : index
    %c0_18 = arith.constant 0 : index
    %16 = vector.load %arg4[%c16, %c0_18] : memref<80x32xf32, #tpu.memory_space<vmem>>, vector<32x32xf32>
    %c48 = arith.constant 48 : index
    %c0_19 = arith.constant 0 : index
    %17 = vector.load %arg4[%c48, %c0_19] : memref<80x32xf32, #tpu.memory_space<vmem>>, vector<32x16xf32>
    %c0_20 = arith.constant 0 : index
    %c0_21 = arith.constant 0 : index
    %c0_22 = arith.constant 0 : index
    %18 = vector.load %arg1[%c0_20, %c0_21, %c0_22] : memref<32x8x16xf32, #tpu.memory_space<vmem>>, vector<32x8x16xf32>
    %19 = vector.shape_cast %18 : vector<32x8x16xf32> to vector<256x16xf32>
    %cst = arith.constant dense<0.000000e+00> : vector<256xf32>
    %20 = vector.multi_reduction <add>, %19, %cst [1] : vector<256x16xf32> to vector<256xf32>
    %21 = vector.shape_cast %20 : vector<256xf32> to vector<256x1xf32>
    %cst_23 = arith.constant 1.600000e+01 : f32
    %22 = vector.broadcast %cst_23 : f32 to vector<256x1xf32>
    %23 = arith.divf %21, %22 : vector<256x1xf32>
    %24 = vector.broadcast %23 : vector<256x1xf32> to vector<256x16xf32>
    %25 = arith.subf %19, %24 : vector<256x16xf32>
    %26 = arith.mulf %25, %25 : vector<256x16xf32>
    %cst_24 = arith.constant dense<0.000000e+00> : vector<256xf32>
    %27 = vector.multi_reduction <add>, %26, %cst_24 [1] : vector<256x16xf32> to vector<256xf32>
    %28 = vector.shape_cast %27 : vector<256xf32> to vector<256x1xf32>
    %cst_25 = arith.constant 1.600000e+01 : f32
    %29 = vector.broadcast %cst_25 : f32 to vector<256x1xf32>
    %30 = arith.divf %28, %29 : vector<256x1xf32>
    %cst_26 = arith.constant 9.99999974E-6 : f32
    %31 = vector.broadcast %cst_26 : f32 to vector<256x1xf32>
    %32 = arith.addf %30, %31 : vector<256x1xf32>
    %33 = math.rsqrt %32 : vector<256x1xf32>
    %34 = vector.broadcast %33 : vector<256x1xf32> to vector<256x16xf32>
    %35 = arith.mulf %25, %34 : vector<256x16xf32>
    %36 = vector.broadcast %0 : vector<1x16xf32> to vector<256x16xf32>
    %37 = arith.mulf %35, %36 : vector<256x16xf32>
    %38 = vector.broadcast %1 : vector<1x16xf32> to vector<256x16xf32>
    %39 = arith.addf %37, %38 : vector<256x16xf32>
    %cst_27 = arith.constant dense<0.000000e+00> : vector<256x48xf32>
    %40 = tpu.matmul %39, %12, %cst_27 {dimension_numbers = #tpu.dot_dimension_numbers<[1], [0], [0], [1], [0, 0, 1, 1], [], []>} : vector<256x16xf32>, vector<16x48xf32>, vector<256x48xf32> -> vector<256x48xf32>
    %41 = vector.broadcast %2 : vector<1x48xf32> to vector<256x48xf32>
    %42 = arith.addf %40, %41 : vector<256x48xf32>
    %43 = vector.extract_strided_slice %42 {offsets = [0, 0], sizes = [256, 16], strides = [1, 1]} : vector<256x48xf32> to vector<256x16xf32>
    %44 = vector.shape_cast %43 : vector<256x16xf32> to vector<32x8x16xf32>
    %45 = vector.extract_strided_slice %42 {offsets = [0, 16], sizes = [256, 16], strides = [1, 1]} : vector<256x48xf32> to vector<256x16xf32>
    %46 = vector.shape_cast %45 : vector<256x16xf32> to vector<32x8x16xf32>
    %47 = vector.extract_strided_slice %42 {offsets = [0, 32], sizes = [256, 16], strides = [1, 1]} : vector<256x48xf32> to vector<256x16xf32>
    %48 = vector.shape_cast %47 : vector<256x16xf32> to vector<32x8x16xf32>
    %49 = tpu.concatenate %44, %44, %44, %44, %44, %44, %44, %44 in 2 : vector<32x8x16xf32>, vector<32x8x16xf32>, vector<32x8x16xf32>, vector<32x8x16xf32>, vector<32x8x16xf32>, vector<32x8x16xf32>, vector<32x8x16xf32>, vector<32x8x16xf32> -> vector<32x8x128xf32>
    %50 = vector.extract_strided_slice %46 {offsets = [0, 0, 0], sizes = [32, 1, 16], strides = [1, 1, 1]} : vector<32x8x16xf32> to vector<32x1x16xf32>
    %51 = vector.extract_strided_slice %46 {offsets = [0, 1, 0], sizes = [32, 1, 16], strides = [1, 1, 1]} : vector<32x8x16xf32> to vector<32x1x16xf32>
    %52 = vector.extract_strided_slice %46 {offsets = [0, 2, 0], sizes = [32, 1, 16], strides = [1, 1, 1]} : vector<32x8x16xf32> to vector<32x1x16xf32>
    %53 = vector.extract_strided_slice %46 {offsets = [0, 3, 0], sizes = [32, 1, 16], strides = [1, 1, 1]} : vector<32x8x16xf32> to vector<32x1x16xf32>
    %54 = vector.extract_strided_slice %46 {offsets = [0, 4, 0], sizes = [32, 1, 16], strides = [1, 1, 1]} : vector<32x8x16xf32> to vector<32x1x16xf32>
    %55 = vector.extract_strided_slice %46 {offsets = [0, 5, 0], sizes = [32, 1, 16], strides = [1, 1, 1]} : vector<32x8x16xf32> to vector<32x1x16xf32>
    %56 = vector.extract_strided_slice %46 {offsets = [0, 6, 0], sizes = [32, 1, 16], strides = [1, 1, 1]} : vector<32x8x16xf32> to vector<32x1x16xf32>
    %57 = vector.extract_strided_slice %46 {offsets = [0, 7, 0], sizes = [32, 1, 16], strides = [1, 1, 1]} : vector<32x8x16xf32> to vector<32x1x16xf32>
    %58 = tpu.concatenate %50, %51, %52, %53, %54, %55, %56, %57 in 2 : vector<32x1x16xf32>, vector<32x1x16xf32>, vector<32x1x16xf32>, vector<32x1x16xf32>, vector<32x1x16xf32>, vector<32x1x16xf32>, vector<32x1x16xf32>, vector<32x1x16xf32> -> vector<32x1x128xf32>
    %59 = vector.extract_strided_slice %48 {offsets = [0, 0, 0], sizes = [32, 1, 16], strides = [1, 1, 1]} : vector<32x8x16xf32> to vector<32x1x16xf32>
    %60 = vector.extract_strided_slice %48 {offsets = [0, 1, 0], sizes = [32, 1, 16], strides = [1, 1, 1]} : vector<32x8x16xf32> to vector<32x1x16xf32>
    %61 = vector.extract_strided_slice %48 {offsets = [0, 2, 0], sizes = [32, 1, 16], strides = [1, 1, 1]} : vector<32x8x16xf32> to vector<32x1x16xf32>
    %62 = vector.extract_strided_slice %48 {offsets = [0, 3, 0], sizes = [32, 1, 16], strides = [1, 1, 1]} : vector<32x8x16xf32> to vector<32x1x16xf32>
    %63 = vector.extract_strided_slice %48 {offsets = [0, 4, 0], sizes = [32, 1, 16], strides = [1, 1, 1]} : vector<32x8x16xf32> to vector<32x1x16xf32>
    %64 = vector.extract_strided_slice %48 {offsets = [0, 5, 0], sizes = [32, 1, 16], strides = [1, 1, 1]} : vector<32x8x16xf32> to vector<32x1x16xf32>
    %65 = vector.extract_strided_slice %48 {offsets = [0, 6, 0], sizes = [32, 1, 16], strides = [1, 1, 1]} : vector<32x8x16xf32> to vector<32x1x16xf32>
    %66 = vector.extract_strided_slice %48 {offsets = [0, 7, 0], sizes = [32, 1, 16], strides = [1, 1, 1]} : vector<32x8x16xf32> to vector<32x1x16xf32>
    %67 = tpu.concatenate %59, %60, %61, %62, %63, %64, %65, %66 in 2 : vector<32x1x16xf32>, vector<32x1x16xf32>, vector<32x1x16xf32>, vector<32x1x16xf32>, vector<32x1x16xf32>, vector<32x1x16xf32>, vector<32x1x16xf32>, vector<32x1x16xf32> -> vector<32x1x128xf32>
    %68 = vector.broadcast %58 : vector<32x1x128xf32> to vector<32x8x128xf32>
    %69 = arith.mulf %49, %68 : vector<32x8x128xf32>
    %c16_i32 = arith.constant 16 : i32
    %70 = tpu.dynamic_rotate %69 by %c16_i32 dim 2 : vector<32x8x128xf32>, i32 -> vector<32x8x128xf32>
    %71 = arith.maximumf %69, %70 : vector<32x8x128xf32>
    %c32_i32 = arith.constant 32 : i32
    %72 = tpu.dynamic_rotate %71 by %c32_i32 dim 2 : vector<32x8x128xf32>, i32 -> vector<32x8x128xf32>
    %73 = arith.maximumf %71, %72 : vector<32x8x128xf32>
    %c64_i32 = arith.constant 64 : i32
    %74 = tpu.dynamic_rotate %73 by %c64_i32 dim 2 : vector<32x8x128xf32>, i32 -> vector<32x8x128xf32>
    %75 = arith.maximumf %73, %74 : vector<32x8x128xf32>
    %76 = arith.subf %69, %75 : vector<32x8x128xf32>
    %77 = math.exp %76 : vector<32x8x128xf32>
    %78 = vector.broadcast %67 : vector<32x1x128xf32> to vector<32x8x128xf32>
    %79 = arith.mulf %77, %78 : vector<32x8x128xf32>
    %c16_i32_28 = arith.constant 16 : i32
    %80 = tpu.dynamic_rotate %77 by %c16_i32_28 dim 2 : vector<32x8x128xf32>, i32 -> vector<32x8x128xf32>
    %81 = arith.addf %77, %80 : vector<32x8x128xf32>
    %c16_i32_29 = arith.constant 16 : i32
    %82 = tpu.dynamic_rotate %79 by %c16_i32_29 dim 2 : vector<32x8x128xf32>, i32 -> vector<32x8x128xf32>
    %83 = arith.addf %79, %82 : vector<32x8x128xf32>
    %c32_i32_30 = arith.constant 32 : i32
    %84 = tpu.dynamic_rotate %81 by %c32_i32_30 dim 2 : vector<32x8x128xf32>, i32 -> vector<32x8x128xf32>
    %85 = arith.addf %81, %84 : vector<32x8x128xf32>
    %c32_i32_31 = arith.constant 32 : i32
    %86 = tpu.dynamic_rotate %83 by %c32_i32_31 dim 2 : vector<32x8x128xf32>, i32 -> vector<32x8x128xf32>
    %87 = arith.addf %83, %86 : vector<32x8x128xf32>
    %c64_i32_32 = arith.constant 64 : i32
    %88 = tpu.dynamic_rotate %85 by %c64_i32_32 dim 2 : vector<32x8x128xf32>, i32 -> vector<32x8x128xf32>
    %89 = arith.addf %85, %88 : vector<32x8x128xf32>
    %c64_i32_33 = arith.constant 64 : i32
    %90 = tpu.dynamic_rotate %87 by %c64_i32_33 dim 2 : vector<32x8x128xf32>, i32 -> vector<32x8x128xf32>
    %91 = arith.addf %87, %90 : vector<32x8x128xf32>
    %92 = vector.extract_strided_slice %91 {offsets = [0, 0, 0], sizes = [32, 8, 16], strides = [1, 1, 1]} : vector<32x8x128xf32> to vector<32x8x16xf32>
    %93 = vector.extract_strided_slice %89 {offsets = [0, 0, 0], sizes = [32, 8, 16], strides = [1, 1, 1]} : vector<32x8x128xf32> to vector<32x8x16xf32>
    %94 = tpu.reciprocal %93 {approx = true} : vector<32x8x16xf32> -> vector<32x8x16xf32>
    %95 = arith.mulf %92, %94 : vector<32x8x16xf32>
    %96 = vector.shape_cast %95 : vector<32x8x16xf32> to vector<256x16xf32>
    %cst_34 = arith.constant dense<0.000000e+00> : vector<256x16xf32>
    %97 = tpu.matmul %96, %13, %cst_34 {dimension_numbers = #tpu.dot_dimension_numbers<[1], [0], [0], [1], [0, 0, 1, 1], [], []>} : vector<256x16xf32>, vector<16x16xf32>, vector<256x16xf32> -> vector<256x16xf32>
    %98 = vector.broadcast %3 : vector<1x16xf32> to vector<256x16xf32>
    %99 = arith.addf %97, %98 : vector<256x16xf32>
    %100 = arith.addf %39, %99 : vector<256x16xf32>
    %cst_35 = arith.constant dense<0.000000e+00> : vector<256xf32>
    %101 = vector.multi_reduction <add>, %100, %cst_35 [1] : vector<256x16xf32> to vector<256xf32>
    %102 = vector.shape_cast %101 : vector<256xf32> to vector<256x1xf32>
    %cst_36 = arith.constant 1.600000e+01 : f32
    %103 = vector.broadcast %cst_36 : f32 to vector<256x1xf32>
    %104 = arith.divf %102, %103 : vector<256x1xf32>
    %105 = vector.broadcast %104 : vector<256x1xf32> to vector<256x16xf32>
    %106 = arith.subf %100, %105 : vector<256x16xf32>
    %107 = arith.mulf %106, %106 : vector<256x16xf32>
    %cst_37 = arith.constant dense<0.000000e+00> : vector<256xf32>
    %108 = vector.multi_reduction <add>, %107, %cst_37 [1] : vector<256x16xf32> to vector<256xf32>
    %109 = vector.shape_cast %108 : vector<256xf32> to vector<256x1xf32>
    %cst_38 = arith.constant 1.600000e+01 : f32
    %110 = vector.broadcast %cst_38 : f32 to vector<256x1xf32>
    %111 = arith.divf %109, %110 : vector<256x1xf32>
    %cst_39 = arith.constant 9.99999974E-6 : f32
    %112 = vector.broadcast %cst_39 : f32 to vector<256x1xf32>
    %113 = arith.addf %111, %112 : vector<256x1xf32>
    %114 = math.rsqrt %113 : vector<256x1xf32>
    %115 = vector.broadcast %114 : vector<256x1xf32> to vector<256x16xf32>
    %116 = arith.mulf %106, %115 : vector<256x16xf32>
    %117 = vector.broadcast %4 : vector<1x16xf32> to vector<256x16xf32>
    %118 = arith.mulf %116, %117 : vector<256x16xf32>
    %119 = vector.broadcast %5 : vector<1x16xf32> to vector<256x16xf32>
    %120 = arith.addf %118, %119 : vector<256x16xf32>
    %cst_40 = arith.constant dense<0.000000e+00> : vector<256x32xf32>
    %121 = tpu.matmul %120, %15, %cst_40 {dimension_numbers = #tpu.dot_dimension_numbers<[1], [0], [0], [1], [0, 0, 1, 1], [], []>} : vector<256x16xf32>, vector<16x32xf32>, vector<256x32xf32> -> vector<256x32xf32>
    %122 = vector.broadcast %6 : vector<1x32xf32> to vector<256x32xf32>
    %123 = arith.addf %121, %122 : vector<256x32xf32>
    %cst_41 = arith.constant 0.000000e+00 : f32
    %124 = vector.broadcast %cst_41 : f32 to vector<256x32xf32>
    %125 = arith.maximumf %123, %124 : vector<256x32xf32>
    %cst_42 = arith.constant dense<0.000000e+00> : vector<256x32xf32>
    %126 = tpu.matmul %125, %16, %cst_42 {dimension_numbers = #tpu.dot_dimension_numbers<[1], [0], [0], [1], [0, 0, 1, 1], [], []>} : vector<256x32xf32>, vector<32x32xf32>, vector<256x32xf32> -> vector<256x32xf32>
    %127 = vector.broadcast %7 : vector<1x32xf32> to vector<256x32xf32>
    %128 = arith.addf %126, %127 : vector<256x32xf32>
    %cst_43 = arith.constant 0.000000e+00 : f32
    %129 = vector.broadcast %cst_43 : f32 to vector<256x32xf32>
    %130 = arith.maximumf %128, %129 : vector<256x32xf32>
    %cst_44 = arith.constant dense<0.000000e+00> : vector<256x16xf32>
    %131 = tpu.matmul %130, %17, %cst_44 {dimension_numbers = #tpu.dot_dimension_numbers<[1], [0], [0], [1], [0, 0, 1, 1], [], []>} : vector<256x32xf32>, vector<32x16xf32>, vector<256x16xf32> -> vector<256x16xf32>
    %132 = vector.broadcast %8 : vector<1x16xf32> to vector<256x16xf32>
    %133 = arith.addf %131, %132 : vector<256x16xf32>
    %134 = arith.addf %120, %133 : vector<256x16xf32>
    %cst_45 = arith.constant dense<0.000000e+00> : vector<256xf32>
    %135 = vector.multi_reduction <add>, %134, %cst_45 [1] : vector<256x16xf32> to vector<256xf32>
    %136 = vector.shape_cast %135 : vector<256xf32> to vector<256x1xf32>
    %cst_46 = arith.constant 1.600000e+01 : f32
    %137 = vector.broadcast %cst_46 : f32 to vector<256x1xf32>
    %138 = arith.divf %136, %137 : vector<256x1xf32>
    %139 = vector.broadcast %138 : vector<256x1xf32> to vector<256x16xf32>
    %140 = arith.subf %134, %139 : vector<256x16xf32>
    %141 = arith.mulf %140, %140 : vector<256x16xf32>
    %cst_47 = arith.constant dense<0.000000e+00> : vector<256xf32>
    %142 = vector.multi_reduction <add>, %141, %cst_47 [1] : vector<256x16xf32> to vector<256xf32>
    %143 = vector.shape_cast %142 : vector<256xf32> to vector<256x1xf32>
    %cst_48 = arith.constant 1.600000e+01 : f32
    %144 = vector.broadcast %cst_48 : f32 to vector<256x1xf32>
    %145 = arith.divf %143, %144 : vector<256x1xf32>
    %cst_49 = arith.constant 9.99999974E-6 : f32
    %146 = vector.broadcast %cst_49 : f32 to vector<256x1xf32>
    %147 = arith.addf %145, %146 : vector<256x1xf32>
    %148 = math.rsqrt %147 : vector<256x1xf32>
    %149 = vector.broadcast %148 : vector<256x1xf32> to vector<256x16xf32>
    %150 = arith.mulf %140, %149 : vector<256x16xf32>
    %151 = vector.broadcast %9 : vector<1x16xf32> to vector<256x16xf32>
    %152 = arith.mulf %150, %151 : vector<256x16xf32>
    %153 = vector.broadcast %10 : vector<1x16xf32> to vector<256x16xf32>
    %154 = arith.addf %152, %153 : vector<256x16xf32>
    %cst_50 = arith.constant dense<0.000000e+00> : vector<256x128xf32>
    %155 = tpu.matmul %154, %14, %cst_50 {dimension_numbers = #tpu.dot_dimension_numbers<[1], [0], [0], [1], [0, 0, 1, 1], [], []>} : vector<256x16xf32>, vector<16x128xf32>, vector<256x128xf32> -> vector<256x128xf32>
    %156 = vector.broadcast %11 : vector<1x128xf32> to vector<256x128xf32>
    %157 = arith.addf %155, %156 : vector<256x128xf32>
    %158 = tpu.iota {dimensions = array<i32: 1>} : vector<256x128xi32>
    %c4_i32 = arith.constant 4 : i32
    %159 = vector.broadcast %c4_i32 : i32 to vector<256x128xi32>
    %160 = arith.cmpi slt, %158, %159 : vector<256x128xi32>
    %161 = math.tanh %157 : vector<256x128xf32>
    %162 = arith.select %160, %161, %157 : vector<256x128xi1>, vector<256x128xf32>
    %163 = vector.shape_cast %162 : vector<256x128xf32> to vector<32x8x128xf32>
    %c0_51 = arith.constant 0 : index
    %c0_52 = arith.constant 0 : index
    %c0_53 = arith.constant 0 : index
    %164 = vector.load %arg5[%c0_51, %c0_52, %c0_53] : memref<32x8x128xf32, #tpu.memory_space<vmem>>, vector<32x8x128xf32>
    tpu.vector_store %arg5[%c0_51, %c0_52, %c0_53], %163 {strides = array<i32>} : memref<32x8x128xf32, #tpu.memory_space<vmem>>, vector<32x8x128xf32>,
    return
  }
  func.func @transform_0(%arg0: i32) -> (i32, i32, i32) {
    %c0_i32 = arith.constant 0 : i32
    %c0_i32_0 = arith.constant 0 : i32
    %c0_i32_1 = arith.constant 0 : i32
    return %arg0, %c0_i32, %c0_i32_0 : i32, i32, i32
  }
  func.func @transform_1(%arg0: i32) -> (i32, i32) {
    %c0_i32 = arith.constant 0 : i32
    %c0_i32_0 = arith.constant 0 : i32
    %c0_i32_1 = arith.constant 0 : i32
    return %c0_i32, %c0_i32_0 : i32, i32
  }
  func.func @transform_2(%arg0: i32) -> (i32, i32) {
    %c0_i32 = arith.constant 0 : i32
    %c0_i32_0 = arith.constant 0 : i32
    %c0_i32_1 = arith.constant 0 : i32
    return %c0_i32, %c0_i32_0 : i32, i32
  }
  func.func @transform_3(%arg0: i32) -> (i32, i32) {
    %c0_i32 = arith.constant 0 : i32
    %c0_i32_0 = arith.constant 0 : i32
    %c0_i32_1 = arith.constant 0 : i32
    return %c0_i32, %c0_i32_0 : i32, i32
  }
  func.func @transform_4(%arg0: i32) -> (i32, i32, i32) {
    %c0_i32 = arith.constant 0 : i32
    %c0_i32_0 = arith.constant 0 : i32
    %c0_i32_1 = arith.constant 0 : i32
    return %arg0, %c0_i32, %c0_i32_0 : i32, i32, i32
  }
}

</mosaic_0001>

<llo_original>
// kernel: ppo_policy_pred_forward.1
$region0: #{ppo_policy_pred_forward.1}
  #allocation0 [shape = 'u32[]', space=smem, size = 0x4, offset = 0x4, fixed_abs, tag = 'smem constant byte address 0x4 - core index']
  #allocation1 [shape = 'u32[144,128]{1,0:T(1,128)}', space=vmem, size = 0x12000, scoped, tag = 'internal scratch']
  %s0 = inlined_call_operand.vmem [shape: f32[32,8,16], index: 0, kind: input, shape index: {}]
  %s1 = inlined_call_operand.vmem [shape: f32[12,128], index: 1, kind: input, shape index: {}]
  %s2 = inlined_call_operand.vmem [shape: f32[16,384], index: 2, kind: input, shape index: {}]
  %s3 = inlined_call_operand.vmem [shape: f32[80,32], index: 3, kind: input, shape index: {}]
  %s4 = inlined_call_operand.vmem [shape: f32[32,8,128], index: 4, kind: output, shape index: {}]
  %s5 = sld [smem:[#allocation0]]
  $region26: #{ppo_policy_pred_forward.1} parent=0
    _
  %s7 = ssub.s32 1, %s5
  %s8 = scalar_select 0, %s7, %s5
  // Predicated region
  $region2: #{ppo_policy_pred_forward.1} parent=0 // pred_check
    _
  $region3: #{ppo_policy_pred_forward.1} parent=0 // pred_check_branch
    %10 = sbr.rel (0) target = $region5
  $region4: #{ppo_policy_pred_forward.1} parent=0 // pred_region
    _
  $region5: #{ppo_policy_pred_forward.1} parent=0 // pred_fallthru
    _
  // Predicated region
  $region6: #{ppo_policy_pred_forward.1} parent=0 // pred_check
    _
  $region7: #{ppo_policy_pred_forward.1} parent=0 // pred_check_branch
    %12 = sbr.rel (0) target = $region9
  $region8: #{ppo_policy_pred_forward.1} parent=0 // pred_region
    _
  $region9: #{ppo_policy_pred_forward.1} parent=0 // pred_fallthru
    _
  // Predicated region
  $region10: #{ppo_policy_pred_forward.1} parent=0 // pred_check
    _
  $region11: #{ppo_policy_pred_forward.1} parent=0 // pred_check_branch
    %14 = sbr.rel (0) target = $region13
  $region12: #{ppo_policy_pred_forward.1} parent=0 // pred_region
    _
  $region13: #{ppo_policy_pred_forward.1} parent=0 // pred_fallthru
    _
  // Predicated region
  $region14: #{ppo_policy_pred_forward.1} parent=0 // pred_check
    _
  $region15: #{ppo_policy_pred_forward.1} parent=0 // pred_check_branch
    %16 = sbr.rel (0) target = $region17
  $region16: #{ppo_policy_pred_forward.1} parent=0 // pred_region
    _
  $region17: #{ppo_policy_pred_forward.1} parent=0 // pred_fallthru
    _
  %v17 = vld [vmem:[%s1] sm:$0x1]
  %v18 = vld [vmem:[%s1 + $0x1] sm:$0x1]
  %v19 = vld [vmem:[%s1 + $0x2] sm:$0x1]
  %v20 = vld [vmem:[%s1 + $0x3] sm:$0x1]
  %v21 = vld [vmem:[%s1 + $0x4] sm:$0x1]
  %v22 = vld [vmem:[%s1 + $0x5] sm:$0x1]
  %v23 = vld [vmem:[%s1 + $0x6] sm:$0x1]
  %v24 = vld [vmem:[%s1 + $0x7] sm:$0x1]
  %v25 = vld [vmem:[%s1 + $0x8] sm:$0x1]
  %v26 = vld [vmem:[%s1 + $0x9] sm:$0x1]
  %v27 = vld [vmem:[%s1 + $0xa] sm:$0x1]
  %v28 = vld [vmem:[%s1 + $0xb] sm:$0x1]
  %v29 = vld [vmem:[%s2] sm:$0xff]
  %v30 = vld [vmem:[%s2 + $0x18] sm:$0xff]
  %v31 = vld [vmem:[%s2 + $0x8] sm:$0xff]
  %v32 = vld [vmem:[%s2 + $0x20] sm:$0xff]
  %v33 = vld [vmem:[%s2 + $0x10] sm:$0xff]
  %v34 = vld [vmem:[%s2 + $0x28] sm:$0xff]
  %v35 = vld [vmem:[%s3] sm:$0xff]
  %v36 = vld [vmem:[%s3 + $0x8] sm:$0xff]
  %v37 = vld [vmem:[%s3 + $0x10] sm:$0xff]
  %v38 = vld [vmem:[%s3 + $0x18] sm:$0xff]
  %v39 = vld [vmem:[%s3 + $0x20] sm:$0xff]
  %v40 = vld [vmem:[%s3 + $0x28] sm:$0xff]
  %v41 = vld [vmem:[%s3 + $0x30] sm:$0xff]
  %v42 = vld [vmem:[%s3 + $0x38] sm:$0xff]
  %v43 = vld [vmem:[%s3 + $0x40] sm:$0xff]
  %v44 = vld [vmem:[%s3 + $0x48] sm:$0xff]
  %v45 = vld [vmem:[%s0] sm:$0xff]
  %v46 = vld [vmem:[%s0 + $0x8] sm:$0xff]
  %v47 = vld [vmem:[%s0 + $0x10] sm:$0xff]
  %v48 = vld [vmem:[%s0 + $0x18] sm:$0xff]
  %v49 = vld [vmem:[%s0 + $0x20] sm:$0xff]
  %v50 = vld [vmem:[%s0 + $0x28] sm:$0xff]
  %v51 = vld [vmem:[%s0 + $0x30] sm:$0xff]
  %v52 = vld [vmem:[%s0 + $0x38] sm:$0xff]
  %v53 = vld [vmem:[%s0 + $0x40] sm:$0xff]
  %v54 = vld [vmem:[%s0 + $0x48] sm:$0xff]
  %v55 = vld [vmem:[%s0 + $0x50] sm:$0xff]
  %v56 = vld [vmem:[%s0 + $0x58] sm:$0xff]
  %v57 = vld [vmem:[%s0 + $0x60] sm:$0xff]
  %v58 = vld [vmem:[%s0 + $0x68] sm:$0xff]
  %v59 = vld [vmem:[%s0 + $0x70] sm:$0xff]
  %v60 = vld [vmem:[%s0 + $0x78] sm:$0xff]
  %v61 = vld [vmem:[%s0 + $0x80] sm:$0xff]
  %v62 = vld [vmem:[%s0 + $0x88] sm:$0xff]
  %v63 = vld [vmem:[%s0 + $0x90] sm:$0xff]
  %v64 = vld [vmem:[%s0 + $0x98] sm:$0xff]
  %v65 = vld [vmem:[%s0 + $0xa0] sm:$0xff]
  %v66 = vld [vmem:[%s0 + $0xa8] sm:$0xff]
  %v67 = vld [vmem:[%s0 + $0xb0] sm:$0xff]
  %v68 = vld [vmem:[%s0 + $0xb8] sm:$0xff]
  %v69 = vld [vmem:[%s0 + $0xc0] sm:$0xff]
  %v70 = vld [vmem:[%s0 + $0xc8] sm:$0xff]
  %v71 = vld [vmem:[%s0 + $0xd0] sm:$0xff]
  %v72 = vld [vmem:[%s0 + $0xd8] sm:$0xff]
  %v73 = vld [vmem:[%s0 + $0xe0] sm:$0xff]
  %v74 = vld [vmem:[%s0 + $0xe8] sm:$0xff]
  %v75 = vld [vmem:[%s0 + $0xf0] sm:$0xff]
  %v76 = vld [vmem:[%s0 + $0xf8] sm:$0xff]
  %vm77 = vcmask 130048
  %v78 = vsel %vm77, %v45, 0.0
  %79 = vadd.xlane.f32.xlu0 %v78
  %v80 = vpop.xlane.xlu0 %79
  %v81 = vsel %vm77, %v46, 0.0
  %82 = vadd.xlane.f32.xlu0 %v81
  %v83 = vpop.xlane.xlu0 %82
  %v84 = vsel %vm77, %v47, 0.0
  %85 = vadd.xlane.f32.xlu0 %v84
  %v86 = vpop.xlane.xlu0 %85
  %v87 = vsel %vm77, %v48, 0.0
  %88 = vadd.xlane.f32.xlu0 %v87
  %v89 = vpop.xlane.xlu0 %88
  %v90 = vsel %vm77, %v49, 0.0
  %91 = vadd.xlane.f32.xlu0 %v90
  %v92 = vpop.xlane.xlu0 %91
  %v93 = vsel %vm77, %v50, 0.0
  %94 = vadd.xlane.f32.xlu0 %v93
  %v95 = vpop.xlane.xlu0 %94
  %v96 = vsel %vm77, %v51, 0.0
  %97 = vadd.xlane.f32.xlu0 %v96
  %v98 = vpop.xlane.xlu0 %97
  %v99 = vsel %vm77, %v52, 0.0
  %100 = vadd.xlane.f32.xlu0 %v99
  %v101 = vpop.xlane.xlu0 %100
  %v102 = vsel %vm77, %v53, 0.0
  %103 = vadd.xlane.f32.xlu0 %v102
  %v104 = vpop.xlane.xlu0 %103
  %v105 = vsel %vm77, %v54, 0.0
  %106 = vadd.xlane.f32.xlu0 %v105
  %v107 = vpop.xlane.xlu0 %106
  %v108 = vsel %vm77, %v55, 0.0
  %109 = vadd.xlane.f32.xlu0 %v108
  %v110 = vpop.xlane.xlu0 %109
  %v111 = vsel %vm77, %v56, 0.0
  %112 = vadd.xlane.f32.xlu0 %v111
  %v113 = vpop.xlane.xlu0 %112
  %v114 = vsel %vm77, %v57, 0.0
  %115 = vadd.xlane.f32.xlu0 %v114
  %v116 = vpop.xlane.xlu0 %115
  %v117 = vsel %vm77, %v58, 0.0
  %118 = vadd.xlane.f32.xlu0 %v117
  %v119 = vpop.xlane.xlu0 %118
  %v120 = vsel %vm77, %v59, 0.0
  %121 = vadd.xlane.f32.xlu0 %v120
  %v122 = vpop.xlane.xlu0 %121
  %v123 = vsel %vm77, %v60, 0.0
  %124 = vadd.xlane.f32.xlu0 %v123
  %v125 = vpop.xlane.xlu0 %124
  %v126 = vsel %vm77, %v61, 0.0
  %127 = vadd.xlane.f32.xlu0 %v126
  %v128 = vpop.xlane.xlu0 %127
  %v129 = vsel %vm77, %v62, 0.0
  %130 = vadd.xlane.f32.xlu0 %v129
  %v131 = vpop.xlane.xlu0 %130
  %v132 = vsel %vm77, %v63, 0.0
  %133 = vadd.xlane.f32.xlu0 %v132
  %v134 = vpop.xlane.xlu0 %133
  %v135 = vsel %vm77, %v64, 0.0
  %136 = vadd.xlane.f32.xlu0 %v135
  %v137 = vpop.xlane.xlu0 %136
  %v138 = vsel %vm77, %v65, 0.0
  %139 = vadd.xlane.f32.xlu0 %v138
  %v140 = vpop.xlane.xlu0 %139
  %v141 = vsel %vm77, %v66, 0.0
  %142 = vadd.xlane.f32.xlu0 %v141
  %v143 = vpop.xlane.xlu0 %142
  %v144 = vsel %vm77, %v67, 0.0
  %145 = vadd.xlane.f32.xlu0 %v144
  %v146 = vpop.xlane.xlu0 %145
  %v147 = vsel %vm77, %v68, 0.0
  %148 = vadd.xlane.f32.xlu0 %v147
  %v149 = vpop.xlane.xlu0 %148
  %v150 = vsel %vm77, %v69, 0.0
  %151 = vadd.xlane.f32.xlu0 %v150
  %v152 = vpop.xlane.xlu0 %151
  %v153 = vsel %vm77, %v70, 0.0
  %154 = vadd.xlane.f32.xlu0 %v153
  %v155 = vpop.xlane.xlu0 %154
  %v156 = vsel %vm77, %v71, 0.0
  %157 = vadd.xlane.f32.xlu0 %v156
  %v158 = vpop.xlane.xlu0 %157
  %v159 = vsel %vm77, %v72, 0.0
  %160 = vadd.xlane.f32.xlu0 %v159
  %v161 = vpop.xlane.xlu0 %160
  %v162 = vsel %vm77, %v73, 0.0
  %163 = vadd.xlane.f32.xlu0 %v162
  %v164 = vpop.xlane.xlu0 %163
  %v165 = vsel %vm77, %v74, 0.0
  %166 = vadd.xlane.f32.xlu0 %v165
  %v167 = vpop.xlane.xlu0 %166
  %v168 = vsel %vm77, %v75, 0.0
  %169 = vadd.xlane.f32.xlu0 %v168
  %v170 = vpop.xlane.xlu0 %169
  %v171 = vsel %vm77, %v76, 0.0
  %172 = vadd.xlane.f32.xlu0 %v171
  %v173 = vpop.xlane.xlu0 %172
  %v174 = vrcp.pop 16.0
  %v175 = vmul.f32 %v80, %v174
  %v176 = vmul.f32 %v83, %v174
  %v177 = vmul.f32 %v86, %v174
  %v178 = vmul.f32 %v89, %v174
  %v179 = vmul.f32 %v92, %v174
  %v180 = vmul.f32 %v95, %v174
  %v181 = vmul.f32 %v98, %v174
  %v182 = vmul.f32 %v101, %v174
  %v183 = vmul.f32 %v104, %v174
  %v184 = vmul.f32 %v107, %v174
  %v185 = vmul.f32 %v110, %v174
  %v186 = vmul.f32 %v113, %v174
  %v187 = vmul.f32 %v116, %v174
  %v188 = vmul.f32 %v119, %v174
  %v189 = vmul.f32 %v122, %v174
  %v190 = vmul.f32 %v125, %v174
  %v191 = vmul.f32 %v128, %v174
  %v192 = vmul.f32 %v131, %v174
  %v193 = vmul.f32 %v134, %v174
  %v194 = vmul.f32 %v137, %v174
  %v195 = vmul.f32 %v140, %v174
  %v196 = vmul.f32 %v143, %v174
  %v197 = vmul.f32 %v146, %v174
  %v198 = vmul.f32 %v149, %v174
  %v199 = vmul.f32 %v152, %v174
  %v200 = vmul.f32 %v155, %v174
  %v201 = vmul.f32 %v158, %v174
  %v202 = vmul.f32 %v161, %v174
  %v203 = vmul.f32 %v164, %v174
  %v204 = vmul.f32 %v167, %v174
  %v205 = vmul.f32 %v170, %v174
  %v206 = vmul.f32 %v173, %v174
  %v207 = vsub.f32 %v45, %v175
  %v208 = vsub.f32 %v46, %v176
  %v209 = vsub.f32 %v47, %v177
  %v210 = vsub.f32 %v48, %v178
  %v211 = vsub.f32 %v49, %v179
  %v212 = vsub.f32 %v50, %v180
  %v213 = vsub.f32 %v51, %v181
  %v214 = vsub.f32 %v52, %v182
  %v215 = vsub.f32 %v53, %v183
  %v216 = vsub.f32 %v54, %v184
  %v217 = vsub.f32 %v55, %v185
  %v218 = vsub.f32 %v56, %v186
  %v219 = vsub.f32 %v57, %v187
  %v220 = vsub.f32 %v58, %v188
  %v221 = vsub.f32 %v59, %v189
  %v222 = vsub.f32 %v60, %v190
  %v223 = vsub.f32 %v61, %v191
  %v224 = vsub.f32 %v62, %v192
  %v225 = vsub.f32 %v63, %v193
  %v226 = vsub.f32 %v64, %v194
  %v227 = vsub.f32 %v65, %v195
  %v228 = vsub.f32 %v66, %v196
  %v229 = vsub.f32 %v67, %v197
  %v230 = vsub.f32 %v68, %v198
  %v231 = vsub.f32 %v69, %v199
  %v232 = vsub.f32 %v70, %v200
  %v233 = vsub.f32 %v71, %v201
  %v234 = vsub.f32 %v72, %v202
  %v235 = vsub.f32 %v73, %v203
  %v236 = vsub.f32 %v74, %v204
  %v237 = vsub.f32 %v75, %v205
  %v238 = vsub.f32 %v76, %v206
  %v239 = vmul.f32 %v207, %v207
  %v240 = vmul.f32 %v208, %v208
  %v241 = vmul.f32 %v209, %v209
  %v242 = vmul.f32 %v210, %v210
  %v243 = vmul.f32 %v211, %v211
  %v244 = vmul.f32 %v212, %v212
  %v245 = vmul.f32 %v213, %v213
  %v246 = vmul.f32 %v214, %v214
  %v247 = vmul.f32 %v215, %v215
  %v248 = vmul.f32 %v216, %v216
  %v249 = vmul.f32 %v217, %v217
  %v250 = vmul.f32 %v218, %v218
  %v251 = vmul.f32 %v219, %v219
  %v252 = vmul.f32 %v220, %v220
  %v253 = vmul.f32 %v221, %v221
  %v254 = vmul.f32 %v222, %v222
  %v255 = vmul.f32 %v223, %v223
  %v256 = vmul.f32 %v224, %v224
  %v257 = vmul.f32 %v225, %v225
  %v258 = vmul.f32 %v226, %v226
  %v259 = vmul.f32 %v227, %v227
  %v260 = vmul.f32 %v228, %v228
  %v261 = vmul.f32 %v229, %v229
  %v262 = vmul.f32 %v230, %v230
  %v263 = vmul.f32 %v231, %v231
  %v264 = vmul.f32 %v232, %v232
  %v265 = vmul.f32 %v233, %v233
  %v266 = vmul.f32 %v234, %v234
  %v267 = vmul.f32 %v235, %v235
  %v268 = vmul.f32 %v236, %v236
  %v269 = vmul.f32 %v237, %v237
  %v270 = vmul.f32 %v238, %v238
  %v271 = vsel %vm77, %v239, 0.0
  %272 = vadd.xlane.f32.xlu0 %v271
  %v273 = vpop.xlane.xlu0 %272
  %v274 = vsel %vm77, %v240, 0.0
  %275 = vadd.xlane.f32.xlu0 %v274
  %v276 = vpop.xlane.xlu0 %275
  %v277 = vsel %vm77, %v241, 0.0
  %278 = vadd.xlane.f32.xlu0 %v277
  %v279 = vpop.xlane.xlu0 %278
  %v280 = vsel %vm77, %v242, 0.0
  %281 = vadd.xlane.f32.xlu0 %v280
  %v282 = vpop.xlane.xlu0 %281
  %v283 = vsel %vm77, %v243, 0.0
  %284 = vadd.xlane.f32.xlu0 %v283
  %v285 = vpop.xlane.xlu0 %284
  %v286 = vsel %vm77, %v244, 0.0
  %287 = vadd.xlane.f32.xlu0 %v286
  %v288 = vpop.xlane.xlu0 %287
  %v289 = vsel %vm77, %v245, 0.0
  %290 = vadd.xlane.f32.xlu0 %v289
  %v291 = vpop.xlane.xlu0 %290
  %v292 = vsel %vm77, %v246, 0.0
  %293 = vadd.xlane.f32.xlu0 %v292
  %v294 = vpop.xlane.xlu0 %293
  %v295 = vsel %vm77, %v247, 0.0
  %296 = vadd.xlane.f32.xlu0 %v295
  %v297 = vpop.xlane.xlu0 %296
  %v298 = vsel %vm77, %v248, 0.0
  %299 = vadd.xlane.f32.xlu0 %v298
  %v300 = vpop.xlane.xlu0 %299
  %v301 = vsel %vm77, %v249, 0.0
  %302 = vadd.xlane.f32.xlu0 %v301
  %v303 = vpop.xlane.xlu0 %302
  %v304 = vsel %vm77, %v250, 0.0
  %305 = vadd.xlane.f32.xlu0 %v304
  %v306 = vpop.xlane.xlu0 %305
  %v307 = vsel %vm77, %v251, 0.0
  %308 = vadd.xlane.f32.xlu0 %v307
  %v309 = vpop.xlane.xlu0 %308
  %v310 = vsel %vm77, %v252, 0.0
  %311 = vadd.xlane.f32.xlu0 %v310
  %v312 = vpop.xlane.xlu0 %311
  %v313 = vsel %vm77, %v253, 0.0
  %314 = vadd.xlane.f32.xlu0 %v313
  %v315 = vpop.xlane.xlu0 %314
  %v316 = vsel %vm77, %v254, 0.0
  %317 = vadd.xlane.f32.xlu0 %v316
  %v318 = vpop.xlane.xlu0 %317
  %v319 = vsel %vm77, %v255, 0.0
  %320 = vadd.xlane.f32.xlu0 %v319
  %v321 = vpop.xlane.xlu0 %320
  %v322 = vsel %vm77, %v256, 0.0
  %323 = vadd.xlane.f32.xlu0 %v322
  %v324 = vpop.xlane.xlu0 %323
  %v325 = vsel %vm77, %v257, 0.0
  %326 = vadd.xlane.f32.xlu0 %v325
  %v327 = vpop.xlane.xlu0 %326
  %v328 = vsel %vm77, %v258, 0.0
  %329 = vadd.xlane.f32.xlu0 %v328
  %v330 = vpop.xlane.xlu0 %329
  %v331 = vsel %vm77, %v259, 0.0
  %332 = vadd.xlane.f32.xlu0 %v331
  %v333 = vpop.xlane.xlu0 %332
  %v334 = vsel %vm77, %v260, 0.0
  %335 = vadd.xlane.f32.xlu0 %v334
  %v336 = vpop.xlane.xlu0 %335
  %v337 = vsel %vm77, %v261, 0.0
  %338 = vadd.xlane.f32.xlu0 %v337
  %v339 = vpop.xlane.xlu0 %338
  %v340 = vsel %vm77, %v262, 0.0
  %341 = vadd.xlane.f32.xlu0 %v340
  %v342 = vpop.xlane.xlu0 %341
  %v343 = vsel %vm77, %v263, 0.0
  %344 = vadd.xlane.f32.xlu0 %v343
  %v345 = vpop.xlane.xlu0 %344
  %v346 = vsel %vm77, %v264, 0.0
  %347 = vadd.xlane.f32.xlu0 %v346
  %v348 = vpop.xlane.xlu0 %347
  %v349 = vsel %vm77, %v265, 0.0
  %350 = vadd.xlane.f32.xlu0 %v349
  %v351 = vpop.xlane.xlu0 %350
  %v352 = vsel %vm77, %v266, 0.0
  %353 = vadd.xlane.f32.xlu0 %v352
  %v354 = vpop.xlane.xlu0 %353
  %v355 = vsel %vm77, %v267, 0.0
  %356 = vadd.xlane.f32.xlu0 %v355
  %v357 = vpop.xlane.xlu0 %356
  %v358 = vsel %vm77, %v268, 0.0
  %359 = vadd.xlane.f32.xlu0 %v358
  %v360 = vpop.xlane.xlu0 %359
  %v361 = vsel %vm77, %v269, 0.0
  %362 = vadd.xlane.f32.xlu0 %v361
  %v363 = vpop.xlane.xlu0 %362
  %v364 = vsel %vm77, %v270, 0.0
  %365 = vadd.xlane.f32.xlu0 %v364
  %v366 = vpop.xlane.xlu0 %365
  %v367 = vmul.f32 %v273, %v174
  %v368 = vmul.f32 %v276, %v174
  %v369 = vmul.f32 %v279, %v174
  %v370 = vmul.f32 %v282, %v174
  %v371 = vmul.f32 %v285, %v174
  %v372 = vmul.f32 %v288, %v174
  %v373 = vmul.f32 %v291, %v174
  %v374 = vmul.f32 %v294, %v174
  %v375 = vmul.f32 %v297, %v174
  %v376 = vmul.f32 %v300, %v174
  %v377 = vmul.f32 %v303, %v174
  %v378 = vmul.f32 %v306, %v174
  %v379 = vmul.f32 %v309, %v174
  %v380 = vmul.f32 %v312, %v174
  %v381 = vmul.f32 %v315, %v174
  %v382 = vmul.f32 %v318, %v174
  %v383 = vmul.f32 %v321, %v174
  %v384 = vmul.f32 %v324, %v174
  %v385 = vmul.f32 %v327, %v174
  %v386 = vmul.f32 %v330, %v174
  %v387 = vmul.f32 %v333, %v174
  %v388 = vmul.f32 %v336, %v174
  %v389 = vmul.f32 %v339, %v174
  %v390 = vmul.f32 %v342, %v174
  %v391 = vmul.f32 %v345, %v174
  %v392 = vmul.f32 %v348, %v174
  %v393 = vmul.f32 %v351, %v174
  %v394 = vmul.f32 %v354, %v174
  %v395 = vmul.f32 %v357, %v174
  %v396 = vmul.f32 %v360, %v174
  %v397 = vmul.f32 %v363, %v174
  %v398 = vmul.f32 %v366, %v174
  %v399 = vadd.f32 %v367, 1e-05
  %v400 = vadd.f32 %v368, 1e-05
  %v401 = vadd.f32 %v369, 1e-05
  %v402 = vadd.f32 %v370, 1e-05
  %v403 = vadd.f32 %v371, 1e-05
  %v404 = vadd.f32 %v372, 1e-05
  %v405 = vadd.f32 %v373, 1e-05
  %v406 = vadd.f32 %v374, 1e-05
  %v407 = vadd.f32 %v375, 1e-05
  %v408 = vadd.f32 %v376, 1e-05
  %v409 = vadd.f32 %v377, 1e-05
  %v410 = vadd.f32 %v378, 1e-05
  %v411 = vadd.f32 %v379, 1e-05
  %v412 = vadd.f32 %v380, 1e-05
  %v413 = vadd.f32 %v381, 1e-05
  %v414 = vadd.f32 %v382, 1e-05
  %v415 = vadd.f32 %v383, 1e-05
  %v416 = vadd.f32 %v384, 1e-05
  %v417 = vadd.f32 %v385, 1e-05
  %v418 = vadd.f32 %v386, 1e-05
  %v419 = vadd.f32 %v387, 1e-05
  %v420 = vadd.f32 %v388, 1e-05
  %v421 = vadd.f32 %v389, 1e-05
  %v422 = vadd.f32 %v390, 1e-05
  %v423 = vadd.f32 %v391, 1e-05
  %v424 = vadd.f32 %v392, 1e-05
  %v425 = vadd.f32 %v393, 1e-05
  %v426 = vadd.f32 %v394, 1e-05
  %v427 = vadd.f32 %v395, 1e-05
  %v428 = vadd.f32 %v396, 1e-05
  %v429 = vadd.f32 %v397, 1e-05
  %v430 = vadd.f32 %v398, 1e-05
  %v431 = vrsqrt.pop %v399
  %v432 = vrsqrt.pop %v400
  %v433 = vrsqrt.pop %v401
  %v434 = vrsqrt.pop %v402
  %v435 = vrsqrt.pop %v403
  %v436 = vrsqrt.pop %v404
  %v437 = vrsqrt.pop %v405
  %v438 = vrsqrt.pop %v406
  %v439 = vrsqrt.pop %v407
  %v440 = vrsqrt.pop %v408
  %v441 = vrsqrt.pop %v409
  %v442 = vrsqrt.pop %v410
  %v443 = vrsqrt.pop %v411
  %v444 = vrsqrt.pop %v412
  %v445 = vrsqrt.pop %v413
  %v446 = vrsqrt.pop %v414
  %v447 = vrsqrt.pop %v415
  %v448 = vrsqrt.pop %v416
  %v449 = vrsqrt.pop %v417
  %v450 = vrsqrt.pop %v418
  %v451 = vrsqrt.pop %v419
  %v452 = vrsqrt.pop %v420
  %v453 = vrsqrt.pop %v421
  %v454 = vrsqrt.pop %v422
  %v455 = vrsqrt.pop %v423
  %v456 = vrsqrt.pop %v424
  %v457 = vrsqrt.pop %v425
  %v458 = vrsqrt.pop %v426
  %v459 = vrsqrt.pop %v427
  %v460 = vrsqrt.pop %v428
  %v461 = vrsqrt.pop %v429
  %v462 = vrsqrt.pop %v430
  %v463 = vmul.f32 %v207, %v431
  %v464 = vmul.f32 %v208, %v432
  %v465 = vmul.f32 %v209, %v433
  %v466 = vmul.f32 %v210, %v434
  %v467 = vmul.f32 %v211, %v435
  %v468 = vmul.f32 %v212, %v436
  %v469 = vmul.f32 %v213, %v437
  %v470 = vmul.f32 %v214, %v438
  %v471 = vmul.f32 %v215, %v439
  %v472 = vmul.f32 %v216, %v440
  %v473 = vmul.f32 %v217, %v441
  %v474 = vmul.f32 %v218, %v442
  %v475 = vmul.f32 %v219, %v443
  %v476 = vmul.f32 %v220, %v444
  %v477 = vmul.f32 %v221, %v445
  %v478 = vmul.f32 %v222, %v446
  %v479 = vmul.f32 %v223, %v447
  %v480 = vmul.f32 %v224, %v448
  %v481 = vmul.f32 %v225, %v449
  %v482 = vmul.f32 %v226, %v450
  %v483 = vmul.f32 %v227, %v451
  %v484 = vmul.f32 %v228, %v452
  %v485 = vmul.f32 %v229, %v453
  %v486 = vmul.f32 %v230, %v454
  %v487 = vmul.f32 %v231, %v455
  %v488 = vmul.f32 %v232, %v456
  %v489 = vmul.f32 %v233, %v457
  %v490 = vmul.f32 %v234, %v458
  %v491 = vmul.f32 %v235, %v459
  %v492 = vmul.f32 %v236, %v460
  %v493 = vmul.f32 %v237, %v461
  %v494 = vmul.f32 %v238, %v462
  %v495 = vlaneseq
  %v496 = vshrl.u32 %v495, 7
  %v497 = vsub.s32 0, %v496
  %v498 = vrot.slane %v17, %v497
  %v499 = vmul.f32 %v463, %v498
  %v500 = vmul.f32 %v464, %v498
  %v501 = vmul.f32 %v465, %v498
  %v502 = vmul.f32 %v466, %v498
  %v503 = vmul.f32 %v467, %v498
  %v504 = vmul.f32 %v468, %v498
  %v505 = vmul.f32 %v469, %v498
  %v506 = vmul.f32 %v470, %v498
  %v507 = vmul.f32 %v471, %v498
  %v508 = vmul.f32 %v472, %v498
  %v509 = vmul.f32 %v473, %v498
  %v510 = vmul.f32 %v474, %v498
  %v511 = vmul.f32 %v475, %v498
  %v512 = vmul.f32 %v476, %v498
  %v513 = vmul.f32 %v477, %v498
  %v514 = vmul.f32 %v478, %v498
  %v515 = vmul.f32 %v479, %v498
  %v516 = vmul.f32 %v480, %v498
  %v517 = vmul.f32 %v481, %v498
  %v518 = vmul.f32 %v482, %v498
  %v519 = vmul.f32 %v483, %v498
  %v520 = vmul.f32 %v484, %v498
  %v521 = vmul.f32 %v485, %v498
  %v522 = vmul.f32 %v486, %v498
  %v523 = vmul.f32 %v487, %v498
  %v524 = vmul.f32 %v488, %v498
  %v525 = vmul.f32 %v489, %v498
  %v526 = vmul.f32 %v490, %v498
  %v527 = vmul.f32 %v491, %v498
  %v528 = vmul.f32 %v492, %v498
  %v529 = vmul.f32 %v493, %v498
  %v530 = vmul.f32 %v494, %v498
  %v531 = vlaneseq
  %v532 = vshrl.u32 %v531, 7
  %v533 = vsub.s32 0, %v532
  %v534 = vrot.slane %v18, %v533
  %v535 = vadd.f32 %v499, %v534
  %v536 = vadd.f32 %v500, %v534
  %v537 = vadd.f32 %v501, %v534
  %v538 = vadd.f32 %v502, %v534
  %v539 = vadd.f32 %v503, %v534
  %v540 = vadd.f32 %v504, %v534
  %v541 = vadd.f32 %v505, %v534
  %v542 = vadd.f32 %v506, %v534
  %v543 = vadd.f32 %v507, %v534
  %v544 = vadd.f32 %v508, %v534
  %v545 = vadd.f32 %v509, %v534
  %v546 = vadd.f32 %v510, %v534
  %v547 = vadd.f32 %v511, %v534
  %v548 = vadd.f32 %v512, %v534
  %v549 = vadd.f32 %v513, %v534
  %v550 = vadd.f32 %v514, %v534
  %v551 = vadd.f32 %v515, %v534
  %v552 = vadd.f32 %v516, %v534
  %v553 = vadd.f32 %v517, %v534
  %v554 = vadd.f32 %v518, %v534
  %v555 = vadd.f32 %v519, %v534
  %v556 = vadd.f32 %v520, %v534
  %v557 = vadd.f32 %v521, %v534
  %v558 = vadd.f32 %v522, %v534
  %v559 = vadd.f32 %v523, %v534
  %v560 = vadd.f32 %v524, %v534
  %v561 = vadd.f32 %v525, %v534
  %v562 = vadd.f32 %v526, %v534
  %v563 = vadd.f32 %v527, %v534
  %v564 = vadd.f32 %v528, %v534
  %v565 = vadd.f32 %v529, %v534
  %v566 = vadd.f32 %v530, %v534
  %v567 = vlaneseq
  %v568 = vshrl.u32 %v567, 7
  %v569 = vsub.s32 0, %v568
  %v570 = vrot.slane %v19, %v569
  %v572 = vsel %vm77, %v535, 0
  %v575 = vsel %vm77, %v536, 0
  %v578 = vsel %vm77, %v537, 0
  %v581 = vsel %vm77, %v538, 0
  %v584 = vsel %vm77, %v539, 0
  %v587 = vsel %vm77, %v540, 0
  %v590 = vsel %vm77, %v541, 0
  %v593 = vsel %vm77, %v542, 0
  %v596 = vsel %vm77, %v543, 0
  %v599 = vsel %vm77, %v544, 0
  %v602 = vsel %vm77, %v545, 0
  %v605 = vsel %vm77, %v546, 0
  %v608 = vsel %vm77, %v547, 0
  %v611 = vsel %vm77, %v548, 0
  %v614 = vsel %vm77, %v549, 0
  %v617 = vsel %vm77, %v550, 0
  %v620 = vsel %vm77, %v551, 0
  %v623 = vsel %vm77, %v552, 0
  %v626 = vsel %vm77, %v553, 0
  %v629 = vsel %vm77, %v554, 0
  %v632 = vsel %vm77, %v555, 0
  %v635 = vsel %vm77, %v556, 0
  %v638 = vsel %vm77, %v557, 0
  %v641 = vsel %vm77, %v558, 0
  %v644 = vsel %vm77, %v559, 0
  %v647 = vsel %vm77, %v560, 0
  %v650 = vsel %vm77, %v561, 0
  %v653 = vsel %vm77, %v562, 0
  %v656 = vsel %vm77, %v563, 0
  %v659 = vsel %vm77, %v564, 0
  %v662 = vsel %vm77, %v565, 0
  %v665 = vsel %vm77, %v566, 0
  %667 = vmatprep.subr.mxu0 0.0
  %668 = vmatpush1.msra.mxu0 %v29
  %669 = vmatprep.subr.mxu0 0.0
  %670 = vmatpush1.msra.mxu0 %v30
  %671 = vmatprep.subr.mxu0 0.0
  %672 = vmatpush1.msra.mxu0 0.0
  %673 = vmatprep.subr.mxu0 0.0
  %674 = vmatpush1.msra.mxu0 0.0
  %675 = vmatprep.subr.mxu0 0.0
  %676 = vmatpush1.msra.mxu0 0.0
  %677 = vmatprep.subr.mxu0 0.0
  %678 = vmatpush1.msra.mxu0 0.0
  %679 = vmatprep.subr.mxu0 0.0
  %680 = vmatpush1.msra.mxu0 0.0
  %681 = vmatprep.subr.mxu0 0.0
  %682 = vmatpush1.msra.mxu0 0.0
  %683 = vmatprep.subr.mxu0 0.0
  %684 = vmatpush1.msra.mxu0 0.0
  %685 = vmatprep.subr.mxu0 0.0
  %686 = vmatpush1.msra.mxu0 0.0
  %687 = vmatprep.subr.mxu0 0.0
  %688 = vmatpush1.msra.mxu0 0.0
  %689 = vmatprep.subr.mxu0 0.0
  %690 = vmatpush1.msra.mxu0 0.0
  %691 = vmatprep.subr.mxu0 0.0
  %692 = vmatpush1.msra.mxu0 0.0
  %693 = vmatprep.subr.mxu0 0.0
  %694 = vmatpush1.msra.mxu0 0.0
  %695 = vmatprep.subr.mxu0 0.0
  %696 = vmatpush1.msra.mxu0 0.0
  %697 = vmatprep.subr.mxu0 0.0
  %698 = vmatpush1.msra.mxu0 0.0
  %699 = vmatprep.subr.mxu0 0.0
  %700 = vmatpush1.msra.mxu0 0.0
  %701 = vmatprep.subr.mxu0 0.0
  %702 = vmatpush1.msra.mxu0 0.0
  %703 = vmatprep.subr.mxu0 0.0
  %704 = vmatpush1.msra.mxu0 0.0
  %705 = vmatprep.subr.mxu0 0.0
  %706 = vmatpush1.msra.mxu0 0.0
  %707 = vmatprep.subr.mxu0 0.0
  %708 = vmatpush1.msra.mxu0 0.0
  %709 = vmatprep.subr.mxu0 0.0
  %710 = vmatpush1.msra.mxu0 0.0
  %711 = vmatprep.subr.mxu0 0.0
  %712 = vmatpush1.msra.mxu0 0.0
  %713 = vmatprep.subr.mxu0 0.0
  %714 = vmatpush1.msra.mxu0 0.0
  %715 = vmatprep.subr.mxu0 0.0
  %716 = vmatpush1.msra.mxu0 0.0
  %717 = vmatprep.subr.mxu0 0.0
  %718 = vmatpush1.msra.mxu0 0.0
  %719 = vmatprep.subr.mxu0 0.0
  %720 = vmatpush1.msra.mxu0 0.0
  %721 = vmatprep.subr.mxu0 0.0
  %722 = vmatpush1.msra.mxu0 0.0
  %723 = vmatprep.subr.mxu0 0.0
  %724 = vmatpush1.msra.mxu0 0.0
  %725 = vmatprep.subr.mxu0 0.0
  %726 = vmatpush1.msra.mxu0 0.0
  %727 = vmatprep.subr.mxu0 0.0
  %728 = vmatpush1.msra.mxu0 0.0
  %729 = vmatprep.subr.mxu0 0.0
  %730 = vmatpush1.msra.mxu0 0.0
  %731 = vmatprep.mubr.f32.mxu0 0.0
  %732 = vmatmul.mubr.f32.gmra.mrb[0].mxu0 %v572
  %v733 = vpop.f32.mrb[0].mxu0
  %v734 = vadd.f32 %v570, %v733
  %v735 = vpop.f32.mrb[0].mxu0
  %736 = vmatprep.mubr.f32.mxu0 0.0
  %737 = vmatmul.mubr.f32.gmra.mrb[0].mxu0 %v575
  %v738 = vpop.f32.mrb[0].mxu0
  %v739 = vadd.f32 %v570, %v738
  %v740 = vpop.f32.mrb[0].mxu0
  %741 = vmatprep.mubr.f32.mxu0 0.0
  %742 = vmatmul.mubr.f32.gmra.mrb[0].mxu0 %v578
  %v743 = vpop.f32.mrb[0].mxu0
  %v744 = vadd.f32 %v570, %v743
  %v745 = vpop.f32.mrb[0].mxu0
  %746 = vmatprep.mubr.f32.mxu0 0.0
  %747 = vmatmul.mubr.f32.gmra.mrb[0].mxu0 %v581
  %v748 = vpop.f32.mrb[0].mxu0
  %v749 = vadd.f32 %v570, %v748
  %v750 = vpop.f32.mrb[0].mxu0
  %751 = vmatprep.mubr.f32.mxu0 0.0
  %752 = vmatmul.mubr.f32.gmra.mrb[0].mxu0 %v584
  %v753 = vpop.f32.mrb[0].mxu0
  %v754 = vadd.f32 %v570, %v753
  %v755 = vpop.f32.mrb[0].mxu0
  %756 = vmatprep.mubr.f32.mxu0 0.0
  %757 = vmatmul.mubr.f32.gmra.mrb[0].mxu0 %v587
  %v758 = vpop.f32.mrb[0].mxu0
  %v759 = vadd.f32 %v570, %v758
  %v760 = vpop.f32.mrb[0].mxu0
  %761 = vmatprep.mubr.f32.mxu0 0.0
  %762 = vmatmul.mubr.f32.gmra.mrb[0].mxu0 %v590
  %v763 = vpop.f32.mrb[0].mxu0
  %v764 = vadd.f32 %v570, %v763
  %v765 = vpop.f32.mrb[0].mxu0
  %766 = vmatprep.mubr.f32.mxu0 0.0
  %767 = vmatmul.mubr.f32.gmra.mrb[0].mxu0 %v593
  %v768 = vpop.f32.mrb[0].mxu0
  %v769 = vadd.f32 %v570, %v768
  %v770 = vpop.f32.mrb[0].mxu0
  %771 = vmatprep.mubr.f32.mxu0 0.0
  %772 = vmatmul.mubr.f32.gmra.mrb[0].mxu0 %v596
  %v773 = vpop.f32.mrb[0].mxu0
  %v774 = vadd.f32 %v570, %v773
  %v775 = vpop.f32.mrb[0].mxu0
  %776 = vmatprep.mubr.f32.mxu0 0.0
  %777 = vmatmul.mubr.f32.gmra.mrb[0].mxu0 %v599
  %v778 = vpop.f32.mrb[0].mxu0
  %v779 = vadd.f32 %v570, %v778
  %v780 = vpop.f32.mrb[0].mxu0
  %781 = vmatprep.mubr.f32.mxu0 0.0
  %782 = vmatmul.mubr.f32.gmra.mrb[0].mxu0 %v602
  %v783 = vpop.f32.mrb[0].mxu0
  %v784 = vadd.f32 %v570, %v783
  %v785 = vpop.f32.mrb[0].mxu0
  %786 = vmatprep.mubr.f32.mxu0 0.0
  %787 = vmatmul.mubr.f32.gmra.mrb[0].mxu0 %v605
  %v788 = vpop.f32.mrb[0].mxu0
  %v789 = vadd.f32 %v570, %v788
  %v790 = vpop.f32.mrb[0].mxu0
  %791 = vmatprep.mubr.f32.mxu0 0.0
  %792 = vmatmul.mubr.f32.gmra.mrb[0].mxu0 %v608
  %v793 = vpop.f32.mrb[0].mxu0
  %v794 = vadd.f32 %v570, %v793
  %v795 = vpop.f32.mrb[0].mxu0
  %796 = vmatprep.mubr.f32.mxu0 0.0
  %797 = vmatmul.mubr.f32.gmra.mrb[0].mxu0 %v611
  %v798 = vpop.f32.mrb[0].mxu0
  %v799 = vadd.f32 %v570, %v798
  %v800 = vpop.f32.mrb[0].mxu0
  %801 = vmatprep.mubr.f32.mxu0 0.0
  %802 = vmatmul.mubr.f32.gmra.mrb[0].mxu0 %v614
  %v803 = vpop.f32.mrb[0].mxu0
  %v804 = vadd.f32 %v570, %v803
  %v805 = vpop.f32.mrb[0].mxu0
  %806 = vmatprep.mubr.f32.mxu0 0.0
  %807 = vmatmul.mubr.f32.gmra.mrb[0].mxu0 %v617
  %v808 = vpop.f32.mrb[0].mxu0
  %v809 = vadd.f32 %v570, %v808
  %v810 = vpop.f32.mrb[0].mxu0
  %811 = vmatprep.mubr.f32.mxu0 0.0
  %812 = vmatmul.mubr.f32.gmra.mrb[0].mxu0 %v620
  %v813 = vpop.f32.mrb[0].mxu0
  %v814 = vadd.f32 %v570, %v813
  %v815 = vpop.f32.mrb[0].mxu0
  %816 = vmatprep.mubr.f32.mxu0 0.0
  %817 = vmatmul.mubr.f32.gmra.mrb[0].mxu0 %v623
  %v818 = vpop.f32.mrb[0].mxu0
  %v819 = vadd.f32 %v570, %v818
  %v820 = vpop.f32.mrb[0].mxu0
  %821 = vmatprep.mubr.f32.mxu0 0.0
  %822 = vmatmul.mubr.f32.gmra.mrb[0].mxu0 %v626
  %v823 = vpop.f32.mrb[0].mxu0
  %v824 = vadd.f32 %v570, %v823
  %v825 = vpop.f32.mrb[0].mxu0
  %826 = vmatprep.mubr.f32.mxu0 0.0
  %827 = vmatmul.mubr.f32.gmra.mrb[0].mxu0 %v629
  %v828 = vpop.f32.mrb[0].mxu0
  %v829 = vadd.f32 %v570, %v828
  %v830 = vpop.f32.mrb[0].mxu0
  %831 = vmatprep.mubr.f32.mxu0 0.0
  %832 = vmatmul.mubr.f32.gmra.mrb[0].mxu0 %v632
  %v833 = vpop.f32.mrb[0].mxu0
  %v834 = vadd.f32 %v570, %v833
  %v835 = vpop.f32.mrb[0].mxu0
  %836 = vmatprep.mubr.f32.mxu0 0.0
  %837 = vmatmul.mubr.f32.gmra.mrb[0].mxu0 %v635
  %v838 = vpop.f32.mrb[0].mxu0
  %v839 = vadd.f32 %v570, %v838
  %v840 = vpop.f32.mrb[0].mxu0
  %841 = vmatprep.mubr.f32.mxu0 0.0
  %842 = vmatmul.mubr.f32.gmra.mrb[0].mxu0 %v638
  %v843 = vpop.f32.mrb[0].mxu0
  %v844 = vadd.f32 %v570, %v843
  %v845 = vpop.f32.mrb[0].mxu0
  %846 = vmatprep.mubr.f32.mxu0 0.0
  %847 = vmatmul.mubr.f32.gmra.mrb[0].mxu0 %v641
  %v848 = vpop.f32.mrb[0].mxu0
  %v849 = vadd.f32 %v570, %v848
  %v850 = vpop.f32.mrb[0].mxu0
  %851 = vmatprep.mubr.f32.mxu0 0.0
  %852 = vmatmul.mubr.f32.gmra.mrb[0].mxu0 %v644
  %v853 = vpop.f32.mrb[0].mxu0
  %v854 = vadd.f32 %v570, %v853
  %v855 = vpop.f32.mrb[0].mxu0
  %856 = vmatprep.mubr.f32.mxu0 0.0
  %857 = vmatmul.mubr.f32.gmra.mrb[0].mxu0 %v647
  %v858 = vpop.f32.mrb[0].mxu0
  %v859 = vadd.f32 %v570, %v858
  %v860 = vpop.f32.mrb[0].mxu0
  %861 = vmatprep.mubr.f32.mxu0 0.0
  %862 = vmatmul.mubr.f32.gmra.mrb[0].mxu0 %v650
  %v863 = vpop.f32.mrb[0].mxu0
  %v864 = vadd.f32 %v570, %v863
  %v865 = vpop.f32.mrb[0].mxu0
  %866 = vmatprep.mubr.f32.mxu0 0.0
  %867 = vmatmul.mubr.f32.gmra.mrb[0].mxu0 %v653
  %v868 = vpop.f32.mrb[0].mxu0
  %v869 = vadd.f32 %v570, %v868
  %v870 = vpop.f32.mrb[0].mxu0
  %871 = vmatprep.mubr.f32.mxu0 0.0
  %872 = vmatmul.mubr.f32.gmra.mrb[0].mxu0 %v656
  %v873 = vpop.f32.mrb[0].mxu0
  %v874 = vadd.f32 %v570, %v873
  %v875 = vpop.f32.mrb[0].mxu0
  %876 = vmatprep.mubr.f32.mxu0 0.0
  %877 = vmatmul.mubr.f32.gmra.mrb[0].mxu0 %v659
  %v878 = vpop.f32.mrb[0].mxu0
  %v879 = vadd.f32 %v570, %v878
  %v880 = vpop.f32.mrb[0].mxu0
  %881 = vmatprep.mubr.f32.mxu0 0.0
  %882 = vmatmul.mubr.f32.gmra.mrb[0].mxu0 %v662
  %v883 = vpop.f32.mrb[0].mxu0
  %v884 = vadd.f32 %v570, %v883
  %v885 = vpop.f32.mrb[0].mxu0
  %886 = vmatprep.mubr.f32.mxu0 0.0
  %887 = vmatmul.mubr.f32.gmra.mrb[0].mxu0 %v665
  %v888 = vpop.f32.mrb[0].mxu0
  %v889 = vadd.f32 %v570, %v888
  %v890 = vpop.f32.mrb[0].mxu0
  %891 = vdwg.mxu0
  %924 = vrot.lane.b32.xlu0 %v734, 16
  %v925 = vpop.permute.xlu0 %924
  %926 = vrot.lane.b32.xlu0 %v739, 16
  %v927 = vpop.permute.xlu0 %926
  %928 = vrot.lane.b32.xlu0 %v744, 16
  %v929 = vpop.permute.xlu0 %928
  %930 = vrot.lane.b32.xlu0 %v749, 16
  %v931 = vpop.permute.xlu0 %930
  %932 = vrot.lane.b32.xlu0 %v754, 16
  %v933 = vpop.permute.xlu0 %932
  %934 = vrot.lane.b32.xlu0 %v759, 16
  %v935 = vpop.permute.xlu0 %934
  %936 = vrot.lane.b32.xlu0 %v764, 16
  %v937 = vpop.permute.xlu0 %936
  %938 = vrot.lane.b32.xlu0 %v769, 16
  %v939 = vpop.permute.xlu0 %938
  %940 = vrot.lane.b32.xlu0 %v774, 16
  %v941 = vpop.permute.xlu0 %940
  %942 = vrot.lane.b32.xlu0 %v779, 16
  %v943 = vpop.permute.xlu0 %942
  %944 = vrot.lane.b32.xlu0 %v784, 16
  %v945 = vpop.permute.xlu0 %944
  %946 = vrot.lane.b32.xlu0 %v789, 16
  %v947 = vpop.permute.xlu0 %946
  %948 = vrot.lane.b32.xlu0 %v794, 16
  %v949 = vpop.permute.xlu0 %948
  %950 = vrot.lane.b32.xlu0 %v799, 16
  %v951 = vpop.permute.xlu0 %950
  %952 = vrot.lane.b32.xlu0 %v804, 16
  %v953 = vpop.permute.xlu0 %952
  %954 = vrot.lane.b32.xlu0 %v809, 16
  %v955 = vpop.permute.xlu0 %954
  %956 = vrot.lane.b32.xlu0 %v814, 16
  %v957 = vpop.permute.xlu0 %956
  %958 = vrot.lane.b32.xlu0 %v819, 16
  %v959 = vpop.permute.xlu0 %958
  %960 = vrot.lane.b32.xlu0 %v824, 16
  %v961 = vpop.permute.xlu0 %960
  %962 = vrot.lane.b32.xlu0 %v829, 16
  %v963 = vpop.permute.xlu0 %962
  %964 = vrot.lane.b32.xlu0 %v834, 16
  %v965 = vpop.permute.xlu0 %964
  %966 = vrot.lane.b32.xlu0 %v839, 16
  %v967 = vpop.permute.xlu0 %966
  %968 = vrot.lane.b32.xlu0 %v844, 16
  %v969 = vpop.permute.xlu0 %968
  %970 = vrot.lane.b32.xlu0 %v849, 16
  %v971 = vpop.permute.xlu0 %970
  %972 = vrot.lane.b32.xlu0 %v854, 16
  %v973 = vpop.permute.xlu0 %972
  %974 = vrot.lane.b32.xlu0 %v859, 16
  %v975 = vpop.permute.xlu0 %974
  %976 = vrot.lane.b32.xlu0 %v864, 16
  %v977 = vpop.permute.xlu0 %976
  %978 = vrot.lane.b32.xlu0 %v869, 16
  %v979 = vpop.permute.xlu0 %978
  %980 = vrot.lane.b32.xlu0 %v874, 16
  %v981 = vpop.permute.xlu0 %980
  %982 = vrot.lane.b32.xlu0 %v879, 16
  %v983 = vpop.permute.xlu0 %982
  %984 = vrot.lane.b32.xlu0 %v884, 16
  %v985 = vpop.permute.xlu0 %984
  %986 = vrot.lane.b32.xlu0 %v889, 16
  %v987 = vpop.permute.xlu0 %986
  %1020 = vrot.lane.b32.xlu0 %v734, 32
  %v1021 = vpop.permute.xlu0 %1020
  %1022 = vrot.lane.b32.xlu0 %v739, 32
  %v1023 = vpop.permute.xlu0 %1022
  %1024 = vrot.lane.b32.xlu0 %v744, 32
  %v1025 = vpop.permute.xlu0 %1024
  %1026 = vrot.lane.b32.xlu0 %v749, 32
  %v1027 = vpop.permute.xlu0 %1026
  %1028 = vrot.lane.b32.xlu0 %v754, 32
  %v1029 = vpop.permute.xlu0 %1028
  %1030 = vrot.lane.b32.xlu0 %v759, 32
  %v1031 = vpop.permute.xlu0 %1030
  %1032 = vrot.lane.b32.xlu0 %v764, 32
  %v1033 = vpop.permute.xlu0 %1032
  %1034 = vrot.lane.b32.xlu0 %v769, 32
  %v1035 = vpop.permute.xlu0 %1034
  %1036 = vrot.lane.b32.xlu0 %v774, 32
  %v1037 = vpop.permute.xlu0 %1036
  %1038 = vrot.lane.b32.xlu0 %v779, 32
  %v1039 = vpop.permute.xlu0 %1038
  %1040 = vrot.lane.b32.xlu0 %v784, 32
  %v1041 = vpop.permute.xlu0 %1040
  %1042 = vrot.lane.b32.xlu0 %v789, 32
  %v1043 = vpop.permute.xlu0 %1042
  %1044 = vrot.lane.b32.xlu0 %v794, 32
  %v1045 = vpop.permute.xlu0 %1044
  %1046 = vrot.lane.b32.xlu0 %v799, 32
  %v1047 = vpop.permute.xlu0 %1046
  %1048 = vrot.lane.b32.xlu0 %v804, 32
  %v1049 = vpop.permute.xlu0 %1048
  %1050 = vrot.lane.b32.xlu0 %v809, 32
  %v1051 = vpop.permute.xlu0 %1050
  %1052 = vrot.lane.b32.xlu0 %v814, 32
  %v1053 = vpop.permute.xlu0 %1052
  %1054 = vrot.lane.b32.xlu0 %v819, 32
  %v1055 = vpop.permute.xlu0 %1054
  %1056 = vrot.lane.b32.xlu0 %v824, 32
  %v1057 = vpop.permute.xlu0 %1056
  %1058 = vrot.lane.b32.xlu0 %v829, 32
  %v1059 = vpop.permute.xlu0 %1058
  %1060 = vrot.lane.b32.xlu0 %v834, 32
  %v1061 = vpop.permute.xlu0 %1060
  %1062 = vrot.lane.b32.xlu0 %v839, 32
  %v1063 = vpop.permute.xlu0 %1062
  %1064 = vrot.lane.b32.xlu0 %v844, 32
  %v1065 = vpop.permute.xlu0 %1064
  %1066 = vrot.lane.b32.xlu0 %v849, 32
  %v1067 = vpop.permute.xlu0 %1066
  %1068 = vrot.lane.b32.xlu0 %v854, 32
  %v1069 = vpop.permute.xlu0 %1068
  %1070 = vrot.lane.b32.xlu0 %v859, 32
  %v1071 = vpop.permute.xlu0 %1070
  %1072 = vrot.lane.b32.xlu0 %v864, 32
  %v1073 = vpop.permute.xlu0 %1072
  %1074 = vrot.lane.b32.xlu0 %v869, 32
  %v1075 = vpop.permute.xlu0 %1074
  %1076 = vrot.lane.b32.xlu0 %v874, 32
  %v1077 = vpop.permute.xlu0 %1076
  %1078 = vrot.lane.b32.xlu0 %v879, 32
  %v1079 = vpop.permute.xlu0 %1078
  %1080 = vrot.lane.b32.xlu0 %v884, 32
  %v1081 = vpop.permute.xlu0 %1080
  %1082 = vrot.lane.b32.xlu0 %v889, 32
  %v1083 = vpop.permute.xlu0 %1082
  %1116 = vrot.lane.b32.xlu0 %v734, 48
  %v1117 = vpop.permute.xlu0 %1116
  %1118 = vrot.lane.b32.xlu0 %v739, 48
  %v1119 = vpop.permute.xlu0 %1118
  %1120 = vrot.lane.b32.xlu0 %v744, 48
  %v1121 = vpop.permute.xlu0 %1120
  %1122 = vrot.lane.b32.xlu0 %v749, 48
  %v1123 = vpop.permute.xlu0 %1122
  %1124 = vrot.lane.b32.xlu0 %v754, 48
  %v1125 = vpop.permute.xlu0 %1124
  %1126 = vrot.lane.b32.xlu0 %v759, 48
  %v1127 = vpop.permute.xlu0 %1126
  %1128 = vrot.lane.b32.xlu0 %v764, 48
  %v1129 = vpop.permute.xlu0 %1128
  %1130 = vrot.lane.b32.xlu0 %v769, 48
  %v1131 = vpop.permute.xlu0 %1130
  %1132 = vrot.lane.b32.xlu0 %v774, 48
  %v1133 = vpop.permute.xlu0 %1132
  %1134 = vrot.lane.b32.xlu0 %v779, 48
  %v1135 = vpop.permute.xlu0 %1134
  %1136 = vrot.lane.b32.xlu0 %v784, 48
  %v1137 = vpop.permute.xlu0 %1136
  %1138 = vrot.lane.b32.xlu0 %v789, 48
  %v1139 = vpop.permute.xlu0 %1138
  %1140 = vrot.lane.b32.xlu0 %v794, 48
  %v1141 = vpop.permute.xlu0 %1140
  %1142 = vrot.lane.b32.xlu0 %v799, 48
  %v1143 = vpop.permute.xlu0 %1142
  %1144 = vrot.lane.b32.xlu0 %v804, 48
  %v1145 = vpop.permute.xlu0 %1144
  %1146 = vrot.lane.b32.xlu0 %v809, 48
  %v1147 = vpop.permute.xlu0 %1146
  %1148 = vrot.lane.b32.xlu0 %v814, 48
  %v1149 = vpop.permute.xlu0 %1148
  %1150 = vrot.lane.b32.xlu0 %v819, 48
  %v1151 = vpop.permute.xlu0 %1150
  %1152 = vrot.lane.b32.xlu0 %v824, 48
  %v1153 = vpop.permute.xlu0 %1152
  %1154 = vrot.lane.b32.xlu0 %v829, 48
  %v1155 = vpop.permute.xlu0 %1154
  %1156 = vrot.lane.b32.xlu0 %v834, 48
  %v1157 = vpop.permute.xlu0 %1156
  %1158 = vrot.lane.b32.xlu0 %v839, 48
  %v1159 = vpop.permute.xlu0 %1158
  %1160 = vrot.lane.b32.xlu0 %v844, 48
  %v1161 = vpop.permute.xlu0 %1160
  %1162 = vrot.lane.b32.xlu0 %v849, 48
  %v1163 = vpop.permute.xlu0 %1162
  %1164 = vrot.lane.b32.xlu0 %v854, 48
  %v1165 = vpop.permute.xlu0 %1164
  %1166 = vrot.lane.b32.xlu0 %v859, 48
  %v1167 = vpop.permute.xlu0 %1166
  %1168 = vrot.lane.b32.xlu0 %v864, 48
  %v1169 = vpop.permute.xlu0 %1168
  %1170 = vrot.lane.b32.xlu0 %v869, 48
  %v1171 = vpop.permute.xlu0 %1170
  %1172 = vrot.lane.b32.xlu0 %v874, 48
  %v1173 = vpop.permute.xlu0 %1172
  %1174 = vrot.lane.b32.xlu0 %v879, 48
  %v1175 = vpop.permute.xlu0 %1174
  %1176 = vrot.lane.b32.xlu0 %v884, 48
  %v1177 = vpop.permute.xlu0 %1176
  %1178 = vrot.lane.b32.xlu0 %v889, 48
  %v1179 = vpop.permute.xlu0 %1178
  %1212 = vrot.lane.b32.xlu0 %v734, 64
  %v1213 = vpop.permute.xlu0 %1212
  %1214 = vrot.lane.b32.xlu0 %v739, 64
  %v1215 = vpop.permute.xlu0 %1214
  %1216 = vrot.lane.b32.xlu0 %v744, 64
  %v1217 = vpop.permute.xlu0 %1216
  %1218 = vrot.lane.b32.xlu0 %v749, 64
  %v1219 = vpop.permute.xlu0 %1218
  %1220 = vrot.lane.b32.xlu0 %v754, 64
  %v1221 = vpop.permute.xlu0 %1220
  %1222 = vrot.lane.b32.xlu0 %v759, 64
  %v1223 = vpop.permute.xlu0 %1222
  %1224 = vrot.lane.b32.xlu0 %v764, 64
  %v1225 = vpop.permute.xlu0 %1224
  %1226 = vrot.lane.b32.xlu0 %v769, 64
  %v1227 = vpop.permute.xlu0 %1226
  %1228 = vrot.lane.b32.xlu0 %v774, 64
  %v1229 = vpop.permute.xlu0 %1228
  %1230 = vrot.lane.b32.xlu0 %v779, 64
  %v1231 = vpop.permute.xlu0 %1230
  %1232 = vrot.lane.b32.xlu0 %v784, 64
  %v1233 = vpop.permute.xlu0 %1232
  %1234 = vrot.lane.b32.xlu0 %v789, 64
  %v1235 = vpop.permute.xlu0 %1234
  %1236 = vrot.lane.b32.xlu0 %v794, 64
  %v1237 = vpop.permute.xlu0 %1236
  %1238 = vrot.lane.b32.xlu0 %v799, 64
  %v1239 = vpop.permute.xlu0 %1238
  %1240 = vrot.lane.b32.xlu0 %v804, 64
  %v1241 = vpop.permute.xlu0 %1240
  %1242 = vrot.lane.b32.xlu0 %v809, 64
  %v1243 = vpop.permute.xlu0 %1242
  %1244 = vrot.lane.b32.xlu0 %v814, 64
  %v1245 = vpop.permute.xlu0 %1244
  %1246 = vrot.lane.b32.xlu0 %v819, 64
  %v1247 = vpop.permute.xlu0 %1246
  %1248 = vrot.lane.b32.xlu0 %v824, 64
  %v1249 = vpop.permute.xlu0 %1248
  %1250 = vrot.lane.b32.xlu0 %v829, 64
  %v1251 = vpop.permute.xlu0 %1250
  %1252 = vrot.lane.b32.xlu0 %v834, 64
  %v1253 = vpop.permute.xlu0 %1252
  %1254 = vrot.lane.b32.xlu0 %v839, 64
  %v1255 = vpop.permute.xlu0 %1254
  %1256 = vrot.lane.b32.xlu0 %v844, 64
  %v1257 = vpop.permute.xlu0 %1256
  %1258 = vrot.lane.b32.xlu0 %v849, 64
  %v1259 = vpop.permute.xlu0 %1258
  %1260 = vrot.lane.b32.xlu0 %v854, 64
  %v1261 = vpop.permute.xlu0 %1260
  %1262 = vrot.lane.b32.xlu0 %v859, 64
  %v1263 = vpop.permute.xlu0 %1262
  %1264 = vrot.lane.b32.xlu0 %v864, 64
  %v1265 = vpop.permute.xlu0 %1264
  %1266 = vrot.lane.b32.xlu0 %v869, 64
  %v1267 = vpop.permute.xlu0 %1266
  %1268 = vrot.lane.b32.xlu0 %v874, 64
  %v1269 = vpop.permute.xlu0 %1268
  %1270 = vrot.lane.b32.xlu0 %v879, 64
  %v1271 = vpop.permute.xlu0 %1270
  %1272 = vrot.lane.b32.xlu0 %v884, 64
  %v1273 = vpop.permute.xlu0 %1272
  %1274 = vrot.lane.b32.xlu0 %v889, 64
  %v1275 = vpop.permute.xlu0 %1274
  %1308 = vrot.lane.b32.xlu0 %v734, 80
  %v1309 = vpop.permute.xlu0 %1308
  %1310 = vrot.lane.b32.xlu0 %v739, 80
  %v1311 = vpop.permute.xlu0 %1310
  %1312 = vrot.lane.b32.xlu0 %v744, 80
  %v1313 = vpop.permute.xlu0 %1312
  %1314 = vrot.lane.b32.xlu0 %v749, 80
  %v1315 = vpop.permute.xlu0 %1314
  %1316 = vrot.lane.b32.xlu0 %v754, 80
  %v1317 = vpop.permute.xlu0 %1316
  %1318 = vrot.lane.b32.xlu0 %v759, 80
  %v1319 = vpop.permute.xlu0 %1318
  %1320 = vrot.lane.b32.xlu0 %v764, 80
  %v1321 = vpop.permute.xlu0 %1320
  %1322 = vrot.lane.b32.xlu0 %v769, 80
  %v1323 = vpop.permute.xlu0 %1322
  %1324 = vrot.lane.b32.xlu0 %v774, 80
  %v1325 = vpop.permute.xlu0 %1324
  %1326 = vrot.lane.b32.xlu0 %v779, 80
  %v1327 = vpop.permute.xlu0 %1326
  %1328 = vrot.lane.b32.xlu0 %v784, 80
  %v1329 = vpop.permute.xlu0 %1328
  %1330 = vrot.lane.b32.xlu0 %v789, 80
  %v1331 = vpop.permute.xlu0 %1330
  %1332 = vrot.lane.b32.xlu0 %v794, 80
  %v1333 = vpop.permute.xlu0 %1332
  %1334 = vrot.lane.b32.xlu0 %v799, 80
  %v1335 = vpop.permute.xlu0 %1334
  %1336 = vrot.lane.b32.xlu0 %v804, 80
  %v1337 = vpop.permute.xlu0 %1336
  %1338 = vrot.lane.b32.xlu0 %v809, 80
  %v1339 = vpop.permute.xlu0 %1338
  %1340 = vrot.lane.b32.xlu0 %v814, 80
  %v1341 = vpop.permute.xlu0 %1340
  %1342 = vrot.lane.b32.xlu0 %v819, 80
  %v1343 = vpop.permute.xlu0 %1342
  %1344 = vrot.lane.b32.xlu0 %v824, 80
  %v1345 = vpop.permute.xlu0 %1344
  %1346 = vrot.lane.b32.xlu0 %v829, 80
  %v1347 = vpop.permute.xlu0 %1346
  %1348 = vrot.lane.b32.xlu0 %v834, 80
  %v1349 = vpop.permute.xlu0 %1348
  %1350 = vrot.lane.b32.xlu0 %v839, 80
  %v1351 = vpop.permute.xlu0 %1350
  %1352 = vrot.lane.b32.xlu0 %v844, 80
  %v1353 = vpop.permute.xlu0 %1352
  %1354 = vrot.lane.b32.xlu0 %v849, 80
  %v1355 = vpop.permute.xlu0 %1354
  %1356 = vrot.lane.b32.xlu0 %v854, 80
  %v1357 = vpop.permute.xlu0 %1356
  %1358 = vrot.lane.b32.xlu0 %v859, 80
  %v1359 = vpop.permute.xlu0 %1358
  %1360 = vrot.lane.b32.xlu0 %v864, 80
  %v1361 = vpop.permute.xlu0 %1360
  %1362 = vrot.lane.b32.xlu0 %v869, 80
  %v1363 = vpop.permute.xlu0 %1362
  %1364 = vrot.lane.b32.xlu0 %v874, 80
  %v1365 = vpop.permute.xlu0 %1364
  %1366 = vrot.lane.b32.xlu0 %v879, 80
  %v1367 = vpop.permute.xlu0 %1366
  %1368 = vrot.lane.b32.xlu0 %v884, 80
  %v1369 = vpop.permute.xlu0 %1368
  %1370 = vrot.lane.b32.xlu0 %v889, 80
  %v1371 = vpop.permute.xlu0 %1370
  %1404 = vrot.lane.b32.xlu0 %v734, 96
  %v1405 = vpop.permute.xlu0 %1404
  %1406 = vrot.lane.b32.xlu0 %v739, 96
  %v1407 = vpop.permute.xlu0 %1406
  %1408 = vrot.lane.b32.xlu0 %v744, 96
  %v1409 = vpop.permute.xlu0 %1408
  %1410 = vrot.lane.b32.xlu0 %v749, 96
  %v1411 = vpop.permute.xlu0 %1410
  %1412 = vrot.lane.b32.xlu0 %v754, 96
  %v1413 = vpop.permute.xlu0 %1412
  %1414 = vrot.lane.b32.xlu0 %v759, 96
  %v1415 = vpop.permute.xlu0 %1414
  %1416 = vrot.lane.b32.xlu0 %v764, 96
  %v1417 = vpop.permute.xlu0 %1416
  %1418 = vrot.lane.b32.xlu0 %v769, 96
  %v1419 = vpop.permute.xlu0 %1418
  %1420 = vrot.lane.b32.xlu0 %v774, 96
  %v1421 = vpop.permute.xlu0 %1420
  %1422 = vrot.lane.b32.xlu0 %v779, 96
  %v1423 = vpop.permute.xlu0 %1422
  %1424 = vrot.lane.b32.xlu0 %v784, 96
  %v1425 = vpop.permute.xlu0 %1424
  %1426 = vrot.lane.b32.xlu0 %v789, 96
  %v1427 = vpop.permute.xlu0 %1426
  %1428 = vrot.lane.b32.xlu0 %v794, 96
  %v1429 = vpop.permute.xlu0 %1428
  %1430 = vrot.lane.b32.xlu0 %v799, 96
  %v1431 = vpop.permute.xlu0 %1430
  %1432 = vrot.lane.b32.xlu0 %v804, 96
  %v1433 = vpop.permute.xlu0 %1432
  %1434 = vrot.lane.b32.xlu0 %v809, 96
  %v1435 = vpop.permute.xlu0 %1434
  %1436 = vrot.lane.b32.xlu0 %v814, 96
  %v1437 = vpop.permute.xlu0 %1436
  %1438 = vrot.lane.b32.xlu0 %v819, 96
  %v1439 = vpop.permute.xlu0 %1438
  %1440 = vrot.lane.b32.xlu0 %v824, 96
  %v1441 = vpop.permute.xlu0 %1440
  %1442 = vrot.lane.b32.xlu0 %v829, 96
  %v1443 = vpop.permute.xlu0 %1442
  %1444 = vrot.lane.b32.xlu0 %v834, 96
  %v1445 = vpop.permute.xlu0 %1444
  %1446 = vrot.lane.b32.xlu0 %v839, 96
  %v1447 = vpop.permute.xlu0 %1446
  %1448 = vrot.lane.b32.xlu0 %v844, 96
  %v1449 = vpop.permute.xlu0 %1448
  %1450 = vrot.lane.b32.xlu0 %v849, 96
  %v1451 = vpop.permute.xlu0 %1450
  %1452 = vrot.lane.b32.xlu0 %v854, 96
  %v1453 = vpop.permute.xlu0 %1452
  %1454 = vrot.lane.b32.xlu0 %v859, 96
  %v1455 = vpop.permute.xlu0 %1454
  %1456 = vrot.lane.b32.xlu0 %v864, 96
  %v1457 = vpop.permute.xlu0 %1456
  %1458 = vrot.lane.b32.xlu0 %v869, 96
  %v1459 = vpop.permute.xlu0 %1458
  %1460 = vrot.lane.b32.xlu0 %v874, 96
  %v1461 = vpop.permute.xlu0 %1460
  %1462 = vrot.lane.b32.xlu0 %v879, 96
  %v1463 = vpop.permute.xlu0 %1462
  %1464 = vrot.lane.b32.xlu0 %v884, 96
  %v1465 = vpop.permute.xlu0 %1464
  %1466 = vrot.lane.b32.xlu0 %v889, 96
  %v1467 = vpop.permute.xlu0 %1466
  %1500 = vrot.lane.b32.xlu0 %v734, 112
  %v1501 = vpop.permute.xlu0 %1500
  %1502 = vrot.lane.b32.xlu0 %v739, 112
  %v1503 = vpop.permute.xlu0 %1502
  %1504 = vrot.lane.b32.xlu0 %v744, 112
  %v1505 = vpop.permute.xlu0 %1504
  %1506 = vrot.lane.b32.xlu0 %v749, 112
  %v1507 = vpop.permute.xlu0 %1506
  %1508 = vrot.lane.b32.xlu0 %v754, 112
  %v1509 = vpop.permute.xlu0 %1508
  %1510 = vrot.lane.b32.xlu0 %v759, 112
  %v1511 = vpop.permute.xlu0 %1510
  %1512 = vrot.lane.b32.xlu0 %v764, 112
  %v1513 = vpop.permute.xlu0 %1512
  %1514 = vrot.lane.b32.xlu0 %v769, 112
  %v1515 = vpop.permute.xlu0 %1514
  %1516 = vrot.lane.b32.xlu0 %v774, 112
  %v1517 = vpop.permute.xlu0 %1516
  %1518 = vrot.lane.b32.xlu0 %v779, 112
  %v1519 = vpop.permute.xlu0 %1518
  %1520 = vrot.lane.b32.xlu0 %v784, 112
  %v1521 = vpop.permute.xlu0 %1520
  %1522 = vrot.lane.b32.xlu0 %v789, 112
  %v1523 = vpop.permute.xlu0 %1522
  %1524 = vrot.lane.b32.xlu0 %v794, 112
  %v1525 = vpop.permute.xlu0 %1524
  %1526 = vrot.lane.b32.xlu0 %v799, 112
  %v1527 = vpop.permute.xlu0 %1526
  %1528 = vrot.lane.b32.xlu0 %v804, 112
  %v1529 = vpop.permute.xlu0 %1528
  %1530 = vrot.lane.b32.xlu0 %v809, 112
  %v1531 = vpop.permute.xlu0 %1530
  %1532 = vrot.lane.b32.xlu0 %v814, 112
  %v1533 = vpop.permute.xlu0 %1532
  %1534 = vrot.lane.b32.xlu0 %v819, 112
  %v1535 = vpop.permute.xlu0 %1534
  %1536 = vrot.lane.b32.xlu0 %v824, 112
  %v1537 = vpop.permute.xlu0 %1536
  %1538 = vrot.lane.b32.xlu0 %v829, 112
  %v1539 = vpop.permute.xlu0 %1538
  %1540 = vrot.lane.b32.xlu0 %v834, 112
  %v1541 = vpop.permute.xlu0 %1540
  %1542 = vrot.lane.b32.xlu0 %v839, 112
  %v1543 = vpop.permute.xlu0 %1542
  %1544 = vrot.lane.b32.xlu0 %v844, 112
  %v1545 = vpop.permute.xlu0 %1544
  %1546 = vrot.lane.b32.xlu0 %v849, 112
  %v1547 = vpop.permute.xlu0 %1546
  %1548 = vrot.lane.b32.xlu0 %v854, 112
  %v1549 = vpop.permute.xlu0 %1548
  %1550 = vrot.lane.b32.xlu0 %v859, 112
  %v1551 = vpop.permute.xlu0 %1550
  %1552 = vrot.lane.b32.xlu0 %v864, 112
  %v1553 = vpop.permute.xlu0 %1552
  %1554 = vrot.lane.b32.xlu0 %v869, 112
  %v1555 = vpop.permute.xlu0 %1554
  %1556 = vrot.lane.b32.xlu0 %v874, 112
  %v1557 = vpop.permute.xlu0 %1556
  %1558 = vrot.lane.b32.xlu0 %v879, 112
  %v1559 = vpop.permute.xlu0 %1558
  %1560 = vrot.lane.b32.xlu0 %v884, 112
  %v1561 = vpop.permute.xlu0 %1560
  %1562 = vrot.lane.b32.xlu0 %v889, 112
  %v1563 = vpop.permute.xlu0 %1562
  %v1596 = vsel %vm77, %v734, %v925
  %v1597 = vsel %vm77, %v739, %v927
  %v1598 = vsel %vm77, %v744, %v929
  %v1599 = vsel %vm77, %v749, %v931
  %v1600 = vsel %vm77, %v754, %v933
  %v1601 = vsel %vm77, %v759, %v935
  %v1602 = vsel %vm77, %v764, %v937
  %v1603 = vsel %vm77, %v769, %v939
  %v1604 = vsel %vm77, %v774, %v941
  %v1605 = vsel %vm77, %v779, %v943
  %v1606 = vsel %vm77, %v784, %v945
  %v1607 = vsel %vm77, %v789, %v947
  %v1608 = vsel %vm77, %v794, %v949
  %v1609 = vsel %vm77, %v799, %v951
  %v1610 = vsel %vm77, %v804, %v953
  %v1611 = vsel %vm77, %v809, %v955
  %v1612 = vsel %vm77, %v814, %v957
  %v1613 = vsel %vm77, %v819, %v959
  %v1614 = vsel %vm77, %v824, %v961
  %v1615 = vsel %vm77, %v829, %v963
  %v1616 = vsel %vm77, %v834, %v965
  %v1617 = vsel %vm77, %v839, %v967
  %v1618 = vsel %vm77, %v844, %v969
  %v1619 = vsel %vm77, %v849, %v971
  %v1620 = vsel %vm77, %v854, %v973
  %v1621 = vsel %vm77, %v859, %v975
  %v1622 = vsel %vm77, %v864, %v977
  %v1623 = vsel %vm77, %v869, %v979
  %v1624 = vsel %vm77, %v874, %v981
  %v1625 = vsel %vm77, %v879, %v983
  %v1626 = vsel %vm77, %v884, %v985
  %v1627 = vsel %vm77, %v889, %v987
  %vm1628 = vcmask 261120
  %v1629 = vsel %vm1628, %v1596, %v1021
  %v1630 = vsel %vm1628, %v1597, %v1023
  %v1631 = vsel %vm1628, %v1598, %v1025
  %v1632 = vsel %vm1628, %v1599, %v1027
  %v1633 = vsel %vm1628, %v1600, %v1029
  %v1634 = vsel %vm1628, %v1601, %v1031
  %v1635 = vsel %vm1628, %v1602, %v1033
  %v1636 = vsel %vm1628, %v1603, %v1035
  %v1637 = vsel %vm1628, %v1604, %v1037
  %v1638 = vsel %vm1628, %v1605, %v1039
  %v1639 = vsel %vm1628, %v1606, %v1041
  %v1640 = vsel %vm1628, %v1607, %v1043
  %v1641 = vsel %vm1628, %v1608, %v1045
  %v1642 = vsel %vm1628, %v1609, %v1047
  %v1643 = vsel %vm1628, %v1610, %v1049
  %v1644 = vsel %vm1628, %v1611, %v1051
  %v1645 = vsel %vm1628, %v1612, %v1053
  %v1646 = vsel %vm1628, %v1613, %v1055
  %v1647 = vsel %vm1628, %v1614, %v1057
  %v1648 = vsel %vm1628, %v1615, %v1059
  %v1649 = vsel %vm1628, %v1616, %v1061
  %v1650 = vsel %vm1628, %v1617, %v1063
  %v1651 = vsel %vm1628, %v1618, %v1065
  %v1652 = vsel %vm1628, %v1619, %v1067
  %v1653 = vsel %vm1628, %v1620, %v1069
  %v1654 = vsel %vm1628, %v1621, %v1071
  %v1655 = vsel %vm1628, %v1622, %v1073
  %v1656 = vsel %vm1628, %v1623, %v1075
  %v1657 = vsel %vm1628, %v1624, %v1077
  %v1658 = vsel %vm1628, %v1625, %v1079
  %v1659 = vsel %vm1628, %v1626, %v1081
  %v1660 = vsel %vm1628, %v1627, %v1083
  %vm1661 = vcmask 392192
  %v1662 = vsel %vm1661, %v1629, %v1117
  %v1663 = vsel %vm1661, %v1630, %v1119
  %v1664 = vsel %vm1661, %v1631, %v1121
  %v1665 = vsel %vm1661, %v1632, %v1123
  %v1666 = vsel %vm1661, %v1633, %v1125
  %v1667 = vsel %vm1661, %v1634, %v1127
  %v1668 = vsel %vm1661, %v1635, %v1129
  %v1669 = vsel %vm1661, %v1636, %v1131
  %v1670 = vsel %vm1661, %v1637, %v1133
  %v1671 = vsel %vm1661, %v1638, %v1135
  %v1672 = vsel %vm1661, %v1639, %v1137
  %v1673 = vsel %vm1661, %v1640, %v1139
  %v1674 = vsel %vm1661, %v1641, %v1141
  %v1675 = vsel %vm1661, %v1642, %v1143
  %v1676 = vsel %vm1661, %v1643, %v1145
  %v1677 = vsel %vm1661, %v1644, %v1147
  %v1678 = vsel %vm1661, %v1645, %v1149
  %v1679 = vsel %vm1661, %v1646, %v1151
  %v1680 = vsel %vm1661, %v1647, %v1153
  %v1681 = vsel %vm1661, %v1648, %v1155
  %v1682 = vsel %vm1661, %v1649, %v1157
  %v1683 = vsel %vm1661, %v1650, %v1159
  %v1684 = vsel %vm1661, %v1651, %v1161
  %v1685 = vsel %vm1661, %v1652, %v1163
  %v1686 = vsel %vm1661, %v1653, %v1165
  %v1687 = vsel %vm1661, %v1654, %v1167
  %v1688 = vsel %vm1661, %v1655, %v1169
  %v1689 = vsel %vm1661, %v1656, %v1171
  %v1690 = vsel %vm1661, %v1657, %v1173
  %v1691 = vsel %vm1661, %v1658, %v1175
  %v1692 = vsel %vm1661, %v1659, %v1177
  %v1693 = vsel %vm1661, %v1660, %v1179
  %vm1694 = vcmask 523264
  %v1695 = vsel %vm1694, %v1662, %v1213
  %v1696 = vsel %vm1694, %v1663, %v1215
  %v1697 = vsel %vm1694, %v1664, %v1217
  %v1698 = vsel %vm1694, %v1665, %v1219
  %v1699 = vsel %vm1694, %v1666, %v1221
  %v1700 = vsel %vm1694, %v1667, %v1223
  %v1701 = vsel %vm1694, %v1668, %v1225
  %v1702 = vsel %vm1694, %v1669, %v1227
  %v1703 = vsel %vm1694, %v1670, %v1229
  %v1704 = vsel %vm1694, %v1671, %v1231
  %v1705 = vsel %vm1694, %v1672, %v1233
  %v1706 = vsel %vm1694, %v1673, %v1235
  %v1707 = vsel %vm1694, %v1674, %v1237
  %v1708 = vsel %vm1694, %v1675, %v1239
  %v1709 = vsel %vm1694, %v1676, %v1241
  %v1710 = vsel %vm1694, %v1677, %v1243
  %v1711 = vsel %vm1694, %v1678, %v1245
  %v1712 = vsel %vm1694, %v1679, %v1247
  %v1713 = vsel %vm1694, %v1680, %v1249
  %v1714 = vsel %vm1694, %v1681, %v1251
  %v1715 = vsel %vm1694, %v1682, %v1253
  %v1716 = vsel %vm1694, %v1683, %v1255
  %v1717 = vsel %vm1694, %v1684, %v1257
  %v1718 = vsel %vm1694, %v1685, %v1259
  %v1719 = vsel %vm1694, %v1686, %v1261
  %v1720 = vsel %vm1694, %v1687, %v1263
  %v1721 = vsel %vm1694, %v1688, %v1265
  %v1722 = vsel %vm1694, %v1689, %v1267
  %v1723 = vsel %vm1694, %v1690, %v1269
  %v1724 = vsel %vm1694, %v1691, %v1271
  %v1725 = vsel %vm1694, %v1692, %v1273
  %v1726 = vsel %vm1694, %v1693, %v1275
  %vm1727 = vcmask 654336
  %v1728 = vsel %vm1727, %v1695, %v1309
  %v1729 = vsel %vm1727, %v1696, %v1311
  %v1730 = vsel %vm1727, %v1697, %v1313
  %v1731 = vsel %vm1727, %v1698, %v1315
  %v1732 = vsel %vm1727, %v1699, %v1317
  %v1733 = vsel %vm1727, %v1700, %v1319
  %v1734 = vsel %vm1727, %v1701, %v1321
  %v1735 = vsel %vm1727, %v1702, %v1323
  %v1736 = vsel %vm1727, %v1703, %v1325
  %v1737 = vsel %vm1727, %v1704, %v1327
  %v1738 = vsel %vm1727, %v1705, %v1329
  %v1739 = vsel %vm1727, %v1706, %v1331
  %v1740 = vsel %vm1727, %v1707, %v1333
  %v1741 = vsel %vm1727, %v1708, %v1335
  %v1742 = vsel %vm1727, %v1709, %v1337
  %v1743 = vsel %vm1727, %v1710, %v1339
  %v1744 = vsel %vm1727, %v1711, %v1341
  %v1745 = vsel %vm1727, %v1712, %v1343
  %v1746 = vsel %vm1727, %v1713, %v1345
  %v1747 = vsel %vm1727, %v1714, %v1347
  %v1748 = vsel %vm1727, %v1715, %v1349
  %v1749 = vsel %vm1727, %v1716, %v1351
  %v1750 = vsel %vm1727, %v1717, %v1353
  %v1751 = vsel %vm1727, %v1718, %v1355
  %v1752 = vsel %vm1727, %v1719, %v1357
  %v1753 = vsel %vm1727, %v1720, %v1359
  %v1754 = vsel %vm1727, %v1721, %v1361
  %v1755 = vsel %vm1727, %v1722, %v1363
  %v1756 = vsel %vm1727, %v1723, %v1365
  %v1757 = vsel %vm1727, %v1724, %v1367
  %v1758 = vsel %vm1727, %v1725, %v1369
  %v1759 = vsel %vm1727, %v1726, %v1371
  %vm1760 = vcmask 785408
  %v1761 = vsel %vm1760, %v1728, %v1405
  %v1762 = vsel %vm1760, %v1729, %v1407
  %v1763 = vsel %vm1760, %v1730, %v1409
  %v1764 = vsel %vm1760, %v1731, %v1411
  %v1765 = vsel %vm1760, %v1732, %v1413
  %v1766 = vsel %vm1760, %v1733, %v1415
  %v1767 = vsel %vm1760, %v1734, %v1417
  %v1768 = vsel %vm1760, %v1735, %v1419
  %v1769 = vsel %vm1760, %v1736, %v1421
  %v1770 = vsel %vm1760, %v1737, %v1423
  %v1771 = vsel %vm1760, %v1738, %v1425
  %v1772 = vsel %vm1760, %v1739, %v1427
  %v1773 = vsel %vm1760, %v1740, %v1429
  %v1774 = vsel %vm1760, %v1741, %v1431
  %v1775 = vsel %vm1760, %v1742, %v1433
  %v1776 = vsel %vm1760, %v1743, %v1435
  %v1777 = vsel %vm1760, %v1744, %v1437
  %v1778 = vsel %vm1760, %v1745, %v1439
  %v1779 = vsel %vm1760, %v1746, %v1441
  %v1780 = vsel %vm1760, %v1747, %v1443
  %v1781 = vsel %vm1760, %v1748, %v1445
  %v1782 = vsel %vm1760, %v1749, %v1447
  %v1783 = vsel %vm1760, %v1750, %v1449
  %v1784 = vsel %vm1760, %v1751, %v1451
  %v1785 = vsel %vm1760, %v1752, %v1453
  %v1786 = vsel %vm1760, %v1753, %v1455
  %v1787 = vsel %vm1760, %v1754, %v1457
  %v1788 = vsel %vm1760, %v1755, %v1459
  %v1789 = vsel %vm1760, %v1756, %v1461
  %v1790 = vsel %vm1760, %v1757, %v1463
  %v1791 = vsel %vm1760, %v1758, %v1465
  %v1792 = vsel %vm1760, %v1759, %v1467
  %vm1793 = vcmask 916480
  %v1794 = vsel %vm1793, %v1761, %v1501
  %v1795 = vsel %vm1793, %v1762, %v1503
  %v1796 = vsel %vm1793, %v1763, %v1505
  %v1797 = vsel %vm1793, %v1764, %v1507
  %v1798 = vsel %vm1793, %v1765, %v1509
  %v1799 = vsel %vm1793, %v1766, %v1511
  %v1800 = vsel %vm1793, %v1767, %v1513
  %v1801 = vsel %vm1793, %v1768, %v1515
  %v1802 = vsel %vm1793, %v1769, %v1517
  %v1803 = vsel %vm1793, %v1770, %v1519
  %v1804 = vsel %vm1793, %v1771, %v1521
  %v1805 = vsel %vm1793, %v1772, %v1523
  %v1806 = vsel %vm1793, %v1773, %v1525
  %v1807 = vsel %vm1793, %v1774, %v1527
  %v1808 = vsel %vm1793, %v1775, %v1529
  %v1809 = vsel %vm1793, %v1776, %v1531
  %v1810 = vsel %vm1793, %v1777, %v1533
  %v1811 = vsel %vm1793, %v1778, %v1535
  %v1812 = vsel %vm1793, %v1779, %v1537
  %v1813 = vsel %vm1793, %v1780, %v1539
  %v1814 = vsel %vm1793, %v1781, %v1541
  %v1815 = vsel %vm1793, %v1782, %v1543
  %v1816 = vsel %vm1793, %v1783, %v1545
  %v1817 = vsel %vm1793, %v1784, %v1547
  %v1818 = vsel %vm1793, %v1785, %v1549
  %v1819 = vsel %vm1793, %v1786, %v1551
  %v1820 = vsel %vm1793, %v1787, %v1553
  %v1821 = vsel %vm1793, %v1788, %v1555
  %v1822 = vsel %vm1793, %v1789, %v1557
  %v1823 = vsel %vm1793, %v1790, %v1559
  %v1824 = vsel %vm1793, %v1791, %v1561
  %v1825 = vsel %vm1793, %v1792, %v1563
  %v1826 = vrot.slane %v734, 1
  %v1827 = vrot.slane %v739, 1
  %v1828 = vrot.slane %v744, 1
  %v1829 = vrot.slane %v749, 1
  %v1830 = vrot.slane %v754, 1
  %v1831 = vrot.slane %v759, 1
  %v1832 = vrot.slane %v764, 1
  %v1833 = vrot.slane %v769, 1
  %v1834 = vrot.slane %v774, 1
  %v1835 = vrot.slane %v779, 1
  %v1836 = vrot.slane %v784, 1
  %v1837 = vrot.slane %v789, 1
  %v1838 = vrot.slane %v794, 1
  %v1839 = vrot.slane %v799, 1
  %v1840 = vrot.slane %v804, 1
  %v1841 = vrot.slane %v809, 1
  %v1842 = vrot.slane %v814, 1
  %v1843 = vrot.slane %v819, 1
  %v1844 = vrot.slane %v824, 1
  %v1845 = vrot.slane %v829, 1
  %v1846 = vrot.slane %v834, 1
  %v1847 = vrot.slane %v839, 1
  %v1848 = vrot.slane %v844, 1
  %v1849 = vrot.slane %v849, 1
  %v1850 = vrot.slane %v854, 1
  %v1851 = vrot.slane %v859, 1
  %v1852 = vrot.slane %v864, 1
  %v1853 = vrot.slane %v869, 1
  %v1854 = vrot.slane %v874, 1
  %v1855 = vrot.slane %v879, 1
  %v1856 = vrot.slane %v884, 1
  %v1857 = vrot.slane %v889, 1
  %v1890 = vrot.slane %v734, 2
  %v1891 = vrot.slane %v739, 2
  %v1892 = vrot.slane %v744, 2
  %v1893 = vrot.slane %v749, 2
  %v1894 = vrot.slane %v754, 2
  %v1895 = vrot.slane %v759, 2
  %v1896 = vrot.slane %v764, 2
  %v1897 = vrot.slane %v769, 2
  %v1898 = vrot.slane %v774, 2
  %v1899 = vrot.slane %v779, 2
  %v1900 = vrot.slane %v784, 2
  %v1901 = vrot.slane %v789, 2
  %v1902 = vrot.slane %v794, 2
  %v1903 = vrot.slane %v799, 2
  %v1904 = vrot.slane %v804, 2
  %v1905 = vrot.slane %v809, 2
  %v1906 = vrot.slane %v814, 2
  %v1907 = vrot.slane %v819, 2
  %v1908 = vrot.slane %v824, 2
  %v1909 = vrot.slane %v829, 2
  %v1910 = vrot.slane %v834, 2
  %v1911 = vrot.slane %v839, 2
  %v1912 = vrot.slane %v844, 2
  %v1913 = vrot.slane %v849, 2
  %v1914 = vrot.slane %v854, 2
  %v1915 = vrot.slane %v859, 2
  %v1916 = vrot.slane %v864, 2
  %v1917 = vrot.slane %v869, 2
  %v1918 = vrot.slane %v874, 2
  %v1919 = vrot.slane %v879, 2
  %v1920 = vrot.slane %v884, 2
  %v1921 = vrot.slane %v889, 2
  %1922 = vrot.lane.b32.xlu0 %v1890, 16
  %v1923 = vpop.permute.xlu0 %1922
  %1924 = vrot.lane.b32.xlu0 %v1891, 16
  %v1925 = vpop.permute.xlu0 %1924
  %1926 = vrot.lane.b32.xlu0 %v1892, 16
  %v1927 = vpop.permute.xlu0 %1926
  %1928 = vrot.lane.b32.xlu0 %v1893, 16
  %v1929 = vpop.permute.xlu0 %1928
  %1930 = vrot.lane.b32.xlu0 %v1894, 16
  %v1931 = vpop.permute.xlu0 %1930
  %1932 = vrot.lane.b32.xlu0 %v1895, 16
  %v1933 = vpop.permute.xlu0 %1932
  %1934 = vrot.lane.b32.xlu0 %v1896, 16
  %v1935 = vpop.permute.xlu0 %1934
  %1936 = vrot.lane.b32.xlu0 %v1897, 16
  %v1937 = vpop.permute.xlu0 %1936
  %1938 = vrot.lane.b32.xlu0 %v1898, 16
  %v1939 = vpop.permute.xlu0 %1938
  %1940 = vrot.lane.b32.xlu0 %v1899, 16
  %v1941 = vpop.permute.xlu0 %1940
  %1942 = vrot.lane.b32.xlu0 %v1900, 16
  %v1943 = vpop.permute.xlu0 %1942
  %1944 = vrot.lane.b32.xlu0 %v1901, 16
  %v1945 = vpop.permute.xlu0 %1944
  %1946 = vrot.lane.b32.xlu0 %v1902, 16
  %v1947 = vpop.permute.xlu0 %1946
  %1948 = vrot.lane.b32.xlu0 %v1903, 16
  %v1949 = vpop.permute.xlu0 %1948
  %1950 = vrot.lane.b32.xlu0 %v1904, 16
  %v1951 = vpop.permute.xlu0 %1950
  %1952 = vrot.lane.b32.xlu0 %v1905, 16
  %v1953 = vpop.permute.xlu0 %1952
  %1954 = vrot.lane.b32.xlu0 %v1906, 16
  %v1955 = vpop.permute.xlu0 %1954
  %1956 = vrot.lane.b32.xlu0 %v1907, 16
  %v1957 = vpop.permute.xlu0 %1956
  %1958 = vrot.lane.b32.xlu0 %v1908, 16
  %v1959 = vpop.permute.xlu0 %1958
  %1960 = vrot.lane.b32.xlu0 %v1909, 16
  %v1961 = vpop.permute.xlu0 %1960
  %1962 = vrot.lane.b32.xlu0 %v1910, 16
  %v1963 = vpop.permute.xlu0 %1962
  %1964 = vrot.lane.b32.xlu0 %v1911, 16
  %v1965 = vpop.permute.xlu0 %1964
  %1966 = vrot.lane.b32.xlu0 %v1912, 16
  %v1967 = vpop.permute.xlu0 %1966
  %1968 = vrot.lane.b32.xlu0 %v1913, 16
  %v1969 = vpop.permute.xlu0 %1968
  %1970 = vrot.lane.b32.xlu0 %v1914, 16
  %v1971 = vpop.permute.xlu0 %1970
  %1972 = vrot.lane.b32.xlu0 %v1915, 16
  %v1973 = vpop.permute.xlu0 %1972
  %1974 = vrot.lane.b32.xlu0 %v1916, 16
  %v1975 = vpop.permute.xlu0 %1974
  %1976 = vrot.lane.b32.xlu0 %v1917, 16
  %v1977 = vpop.permute.xlu0 %1976
  %1978 = vrot.lane.b32.xlu0 %v1918, 16
  %v1979 = vpop.permute.xlu0 %1978
  %1980 = vrot.lane.b32.xlu0 %v1919, 16
  %v1981 = vpop.permute.xlu0 %1980
  %1982 = vrot.lane.b32.xlu0 %v1920, 16
  %v1983 = vpop.permute.xlu0 %1982
  %1984 = vrot.lane.b32.xlu0 %v1921, 16
  %v1985 = vpop.permute.xlu0 %1984
  %v2018 = vrot.slane %v734, 3
  %v2019 = vrot.slane %v739, 3
  %v2020 = vrot.slane %v744, 3
  %v2021 = vrot.slane %v749, 3
  %v2022 = vrot.slane %v754, 3
  %v2023 = vrot.slane %v759, 3
  %v2024 = vrot.slane %v764, 3
  %v2025 = vrot.slane %v769, 3
  %v2026 = vrot.slane %v774, 3
  %v2027 = vrot.slane %v779, 3
  %v2028 = vrot.slane %v784, 3
  %v2029 = vrot.slane %v789, 3
  %v2030 = vrot.slane %v794, 3
  %v2031 = vrot.slane %v799, 3
  %v2032 = vrot.slane %v804, 3
  %v2033 = vrot.slane %v809, 3
  %v2034 = vrot.slane %v814, 3
  %v2035 = vrot.slane %v819, 3
  %v2036 = vrot.slane %v824, 3
  %v2037 = vrot.slane %v829, 3
  %v2038 = vrot.slane %v834, 3
  %v2039 = vrot.slane %v839, 3
  %v2040 = vrot.slane %v844, 3
  %v2041 = vrot.slane %v849, 3
  %v2042 = vrot.slane %v854, 3
  %v2043 = vrot.slane %v859, 3
  %v2044 = vrot.slane %v864, 3
  %v2045 = vrot.slane %v869, 3
  %v2046 = vrot.slane %v874, 3
  %v2047 = vrot.slane %v879, 3
  %v2048 = vrot.slane %v884, 3
  %v2049 = vrot.slane %v889, 3
  %2050 = vrot.lane.b32.xlu0 %v2018, 32
  %v2051 = vpop.permute.xlu0 %2050
  %2052 = vrot.lane.b32.xlu0 %v2019, 32
  %v2053 = vpop.permute.xlu0 %2052
  %2054 = vrot.lane.b32.xlu0 %v2020, 32
  %v2055 = vpop.permute.xlu0 %2054
  %2056 = vrot.lane.b32.xlu0 %v2021, 32
  %v2057 = vpop.permute.xlu0 %2056
  %2058 = vrot.lane.b32.xlu0 %v2022, 32
  %v2059 = vpop.permute.xlu0 %2058
  %2060 = vrot.lane.b32.xlu0 %v2023, 32
  %v2061 = vpop.permute.xlu0 %2060
  %2062 = vrot.lane.b32.xlu0 %v2024, 32
  %v2063 = vpop.permute.xlu0 %2062
  %2064 = vrot.lane.b32.xlu0 %v2025, 32
  %v2065 = vpop.permute.xlu0 %2064
  %2066 = vrot.lane.b32.xlu0 %v2026, 32
  %v2067 = vpop.permute.xlu0 %2066
  %2068 = vrot.lane.b32.xlu0 %v2027, 32
  %v2069 = vpop.permute.xlu0 %2068
  %2070 = vrot.lane.b32.xlu0 %v2028, 32
  %v2071 = vpop.permute.xlu0 %2070
  %2072 = vrot.lane.b32.xlu0 %v2029, 32
  %v2073 = vpop.permute.xlu0 %2072
  %2074 = vrot.lane.b32.xlu0 %v2030, 32
  %v2075 = vpop.permute.xlu0 %2074
  %2076 = vrot.lane.b32.xlu0 %v2031, 32
  %v2077 = vpop.permute.xlu0 %2076
  %2078 = vrot.lane.b32.xlu0 %v2032, 32
  %v2079 = vpop.permute.xlu0 %2078
  %2080 = vrot.lane.b32.xlu0 %v2033, 32
  %v2081 = vpop.permute.xlu0 %2080
  %2082 = vrot.lane.b32.xlu0 %v2034, 32
  %v2083 = vpop.permute.xlu0 %2082
  %2084 = vrot.lane.b32.xlu0 %v2035, 32
  %v2085 = vpop.permute.xlu0 %2084
  %2086 = vrot.lane.b32.xlu0 %v2036, 32
  %v2087 = vpop.permute.xlu0 %2086
  %2088 = vrot.lane.b32.xlu0 %v2037, 32
  %v2089 = vpop.permute.xlu0 %2088
  %2090 = vrot.lane.b32.xlu0 %v2038, 32
  %v2091 = vpop.permute.xlu0 %2090
  %2092 = vrot.lane.b32.xlu0 %v2039, 32
  %v2093 = vpop.permute.xlu0 %2092
  %2094 = vrot.lane.b32.xlu0 %v2040, 32
  %v2095 = vpop.permute.xlu0 %2094
  %2096 = vrot.lane.b32.xlu0 %v2041, 32
  %v2097 = vpop.permute.xlu0 %2096
  %2098 = vrot.lane.b32.xlu0 %v2042, 32
  %v2099 = vpop.permute.xlu0 %2098
  %2100 = vrot.lane.b32.xlu0 %v2043, 32
  %v2101 = vpop.permute.xlu0 %2100
  %2102 = vrot.lane.b32.xlu0 %v2044, 32
  %v2103 = vpop.permute.xlu0 %2102
  %2104 = vrot.lane.b32.xlu0 %v2045, 32
  %v2105 = vpop.permute.xlu0 %2104
  %2106 = vrot.lane.b32.xlu0 %v2046, 32
  %v2107 = vpop.permute.xlu0 %2106
  %2108 = vrot.lane.b32.xlu0 %v2047, 32
  %v2109 = vpop.permute.xlu0 %2108
  %2110 = vrot.lane.b32.xlu0 %v2048, 32
  %v2111 = vpop.permute.xlu0 %2110
  %2112 = vrot.lane.b32.xlu0 %v2049, 32
  %v2113 = vpop.permute.xlu0 %2112
  %v2146 = vrot.slane %v734, 4
  %v2147 = vrot.slane %v739, 4
  %v2148 = vrot.slane %v744, 4
  %v2149 = vrot.slane %v749, 4
  %v2150 = vrot.slane %v754, 4
  %v2151 = vrot.slane %v759, 4
  %v2152 = vrot.slane %v764, 4
  %v2153 = vrot.slane %v769, 4
  %v2154 = vrot.slane %v774, 4
  %v2155 = vrot.slane %v779, 4
  %v2156 = vrot.slane %v784, 4
  %v2157 = vrot.slane %v789, 4
  %v2158 = vrot.slane %v794, 4
  %v2159 = vrot.slane %v799, 4
  %v2160 = vrot.slane %v804, 4
  %v2161 = vrot.slane %v809, 4
  %v2162 = vrot.slane %v814, 4
  %v2163 = vrot.slane %v819, 4
  %v2164 = vrot.slane %v824, 4
  %v2165 = vrot.slane %v829, 4
  %v2166 = vrot.slane %v834, 4
  %v2167 = vrot.slane %v839, 4
  %v2168 = vrot.slane %v844, 4
  %v2169 = vrot.slane %v849, 4
  %v2170 = vrot.slane %v854, 4
  %v2171 = vrot.slane %v859, 4
  %v2172 = vrot.slane %v864, 4
  %v2173 = vrot.slane %v869, 4
  %v2174 = vrot.slane %v874, 4
  %v2175 = vrot.slane %v879, 4
  %v2176 = vrot.slane %v884, 4
  %v2177 = vrot.slane %v889, 4
  %2178 = vrot.lane.b32.xlu0 %v2146, 48
  %v2179 = vpop.permute.xlu0 %2178
  %2180 = vrot.lane.b32.xlu0 %v2147, 48
  %v2181 = vpop.permute.xlu0 %2180
  %2182 = vrot.lane.b32.xlu0 %v2148, 48
  %v2183 = vpop.permute.xlu0 %2182
  %2184 = vrot.lane.b32.xlu0 %v2149, 48
  %v2185 = vpop.permute.xlu0 %2184
  %2186 = vrot.lane.b32.xlu0 %v2150, 48
  %v2187 = vpop.permute.xlu0 %2186
  %2188 = vrot.lane.b32.xlu0 %v2151, 48
  %v2189 = vpop.permute.xlu0 %2188
  %2190 = vrot.lane.b32.xlu0 %v2152, 48
  %v2191 = vpop.permute.xlu0 %2190
  %2192 = vrot.lane.b32.xlu0 %v2153, 48
  %v2193 = vpop.permute.xlu0 %2192
  %2194 = vrot.lane.b32.xlu0 %v2154, 48
  %v2195 = vpop.permute.xlu0 %2194
  %2196 = vrot.lane.b32.xlu0 %v2155, 48
  %v2197 = vpop.permute.xlu0 %2196
  %2198 = vrot.lane.b32.xlu0 %v2156, 48
  %v2199 = vpop.permute.xlu0 %2198
  %2200 = vrot.lane.b32.xlu0 %v2157, 48
  %v2201 = vpop.permute.xlu0 %2200
  %2202 = vrot.lane.b32.xlu0 %v2158, 48
  %v2203 = vpop.permute.xlu0 %2202
  %2204 = vrot.lane.b32.xlu0 %v2159, 48
  %v2205 = vpop.permute.xlu0 %2204
  %2206 = vrot.lane.b32.xlu0 %v2160, 48
  %v2207 = vpop.permute.xlu0 %2206
  %2208 = vrot.lane.b32.xlu0 %v2161, 48
  %v2209 = vpop.permute.xlu0 %2208
  %2210 = vrot.lane.b32.xlu0 %v2162, 48
  %v2211 = vpop.permute.xlu0 %2210
  %2212 = vrot.lane.b32.xlu0 %v2163, 48
  %v2213 = vpop.permute.xlu0 %2212
  %2214 = vrot.lane.b32.xlu0 %v2164, 48
  %v2215 = vpop.permute.xlu0 %2214
  %2216 = vrot.lane.b32.xlu0 %v2165, 48
  %v2217 = vpop.permute.xlu0 %2216
  %2218 = vrot.lane.b32.xlu0 %v2166, 48
  %v2219 = vpop.permute.xlu0 %2218
  %2220 = vrot.lane.b32.xlu0 %v2167, 48
  %v2221 = vpop.permute.xlu0 %2220
  %2222 = vrot.lane.b32.xlu0 %v2168, 48
  %v2223 = vpop.permute.xlu0 %2222
  %2224 = vrot.lane.b32.xlu0 %v2169, 48
  %v2225 = vpop.permute.xlu0 %2224
  %2226 = vrot.lane.b32.xlu0 %v2170, 48
  %v2227 = vpop.permute.xlu0 %2226
  %2228 = vrot.lane.b32.xlu0 %v2171, 48
  %v2229 = vpop.permute.xlu0 %2228
  %2230 = vrot.lane.b32.xlu0 %v2172, 48
  %v2231 = vpop.permute.xlu0 %2230
  %2232 = vrot.lane.b32.xlu0 %v2173, 48
  %v2233 = vpop.permute.xlu0 %2232
  %2234 = vrot.lane.b32.xlu0 %v2174, 48
  %v2235 = vpop.permute.xlu0 %2234
  %2236 = vrot.lane.b32.xlu0 %v2175, 48
  %v2237 = vpop.permute.xlu0 %2236
  %2238 = vrot.lane.b32.xlu0 %v2176, 48
  %v2239 = vpop.permute.xlu0 %2238
  %2240 = vrot.lane.b32.xlu0 %v2177, 48
  %v2241 = vpop.permute.xlu0 %2240
  %v2274 = vrot.slane %v734, 5
  %v2275 = vrot.slane %v739, 5
  %v2276 = vrot.slane %v744, 5
  %v2277 = vrot.slane %v749, 5
  %v2278 = vrot.slane %v754, 5
  %v2279 = vrot.slane %v759, 5
  %v2280 = vrot.slane %v764, 5
  %v2281 = vrot.slane %v769, 5
  %v2282 = vrot.slane %v774, 5
  %v2283 = vrot.slane %v779, 5
  %v2284 = vrot.slane %v784, 5
  %v2285 = vrot.slane %v789, 5
  %v2286 = vrot.slane %v794, 5
  %v2287 = vrot.slane %v799, 5
  %v2288 = vrot.slane %v804, 5
  %v2289 = vrot.slane %v809, 5
  %v2290 = vrot.slane %v814, 5
  %v2291 = vrot.slane %v819, 5
  %v2292 = vrot.slane %v824, 5
  %v2293 = vrot.slane %v829, 5
  %v2294 = vrot.slane %v834, 5
  %v2295 = vrot.slane %v839, 5
  %v2296 = vrot.slane %v844, 5
  %v2297 = vrot.slane %v849, 5
  %v2298 = vrot.slane %v854, 5
  %v2299 = vrot.slane %v859, 5
  %v2300 = vrot.slane %v864, 5
  %v2301 = vrot.slane %v869, 5
  %v2302 = vrot.slane %v874, 5
  %v2303 = vrot.slane %v879, 5
  %v2304 = vrot.slane %v884, 5
  %v2305 = vrot.slane %v889, 5
  %2306 = vrot.lane.b32.xlu0 %v2274, 64
  %v2307 = vpop.permute.xlu0 %2306
  %2308 = vrot.lane.b32.xlu0 %v2275, 64
  %v2309 = vpop.permute.xlu0 %2308
  %2310 = vrot.lane.b32.xlu0 %v2276, 64
  %v2311 = vpop.permute.xlu0 %2310
  %2312 = vrot.lane.b32.xlu0 %v2277, 64
  %v2313 = vpop.permute.xlu0 %2312
  %2314 = vrot.lane.b32.xlu0 %v2278, 64
  %v2315 = vpop.permute.xlu0 %2314
  %2316 = vrot.lane.b32.xlu0 %v2279, 64
  %v2317 = vpop.permute.xlu0 %2316
  %2318 = vrot.lane.b32.xlu0 %v2280, 64
  %v2319 = vpop.permute.xlu0 %2318
  %2320 = vrot.lane.b32.xlu0 %v2281, 64
  %v2321 = vpop.permute.xlu0 %2320
  %2322 = vrot.lane.b32.xlu0 %v2282, 64
  %v2323 = vpop.permute.xlu0 %2322
  %2324 = vrot.lane.b32.xlu0 %v2283, 64
  %v2325 = vpop.permute.xlu0 %2324
  %2326 = vrot.lane.b32.xlu0 %v2284, 64
  %v2327 = vpop.permute.xlu0 %2326
  %2328 = vrot.lane.b32.xlu0 %v2285, 64
  %v2329 = vpop.permute.xlu0 %2328
  %2330 = vrot.lane.b32.xlu0 %v2286, 64
  %v2331 = vpop.permute.xlu0 %2330
  %2332 = vrot.lane.b32.xlu0 %v2287, 64
  %v2333 = vpop.permute.xlu0 %2332
  %2334 = vrot.lane.b32.xlu0 %v2288, 64
  %v2335 = vpop.permute.xlu0 %2334
  %2336 = vrot.lane.b32.xlu0 %v2289, 64
  %v2337 = vpop.permute.xlu0 %2336
  %2338 = vrot.lane.b32.xlu0 %v2290, 64
  %v2339 = vpop.permute.xlu0 %2338
  %2340 = vrot.lane.b32.xlu0 %v2291, 64
  %v2341 = vpop.permute.xlu0 %2340
  %2342 = vrot.lane.b32.xlu0 %v2292, 64
  %v2343 = vpop.permute.xlu0 %2342
  %2344 = vrot.lane.b32.xlu0 %v2293, 64
  %v2345 = vpop.permute.xlu0 %2344
  %2346 = vrot.lane.b32.xlu0 %v2294, 64
  %v2347 = vpop.permute.xlu0 %2346
  %2348 = vrot.lane.b32.xlu0 %v2295, 64
  %v2349 = vpop.permute.xlu0 %2348
  %2350 = vrot.lane.b32.xlu0 %v2296, 64
  %v2351 = vpop.permute.xlu0 %2350
  %2352 = vrot.lane.b32.xlu0 %v2297, 64
  %v2353 = vpop.permute.xlu0 %2352
  %2354 = vrot.lane.b32.xlu0 %v2298, 64
  %v2355 = vpop.permute.xlu0 %2354
  %2356 = vrot.lane.b32.xlu0 %v2299, 64
  %v2357 = vpop.permute.xlu0 %2356
  %2358 = vrot.lane.b32.xlu0 %v2300, 64
  %v2359 = vpop.permute.xlu0 %2358
  %2360 = vrot.lane.b32.xlu0 %v2301, 64
  %v2361 = vpop.permute.xlu0 %2360
  %2362 = vrot.lane.b32.xlu0 %v2302, 64
  %v2363 = vpop.permute.xlu0 %2362
  %2364 = vrot.lane.b32.xlu0 %v2303, 64
  %v2365 = vpop.permute.xlu0 %2364
  %2366 = vrot.lane.b32.xlu0 %v2304, 64
  %v2367 = vpop.permute.xlu0 %2366
  %2368 = vrot.lane.b32.xlu0 %v2305, 64
  %v2369 = vpop.permute.xlu0 %2368
  %v2402 = vrot.slane %v734, 6
  %v2403 = vrot.slane %v739, 6
  %v2404 = vrot.slane %v744, 6
  %v2405 = vrot.slane %v749, 6
  %v2406 = vrot.slane %v754, 6
  %v2407 = vrot.slane %v759, 6
  %v2408 = vrot.slane %v764, 6
  %v2409 = vrot.slane %v769, 6
  %v2410 = vrot.slane %v774, 6
  %v2411 = vrot.slane %v779, 6
  %v2412 = vrot.slane %v784, 6
  %v2413 = vrot.slane %v789, 6
  %v2414 = vrot.slane %v794, 6
  %v2415 = vrot.slane %v799, 6
  %v2416 = vrot.slane %v804, 6
  %v2417 = vrot.slane %v809, 6
  %v2418 = vrot.slane %v814, 6
  %v2419 = vrot.slane %v819, 6
  %v2420 = vrot.slane %v824, 6
  %v2421 = vrot.slane %v829, 6
  %v2422 = vrot.slane %v834, 6
  %v2423 = vrot.slane %v839, 6
  %v2424 = vrot.slane %v844, 6
  %v2425 = vrot.slane %v849, 6
  %v2426 = vrot.slane %v854, 6
  %v2427 = vrot.slane %v859, 6
  %v2428 = vrot.slane %v864, 6
  %v2429 = vrot.slane %v869, 6
  %v2430 = vrot.slane %v874, 6
  %v2431 = vrot.slane %v879, 6
  %v2432 = vrot.slane %v884, 6
  %v2433 = vrot.slane %v889, 6
  %2434 = vrot.lane.b32.xlu0 %v2402, 80
  %v2435 = vpop.permute.xlu0 %2434
  %2436 = vrot.lane.b32.xlu0 %v2403, 80
  %v2437 = vpop.permute.xlu0 %2436
  %2438 = vrot.lane.b32.xlu0 %v2404, 80
  %v2439 = vpop.permute.xlu0 %2438
  %2440 = vrot.lane.b32.xlu0 %v2405, 80
  %v2441 = vpop.permute.xlu0 %2440
  %2442 = vrot.lane.b32.xlu0 %v2406, 80
  %v2443 = vpop.permute.xlu0 %2442
  %2444 = vrot.lane.b32.xlu0 %v2407, 80
  %v2445 = vpop.permute.xlu0 %2444
  %2446 = vrot.lane.b32.xlu0 %v2408, 80
  %v2447 = vpop.permute.xlu0 %2446
  %2448 = vrot.lane.b32.xlu0 %v2409, 80
  %v2449 = vpop.permute.xlu0 %2448
  %2450 = vrot.lane.b32.xlu0 %v2410, 80
  %v2451 = vpop.permute.xlu0 %2450
  %2452 = vrot.lane.b32.xlu0 %v2411, 80
  %v2453 = vpop.permute.xlu0 %2452
  %2454 = vrot.lane.b32.xlu0 %v2412, 80
  %v2455 = vpop.permute.xlu0 %2454
  %2456 = vrot.lane.b32.xlu0 %v2413, 80
  %v2457 = vpop.permute.xlu0 %2456
  %2458 = vrot.lane.b32.xlu0 %v2414, 80
  %v2459 = vpop.permute.xlu0 %2458
  %2460 = vrot.lane.b32.xlu0 %v2415, 80
  %v2461 = vpop.permute.xlu0 %2460
  %2462 = vrot.lane.b32.xlu0 %v2416, 80
  %v2463 = vpop.permute.xlu0 %2462
  %2464 = vrot.lane.b32.xlu0 %v2417, 80
  %v2465 = vpop.permute.xlu0 %2464
  %2466 = vrot.lane.b32.xlu0 %v2418, 80
  %v2467 = vpop.permute.xlu0 %2466
  %2468 = vrot.lane.b32.xlu0 %v2419, 80
  %v2469 = vpop.permute.xlu0 %2468
  %2470 = vrot.lane.b32.xlu0 %v2420, 80
  %v2471 = vpop.permute.xlu0 %2470
  %2472 = vrot.lane.b32.xlu0 %v2421, 80
  %v2473 = vpop.permute.xlu0 %2472
  %2474 = vrot.lane.b32.xlu0 %v2422, 80
  %v2475 = vpop.permute.xlu0 %2474
  %2476 = vrot.lane.b32.xlu0 %v2423, 80
  %v2477 = vpop.permute.xlu0 %2476
  %2478 = vrot.lane.b32.xlu0 %v2424, 80
  %v2479 = vpop.permute.xlu0 %2478
  %2480 = vrot.lane.b32.xlu0 %v2425, 80
  %v2481 = vpop.permute.xlu0 %2480
  %2482 = vrot.lane.b32.xlu0 %v2426, 80
  %v2483 = vpop.permute.xlu0 %2482
  %2484 = vrot.lane.b32.xlu0 %v2427, 80
  %v2485 = vpop.permute.xlu0 %2484
  %2486 = vrot.lane.b32.xlu0 %v2428, 80
  %v2487 = vpop.permute.xlu0 %2486
  %2488 = vrot.lane.b32.xlu0 %v2429, 80
  %v2489 = vpop.permute.xlu0 %2488
  %2490 = vrot.lane.b32.xlu0 %v2430, 80
  %v2491 = vpop.permute.xlu0 %2490
  %2492 = vrot.lane.b32.xlu0 %v2431, 80
  %v2493 = vpop.permute.xlu0 %2492
  %2494 = vrot.lane.b32.xlu0 %v2432, 80
  %v2495 = vpop.permute.xlu0 %2494
  %2496 = vrot.lane.b32.xlu0 %v2433, 80
  %v2497 = vpop.permute.xlu0 %2496
  %v2530 = vrot.slane %v734, 7
  %v2531 = vrot.slane %v739, 7
  %v2532 = vrot.slane %v744, 7
  %v2533 = vrot.slane %v749, 7
  %v2534 = vrot.slane %v754, 7
  %v2535 = vrot.slane %v759, 7
  %v2536 = vrot.slane %v764, 7
  %v2537 = vrot.slane %v769, 7
  %v2538 = vrot.slane %v774, 7
  %v2539 = vrot.slane %v779, 7
  %v2540 = vrot.slane %v784, 7
  %v2541 = vrot.slane %v789, 7
  %v2542 = vrot.slane %v794, 7
  %v2543 = vrot.slane %v799, 7
  %v2544 = vrot.slane %v804, 7
  %v2545 = vrot.slane %v809, 7
  %v2546 = vrot.slane %v814, 7
  %v2547 = vrot.slane %v819, 7
  %v2548 = vrot.slane %v824, 7
  %v2549 = vrot.slane %v829, 7
  %v2550 = vrot.slane %v834, 7
  %v2551 = vrot.slane %v839, 7
  %v2552 = vrot.slane %v844, 7
  %v2553 = vrot.slane %v849, 7
  %v2554 = vrot.slane %v854, 7
  %v2555 = vrot.slane %v859, 7
  %v2556 = vrot.slane %v864, 7
  %v2557 = vrot.slane %v869, 7
  %v2558 = vrot.slane %v874, 7
  %v2559 = vrot.slane %v879, 7
  %v2560 = vrot.slane %v884, 7
  %v2561 = vrot.slane %v889, 7
  %2562 = vrot.lane.b32.xlu0 %v2530, 96
  %v2563 = vpop.permute.xlu0 %2562
  %2564 = vrot.lane.b32.xlu0 %v2531, 96
  %v2565 = vpop.permute.xlu0 %2564
  %2566 = vrot.lane.b32.xlu0 %v2532, 96
  %v2567 = vpop.permute.xlu0 %2566
  %2568 = vrot.lane.b32.xlu0 %v2533, 96
  %v2569 = vpop.permute.xlu0 %2568
  %2570 = vrot.lane.b32.xlu0 %v2534, 96
  %v2571 = vpop.permute.xlu0 %2570
  %2572 = vrot.lane.b32.xlu0 %v2535, 96
  %v2573 = vpop.permute.xlu0 %2572
  %2574 = vrot.lane.b32.xlu0 %v2536, 96
  %v2575 = vpop.permute.xlu0 %2574
  %2576 = vrot.lane.b32.xlu0 %v2537, 96
  %v2577 = vpop.permute.xlu0 %2576
  %2578 = vrot.lane.b32.xlu0 %v2538, 96
  %v2579 = vpop.permute.xlu0 %2578
  %2580 = vrot.lane.b32.xlu0 %v2539, 96
  %v2581 = vpop.permute.xlu0 %2580
  %2582 = vrot.lane.b32.xlu0 %v2540, 96
  %v2583 = vpop.permute.xlu0 %2582
  %2584 = vrot.lane.b32.xlu0 %v2541, 96
  %v2585 = vpop.permute.xlu0 %2584
  %2586 = vrot.lane.b32.xlu0 %v2542, 96
  %v2587 = vpop.permute.xlu0 %2586
  %2588 = vrot.lane.b32.xlu0 %v2543, 96
  %v2589 = vpop.permute.xlu0 %2588
  %2590 = vrot.lane.b32.xlu0 %v2544, 96
  %v2591 = vpop.permute.xlu0 %2590
  %2592 = vrot.lane.b32.xlu0 %v2545, 96
  %v2593 = vpop.permute.xlu0 %2592
  %2594 = vrot.lane.b32.xlu0 %v2546, 96
  %v2595 = vpop.permute.xlu0 %2594
  %2596 = vrot.lane.b32.xlu0 %v2547, 96
  %v2597 = vpop.permute.xlu0 %2596
  %2598 = vrot.lane.b32.xlu0 %v2548, 96
  %v2599 = vpop.permute.xlu0 %2598
  %2600 = vrot.lane.b32.xlu0 %v2549, 96
  %v2601 = vpop.permute.xlu0 %2600
  %2602 = vrot.lane.b32.xlu0 %v2550, 96
  %v2603 = vpop.permute.xlu0 %2602
  %2604 = vrot.lane.b32.xlu0 %v2551, 96
  %v2605 = vpop.permute.xlu0 %2604
  %2606 = vrot.lane.b32.xlu0 %v2552, 96
  %v2607 = vpop.permute.xlu0 %2606
  %2608 = vrot.lane.b32.xlu0 %v2553, 96
  %v2609 = vpop.permute.xlu0 %2608
  %2610 = vrot.lane.b32.xlu0 %v2554, 96
  %v2611 = vpop.permute.xlu0 %2610
  %2612 = vrot.lane.b32.xlu0 %v2555, 96
  %v2613 = vpop.permute.xlu0 %2612
  %2614 = vrot.lane.b32.xlu0 %v2556, 96
  %v2615 = vpop.permute.xlu0 %2614
  %2616 = vrot.lane.b32.xlu0 %v2557, 96
  %v2617 = vpop.permute.xlu0 %2616
  %2618 = vrot.lane.b32.xlu0 %v2558, 96
  %v2619 = vpop.permute.xlu0 %2618
  %2620 = vrot.lane.b32.xlu0 %v2559, 96
  %v2621 = vpop.permute.xlu0 %2620
  %2622 = vrot.lane.b32.xlu0 %v2560, 96
  %v2623 = vpop.permute.xlu0 %2622
  %2624 = vrot.lane.b32.xlu0 %v2561, 96
  %v2625 = vpop.permute.xlu0 %2624
  %v2658 = vsel %vm77, %v1501, %v1826
  %v2659 = vsel %vm77, %v1503, %v1827
  %v2660 = vsel %vm77, %v1505, %v1828
  %v2661 = vsel %vm77, %v1507, %v1829
  %v2662 = vsel %vm77, %v1509, %v1830
  %v2663 = vsel %vm77, %v1511, %v1831
  %v2664 = vsel %vm77, %v1513, %v1832
  %v2665 = vsel %vm77, %v1515, %v1833
  %v2666 = vsel %vm77, %v1517, %v1834
  %v2667 = vsel %vm77, %v1519, %v1835
  %v2668 = vsel %vm77, %v1521, %v1836
  %v2669 = vsel %vm77, %v1523, %v1837
  %v2670 = vsel %vm77, %v1525, %v1838
  %v2671 = vsel %vm77, %v1527, %v1839
  %v2672 = vsel %vm77, %v1529, %v1840
  %v2673 = vsel %vm77, %v1531, %v1841
  %v2674 = vsel %vm77, %v1533, %v1842
  %v2675 = vsel %vm77, %v1535, %v1843
  %v2676 = vsel %vm77, %v1537, %v1844
  %v2677 = vsel %vm77, %v1539, %v1845
  %v2678 = vsel %vm77, %v1541, %v1846
  %v2679 = vsel %vm77, %v1543, %v1847
  %v2680 = vsel %vm77, %v1545, %v1848
  %v2681 = vsel %vm77, %v1547, %v1849
  %v2682 = vsel %vm77, %v1549, %v1850
  %v2683 = vsel %vm77, %v1551, %v1851
  %v2684 = vsel %vm77, %v1553, %v1852
  %v2685 = vsel %vm77, %v1555, %v1853
  %v2686 = vsel %vm77, %v1557, %v1854
  %v2687 = vsel %vm77, %v1559, %v1855
  %v2688 = vsel %vm77, %v1561, %v1856
  %v2689 = vsel %vm77, %v1563, %v1857
  %v2690 = vsel %vm1628, %v2658, %v1923
  %v2691 = vsel %vm1628, %v2659, %v1925
  %v2692 = vsel %vm1628, %v2660, %v1927
  %v2693 = vsel %vm1628, %v2661, %v1929
  %v2694 = vsel %vm1628, %v2662, %v1931
  %v2695 = vsel %vm1628, %v2663, %v1933
  %v2696 = vsel %vm1628, %v2664, %v1935
  %v2697 = vsel %vm1628, %v2665, %v1937
  %v2698 = vsel %vm1628, %v2666, %v1939
  %v2699 = vsel %vm1628, %v2667, %v1941
  %v2700 = vsel %vm1628, %v2668, %v1943
  %v2701 = vsel %vm1628, %v2669, %v1945
  %v2702 = vsel %vm1628, %v2670, %v1947
  %v2703 = vsel %vm1628, %v2671, %v1949
  %v2704 = vsel %vm1628, %v2672, %v1951
  %v2705 = vsel %vm1628, %v2673, %v1953
  %v2706 = vsel %vm1628, %v2674, %v1955
  %v2707 = vsel %vm1628, %v2675, %v1957
  %v2708 = vsel %vm1628, %v2676, %v1959
  %v2709 = vsel %vm1628, %v2677, %v1961
  %v2710 = vsel %vm1628, %v2678, %v1963
  %v2711 = vsel %vm1628, %v2679, %v1965
  %v2712 = vsel %vm1628, %v2680, %v1967
  %v2713 = vsel %vm1628, %v2681, %v1969
  %v2714 = vsel %vm1628, %v2682, %v1971
  %v2715 = vsel %vm1628, %v2683, %v1973
  %v2716 = vsel %vm1628, %v2684, %v1975
  %v2717 = vsel %vm1628, %v2685, %v1977
  %v2718 = vsel %vm1628, %v2686, %v1979
  %v2719 = vsel %vm1628, %v2687, %v1981
  %v2720 = vsel %vm1628, %v2688, %v1983
  %v2721 = vsel %vm1628, %v2689, %v1985
  %v2722 = vsel %vm1661, %v2690, %v2051
  %v2723 = vsel %vm1661, %v2691, %v2053
  %v2724 = vsel %vm1661, %v2692, %v2055
  %v2725 = vsel %vm1661, %v2693, %v2057
  %v2726 = vsel %vm1661, %v2694, %v2059
  %v2727 = vsel %vm1661, %v2695, %v2061
  %v2728 = vsel %vm1661, %v2696, %v2063
  %v2729 = vsel %vm1661, %v2697, %v2065
  %v2730 = vsel %vm1661, %v2698, %v2067
  %v2731 = vsel %vm1661, %v2699, %v2069
  %v2732 = vsel %vm1661, %v2700, %v2071
  %v2733 = vsel %vm1661, %v2701, %v2073
  %v2734 = vsel %vm1661, %v2702, %v2075
  %v2735 = vsel %vm1661, %v2703, %v2077
  %v2736 = vsel %vm1661, %v2704, %v2079
  %v2737 = vsel %vm1661, %v2705, %v2081
  %v2738 = vsel %vm1661, %v2706, %v2083
  %v2739 = vsel %vm1661, %v2707, %v2085
  %v2740 = vsel %vm1661, %v2708, %v2087
  %v2741 = vsel %vm1661, %v2709, %v2089
  %v2742 = vsel %vm1661, %v2710, %v2091
  %v2743 = vsel %vm1661, %v2711, %v2093
  %v2744 = vsel %vm1661, %v2712, %v2095
  %v2745 = vsel %vm1661, %v2713, %v2097
  %v2746 = vsel %vm1661, %v2714, %v2099
  %v2747 = vsel %vm1661, %v2715, %v2101
  %v2748 = vsel %vm1661, %v2716, %v2103
  %v2749 = vsel %vm1661, %v2717, %v2105
  %v2750 = vsel %vm1661, %v2718, %v2107
  %v2751 = vsel %vm1661, %v2719, %v2109
  %v2752 = vsel %vm1661, %v2720, %v2111
  %v2753 = vsel %vm1661, %v2721, %v2113
  %v2754 = vsel %vm1694, %v2722, %v2179
  %v2755 = vsel %vm1694, %v2723, %v2181
  %v2756 = vsel %vm1694, %v2724, %v2183
  %v2757 = vsel %vm1694, %v2725, %v2185
  %v2758 = vsel %vm1694, %v2726, %v2187
  %v2759 = vsel %vm1694, %v2727, %v2189
  %v2760 = vsel %vm1694, %v2728, %v2191
  %v2761 = vsel %vm1694, %v2729, %v2193
  %v2762 = vsel %vm1694, %v2730, %v2195
  %v2763 = vsel %vm1694, %v2731, %v2197
  %v2764 = vsel %vm1694, %v2732, %v2199
  %v2765 = vsel %vm1694, %v2733, %v2201
  %v2766 = vsel %vm1694, %v2734, %v2203
  %v2767 = vsel %vm1694, %v2735, %v2205
  %v2768 = vsel %vm1694, %v2736, %v2207
  %v2769 = vsel %vm1694, %v2737, %v2209
  %v2770 = vsel %vm1694, %v2738, %v2211
  %v2771 = vsel %vm1694, %v2739, %v2213
  %v2772 = vsel %vm1694, %v2740, %v2215
  %v2773 = vsel %vm1694, %v2741, %v2217
  %v2774 = vsel %vm1694, %v2742, %v2219
  %v2775 = vsel %vm1694, %v2743, %v2221
  %v2776 = vsel %vm1694, %v2744, %v2223
  %v2777 = vsel %vm1694, %v2745, %v2225
  %v2778 = vsel %vm1694, %v2746, %v2227
  %v2779 = vsel %vm1694, %v2747, %v2229
  %v2780 = vsel %vm1694, %v2748, %v2231
  %v2781 = vsel %vm1694, %v2749, %v2233
  %v2782 = vsel %vm1694, %v2750, %v2235
  %v2783 = vsel %vm1694, %v2751, %v2237
  %v2784 = vsel %vm1694, %v2752, %v2239
  %v2785 = vsel %vm1694, %v2753, %v2241
  %v2786 = vsel %vm1727, %v2754, %v2307
  %v2787 = vsel %vm1727, %v2755, %v2309
  %v2788 = vsel %vm1727, %v2756, %v2311
  %v2789 = vsel %vm1727, %v2757, %v2313
  %v2790 = vsel %vm1727, %v2758, %v2315
  %v2791 = vsel %vm1727, %v2759, %v2317
  %v2792 = vsel %vm1727, %v2760, %v2319
  %v2793 = vsel %vm1727, %v2761, %v2321
  %v2794 = vsel %vm1727, %v2762, %v2323
  %v2795 = vsel %vm1727, %v2763, %v2325
  %v2796 = vsel %vm1727, %v2764, %v2327
  %v2797 = vsel %vm1727, %v2765, %v2329
  %v2798 = vsel %vm1727, %v2766, %v2331
  %v2799 = vsel %vm1727, %v2767, %v2333
  %v2800 = vsel %vm1727, %v2768, %v2335
  %v2801 = vsel %vm1727, %v2769, %v2337
  %v2802 = vsel %vm1727, %v2770, %v2339
  %v2803 = vsel %vm1727, %v2771, %v2341
  %v2804 = vsel %vm1727, %v2772, %v2343
  %v2805 = vsel %vm1727, %v2773, %v2345
  %v2806 = vsel %vm1727, %v2774, %v2347
  %v2807 = vsel %vm1727, %v2775, %v2349
  %v2808 = vsel %vm1727, %v2776, %v2351
  %v2809 = vsel %vm1727, %v2777, %v2353
  %v2810 = vsel %vm1727, %v2778, %v2355
  %v2811 = vsel %vm1727, %v2779, %v2357
  %v2812 = vsel %vm1727, %v2780, %v2359
  %v2813 = vsel %vm1727, %v2781, %v2361
  %v2814 = vsel %vm1727, %v2782, %v2363
  %v2815 = vsel %vm1727, %v2783, %v2365
  %v2816 = vsel %vm1727, %v2784, %v2367
  %v2817 = vsel %vm1727, %v2785, %v2369
  %v2818 = vsel %vm1760, %v2786, %v2435
  %v2819 = vsel %vm1760, %v2787, %v2437
  %v2820 = vsel %vm1760, %v2788, %v2439
  %v2821 = vsel %vm1760, %v2789, %v2441
  %v2822 = vsel %vm1760, %v2790, %v2443
  %v2823 = vsel %vm1760, %v2791, %v2445
  %v2824 = vsel %vm1760, %v2792, %v2447
  %v2825 = vsel %vm1760, %v2793, %v2449
  %v2826 = vsel %vm1760, %v2794, %v2451
  %v2827 = vsel %vm1760, %v2795, %v2453
  %v2828 = vsel %vm1760, %v2796, %v2455
  %v2829 = vsel %vm1760, %v2797, %v2457
  %v2830 = vsel %vm1760, %v2798, %v2459
  %v2831 = vsel %vm1760, %v2799, %v2461
  %v2832 = vsel %vm1760, %v2800, %v2463
  %v2833 = vsel %vm1760, %v2801, %v2465
  %v2834 = vsel %vm1760, %v2802, %v2467
  %v2835 = vsel %vm1760, %v2803, %v2469
  %v2836 = vsel %vm1760, %v2804, %v2471
  %v2837 = vsel %vm1760, %v2805, %v2473
  %v2838 = vsel %vm1760, %v2806, %v2475
  %v2839 = vsel %vm1760, %v2807, %v2477
  %v2840 = vsel %vm1760, %v2808, %v2479
  %v2841 = vsel %vm1760, %v2809, %v2481
  %v2842 = vsel %vm1760, %v2810, %v2483
  %v2843 = vsel %vm1760, %v2811, %v2485
  %v2844 = vsel %vm1760, %v2812, %v2487
  %v2845 = vsel %vm1760, %v2813, %v2489
  %v2846 = vsel %vm1760, %v2814, %v2491
  %v2847 = vsel %vm1760, %v2815, %v2493
  %v2848 = vsel %vm1760, %v2816, %v2495
  %v2849 = vsel %vm1760, %v2817, %v2497
  %v2850 = vsel %vm1793, %v2818, %v2563
  %v2851 = vsel %vm1793, %v2819, %v2565
  %v2852 = vsel %vm1793, %v2820, %v2567
  %v2853 = vsel %vm1793, %v2821, %v2569
  %v2854 = vsel %vm1793, %v2822, %v2571
  %v2855 = vsel %vm1793, %v2823, %v2573
  %v2856 = vsel %vm1793, %v2824, %v2575
  %v2857 = vsel %vm1793, %v2825, %v2577
  %v2858 = vsel %vm1793, %v2826, %v2579
  %v2859 = vsel %vm1793, %v2827, %v2581
  %v2860 = vsel %vm1793, %v2828, %v2583
  %v2861 = vsel %vm1793, %v2829, %v2585
  %v2862 = vsel %vm1793, %v2830, %v2587
  %v2863 = vsel %vm1793, %v2831, %v2589
  %v2864 = vsel %vm1793, %v2832, %v2591
  %v2865 = vsel %vm1793, %v2833, %v2593
  %v2866 = vsel %vm1793, %v2834, %v2595
  %v2867 = vsel %vm1793, %v2835, %v2597
  %v2868 = vsel %vm1793, %v2836, %v2599
  %v2869 = vsel %vm1793, %v2837, %v2601
  %v2870 = vsel %vm1793, %v2838, %v2603
  %v2871 = vsel %vm1793, %v2839, %v2605
  %v2872 = vsel %vm1793, %v2840, %v2607
  %v2873 = vsel %vm1793, %v2841, %v2609
  %v2874 = vsel %vm1793, %v2842, %v2611
  %v2875 = vsel %vm1793, %v2843, %v2613
  %v2876 = vsel %vm1793, %v2844, %v2615
  %v2877 = vsel %vm1793, %v2845, %v2617
  %v2878 = vsel %vm1793, %v2846, %v2619
  %v2879 = vsel %vm1793, %v2847, %v2621
  %v2880 = vsel %vm1793, %v2848, %v2623
  %v2881 = vsel %vm1793, %v2849, %v2625
  %2882 = vrot.lane.b32.xlu0 %v1826, 112
  %v2883 = vpop.permute.xlu0 %2882
  %2884 = vrot.lane.b32.xlu0 %v1827, 112
  %v2885 = vpop.permute.xlu0 %2884
  %2886 = vrot.lane.b32.xlu0 %v1828, 112
  %v2887 = vpop.permute.xlu0 %2886
  %2888 = vrot.lane.b32.xlu0 %v1829, 112
  %v2889 = vpop.permute.xlu0 %2888
  %2890 = vrot.lane.b32.xlu0 %v1830, 112
  %v2891 = vpop.permute.xlu0 %2890
  %2892 = vrot.lane.b32.xlu0 %v1831, 112
  %v2893 = vpop.permute.xlu0 %2892
  %2894 = vrot.lane.b32.xlu0 %v1832, 112
  %v2895 = vpop.permute.xlu0 %2894
  %2896 = vrot.lane.b32.xlu0 %v1833, 112
  %v2897 = vpop.permute.xlu0 %2896
  %2898 = vrot.lane.b32.xlu0 %v1834, 112
  %v2899 = vpop.permute.xlu0 %2898
  %2900 = vrot.lane.b32.xlu0 %v1835, 112
  %v2901 = vpop.permute.xlu0 %2900
  %2902 = vrot.lane.b32.xlu0 %v1836, 112
  %v2903 = vpop.permute.xlu0 %2902
  %2904 = vrot.lane.b32.xlu0 %v1837, 112
  %v2905 = vpop.permute.xlu0 %2904
  %2906 = vrot.lane.b32.xlu0 %v1838, 112
  %v2907 = vpop.permute.xlu0 %2906
  %2908 = vrot.lane.b32.xlu0 %v1839, 112
  %v2909 = vpop.permute.xlu0 %2908
  %2910 = vrot.lane.b32.xlu0 %v1840, 112
  %v2911 = vpop.permute.xlu0 %2910
  %2912 = vrot.lane.b32.xlu0 %v1841, 112
  %v2913 = vpop.permute.xlu0 %2912
  %2914 = vrot.lane.b32.xlu0 %v1842, 112
  %v2915 = vpop.permute.xlu0 %2914
  %2916 = vrot.lane.b32.xlu0 %v1843, 112
  %v2917 = vpop.permute.xlu0 %2916
  %2918 = vrot.lane.b32.xlu0 %v1844, 112
  %v2919 = vpop.permute.xlu0 %2918
  %2920 = vrot.lane.b32.xlu0 %v1845, 112
  %v2921 = vpop.permute.xlu0 %2920
  %2922 = vrot.lane.b32.xlu0 %v1846, 112
  %v2923 = vpop.permute.xlu0 %2922
  %2924 = vrot.lane.b32.xlu0 %v1847, 112
  %v2925 = vpop.permute.xlu0 %2924
  %2926 = vrot.lane.b32.xlu0 %v1848, 112
  %v2927 = vpop.permute.xlu0 %2926
  %2928 = vrot.lane.b32.xlu0 %v1849, 112
  %v2929 = vpop.permute.xlu0 %2928
  %2930 = vrot.lane.b32.xlu0 %v1850, 112
  %v2931 = vpop.permute.xlu0 %2930
  %2932 = vrot.lane.b32.xlu0 %v1851, 112
  %v2933 = vpop.permute.xlu0 %2932
  %2934 = vrot.lane.b32.xlu0 %v1852, 112
  %v2935 = vpop.permute.xlu0 %2934
  %2936 = vrot.lane.b32.xlu0 %v1853, 112
  %v2937 = vpop.permute.xlu0 %2936
  %2938 = vrot.lane.b32.xlu0 %v1854, 112
  %v2939 = vpop.permute.xlu0 %2938
  %2940 = vrot.lane.b32.xlu0 %v1855, 112
  %v2941 = vpop.permute.xlu0 %2940
  %2942 = vrot.lane.b32.xlu0 %v1856, 112
  %v2943 = vpop.permute.xlu0 %2942
  %2944 = vrot.lane.b32.xlu0 %v1857, 112
  %v2945 = vpop.permute.xlu0 %2944
  %3010 = vrot.lane.b32.xlu0 %v2018, 16
  %v3011 = vpop.permute.xlu0 %3010
  %3012 = vrot.lane.b32.xlu0 %v2019, 16
  %v3013 = vpop.permute.xlu0 %3012
  %3014 = vrot.lane.b32.xlu0 %v2020, 16
  %v3015 = vpop.permute.xlu0 %3014
  %3016 = vrot.lane.b32.xlu0 %v2021, 16
  %v3017 = vpop.permute.xlu0 %3016
  %3018 = vrot.lane.b32.xlu0 %v2022, 16
  %v3019 = vpop.permute.xlu0 %3018
  %3020 = vrot.lane.b32.xlu0 %v2023, 16
  %v3021 = vpop.permute.xlu0 %3020
  %3022 = vrot.lane.b32.xlu0 %v2024, 16
  %v3023 = vpop.permute.xlu0 %3022
  %3024 = vrot.lane.b32.xlu0 %v2025, 16
  %v3025 = vpop.permute.xlu0 %3024
  %3026 = vrot.lane.b32.xlu0 %v2026, 16
  %v3027 = vpop.permute.xlu0 %3026
  %3028 = vrot.lane.b32.xlu0 %v2027, 16
  %v3029 = vpop.permute.xlu0 %3028
  %3030 = vrot.lane.b32.xlu0 %v2028, 16
  %v3031 = vpop.permute.xlu0 %3030
  %3032 = vrot.lane.b32.xlu0 %v2029, 16
  %v3033 = vpop.permute.xlu0 %3032
  %3034 = vrot.lane.b32.xlu0 %v2030, 16
  %v3035 = vpop.permute.xlu0 %3034
  %3036 = vrot.lane.b32.xlu0 %v2031, 16
  %v3037 = vpop.permute.xlu0 %3036
  %3038 = vrot.lane.b32.xlu0 %v2032, 16
  %v3039 = vpop.permute.xlu0 %3038
  %3040 = vrot.lane.b32.xlu0 %v2033, 16
  %v3041 = vpop.permute.xlu0 %3040
  %3042 = vrot.lane.b32.xlu0 %v2034, 16
  %v3043 = vpop.permute.xlu0 %3042
  %3044 = vrot.lane.b32.xlu0 %v2035, 16
  %v3045 = vpop.permute.xlu0 %3044
  %3046 = vrot.lane.b32.xlu0 %v2036, 16
  %v3047 = vpop.permute.xlu0 %3046
  %3048 = vrot.lane.b32.xlu0 %v2037, 16
  %v3049 = vpop.permute.xlu0 %3048
  %3050 = vrot.lane.b32.xlu0 %v2038, 16
  %v3051 = vpop.permute.xlu0 %3050
  %3052 = vrot.lane.b32.xlu0 %v2039, 16
  %v3053 = vpop.permute.xlu0 %3052
  %3054 = vrot.lane.b32.xlu0 %v2040, 16
  %v3055 = vpop.permute.xlu0 %3054
  %3056 = vrot.lane.b32.xlu0 %v2041, 16
  %v3057 = vpop.permute.xlu0 %3056
  %3058 = vrot.lane.b32.xlu0 %v2042, 16
  %v3059 = vpop.permute.xlu0 %3058
  %3060 = vrot.lane.b32.xlu0 %v2043, 16
  %v3061 = vpop.permute.xlu0 %3060
  %3062 = vrot.lane.b32.xlu0 %v2044, 16
  %v3063 = vpop.permute.xlu0 %3062
  %3064 = vrot.lane.b32.xlu0 %v2045, 16
  %v3065 = vpop.permute.xlu0 %3064
  %3066 = vrot.lane.b32.xlu0 %v2046, 16
  %v3067 = vpop.permute.xlu0 %3066
  %3068 = vrot.lane.b32.xlu0 %v2047, 16
  %v3069 = vpop.permute.xlu0 %3068
  %3070 = vrot.lane.b32.xlu0 %v2048, 16
  %v3071 = vpop.permute.xlu0 %3070
  %3072 = vrot.lane.b32.xlu0 %v2049, 16
  %v3073 = vpop.permute.xlu0 %3072
  %3106 = vrot.lane.b32.xlu0 %v2146, 32
  %v3107 = vpop.permute.xlu0 %3106
  %3108 = vrot.lane.b32.xlu0 %v2147, 32
  %v3109 = vpop.permute.xlu0 %3108
  %3110 = vrot.lane.b32.xlu0 %v2148, 32
  %v3111 = vpop.permute.xlu0 %3110
  %3112 = vrot.lane.b32.xlu0 %v2149, 32
  %v3113 = vpop.permute.xlu0 %3112
  %3114 = vrot.lane.b32.xlu0 %v2150, 32
  %v3115 = vpop.permute.xlu0 %3114
  %3116 = vrot.lane.b32.xlu0 %v2151, 32
  %v3117 = vpop.permute.xlu0 %3116
  %3118 = vrot.lane.b32.xlu0 %v2152, 32
  %v3119 = vpop.permute.xlu0 %3118
  %3120 = vrot.lane.b32.xlu0 %v2153, 32
  %v3121 = vpop.permute.xlu0 %3120
  %3122 = vrot.lane.b32.xlu0 %v2154, 32
  %v3123 = vpop.permute.xlu0 %3122
  %3124 = vrot.lane.b32.xlu0 %v2155, 32
  %v3125 = vpop.permute.xlu0 %3124
  %3126 = vrot.lane.b32.xlu0 %v2156, 32
  %v3127 = vpop.permute.xlu0 %3126
  %3128 = vrot.lane.b32.xlu0 %v2157, 32
  %v3129 = vpop.permute.xlu0 %3128
  %3130 = vrot.lane.b32.xlu0 %v2158, 32
  %v3131 = vpop.permute.xlu0 %3130
  %3132 = vrot.lane.b32.xlu0 %v2159, 32
  %v3133 = vpop.permute.xlu0 %3132
  %3134 = vrot.lane.b32.xlu0 %v2160, 32
  %v3135 = vpop.permute.xlu0 %3134
  %3136 = vrot.lane.b32.xlu0 %v2161, 32
  %v3137 = vpop.permute.xlu0 %3136
  %3138 = vrot.lane.b32.xlu0 %v2162, 32
  %v3139 = vpop.permute.xlu0 %3138
  %3140 = vrot.lane.b32.xlu0 %v2163, 32
  %v3141 = vpop.permute.xlu0 %3140
  %3142 = vrot.lane.b32.xlu0 %v2164, 32
  %v3143 = vpop.permute.xlu0 %3142
  %3144 = vrot.lane.b32.xlu0 %v2165, 32
  %v3145 = vpop.permute.xlu0 %3144
  %3146 = vrot.lane.b32.xlu0 %v2166, 32
  %v3147 = vpop.permute.xlu0 %3146
  %3148 = vrot.lane.b32.xlu0 %v2167, 32
  %v3149 = vpop.permute.xlu0 %3148
  %3150 = vrot.lane.b32.xlu0 %v2168, 32
  %v3151 = vpop.permute.xlu0 %3150
  %3152 = vrot.lane.b32.xlu0 %v2169, 32
  %v3153 = vpop.permute.xlu0 %3152
  %3154 = vrot.lane.b32.xlu0 %v2170, 32
  %v3155 = vpop.permute.xlu0 %3154
  %3156 = vrot.lane.b32.xlu0 %v2171, 32
  %v3157 = vpop.permute.xlu0 %3156
  %3158 = vrot.lane.b32.xlu0 %v2172, 32
  %v3159 = vpop.permute.xlu0 %3158
  %3160 = vrot.lane.b32.xlu0 %v2173, 32
  %v3161 = vpop.permute.xlu0 %3160
  %3162 = vrot.lane.b32.xlu0 %v2174, 32
  %v3163 = vpop.permute.xlu0 %3162
  %3164 = vrot.lane.b32.xlu0 %v2175, 32
  %v3165 = vpop.permute.xlu0 %3164
  %3166 = vrot.lane.b32.xlu0 %v2176, 32
  %v3167 = vpop.permute.xlu0 %3166
  %3168 = vrot.lane.b32.xlu0 %v2177, 32
  %v3169 = vpop.permute.xlu0 %3168
  %3202 = vrot.lane.b32.xlu0 %v2274, 48
  %v3203 = vpop.permute.xlu0 %3202
  %3204 = vrot.lane.b32.xlu0 %v2275, 48
  %v3205 = vpop.permute.xlu0 %3204
  %3206 = vrot.lane.b32.xlu0 %v2276, 48
  %v3207 = vpop.permute.xlu0 %3206
  %3208 = vrot.lane.b32.xlu0 %v2277, 48
  %v3209 = vpop.permute.xlu0 %3208
  %3210 = vrot.lane.b32.xlu0 %v2278, 48
  %v3211 = vpop.permute.xlu0 %3210
  %3212 = vrot.lane.b32.xlu0 %v2279, 48
  %v3213 = vpop.permute.xlu0 %3212
  %3214 = vrot.lane.b32.xlu0 %v2280, 48
  %v3215 = vpop.permute.xlu0 %3214
  %3216 = vrot.lane.b32.xlu0 %v2281, 48
  %v3217 = vpop.permute.xlu0 %3216
  %3218 = vrot.lane.b32.xlu0 %v2282, 48
  %v3219 = vpop.permute.xlu0 %3218
  %3220 = vrot.lane.b32.xlu0 %v2283, 48
  %v3221 = vpop.permute.xlu0 %3220
  %3222 = vrot.lane.b32.xlu0 %v2284, 48
  %v3223 = vpop.permute.xlu0 %3222
  %3224 = vrot.lane.b32.xlu0 %v2285, 48
  %v3225 = vpop.permute.xlu0 %3224
  %3226 = vrot.lane.b32.xlu0 %v2286, 48
  %v3227 = vpop.permute.xlu0 %3226
  %3228 = vrot.lane.b32.xlu0 %v2287, 48
  %v3229 = vpop.permute.xlu0 %3228
  %3230 = vrot.lane.b32.xlu0 %v2288, 48
  %v3231 = vpop.permute.xlu0 %3230
  %3232 = vrot.lane.b32.xlu0 %v2289, 48
  %v3233 = vpop.permute.xlu0 %3232
  %3234 = vrot.lane.b32.xlu0 %v2290, 48
  %v3235 = vpop.permute.xlu0 %3234
  %3236 = vrot.lane.b32.xlu0 %v2291, 48
  %v3237 = vpop.permute.xlu0 %3236
  %3238 = vrot.lane.b32.xlu0 %v2292, 48
  %v3239 = vpop.permute.xlu0 %3238
  %3240 = vrot.lane.b32.xlu0 %v2293, 48
  %v3241 = vpop.permute.xlu0 %3240
  %3242 = vrot.lane.b32.xlu0 %v2294, 48
  %v3243 = vpop.permute.xlu0 %3242
  %3244 = vrot.lane.b32.xlu0 %v2295, 48
  %v3245 = vpop.permute.xlu0 %3244
  %3246 = vrot.lane.b32.xlu0 %v2296, 48
  %v3247 = vpop.permute.xlu0 %3246
  %3248 = vrot.lane.b32.xlu0 %v2297, 48
  %v3249 = vpop.permute.xlu0 %3248
  %3250 = vrot.lane.b32.xlu0 %v2298, 48
  %v3251 = vpop.permute.xlu0 %3250
  %3252 = vrot.lane.b32.xlu0 %v2299, 48
  %v3253 = vpop.permute.xlu0 %3252
  %3254 = vrot.lane.b32.xlu0 %v2300, 48
  %v3255 = vpop.permute.xlu0 %3254
  %3256 = vrot.lane.b32.xlu0 %v2301, 48
  %v3257 = vpop.permute.xlu0 %3256
  %3258 = vrot.lane.b32.xlu0 %v2302, 48
  %v3259 = vpop.permute.xlu0 %3258
  %3260 = vrot.lane.b32.xlu0 %v2303, 48
  %v3261 = vpop.permute.xlu0 %3260
  %3262 = vrot.lane.b32.xlu0 %v2304, 48
  %v3263 = vpop.permute.xlu0 %3262
  %3264 = vrot.lane.b32.xlu0 %v2305, 48
  %v3265 = vpop.permute.xlu0 %3264
  %3298 = vrot.lane.b32.xlu0 %v2402, 64
  %v3299 = vpop.permute.xlu0 %3298
  %3300 = vrot.lane.b32.xlu0 %v2403, 64
  %v3301 = vpop.permute.xlu0 %3300
  %3302 = vrot.lane.b32.xlu0 %v2404, 64
  %v3303 = vpop.permute.xlu0 %3302
  %3304 = vrot.lane.b32.xlu0 %v2405, 64
  %v3305 = vpop.permute.xlu0 %3304
  %3306 = vrot.lane.b32.xlu0 %v2406, 64
  %v3307 = vpop.permute.xlu0 %3306
  %3308 = vrot.lane.b32.xlu0 %v2407, 64
  %v3309 = vpop.permute.xlu0 %3308
  %3310 = vrot.lane.b32.xlu0 %v2408, 64
  %v3311 = vpop.permute.xlu0 %3310
  %3312 = vrot.lane.b32.xlu0 %v2409, 64
  %v3313 = vpop.permute.xlu0 %3312
  %3314 = vrot.lane.b32.xlu0 %v2410, 64
  %v3315 = vpop.permute.xlu0 %3314
  %3316 = vrot.lane.b32.xlu0 %v2411, 64
  %v3317 = vpop.permute.xlu0 %3316
  %3318 = vrot.lane.b32.xlu0 %v2412, 64
  %v3319 = vpop.permute.xlu0 %3318
  %3320 = vrot.lane.b32.xlu0 %v2413, 64
  %v3321 = vpop.permute.xlu0 %3320
  %3322 = vrot.lane.b32.xlu0 %v2414, 64
  %v3323 = vpop.permute.xlu0 %3322
  %3324 = vrot.lane.b32.xlu0 %v2415, 64
  %v3325 = vpop.permute.xlu0 %3324
  %3326 = vrot.lane.b32.xlu0 %v2416, 64
  %v3327 = vpop.permute.xlu0 %3326
  %3328 = vrot.lane.b32.xlu0 %v2417, 64
  %v3329 = vpop.permute.xlu0 %3328
  %3330 = vrot.lane.b32.xlu0 %v2418, 64
  %v3331 = vpop.permute.xlu0 %3330
  %3332 = vrot.lane.b32.xlu0 %v2419, 64
  %v3333 = vpop.permute.xlu0 %3332
  %3334 = vrot.lane.b32.xlu0 %v2420, 64
  %v3335 = vpop.permute.xlu0 %3334
  %3336 = vrot.lane.b32.xlu0 %v2421, 64
  %v3337 = vpop.permute.xlu0 %3336
  %3338 = vrot.lane.b32.xlu0 %v2422, 64
  %v3339 = vpop.permute.xlu0 %3338
  %3340 = vrot.lane.b32.xlu0 %v2423, 64
  %v3341 = vpop.permute.xlu0 %3340
  %3342 = vrot.lane.b32.xlu0 %v2424, 64
  %v3343 = vpop.permute.xlu0 %3342
  %3344 = vrot.lane.b32.xlu0 %v2425, 64
  %v3345 = vpop.permute.xlu0 %3344
  %3346 = vrot.lane.b32.xlu0 %v2426, 64
  %v3347 = vpop.permute.xlu0 %3346
  %3348 = vrot.lane.b32.xlu0 %v2427, 64
  %v3349 = vpop.permute.xlu0 %3348
  %3350 = vrot.lane.b32.xlu0 %v2428, 64
  %v3351 = vpop.permute.xlu0 %3350
  %3352 = vrot.lane.b32.xlu0 %v2429, 64
  %v3353 = vpop.permute.xlu0 %3352
  %3354 = vrot.lane.b32.xlu0 %v2430, 64
  %v3355 = vpop.permute.xlu0 %3354
  %3356 = vrot.lane.b32.xlu0 %v2431, 64
  %v3357 = vpop.permute.xlu0 %3356
  %3358 = vrot.lane.b32.xlu0 %v2432, 64
  %v3359 = vpop.permute.xlu0 %3358
  %3360 = vrot.lane.b32.xlu0 %v2433, 64
  %v3361 = vpop.permute.xlu0 %3360
  %3394 = vrot.lane.b32.xlu0 %v2530, 80
  %v3395 = vpop.permute.xlu0 %3394
  %3396 = vrot.lane.b32.xlu0 %v2531, 80
  %v3397 = vpop.permute.xlu0 %3396
  %3398 = vrot.lane.b32.xlu0 %v2532, 80
  %v3399 = vpop.permute.xlu0 %3398
  %3400 = vrot.lane.b32.xlu0 %v2533, 80
  %v3401 = vpop.permute.xlu0 %3400
  %3402 = vrot.lane.b32.xlu0 %v2534, 80
  %v3403 = vpop.permute.xlu0 %3402
  %3404 = vrot.lane.b32.xlu0 %v2535, 80
  %v3405 = vpop.permute.xlu0 %3404
  %3406 = vrot.lane.b32.xlu0 %v2536, 80
  %v3407 = vpop.permute.xlu0 %3406
  %3408 = vrot.lane.b32.xlu0 %v2537, 80
  %v3409 = vpop.permute.xlu0 %3408
  %3410 = vrot.lane.b32.xlu0 %v2538, 80
  %v3411 = vpop.permute.xlu0 %3410
  %3412 = vrot.lane.b32.xlu0 %v2539, 80
  %v3413 = vpop.permute.xlu0 %3412
  %3414 = vrot.lane.b32.xlu0 %v2540, 80
  %v3415 = vpop.permute.xlu0 %3414
  %3416 = vrot.lane.b32.xlu0 %v2541, 80
  %v3417 = vpop.permute.xlu0 %3416
  %3418 = vrot.lane.b32.xlu0 %v2542, 80
  %v3419 = vpop.permute.xlu0 %3418
  %3420 = vrot.lane.b32.xlu0 %v2543, 80
  %v3421 = vpop.permute.xlu0 %3420
  %3422 = vrot.lane.b32.xlu0 %v2544, 80
  %v3423 = vpop.permute.xlu0 %3422
  %3424 = vrot.lane.b32.xlu0 %v2545, 80
  %v3425 = vpop.permute.xlu0 %3424
  %3426 = vrot.lane.b32.xlu0 %v2546, 80
  %v3427 = vpop.permute.xlu0 %3426
  %3428 = vrot.lane.b32.xlu0 %v2547, 80
  %v3429 = vpop.permute.xlu0 %3428
  %3430 = vrot.lane.b32.xlu0 %v2548, 80
  %v3431 = vpop.permute.xlu0 %3430
  %3432 = vrot.lane.b32.xlu0 %v2549, 80
  %v3433 = vpop.permute.xlu0 %3432
  %3434 = vrot.lane.b32.xlu0 %v2550, 80
  %v3435 = vpop.permute.xlu0 %3434
  %3436 = vrot.lane.b32.xlu0 %v2551, 80
  %v3437 = vpop.permute.xlu0 %3436
  %3438 = vrot.lane.b32.xlu0 %v2552, 80
  %v3439 = vpop.permute.xlu0 %3438
  %3440 = vrot.lane.b32.xlu0 %v2553, 80
  %v3441 = vpop.permute.xlu0 %3440
  %3442 = vrot.lane.b32.xlu0 %v2554, 80
  %v3443 = vpop.permute.xlu0 %3442
  %3444 = vrot.lane.b32.xlu0 %v2555, 80
  %v3445 = vpop.permute.xlu0 %3444
  %3446 = vrot.lane.b32.xlu0 %v2556, 80
  %v3447 = vpop.permute.xlu0 %3446
  %3448 = vrot.lane.b32.xlu0 %v2557, 80
  %v3449 = vpop.permute.xlu0 %3448
  %3450 = vrot.lane.b32.xlu0 %v2558, 80
  %v3451 = vpop.permute.xlu0 %3450
  %3452 = vrot.lane.b32.xlu0 %v2559, 80
  %v3453 = vpop.permute.xlu0 %3452
  %3454 = vrot.lane.b32.xlu0 %v2560, 80
  %v3455 = vpop.permute.xlu0 %3454
  %3456 = vrot.lane.b32.xlu0 %v2561, 80
  %v3457 = vpop.permute.xlu0 %3456
  %v3490 = vsel %vm77, %v1405, %v2883
  %v3491 = vsel %vm77, %v1407, %v2885
  %v3492 = vsel %vm77, %v1409, %v2887
  %v3493 = vsel %vm77, %v1411, %v2889
  %v3494 = vsel %vm77, %v1413, %v2891
  %v3495 = vsel %vm77, %v1415, %v2893
  %v3496 = vsel %vm77, %v1417, %v2895
  %v3497 = vsel %vm77, %v1419, %v2897
  %v3498 = vsel %vm77, %v1421, %v2899
  %v3499 = vsel %vm77, %v1423, %v2901
  %v3500 = vsel %vm77, %v1425, %v2903
  %v3501 = vsel %vm77, %v1427, %v2905
  %v3502 = vsel %vm77, %v1429, %v2907
  %v3503 = vsel %vm77, %v1431, %v2909
  %v3504 = vsel %vm77, %v1433, %v2911
  %v3505 = vsel %vm77, %v1435, %v2913
  %v3506 = vsel %vm77, %v1437, %v2915
  %v3507 = vsel %vm77, %v1439, %v2917
  %v3508 = vsel %vm77, %v1441, %v2919
  %v3509 = vsel %vm77, %v1443, %v2921
  %v3510 = vsel %vm77, %v1445, %v2923
  %v3511 = vsel %vm77, %v1447, %v2925
  %v3512 = vsel %vm77, %v1449, %v2927
  %v3513 = vsel %vm77, %v1451, %v2929
  %v3514 = vsel %vm77, %v1453, %v2931
  %v3515 = vsel %vm77, %v1455, %v2933
  %v3516 = vsel %vm77, %v1457, %v2935
  %v3517 = vsel %vm77, %v1459, %v2937
  %v3518 = vsel %vm77, %v1461, %v2939
  %v3519 = vsel %vm77, %v1463, %v2941
  %v3520 = vsel %vm77, %v1465, %v2943
  %v3521 = vsel %vm77, %v1467, %v2945
  %v3522 = vsel %vm1628, %v3490, %v1890
  %v3523 = vsel %vm1628, %v3491, %v1891
  %v3524 = vsel %vm1628, %v3492, %v1892
  %v3525 = vsel %vm1628, %v3493, %v1893
  %v3526 = vsel %vm1628, %v3494, %v1894
  %v3527 = vsel %vm1628, %v3495, %v1895
  %v3528 = vsel %vm1628, %v3496, %v1896
  %v3529 = vsel %vm1628, %v3497, %v1897
  %v3530 = vsel %vm1628, %v3498, %v1898
  %v3531 = vsel %vm1628, %v3499, %v1899
  %v3532 = vsel %vm1628, %v3500, %v1900
  %v3533 = vsel %vm1628, %v3501, %v1901
  %v3534 = vsel %vm1628, %v3502, %v1902
  %v3535 = vsel %vm1628, %v3503, %v1903
  %v3536 = vsel %vm1628, %v3504, %v1904
  %v3537 = vsel %vm1628, %v3505, %v1905
  %v3538 = vsel %vm1628, %v3506, %v1906
  %v3539 = vsel %vm1628, %v3507, %v1907
  %v3540 = vsel %vm1628, %v3508, %v1908
  %v3541 = vsel %vm1628, %v3509, %v1909
  %v3542 = vsel %vm1628, %v3510, %v1910
  %v3543 = vsel %vm1628, %v3511, %v1911
  %v3544 = vsel %vm1628, %v3512, %v1912
  %v3545 = vsel %vm1628, %v3513, %v1913
  %v3546 = vsel %vm1628, %v3514, %v1914
  %v3547 = vsel %vm1628, %v3515, %v1915
  %v3548 = vsel %vm1628, %v3516, %v1916
  %v3549 = vsel %vm1628, %v3517, %v1917
  %v3550 = vsel %vm1628, %v3518, %v1918
  %v3551 = vsel %vm1628, %v3519, %v1919
  %v3552 = vsel %vm1628, %v3520, %v1920
  %v3553 = vsel %vm1628, %v3521, %v1921
  %v3554 = vsel %vm1661, %v3522, %v3011
  %v3555 = vsel %vm1661, %v3523, %v3013
  %v3556 = vsel %vm1661, %v3524, %v3015
  %v3557 = vsel %vm1661, %v3525, %v3017
  %v3558 = vsel %vm1661, %v3526, %v3019
  %v3559 = vsel %vm1661, %v3527, %v3021
  %v3560 = vsel %vm1661, %v3528, %v3023
  %v3561 = vsel %vm1661, %v3529, %v3025
  %v3562 = vsel %vm1661, %v3530, %v3027
  %v3563 = vsel %vm1661, %v3531, %v3029
  %v3564 = vsel %vm1661, %v3532, %v3031
  %v3565 = vsel %vm1661, %v3533, %v3033
  %v3566 = vsel %vm1661, %v3534, %v3035
  %v3567 = vsel %vm1661, %v3535, %v3037
  %v3568 = vsel %vm1661, %v3536, %v3039
  %v3569 = vsel %vm1661, %v3537, %v3041
  %v3570 = vsel %vm1661, %v3538, %v3043
  %v3571 = vsel %vm1661, %v3539, %v3045
  %v3572 = vsel %vm1661, %v3540, %v3047
  %v3573 = vsel %vm1661, %v3541, %v3049
  %v3574 = vsel %vm1661, %v3542, %v3051
  %v3575 = vsel %vm1661, %v3543, %v3053
  %v3576 = vsel %vm1661, %v3544, %v3055
  %v3577 = vsel %vm1661, %v3545, %v3057
  %v3578 = vsel %vm1661, %v3546, %v3059
  %v3579 = vsel %vm1661, %v3547, %v3061
  %v3580 = vsel %vm1661, %v3548, %v3063
  %v3581 = vsel %vm1661, %v3549, %v3065
  %v3582 = vsel %vm1661, %v3550, %v3067
  %v3583 = vsel %vm1661, %v3551, %v3069
  %v3584 = vsel %vm1661, %v3552, %v3071
  %v3585 = vsel %vm1661, %v3553, %v3073
  %v3586 = vsel %vm1694, %v3554, %v3107
  %v3587 = vsel %vm1694, %v3555, %v3109
  %v3588 = vsel %vm1694, %v3556, %v3111
  %v3589 = vsel %vm1694, %v3557, %v3113
  %v3590 = vsel %vm1694, %v3558, %v3115
  %v3591 = vsel %vm1694, %v3559, %v3117
  %v3592 = vsel %vm1694, %v3560, %v3119
  %v3593 = vsel %vm1694, %v3561, %v3121
  %v3594 = vsel %vm1694, %v3562, %v3123
  %v3595 = vsel %vm1694, %v3563, %v3125
  %v3596 = vsel %vm1694, %v3564, %v3127
  %v3597 = vsel %vm1694, %v3565, %v3129
  %v3598 = vsel %vm1694, %v3566, %v3131
  %v3599 = vsel %vm1694, %v3567, %v3133
  %v3600 = vsel %vm1694, %v3568, %v3135
  %v3601 = vsel %vm1694, %v3569, %v3137
  %v3602 = vsel %vm1694, %v3570, %v3139
  %v3603 = vsel %vm1694, %v3571, %v3141
  %v3604 = vsel %vm1694, %v3572, %v3143
  %v3605 = vsel %vm1694, %v3573, %v3145
  %v3606 = vsel %vm1694, %v3574, %v3147
  %v3607 = vsel %vm1694, %v3575, %v3149
  %v3608 = vsel %vm1694, %v3576, %v3151
  %v3609 = vsel %vm1694, %v3577, %v3153
  %v3610 = vsel %vm1694, %v3578, %v3155
  %v3611 = vsel %vm1694, %v3579, %v3157
  %v3612 = vsel %vm1694, %v3580, %v3159
  %v3613 = vsel %vm1694, %v3581, %v3161
  %v3614 = vsel %vm1694, %v3582, %v3163
  %v3615 = vsel %vm1694, %v3583, %v3165
  %v3616 = vsel %vm1694, %v3584, %v3167
  %v3617 = vsel %vm1694, %v3585, %v3169
  %v3618 = vsel %vm1727, %v3586, %v3203
  %v3619 = vsel %vm1727, %v3587, %v3205
  %v3620 = vsel %vm1727, %v3588, %v3207
  %v3621 = vsel %vm1727, %v3589, %v3209
  %v3622 = vsel %vm1727, %v3590, %v3211
  %v3623 = vsel %vm1727, %v3591, %v3213
  %v3624 = vsel %vm1727, %v3592, %v3215
  %v3625 = vsel %vm1727, %v3593, %v3217
  %v3626 = vsel %vm1727, %v3594, %v3219
  %v3627 = vsel %vm1727, %v3595, %v3221
  %v3628 = vsel %vm1727, %v3596, %v3223
  %v3629 = vsel %vm1727, %v3597, %v3225
  %v3630 = vsel %vm1727, %v3598, %v3227
  %v3631 = vsel %vm1727, %v3599, %v3229
  %v3632 = vsel %vm1727, %v3600, %v3231
  %v3633 = vsel %vm1727, %v3601, %v3233
  %v3634 = vsel %vm1727, %v3602, %v3235
  %v3635 = vsel %vm1727, %v3603, %v3237
  %v3636 = vsel %vm1727, %v3604, %v3239
  %v3637 = vsel %vm1727, %v3605, %v3241
  %v3638 = vsel %vm1727, %v3606, %v3243
  %v3639 = vsel %vm1727, %v3607, %v3245
  %v3640 = vsel %vm1727, %v3608, %v3247
  %v3641 = vsel %vm1727, %v3609, %v3249
  %v3642 = vsel %vm1727, %v3610, %v3251
  %v3643 = vsel %vm1727, %v3611, %v3253
  %v3644 = vsel %vm1727, %v3612, %v3255
  %v3645 = vsel %vm1727, %v3613, %v3257
  %v3646 = vsel %vm1727, %v3614, %v3259
  %v3647 = vsel %vm1727, %v3615, %v3261
  %v3648 = vsel %vm1727, %v3616, %v3263
  %v3649 = vsel %vm1727, %v3617, %v3265
  %v3650 = vsel %vm1760, %v3618, %v3299
  %v3651 = vsel %vm1760, %v3619, %v3301
  %v3652 = vsel %vm1760, %v3620, %v3303
  %v3653 = vsel %vm1760, %v3621, %v3305
  %v3654 = vsel %vm1760, %v3622, %v3307
  %v3655 = vsel %vm1760, %v3623, %v3309
  %v3656 = vsel %vm1760, %v3624, %v3311
  %v3657 = vsel %vm1760, %v3625, %v3313
  %v3658 = vsel %vm1760, %v3626, %v3315
  %v3659 = vsel %vm1760, %v3627, %v3317
  %v3660 = vsel %vm1760, %v3628, %v3319
  %v3661 = vsel %vm1760, %v3629, %v3321
  %v3662 = vsel %vm1760, %v3630, %v3323
  %v3663 = vsel %vm1760, %v3631, %v3325
  %v3664 = vsel %vm1760, %v3632, %v3327
  %v3665 = vsel %vm1760, %v3633, %v3329
  %v3666 = vsel %vm1760, %v3634, %v3331
  %v3667 = vsel %vm1760, %v3635, %v3333
  %v3668 = vsel %vm1760, %v3636, %v3335
  %v3669 = vsel %vm1760, %v3637, %v3337
  %v3670 = vsel %vm1760, %v3638, %v3339
  %v3671 = vsel %vm1760, %v3639, %v3341
  %v3672 = vsel %vm1760, %v3640, %v3343
  %v3673 = vsel %vm1760, %v3641, %v3345
  %v3674 = vsel %vm1760, %v3642, %v3347
  %v3675 = vsel %vm1760, %v3643, %v3349
  %v3676 = vsel %vm1760, %v3644, %v3351
  %v3677 = vsel %vm1760, %v3645, %v3353
  %v3678 = vsel %vm1760, %v3646, %v3355
  %v3679 = vsel %vm1760, %v3647, %v3357
  %v3680 = vsel %vm1760, %v3648, %v3359
  %v3681 = vsel %vm1760, %v3649, %v3361
  %v3682 = vsel %vm1793, %v3650, %v3395
  %v3683 = vsel %vm1793, %v3651, %v3397
  %v3684 = vsel %vm1793, %v3652, %v3399
  %v3685 = vsel %vm1793, %v3653, %v3401
  %v3686 = vsel %vm1793, %v3654, %v3403
  %v3687 = vsel %vm1793, %v3655, %v3405
  %v3688 = vsel %vm1793, %v3656, %v3407
  %v3689 = vsel %vm1793, %v3657, %v3409
  %v3690 = vsel %vm1793, %v3658, %v3411
  %v3691 = vsel %vm1793, %v3659, %v3413
  %v3692 = vsel %vm1793, %v3660, %v3415
  %v3693 = vsel %vm1793, %v3661, %v3417
  %v3694 = vsel %vm1793, %v3662, %v3419
  %v3695 = vsel %vm1793, %v3663, %v3421
  %v3696 = vsel %vm1793, %v3664, %v3423
  %v3697 = vsel %vm1793, %v3665, %v3425
  %v3698 = vsel %vm1793, %v3666, %v3427
  %v3699 = vsel %vm1793, %v3667, %v3429
  %v3700 = vsel %vm1793, %v3668, %v3431
  %v3701 = vsel %vm1793, %v3669, %v3433
  %v3702 = vsel %vm1793, %v3670, %v3435
  %v3703 = vsel %vm1793, %v3671, %v3437
  %v3704 = vsel %vm1793, %v3672, %v3439
  %v3705 = vsel %vm1793, %v3673, %v3441
  %v3706 = vsel %vm1793, %v3674, %v3443
  %v3707 = vsel %vm1793, %v3675, %v3445
  %v3708 = vsel %vm1793, %v3676, %v3447
  %v3709 = vsel %vm1793, %v3677, %v3449
  %v3710 = vsel %vm1793, %v3678, %v3451
  %v3711 = vsel %vm1793, %v3679, %v3453
  %v3712 = vsel %vm1793, %v3680, %v3455
  %v3713 = vsel %vm1793, %v3681, %v3457
  %v3714 = vlaneseq
  %v3715 = vshrl.u32 %v3714, 7
  %v3716 = vsub.s32 0, %v3715
  %v3717 = vrot.slane %v2850, %v3716
  %v3718 = vlaneseq
  %v3719 = vshrl.u32 %v3718, 7
  %v3720 = vsub.s32 0, %v3719
  %v3721 = vrot.slane %v2851, %v3720
  %v3722 = vlaneseq
  %v3723 = vshrl.u32 %v3722, 7
  %v3724 = vsub.s32 0, %v3723
  %v3725 = vrot.slane %v2852, %v3724
  %v3726 = vlaneseq
  %v3727 = vshrl.u32 %v3726, 7
  %v3728 = vsub.s32 0, %v3727
  %v3729 = vrot.slane %v2853, %v3728
  %v3730 = vlaneseq
  %v3731 = vshrl.u32 %v3730, 7
  %v3732 = vsub.s32 0, %v3731
  %v3733 = vrot.slane %v2854, %v3732
  %v3734 = vlaneseq
  %v3735 = vshrl.u32 %v3734, 7
  %v3736 = vsub.s32 0, %v3735
  %v3737 = vrot.slane %v2855, %v3736
  %v3738 = vlaneseq
  %v3739 = vshrl.u32 %v3738, 7
  %v3740 = vsub.s32 0, %v3739
  %v3741 = vrot.slane %v2856, %v3740
  %v3742 = vlaneseq
  %v3743 = vshrl.u32 %v3742, 7
  %v3744 = vsub.s32 0, %v3743
  %v3745 = vrot.slane %v2857, %v3744
  %v3746 = vlaneseq
  %v3747 = vshrl.u32 %v3746, 7
  %v3748 = vsub.s32 0, %v3747
  %v3749 = vrot.slane %v2858, %v3748
  %v3750 = vlaneseq
  %v3751 = vshrl.u32 %v3750, 7
  %v3752 = vsub.s32 0, %v3751
  %v3753 = vrot.slane %v2859, %v3752
  %v3754 = vlaneseq
  %v3755 = vshrl.u32 %v3754, 7
  %v3756 = vsub.s32 0, %v3755
  %v3757 = vrot.slane %v2860, %v3756
  %v3758 = vlaneseq
  %v3759 = vshrl.u32 %v3758, 7
  %v3760 = vsub.s32 0, %v3759
  %v3761 = vrot.slane %v2861, %v3760
  %v3762 = vlaneseq
  %v3763 = vshrl.u32 %v3762, 7
  %v3764 = vsub.s32 0, %v3763
  %v3765 = vrot.slane %v2862, %v3764
  %v3766 = vlaneseq
  %v3767 = vshrl.u32 %v3766, 7
  %v3768 = vsub.s32 0, %v3767
  %v3769 = vrot.slane %v2863, %v3768
  %v3770 = vlaneseq
  %v3771 = vshrl.u32 %v3770, 7
  %v3772 = vsub.s32 0, %v3771
  %v3773 = vrot.slane %v2864, %v3772
  %v3774 = vlaneseq
  %v3775 = vshrl.u32 %v3774, 7
  %v3776 = vsub.s32 0, %v3775
  %v3777 = vrot.slane %v2865, %v3776
  %v3778 = vlaneseq
  %v3779 = vshrl.u32 %v3778, 7
  %v3780 = vsub.s32 0, %v3779
  %v3781 = vrot.slane %v2866, %v3780
  %v3782 = vlaneseq
  %v3783 = vshrl.u32 %v3782, 7
  %v3784 = vsub.s32 0, %v3783
  %v3785 = vrot.slane %v2867, %v3784
  %v3786 = vlaneseq
  %v3787 = vshrl.u32 %v3786, 7
  %v3788 = vsub.s32 0, %v3787
  %v3789 = vrot.slane %v2868, %v3788
  %v3790 = vlaneseq
  %v3791 = vshrl.u32 %v3790, 7
  %v3792 = vsub.s32 0, %v3791
  %v3793 = vrot.slane %v2869, %v3792
  %v3794 = vlaneseq
  %v3795 = vshrl.u32 %v3794, 7
  %v3796 = vsub.s32 0, %v3795
  %v3797 = vrot.slane %v2870, %v3796
  %v3798 = vlaneseq
  %v3799 = vshrl.u32 %v3798, 7
  %v3800 = vsub.s32 0, %v3799
  %v3801 = vrot.slane %v2871, %v3800
  %v3802 = vlaneseq
  %v3803 = vshrl.u32 %v3802, 7
  %v3804 = vsub.s32 0, %v3803
  %v3805 = vrot.slane %v2872, %v3804
  %v3806 = vlaneseq
  %v3807 = vshrl.u32 %v3806, 7
  %v3808 = vsub.s32 0, %v3807
  %v3809 = vrot.slane %v2873, %v3808
  %v3810 = vlaneseq
  %v3811 = vshrl.u32 %v3810, 7
  %v3812 = vsub.s32 0, %v3811
  %v3813 = vrot.slane %v2874, %v3812
  %v3814 = vlaneseq
  %v3815 = vshrl.u32 %v3814, 7
  %v3816 = vsub.s32 0, %v3815
  %v3817 = vrot.slane %v2875, %v3816
  %v3818 = vlaneseq
  %v3819 = vshrl.u32 %v3818, 7
  %v3820 = vsub.s32 0, %v3819
  %v3821 = vrot.slane %v2876, %v3820
  %v3822 = vlaneseq
  %v3823 = vshrl.u32 %v3822, 7
  %v3824 = vsub.s32 0, %v3823
  %v3825 = vrot.slane %v2877, %v3824
  %v3826 = vlaneseq
  %v3827 = vshrl.u32 %v3826, 7
  %v3828 = vsub.s32 0, %v3827
  %v3829 = vrot.slane %v2878, %v3828
  %v3830 = vlaneseq
  %v3831 = vshrl.u32 %v3830, 7
  %v3832 = vsub.s32 0, %v3831
  %v3833 = vrot.slane %v2879, %v3832
  %v3834 = vlaneseq
  %v3835 = vshrl.u32 %v3834, 7
  %v3836 = vsub.s32 0, %v3835
  %v3837 = vrot.slane %v2880, %v3836
  %v3838 = vlaneseq
  %v3839 = vshrl.u32 %v3838, 7
  %v3840 = vsub.s32 0, %v3839
  %v3841 = vrot.slane %v2881, %v3840
  %v3842 = vmul.f32 %v1794, %v3717
  %v3843 = vmul.f32 %v1795, %v3721
  %v3844 = vmul.f32 %v1796, %v3725
  %v3845 = vmul.f32 %v1797, %v3729
  %v3846 = vmul.f32 %v1798, %v3733
  %v3847 = vmul.f32 %v1799, %v3737
  %v3848 = vmul.f32 %v1800, %v3741
  %v3849 = vmul.f32 %v1801, %v3745
  %v3850 = vmul.f32 %v1802, %v3749
  %v3851 = vmul.f32 %v1803, %v3753
  %v3852 = vmul.f32 %v1804, %v3757
  %v3853 = vmul.f32 %v1805, %v3761
  %v3854 = vmul.f32 %v1806, %v3765
  %v3855 = vmul.f32 %v1807, %v3769
  %v3856 = vmul.f32 %v1808, %v3773
  %v3857 = vmul.f32 %v1809, %v3777
  %v3858 = vmul.f32 %v1810, %v3781
  %v3859 = vmul.f32 %v1811, %v3785
  %v3860 = vmul.f32 %v1812, %v3789
  %v3861 = vmul.f32 %v1813, %v3793
  %v3862 = vmul.f32 %v1814, %v3797
  %v3863 = vmul.f32 %v1815, %v3801
  %v3864 = vmul.f32 %v1816, %v3805
  %v3865 = vmul.f32 %v1817, %v3809
  %v3866 = vmul.f32 %v1818, %v3813
  %v3867 = vmul.f32 %v1819, %v3817
  %v3868 = vmul.f32 %v1820, %v3821
  %v3869 = vmul.f32 %v1821, %v3825
  %v3870 = vmul.f32 %v1822, %v3829
  %v3871 = vmul.f32 %v1823, %v3833
  %v3872 = vmul.f32 %v1824, %v3837
  %v3873 = vmul.f32 %v1825, %v3841
  %3874 = vrot.lane.b32.xlu0 %v3842, 16
  %v3875 = vpop.permute.xlu0 %3874
  %3876 = vrot.lane.b32.xlu0 %v3843, 16
  %v3877 = vpop.permute.xlu0 %3876
  %3878 = vrot.lane.b32.xlu0 %v3844, 16
  %v3879 = vpop.permute.xlu0 %3878
  %3880 = vrot.lane.b32.xlu0 %v3845, 16
  %v3881 = vpop.permute.xlu0 %3880
  %3882 = vrot.lane.b32.xlu0 %v3846, 16
  %v3883 = vpop.permute.xlu0 %3882
  %3884 = vrot.lane.b32.xlu0 %v3847, 16
  %v3885 = vpop.permute.xlu0 %3884
  %3886 = vrot.lane.b32.xlu0 %v3848, 16
  %v3887 = vpop.permute.xlu0 %3886
  %3888 = vrot.lane.b32.xlu0 %v3849, 16
  %v3889 = vpop.permute.xlu0 %3888
  %3890 = vrot.lane.b32.xlu0 %v3850, 16
  %v3891 = vpop.permute.xlu0 %3890
  %3892 = vrot.lane.b32.xlu0 %v3851, 16
  %v3893 = vpop.permute.xlu0 %3892
  %3894 = vrot.lane.b32.xlu0 %v3852, 16
  %v3895 = vpop.permute.xlu0 %3894
  %3896 = vrot.lane.b32.xlu0 %v3853, 16
  %v3897 = vpop.permute.xlu0 %3896
  %3898 = vrot.lane.b32.xlu0 %v3854, 16
  %v3899 = vpop.permute.xlu0 %3898
  %3900 = vrot.lane.b32.xlu0 %v3855, 16
  %v3901 = vpop.permute.xlu0 %3900
  %3902 = vrot.lane.b32.xlu0 %v3856, 16
  %v3903 = vpop.permute.xlu0 %3902
  %3904 = vrot.lane.b32.xlu0 %v3857, 16
  %v3905 = vpop.permute.xlu0 %3904
  %3906 = vrot.lane.b32.xlu0 %v3858, 16
  %v3907 = vpop.permute.xlu0 %3906
  %3908 = vrot.lane.b32.xlu0 %v3859, 16
  %v3909 = vpop.permute.xlu0 %3908
  %3910 = vrot.lane.b32.xlu0 %v3860, 16
  %v3911 = vpop.permute.xlu0 %3910
  %3912 = vrot.lane.b32.xlu0 %v3861, 16
  %v3913 = vpop.permute.xlu0 %3912
  %3914 = vrot.lane.b32.xlu0 %v3862, 16
  %v3915 = vpop.permute.xlu0 %3914
  %3916 = vrot.lane.b32.xlu0 %v3863, 16
  %v3917 = vpop.permute.xlu0 %3916
  %3918 = vrot.lane.b32.xlu0 %v3864, 16
  %v3919 = vpop.permute.xlu0 %3918
  %3920 = vrot.lane.b32.xlu0 %v3865, 16
  %v3921 = vpop.permute.xlu0 %3920
  %3922 = vrot.lane.b32.xlu0 %v3866, 16
  %v3923 = vpop.permute.xlu0 %3922
  %3924 = vrot.lane.b32.xlu0 %v3867, 16
  %v3925 = vpop.permute.xlu0 %3924
  %3926 = vrot.lane.b32.xlu0 %v3868, 16
  %v3927 = vpop.permute.xlu0 %3926
  %3928 = vrot.lane.b32.xlu0 %v3869, 16
  %v3929 = vpop.permute.xlu0 %3928
  %3930 = vrot.lane.b32.xlu0 %v3870, 16
  %v3931 = vpop.permute.xlu0 %3930
  %3932 = vrot.lane.b32.xlu0 %v3871, 16
  %v3933 = vpop.permute.xlu0 %3932
  %3934 = vrot.lane.b32.xlu0 %v3872, 16
  %v3935 = vpop.permute.xlu0 %3934
  %3936 = vrot.lane.b32.xlu0 %v3873, 16
  %v3937 = vpop.permute.xlu0 %3936
  %v3938 = vmax.f32 %v3842, %v3875
  %v3939 = vmax.f32 %v3843, %v3877
  %v3940 = vmax.f32 %v3844, %v3879
  %v3941 = vmax.f32 %v3845, %v3881
  %v3942 = vmax.f32 %v3846, %v3883
  %v3943 = vmax.f32 %v3847, %v3885
  %v3944 = vmax.f32 %v3848, %v3887
  %v3945 = vmax.f32 %v3849, %v3889
  %v3946 = vmax.f32 %v3850, %v3891
  %v3947 = vmax.f32 %v3851, %v3893
  %v3948 = vmax.f32 %v3852, %v3895
  %v3949 = vmax.f32 %v3853, %v3897
  %v3950 = vmax.f32 %v3854, %v3899
  %v3951 = vmax.f32 %v3855, %v3901
  %v3952 = vmax.f32 %v3856, %v3903
  %v3953 = vmax.f32 %v3857, %v3905
  %v3954 = vmax.f32 %v3858, %v3907
  %v3955 = vmax.f32 %v3859, %v3909
  %v3956 = vmax.f32 %v3860, %v3911
  %v3957 = vmax.f32 %v3861, %v3913
  %v3958 = vmax.f32 %v3862, %v3915
  %v3959 = vmax.f32 %v3863, %v3917
  %v3960 = vmax.f32 %v3864, %v3919
  %v3961 = vmax.f32 %v3865, %v3921
  %v3962 = vmax.f32 %v3866, %v3923
  %v3963 = vmax.f32 %v3867, %v3925
  %v3964 = vmax.f32 %v3868, %v3927
  %v3965 = vmax.f32 %v3869, %v3929
  %v3966 = vmax.f32 %v3870, %v3931
  %v3967 = vmax.f32 %v3871, %v3933
  %v3968 = vmax.f32 %v3872, %v3935
  %v3969 = vmax.f32 %v3873, %v3937
  %3970 = vrot.lane.b32.xlu0 %v3938, 32
  %v3971 = vpop.permute.xlu0 %3970
  %3972 = vrot.lane.b32.xlu0 %v3939, 32
  %v3973 = vpop.permute.xlu0 %3972
  %3974 = vrot.lane.b32.xlu0 %v3940, 32
  %v3975 = vpop.permute.xlu0 %3974
  %3976 = vrot.lane.b32.xlu0 %v3941, 32
  %v3977 = vpop.permute.xlu0 %3976
  %3978 = vrot.lane.b32.xlu0 %v3942, 32
  %v3979 = vpop.permute.xlu0 %3978
  %3980 = vrot.lane.b32.xlu0 %v3943, 32
  %v3981 = vpop.permute.xlu0 %3980
  %3982 = vrot.lane.b32.xlu0 %v3944, 32
  %v3983 = vpop.permute.xlu0 %3982
  %3984 = vrot.lane.b32.xlu0 %v3945, 32
  %v3985 = vpop.permute.xlu0 %3984
  %3986 = vrot.lane.b32.xlu0 %v3946, 32
  %v3987 = vpop.permute.xlu0 %3986
  %3988 = vrot.lane.b32.xlu0 %v3947, 32
  %v3989 = vpop.permute.xlu0 %3988
  %3990 = vrot.lane.b32.xlu0 %v3948, 32
  %v3991 = vpop.permute.xlu0 %3990
  %3992 = vrot.lane.b32.xlu0 %v3949, 32
  %v3993 = vpop.permute.xlu0 %3992
  %3994 = vrot.lane.b32.xlu0 %v3950, 32
  %v3995 = vpop.permute.xlu0 %3994
  %3996 = vrot.lane.b32.xlu0 %v3951, 32
  %v3997 = vpop.permute.xlu0 %3996
  %3998 = vrot.lane.b32.xlu0 %v3952, 32
  %v3999 = vpop.permute.xlu0 %3998
  %4000 = vrot.lane.b32.xlu0 %v3953, 32
  %v4001 = vpop.permute.xlu0 %4000
  %4002 = vrot.lane.b32.xlu0 %v3954, 32
  %v4003 = vpop.permute.xlu0 %4002
  %4004 = vrot.lane.b32.xlu0 %v3955, 32
  %v4005 = vpop.permute.xlu0 %4004
  %4006 = vrot.lane.b32.xlu0 %v3956, 32
  %v4007 = vpop.permute.xlu0 %4006
  %4008 = vrot.lane.b32.xlu0 %v3957, 32
  %v4009 = vpop.permute.xlu0 %4008
  %4010 = vrot.lane.b32.xlu0 %v3958, 32
  %v4011 = vpop.permute.xlu0 %4010
  %4012 = vrot.lane.b32.xlu0 %v3959, 32
  %v4013 = vpop.permute.xlu0 %4012
  %4014 = vrot.lane.b32.xlu0 %v3960, 32
  %v4015 = vpop.permute.xlu0 %4014
  %4016 = vrot.lane.b32.xlu0 %v3961, 32
  %v4017 = vpop.permute.xlu0 %4016
  %4018 = vrot.lane.b32.xlu0 %v3962, 32
  %v4019 = vpop.permute.xlu0 %4018
  %4020 = vrot.lane.b32.xlu0 %v3963, 32
  %v4021 = vpop.permute.xlu0 %4020
  %4022 = vrot.lane.b32.xlu0 %v3964, 32
  %v4023 = vpop.permute.xlu0 %4022
  %4024 = vrot.lane.b32.xlu0 %v3965, 32
  %v4025 = vpop.permute.xlu0 %4024
  %4026 = vrot.lane.b32.xlu0 %v3966, 32
  %v4027 = vpop.permute.xlu0 %4026
  %4028 = vrot.lane.b32.xlu0 %v3967, 32
  %v4029 = vpop.permute.xlu0 %4028
  %4030 = vrot.lane.b32.xlu0 %v3968, 32
  %v4031 = vpop.permute.xlu0 %4030
  %4032 = vrot.lane.b32.xlu0 %v3969, 32
  %v4033 = vpop.permute.xlu0 %4032
  %v4034 = vmax.f32 %v3938, %v3971
  %v4035 = vmax.f32 %v3939, %v3973
  %v4036 = vmax.f32 %v3940, %v3975
  %v4037 = vmax.f32 %v3941, %v3977
  %v4038 = vmax.f32 %v3942, %v3979
  %v4039 = vmax.f32 %v3943, %v3981
  %v4040 = vmax.f32 %v3944, %v3983
  %v4041 = vmax.f32 %v3945, %v3985
  %v4042 = vmax.f32 %v3946, %v3987
  %v4043 = vmax.f32 %v3947, %v3989
  %v4044 = vmax.f32 %v3948, %v3991
  %v4045 = vmax.f32 %v3949, %v3993
  %v4046 = vmax.f32 %v3950, %v3995
  %v4047 = vmax.f32 %v3951, %v3997
  %v4048 = vmax.f32 %v3952, %v3999
  %v4049 = vmax.f32 %v3953, %v4001
  %v4050 = vmax.f32 %v3954, %v4003
  %v4051 = vmax.f32 %v3955, %v4005
  %v4052 = vmax.f32 %v3956, %v4007
  %v4053 = vmax.f32 %v3957, %v4009
  %v4054 = vmax.f32 %v3958, %v4011
  %v4055 = vmax.f32 %v3959, %v4013
  %v4056 = vmax.f32 %v3960, %v4015
  %v4057 = vmax.f32 %v3961, %v4017
  %v4058 = vmax.f32 %v3962, %v4019
  %v4059 = vmax.f32 %v3963, %v4021
  %v4060 = vmax.f32 %v3964, %v4023
  %v4061 = vmax.f32 %v3965, %v4025
  %v4062 = vmax.f32 %v3966, %v4027
  %v4063 = vmax.f32 %v3967, %v4029
  %v4064 = vmax.f32 %v3968, %v4031
  %v4065 = vmax.f32 %v3969, %v4033
  %4066 = vrot.lane.b32.xlu0 %v4034, 64
  %v4067 = vpop.permute.xlu0 %4066
  %4068 = vrot.lane.b32.xlu0 %v4035, 64
  %v4069 = vpop.permute.xlu0 %4068
  %4070 = vrot.lane.b32.xlu0 %v4036, 64
  %v4071 = vpop.permute.xlu0 %4070
  %4072 = vrot.lane.b32.xlu0 %v4037, 64
  %v4073 = vpop.permute.xlu0 %4072
  %4074 = vrot.lane.b32.xlu0 %v4038, 64
  %v4075 = vpop.permute.xlu0 %4074
  %4076 = vrot.lane.b32.xlu0 %v4039, 64
  %v4077 = vpop.permute.xlu0 %4076
  %4078 = vrot.lane.b32.xlu0 %v4040, 64
  %v4079 = vpop.permute.xlu0 %4078
  %4080 = vrot.lane.b32.xlu0 %v4041, 64
  %v4081 = vpop.permute.xlu0 %4080
  %4082 = vrot.lane.b32.xlu0 %v4042, 64
  %v4083 = vpop.permute.xlu0 %4082
  %4084 = vrot.lane.b32.xlu0 %v4043, 64
  %v4085 = vpop.permute.xlu0 %4084
  %4086 = vrot.lane.b32.xlu0 %v4044, 64
  %v4087 = vpop.permute.xlu0 %4086
  %4088 = vrot.lane.b32.xlu0 %v4045, 64
  %v4089 = vpop.permute.xlu0 %4088
  %4090 = vrot.lane.b32.xlu0 %v4046, 64
  %v4091 = vpop.permute.xlu0 %4090
  %4092 = vrot.lane.b32.xlu0 %v4047, 64
  %v4093 = vpop.permute.xlu0 %4092
  %4094 = vrot.lane.b32.xlu0 %v4048, 64
  %v4095 = vpop.permute.xlu0 %4094
  %4096 = vrot.lane.b32.xlu0 %v4049, 64
  %v4097 = vpop.permute.xlu0 %4096
  %4098 = vrot.lane.b32.xlu0 %v4050, 64
  %v4099 = vpop.permute.xlu0 %4098
  %4100 = vrot.lane.b32.xlu0 %v4051, 64
  %v4101 = vpop.permute.xlu0 %4100
  %4102 = vrot.lane.b32.xlu0 %v4052, 64
  %v4103 = vpop.permute.xlu0 %4102
  %4104 = vrot.lane.b32.xlu0 %v4053, 64
  %v4105 = vpop.permute.xlu0 %4104
  %4106 = vrot.lane.b32.xlu0 %v4054, 64
  %v4107 = vpop.permute.xlu0 %4106
  %4108 = vrot.lane.b32.xlu0 %v4055, 64
  %v4109 = vpop.permute.xlu0 %4108
  %4110 = vrot.lane.b32.xlu0 %v4056, 64
  %v4111 = vpop.permute.xlu0 %4110
  %4112 = vrot.lane.b32.xlu0 %v4057, 64
  %v4113 = vpop.permute.xlu0 %4112
  %4114 = vrot.lane.b32.xlu0 %v4058, 64
  %v4115 = vpop.permute.xlu0 %4114
  %4116 = vrot.lane.b32.xlu0 %v4059, 64
  %v4117 = vpop.permute.xlu0 %4116
  %4118 = vrot.lane.b32.xlu0 %v4060, 64
  %v4119 = vpop.permute.xlu0 %4118
  %4120 = vrot.lane.b32.xlu0 %v4061, 64
  %v4121 = vpop.permute.xlu0 %4120
  %4122 = vrot.lane.b32.xlu0 %v4062, 64
  %v4123 = vpop.permute.xlu0 %4122
  %4124 = vrot.lane.b32.xlu0 %v4063, 64
  %v4125 = vpop.permute.xlu0 %4124
  %4126 = vrot.lane.b32.xlu0 %v4064, 64
  %v4127 = vpop.permute.xlu0 %4126
  %4128 = vrot.lane.b32.xlu0 %v4065, 64
  %v4129 = vpop.permute.xlu0 %4128
  %v4130 = vmax.f32 %v4034, %v4067
  %v4131 = vmax.f32 %v4035, %v4069
  %v4132 = vmax.f32 %v4036, %v4071
  %v4133 = vmax.f32 %v4037, %v4073
  %v4134 = vmax.f32 %v4038, %v4075
  %v4135 = vmax.f32 %v4039, %v4077
  %v4136 = vmax.f32 %v4040, %v4079
  %v4137 = vmax.f32 %v4041, %v4081
  %v4138 = vmax.f32 %v4042, %v4083
  %v4139 = vmax.f32 %v4043, %v4085
  %v4140 = vmax.f32 %v4044, %v4087
  %v4141 = vmax.f32 %v4045, %v4089
  %v4142 = vmax.f32 %v4046, %v4091
  %v4143 = vmax.f32 %v4047, %v4093
  %v4144 = vmax.f32 %v4048, %v4095
  %v4145 = vmax.f32 %v4049, %v4097
  %v4146 = vmax.f32 %v4050, %v4099
  %v4147 = vmax.f32 %v4051, %v4101
  %v4148 = vmax.f32 %v4052, %v4103
  %v4149 = vmax.f32 %v4053, %v4105
  %v4150 = vmax.f32 %v4054, %v4107
  %v4151 = vmax.f32 %v4055, %v4109
  %v4152 = vmax.f32 %v4056, %v4111
  %v4153 = vmax.f32 %v4057, %v4113
  %v4154 = vmax.f32 %v4058, %v4115
  %v4155 = vmax.f32 %v4059, %v4117
  %v4156 = vmax.f32 %v4060, %v4119
  %v4157 = vmax.f32 %v4061, %v4121
  %v4158 = vmax.f32 %v4062, %v4123
  %v4159 = vmax.f32 %v4063, %v4125
  %v4160 = vmax.f32 %v4064, %v4127
  %v4161 = vmax.f32 %v4065, %v4129
  %v4162 = vsub.f32 %v3842, %v4130
  %v4163 = vsub.f32 %v3843, %v4131
  %v4164 = vsub.f32 %v3844, %v4132
  %v4165 = vsub.f32 %v3845, %v4133
  %v4166 = vsub.f32 %v3846, %v4134
  %v4167 = vsub.f32 %v3847, %v4135
  %v4168 = vsub.f32 %v3848, %v4136
  %v4169 = vsub.f32 %v3849, %v4137
  %v4170 = vsub.f32 %v3850, %v4138
  %v4171 = vsub.f32 %v3851, %v4139
  %v4172 = vsub.f32 %v3852, %v4140
  %v4173 = vsub.f32 %v3853, %v4141
  %v4174 = vsub.f32 %v3854, %v4142
  %v4175 = vsub.f32 %v3855, %v4143
  %v4176 = vsub.f32 %v3856, %v4144
  %v4177 = vsub.f32 %v3857, %v4145
  %v4178 = vsub.f32 %v3858, %v4146
  %v4179 = vsub.f32 %v3859, %v4147
  %v4180 = vsub.f32 %v3860, %v4148
  %v4181 = vsub.f32 %v3861, %v4149
  %v4182 = vsub.f32 %v3862, %v4150
  %v4183 = vsub.f32 %v3863, %v4151
  %v4184 = vsub.f32 %v3864, %v4152
  %v4185 = vsub.f32 %v3865, %v4153
  %v4186 = vsub.f32 %v3866, %v4154
  %v4187 = vsub.f32 %v3867, %v4155
  %v4188 = vsub.f32 %v3868, %v4156
  %v4189 = vsub.f32 %v3869, %v4157
  %v4190 = vsub.f32 %v3870, %v4158
  %v4191 = vsub.f32 %v3871, %v4159
  %v4192 = vsub.f32 %v3872, %v4160
  %v4193 = vsub.f32 %v3873, %v4161
  %v4194 = vmul.f32 %v4162, 1.442695
  %v4195 = vpow.pop %v4194
  %v4196 = vmul.f32 %v4163, 1.442695
  %v4197 = vpow.pop %v4196
  %v4198 = vmul.f32 %v4164, 1.442695
  %v4199 = vpow.pop %v4198
  %v4200 = vmul.f32 %v4165, 1.442695
  %v4201 = vpow.pop %v4200
  %v4202 = vmul.f32 %v4166, 1.442695
  %v4203 = vpow.pop %v4202
  %v4204 = vmul.f32 %v4167, 1.442695
  %v4205 = vpow.pop %v4204
  %v4206 = vmul.f32 %v4168, 1.442695
  %v4207 = vpow.pop %v4206
  %v4208 = vmul.f32 %v4169, 1.442695
  %v4209 = vpow.pop %v4208
  %v4210 = vmul.f32 %v4170, 1.442695
  %v4211 = vpow.pop %v4210
  %v4212 = vmul.f32 %v4171, 1.442695
  %v4213 = vpow.pop %v4212
  %v4214 = vmul.f32 %v4172, 1.442695
  %v4215 = vpow.pop %v4214
  %v4216 = vmul.f32 %v4173, 1.442695
  %v4217 = vpow.pop %v4216
  %v4218 = vmul.f32 %v4174, 1.442695
  %v4219 = vpow.pop %v4218
  %v4220 = vmul.f32 %v4175, 1.442695
  %v4221 = vpow.pop %v4220
  %v4222 = vmul.f32 %v4176, 1.442695
  %v4223 = vpow.pop %v4222
  %v4224 = vmul.f32 %v4177, 1.442695
  %v4225 = vpow.pop %v4224
  %v4226 = vmul.f32 %v4178, 1.442695
  %v4227 = vpow.pop %v4226
  %v4228 = vmul.f32 %v4179, 1.442695
  %v4229 = vpow.pop %v4228
  %v4230 = vmul.f32 %v4180, 1.442695
  %v4231 = vpow.pop %v4230
  %v4232 = vmul.f32 %v4181, 1.442695
  %v4233 = vpow.pop %v4232
  %v4234 = vmul.f32 %v4182, 1.442695
  %v4235 = vpow.pop %v4234
  %v4236 = vmul.f32 %v4183, 1.442695
  %v4237 = vpow.pop %v4236
  %v4238 = vmul.f32 %v4184, 1.442695
  %v4239 = vpow.pop %v4238
  %v4240 = vmul.f32 %v4185, 1.442695
  %v4241 = vpow.pop %v4240
  %v4242 = vmul.f32 %v4186, 1.442695
  %v4243 = vpow.pop %v4242
  %v4244 = vmul.f32 %v4187, 1.442695
  %v4245 = vpow.pop %v4244
  %v4246 = vmul.f32 %v4188, 1.442695
  %v4247 = vpow.pop %v4246
  %v4248 = vmul.f32 %v4189, 1.442695
  %v4249 = vpow.pop %v4248
  %v4250 = vmul.f32 %v4190, 1.442695
  %v4251 = vpow.pop %v4250
  %v4252 = vmul.f32 %v4191, 1.442695
  %v4253 = vpow.pop %v4252
  %v4254 = vmul.f32 %v4192, 1.442695
  %v4255 = vpow.pop %v4254
  %v4256 = vmul.f32 %v4193, 1.442695
  %v4257 = vpow.pop %v4256
  %v4258 = vlaneseq
  %v4259 = vshrl.u32 %v4258, 7
  %v4260 = vsub.s32 0, %v4259
  %v4261 = vrot.slane %v3682, %v4260
  %v4262 = vlaneseq
  %v4263 = vshrl.u32 %v4262, 7
  %v4264 = vsub.s32 0, %v4263
  %v4265 = vrot.slane %v3683, %v4264
  %v4266 = vlaneseq
  %v4267 = vshrl.u32 %v4266, 7
  %v4268 = vsub.s32 0, %v4267
  %v4269 = vrot.slane %v3684, %v4268
  %v4270 = vlaneseq
  %v4271 = vshrl.u32 %v4270, 7
  %v4272 = vsub.s32 0, %v4271
  %v4273 = vrot.slane %v3685, %v4272
  %v4274 = vlaneseq
  %v4275 = vshrl.u32 %v4274, 7
  %v4276 = vsub.s32 0, %v4275
  %v4277 = vrot.slane %v3686, %v4276
  %v4278 = vlaneseq
  %v4279 = vshrl.u32 %v4278, 7
  %v4280 = vsub.s32 0, %v4279
  %v4281 = vrot.slane %v3687, %v4280
  %v4282 = vlaneseq
  %v4283 = vshrl.u32 %v4282, 7
  %v4284 = vsub.s32 0, %v4283
  %v4285 = vrot.slane %v3688, %v4284
  %v4286 = vlaneseq
  %v4287 = vshrl.u32 %v4286, 7
  %v4288 = vsub.s32 0, %v4287
  %v4289 = vrot.slane %v3689, %v4288
  %v4290 = vlaneseq
  %v4291 = vshrl.u32 %v4290, 7
  %v4292 = vsub.s32 0, %v4291
  %v4293 = vrot.slane %v3690, %v4292
  %v4294 = vlaneseq
  %v4295 = vshrl.u32 %v4294, 7
  %v4296 = vsub.s32 0, %v4295
  %v4297 = vrot.slane %v3691, %v4296
  %v4298 = vlaneseq
  %v4299 = vshrl.u32 %v4298, 7
  %v4300 = vsub.s32 0, %v4299
  %v4301 = vrot.slane %v3692, %v4300
  %v4302 = vlaneseq
  %v4303 = vshrl.u32 %v4302, 7
  %v4304 = vsub.s32 0, %v4303
  %v4305 = vrot.slane %v3693, %v4304
  %v4306 = vlaneseq
  %v4307 = vshrl.u32 %v4306, 7
  %v4308 = vsub.s32 0, %v4307
  %v4309 = vrot.slane %v3694, %v4308
  %v4310 = vlaneseq
  %v4311 = vshrl.u32 %v4310, 7
  %v4312 = vsub.s32 0, %v4311
  %v4313 = vrot.slane %v3695, %v4312
  %v4314 = vlaneseq
  %v4315 = vshrl.u32 %v4314, 7
  %v4316 = vsub.s32 0, %v4315
  %v4317 = vrot.slane %v3696, %v4316
  %v4318 = vlaneseq
  %v4319 = vshrl.u32 %v4318, 7
  %v4320 = vsub.s32 0, %v4319
  %v4321 = vrot.slane %v3697, %v4320
  %v4322 = vlaneseq
  %v4323 = vshrl.u32 %v4322, 7
  %v4324 = vsub.s32 0, %v4323
  %v4325 = vrot.slane %v3698, %v4324
  %v4326 = vlaneseq
  %v4327 = vshrl.u32 %v4326, 7
  %v4328 = vsub.s32 0, %v4327
  %v4329 = vrot.slane %v3699, %v4328
  %v4330 = vlaneseq
  %v4331 = vshrl.u32 %v4330, 7
  %v4332 = vsub.s32 0, %v4331
  %v4333 = vrot.slane %v3700, %v4332
  %v4334 = vlaneseq
  %v4335 = vshrl.u32 %v4334, 7
  %v4336 = vsub.s32 0, %v4335
  %v4337 = vrot.slane %v3701, %v4336
  %v4338 = vlaneseq
  %v4339 = vshrl.u32 %v4338, 7
  %v4340 = vsub.s32 0, %v4339
  %v4341 = vrot.slane %v3702, %v4340
  %v4342 = vlaneseq
  %v4343 = vshrl.u32 %v4342, 7
  %v4344 = vsub.s32 0, %v4343
  %v4345 = vrot.slane %v3703, %v4344
  %v4346 = vlaneseq
  %v4347 = vshrl.u32 %v4346, 7
  %v4348 = vsub.s32 0, %v4347
  %v4349 = vrot.slane %v3704, %v4348
  %v4350 = vlaneseq
  %v4351 = vshrl.u32 %v4350, 7
  %v4352 = vsub.s32 0, %v4351
  %v4353 = vrot.slane %v3705, %v4352
  %v4354 = vlaneseq
  %v4355 = vshrl.u32 %v4354, 7
  %v4356 = vsub.s32 0, %v4355
  %v4357 = vrot.slane %v3706, %v4356
  %v4358 = vlaneseq
  %v4359 = vshrl.u32 %v4358, 7
  %v4360 = vsub.s32 0, %v4359
  %v4361 = vrot.slane %v3707, %v4360
  %v4362 = vlaneseq
  %v4363 = vshrl.u32 %v4362, 7
  %v4364 = vsub.s32 0, %v4363
  %v4365 = vrot.slane %v3708, %v4364
  %v4366 = vlaneseq
  %v4367 = vshrl.u32 %v4366, 7
  %v4368 = vsub.s32 0, %v4367
  %v4369 = vrot.slane %v3709, %v4368
  %v4370 = vlaneseq
  %v4371 = vshrl.u32 %v4370, 7
  %v4372 = vsub.s32 0, %v4371
  %v4373 = vrot.slane %v3710, %v4372
  %v4374 = vlaneseq
  %v4375 = vshrl.u32 %v4374, 7
  %v4376 = vsub.s32 0, %v4375
  %v4377 = vrot.slane %v3711, %v4376
  %v4378 = vlaneseq
  %v4379 = vshrl.u32 %v4378, 7
  %v4380 = vsub.s32 0, %v4379
  %v4381 = vrot.slane %v3712, %v4380
  %v4382 = vlaneseq
  %v4383 = vshrl.u32 %v4382, 7
  %v4384 = vsub.s32 0, %v4383
  %v4385 = vrot.slane %v3713, %v4384
  %v4386 = vmul.f32 %v4195, %v4261
  %v4387 = vmul.f32 %v4197, %v4265
  %v4388 = vmul.f32 %v4199, %v4269
  %v4389 = vmul.f32 %v4201, %v4273
  %v4390 = vmul.f32 %v4203, %v4277
  %v4391 = vmul.f32 %v4205, %v4281
  %v4392 = vmul.f32 %v4207, %v4285
  %v4393 = vmul.f32 %v4209, %v4289
  %v4394 = vmul.f32 %v4211, %v4293
  %v4395 = vmul.f32 %v4213, %v4297
  %v4396 = vmul.f32 %v4215, %v4301
  %v4397 = vmul.f32 %v4217, %v4305
  %v4398 = vmul.f32 %v4219, %v4309
  %v4399 = vmul.f32 %v4221, %v4313
  %v4400 = vmul.f32 %v4223, %v4317
  %v4401 = vmul.f32 %v4225, %v4321
  %v4402 = vmul.f32 %v4227, %v4325
  %v4403 = vmul.f32 %v4229, %v4329
  %v4404 = vmul.f32 %v4231, %v4333
  %v4405 = vmul.f32 %v4233, %v4337
  %v4406 = vmul.f32 %v4235, %v4341
  %v4407 = vmul.f32 %v4237, %v4345
  %v4408 = vmul.f32 %v4239, %v4349
  %v4409 = vmul.f32 %v4241, %v4353
  %v4410 = vmul.f32 %v4243, %v4357
  %v4411 = vmul.f32 %v4245, %v4361
  %v4412 = vmul.f32 %v4247, %v4365
  %v4413 = vmul.f32 %v4249, %v4369
  %v4414 = vmul.f32 %v4251, %v4373
  %v4415 = vmul.f32 %v4253, %v4377
  %v4416 = vmul.f32 %v4255, %v4381
  %v4417 = vmul.f32 %v4257, %v4385
  %4418 = vrot.lane.b32.xlu0 %v4195, 16
  %v4419 = vpop.permute.xlu0 %4418
  %4420 = vrot.lane.b32.xlu0 %v4197, 16
  %v4421 = vpop.permute.xlu0 %4420
  %4422 = vrot.lane.b32.xlu0 %v4199, 16
  %v4423 = vpop.permute.xlu0 %4422
  %4424 = vrot.lane.b32.xlu0 %v4201, 16
  %v4425 = vpop.permute.xlu0 %4424
  %4426 = vrot.lane.b32.xlu0 %v4203, 16
  %v4427 = vpop.permute.xlu0 %4426
  %4428 = vrot.lane.b32.xlu0 %v4205, 16
  %v4429 = vpop.permute.xlu0 %4428
  %4430 = vrot.lane.b32.xlu0 %v4207, 16
  %v4431 = vpop.permute.xlu0 %4430
  %4432 = vrot.lane.b32.xlu0 %v4209, 16
  %v4433 = vpop.permute.xlu0 %4432
  %4434 = vrot.lane.b32.xlu0 %v4211, 16
  %v4435 = vpop.permute.xlu0 %4434
  %4436 = vrot.lane.b32.xlu0 %v4213, 16
  %v4437 = vpop.permute.xlu0 %4436
  %4438 = vrot.lane.b32.xlu0 %v4215, 16
  %v4439 = vpop.permute.xlu0 %4438
  %4440 = vrot.lane.b32.xlu0 %v4217, 16
  %v4441 = vpop.permute.xlu0 %4440
  %4442 = vrot.lane.b32.xlu0 %v4219, 16
  %v4443 = vpop.permute.xlu0 %4442
  %4444 = vrot.lane.b32.xlu0 %v4221, 16
  %v4445 = vpop.permute.xlu0 %4444
  %4446 = vrot.lane.b32.xlu0 %v4223, 16
  %v4447 = vpop.permute.xlu0 %4446
  %4448 = vrot.lane.b32.xlu0 %v4225, 16
  %v4449 = vpop.permute.xlu0 %4448
  %4450 = vrot.lane.b32.xlu0 %v4227, 16
  %v4451 = vpop.permute.xlu0 %4450
  %4452 = vrot.lane.b32.xlu0 %v4229, 16
  %v4453 = vpop.permute.xlu0 %4452
  %4454 = vrot.lane.b32.xlu0 %v4231, 16
  %v4455 = vpop.permute.xlu0 %4454
  %4456 = vrot.lane.b32.xlu0 %v4233, 16
  %v4457 = vpop.permute.xlu0 %4456
  %4458 = vrot.lane.b32.xlu0 %v4235, 16
  %v4459 = vpop.permute.xlu0 %4458
  %4460 = vrot.lane.b32.xlu0 %v4237, 16
  %v4461 = vpop.permute.xlu0 %4460
  %4462 = vrot.lane.b32.xlu0 %v4239, 16
  %v4463 = vpop.permute.xlu0 %4462
  %4464 = vrot.lane.b32.xlu0 %v4241, 16
  %v4465 = vpop.permute.xlu0 %4464
  %4466 = vrot.lane.b32.xlu0 %v4243, 16
  %v4467 = vpop.permute.xlu0 %4466
  %4468 = vrot.lane.b32.xlu0 %v4245, 16
  %v4469 = vpop.permute.xlu0 %4468
  %4470 = vrot.lane.b32.xlu0 %v4247, 16
  %v4471 = vpop.permute.xlu0 %4470
  %4472 = vrot.lane.b32.xlu0 %v4249, 16
  %v4473 = vpop.permute.xlu0 %4472
  %4474 = vrot.lane.b32.xlu0 %v4251, 16
  %v4475 = vpop.permute.xlu0 %4474
  %4476 = vrot.lane.b32.xlu0 %v4253, 16
  %v4477 = vpop.permute.xlu0 %4476
  %4478 = vrot.lane.b32.xlu0 %v4255, 16
  %v4479 = vpop.permute.xlu0 %4478
  %4480 = vrot.lane.b32.xlu0 %v4257, 16
  %v4481 = vpop.permute.xlu0 %4480
  %v4482 = vadd.f32 %v4195, %v4419
  %v4483 = vadd.f32 %v4197, %v4421
  %v4484 = vadd.f32 %v4199, %v4423
  %v4485 = vadd.f32 %v4201, %v4425
  %v4486 = vadd.f32 %v4203, %v4427
  %v4487 = vadd.f32 %v4205, %v4429
  %v4488 = vadd.f32 %v4207, %v4431
  %v4489 = vadd.f32 %v4209, %v4433
  %v4490 = vadd.f32 %v4211, %v4435
  %v4491 = vadd.f32 %v4213, %v4437
  %v4492 = vadd.f32 %v4215, %v4439
  %v4493 = vadd.f32 %v4217, %v4441
  %v4494 = vadd.f32 %v4219, %v4443
  %v4495 = vadd.f32 %v4221, %v4445
  %v4496 = vadd.f32 %v4223, %v4447
  %v4497 = vadd.f32 %v4225, %v4449
  %v4498 = vadd.f32 %v4227, %v4451
  %v4499 = vadd.f32 %v4229, %v4453
  %v4500 = vadd.f32 %v4231, %v4455
  %v4501 = vadd.f32 %v4233, %v4457
  %v4502 = vadd.f32 %v4235, %v4459
  %v4503 = vadd.f32 %v4237, %v4461
  %v4504 = vadd.f32 %v4239, %v4463
  %v4505 = vadd.f32 %v4241, %v4465
  %v4506 = vadd.f32 %v4243, %v4467
  %v4507 = vadd.f32 %v4245, %v4469
  %v4508 = vadd.f32 %v4247, %v4471
  %v4509 = vadd.f32 %v4249, %v4473
  %v4510 = vadd.f32 %v4251, %v4475
  %v4511 = vadd.f32 %v4253, %v4477
  %v4512 = vadd.f32 %v4255, %v4479
  %v4513 = vadd.f32 %v4257, %v4481
  %4514 = vrot.lane.b32.xlu0 %v4386, 16
  %v4515 = vpop.permute.xlu0 %4514
  %4516 = vrot.lane.b32.xlu0 %v4387, 16
  %v4517 = vpop.permute.xlu0 %4516
  %4518 = vrot.lane.b32.xlu0 %v4388, 16
  %v4519 = vpop.permute.xlu0 %4518
  %4520 = vrot.lane.b32.xlu0 %v4389, 16
  %v4521 = vpop.permute.xlu0 %4520
  %4522 = vrot.lane.b32.xlu0 %v4390, 16
  %v4523 = vpop.permute.xlu0 %4522
  %4524 = vrot.lane.b32.xlu0 %v4391, 16
  %v4525 = vpop.permute.xlu0 %4524
  %4526 = vrot.lane.b32.xlu0 %v4392, 16
  %v4527 = vpop.permute.xlu0 %4526
  %4528 = vrot.lane.b32.xlu0 %v4393, 16
  %v4529 = vpop.permute.xlu0 %4528
  %4530 = vrot.lane.b32.xlu0 %v4394, 16
  %v4531 = vpop.permute.xlu0 %4530
  %4532 = vrot.lane.b32.xlu0 %v4395, 16
  %v4533 = vpop.permute.xlu0 %4532
  %4534 = vrot.lane.b32.xlu0 %v4396, 16
  %v4535 = vpop.permute.xlu0 %4534
  %4536 = vrot.lane.b32.xlu0 %v4397, 16
  %v4537 = vpop.permute.xlu0 %4536
  %4538 = vrot.lane.b32.xlu0 %v4398, 16
  %v4539 = vpop.permute.xlu0 %4538
  %4540 = vrot.lane.b32.xlu0 %v4399, 16
  %v4541 = vpop.permute.xlu0 %4540
  %4542 = vrot.lane.b32.xlu0 %v4400, 16
  %v4543 = vpop.permute.xlu0 %4542
  %4544 = vrot.lane.b32.xlu0 %v4401, 16
  %v4545 = vpop.permute.xlu0 %4544
  %4546 = vrot.lane.b32.xlu0 %v4402, 16
  %v4547 = vpop.permute.xlu0 %4546
  %4548 = vrot.lane.b32.xlu0 %v4403, 16
  %v4549 = vpop.permute.xlu0 %4548
  %4550 = vrot.lane.b32.xlu0 %v4404, 16
  %v4551 = vpop.permute.xlu0 %4550
  %4552 = vrot.lane.b32.xlu0 %v4405, 16
  %v4553 = vpop.permute.xlu0 %4552
  %4554 = vrot.lane.b32.xlu0 %v4406, 16
  %v4555 = vpop.permute.xlu0 %4554
  %4556 = vrot.lane.b32.xlu0 %v4407, 16
  %v4557 = vpop.permute.xlu0 %4556
  %4558 = vrot.lane.b32.xlu0 %v4408, 16
  %v4559 = vpop.permute.xlu0 %4558
  %4560 = vrot.lane.b32.xlu0 %v4409, 16
  %v4561 = vpop.permute.xlu0 %4560
  %4562 = vrot.lane.b32.xlu0 %v4410, 16
  %v4563 = vpop.permute.xlu0 %4562
  %4564 = vrot.lane.b32.xlu0 %v4411, 16
  %v4565 = vpop.permute.xlu0 %4564
  %4566 = vrot.lane.b32.xlu0 %v4412, 16
  %v4567 = vpop.permute.xlu0 %4566
  %4568 = vrot.lane.b32.xlu0 %v4413, 16
  %v4569 = vpop.permute.xlu0 %4568
  %4570 = vrot.lane.b32.xlu0 %v4414, 16
  %v4571 = vpop.permute.xlu0 %4570
  %4572 = vrot.lane.b32.xlu0 %v4415, 16
  %v4573 = vpop.permute.xlu0 %4572
  %4574 = vrot.lane.b32.xlu0 %v4416, 16
  %v4575 = vpop.permute.xlu0 %4574
  %4576 = vrot.lane.b32.xlu0 %v4417, 16
  %v4577 = vpop.permute.xlu0 %4576
  %v4578 = vadd.f32 %v4386, %v4515
  %v4579 = vadd.f32 %v4387, %v4517
  %v4580 = vadd.f32 %v4388, %v4519
  %v4581 = vadd.f32 %v4389, %v4521
  %v4582 = vadd.f32 %v4390, %v4523
  %v4583 = vadd.f32 %v4391, %v4525
  %v4584 = vadd.f32 %v4392, %v4527
  %v4585 = vadd.f32 %v4393, %v4529
  %v4586 = vadd.f32 %v4394, %v4531
  %v4587 = vadd.f32 %v4395, %v4533
  %v4588 = vadd.f32 %v4396, %v4535
  %v4589 = vadd.f32 %v4397, %v4537
  %v4590 = vadd.f32 %v4398, %v4539
  %v4591 = vadd.f32 %v4399, %v4541
  %v4592 = vadd.f32 %v4400, %v4543
  %v4593 = vadd.f32 %v4401, %v4545
  %v4594 = vadd.f32 %v4402, %v4547
  %v4595 = vadd.f32 %v4403, %v4549
  %v4596 = vadd.f32 %v4404, %v4551
  %v4597 = vadd.f32 %v4405, %v4553
  %v4598 = vadd.f32 %v4406, %v4555
  %v4599 = vadd.f32 %v4407, %v4557
  %v4600 = vadd.f32 %v4408, %v4559
  %v4601 = vadd.f32 %v4409, %v4561
  %v4602 = vadd.f32 %v4410, %v4563
  %v4603 = vadd.f32 %v4411, %v4565
  %v4604 = vadd.f32 %v4412, %v4567
  %v4605 = vadd.f32 %v4413, %v4569
  %v4606 = vadd.f32 %v4414, %v4571
  %v4607 = vadd.f32 %v4415, %v4573
  %v4608 = vadd.f32 %v4416, %v4575
  %v4609 = vadd.f32 %v4417, %v4577
  %4610 = vrot.lane.b32.xlu0 %v4482, 32
  %v4611 = vpop.permute.xlu0 %4610
  %4612 = vrot.lane.b32.xlu0 %v4483, 32
  %v4613 = vpop.permute.xlu0 %4612
  %4614 = vrot.lane.b32.xlu0 %v4484, 32
  %v4615 = vpop.permute.xlu0 %4614
  %4616 = vrot.lane.b32.xlu0 %v4485, 32
  %v4617 = vpop.permute.xlu0 %4616
  %4618 = vrot.lane.b32.xlu0 %v4486, 32
  %v4619 = vpop.permute.xlu0 %4618
  %4620 = vrot.lane.b32.xlu0 %v4487, 32
  %v4621 = vpop.permute.xlu0 %4620
  %4622 = vrot.lane.b32.xlu0 %v4488, 32
  %v4623 = vpop.permute.xlu0 %4622
  %4624 = vrot.lane.b32.xlu0 %v4489, 32
  %v4625 = vpop.permute.xlu0 %4624
  %4626 = vrot.lane.b32.xlu0 %v4490, 32
  %v4627 = vpop.permute.xlu0 %4626
  %4628 = vrot.lane.b32.xlu0 %v4491, 32
  %v4629 = vpop.permute.xlu0 %4628
  %4630 = vrot.lane.b32.xlu0 %v4492, 32
  %v4631 = vpop.permute.xlu0 %4630
  %4632 = vrot.lane.b32.xlu0 %v4493, 32
  %v4633 = vpop.permute.xlu0 %4632
  %4634 = vrot.lane.b32.xlu0 %v4494, 32
  %v4635 = vpop.permute.xlu0 %4634
  %4636 = vrot.lane.b32.xlu0 %v4495, 32
  %v4637 = vpop.permute.xlu0 %4636
  %4638 = vrot.lane.b32.xlu0 %v4496, 32
  %v4639 = vpop.permute.xlu0 %4638
  %4640 = vrot.lane.b32.xlu0 %v4497, 32
  %v4641 = vpop.permute.xlu0 %4640
  %4642 = vrot.lane.b32.xlu0 %v4498, 32
  %v4643 = vpop.permute.xlu0 %4642
  %4644 = vrot.lane.b32.xlu0 %v4499, 32
  %v4645 = vpop.permute.xlu0 %4644
  %4646 = vrot.lane.b32.xlu0 %v4500, 32
  %v4647 = vpop.permute.xlu0 %4646
  %4648 = vrot.lane.b32.xlu0 %v4501, 32
  %v4649 = vpop.permute.xlu0 %4648
  %4650 = vrot.lane.b32.xlu0 %v4502, 32
  %v4651 = vpop.permute.xlu0 %4650
  %4652 = vrot.lane.b32.xlu0 %v4503, 32
  %v4653 = vpop.permute.xlu0 %4652
  %4654 = vrot.lane.b32.xlu0 %v4504, 32
  %v4655 = vpop.permute.xlu0 %4654
  %4656 = vrot.lane.b32.xlu0 %v4505, 32
  %v4657 = vpop.permute.xlu0 %4656
  %4658 = vrot.lane.b32.xlu0 %v4506, 32
  %v4659 = vpop.permute.xlu0 %4658
  %4660 = vrot.lane.b32.xlu0 %v4507, 32
  %v4661 = vpop.permute.xlu0 %4660
  %4662 = vrot.lane.b32.xlu0 %v4508, 32
  %v4663 = vpop.permute.xlu0 %4662
  %4664 = vrot.lane.b32.xlu0 %v4509, 32
  %v4665 = vpop.permute.xlu0 %4664
  %4666 = vrot.lane.b32.xlu0 %v4510, 32
  %v4667 = vpop.permute.xlu0 %4666
  %4668 = vrot.lane.b32.xlu0 %v4511, 32
  %v4669 = vpop.permute.xlu0 %4668
  %4670 = vrot.lane.b32.xlu0 %v4512, 32
  %v4671 = vpop.permute.xlu0 %4670
  %4672 = vrot.lane.b32.xlu0 %v4513, 32
  %v4673 = vpop.permute.xlu0 %4672
  %v4674 = vadd.f32 %v4482, %v4611
  %v4675 = vadd.f32 %v4483, %v4613
  %v4676 = vadd.f32 %v4484, %v4615
  %v4677 = vadd.f32 %v4485, %v4617
  %v4678 = vadd.f32 %v4486, %v4619
  %v4679 = vadd.f32 %v4487, %v4621
  %v4680 = vadd.f32 %v4488, %v4623
  %v4681 = vadd.f32 %v4489, %v4625
  %v4682 = vadd.f32 %v4490, %v4627
  %v4683 = vadd.f32 %v4491, %v4629
  %v4684 = vadd.f32 %v4492, %v4631
  %v4685 = vadd.f32 %v4493, %v4633
  %v4686 = vadd.f32 %v4494, %v4635
  %v4687 = vadd.f32 %v4495, %v4637
  %v4688 = vadd.f32 %v4496, %v4639
  %v4689 = vadd.f32 %v4497, %v4641
  %v4690 = vadd.f32 %v4498, %v4643
  %v4691 = vadd.f32 %v4499, %v4645
  %v4692 = vadd.f32 %v4500, %v4647
  %v4693 = vadd.f32 %v4501, %v4649
  %v4694 = vadd.f32 %v4502, %v4651
  %v4695 = vadd.f32 %v4503, %v4653
  %v4696 = vadd.f32 %v4504, %v4655
  %v4697 = vadd.f32 %v4505, %v4657
  %v4698 = vadd.f32 %v4506, %v4659
  %v4699 = vadd.f32 %v4507, %v4661
  %v4700 = vadd.f32 %v4508, %v4663
  %v4701 = vadd.f32 %v4509, %v4665
  %v4702 = vadd.f32 %v4510, %v4667
  %v4703 = vadd.f32 %v4511, %v4669
  %v4704 = vadd.f32 %v4512, %v4671
  %v4705 = vadd.f32 %v4513, %v4673
  %4706 = vrot.lane.b32.xlu0 %v4578, 32
  %v4707 = vpop.permute.xlu0 %4706
  %4708 = vrot.lane.b32.xlu0 %v4579, 32
  %v4709 = vpop.permute.xlu0 %4708
  %4710 = vrot.lane.b32.xlu0 %v4580, 32
  %v4711 = vpop.permute.xlu0 %4710
  %4712 = vrot.lane.b32.xlu0 %v4581, 32
  %v4713 = vpop.permute.xlu0 %4712
  %4714 = vrot.lane.b32.xlu0 %v4582, 32
  %v4715 = vpop.permute.xlu0 %4714
  %4716 = vrot.lane.b32.xlu0 %v4583, 32
  %v4717 = vpop.permute.xlu0 %4716
  %4718 = vrot.lane.b32.xlu0 %v4584, 32
  %v4719 = vpop.permute.xlu0 %4718
  %4720 = vrot.lane.b32.xlu0 %v4585, 32
  %v4721 = vpop.permute.xlu0 %4720
  %4722 = vrot.lane.b32.xlu0 %v4586, 32
  %v4723 = vpop.permute.xlu0 %4722
  %4724 = vrot.lane.b32.xlu0 %v4587, 32
  %v4725 = vpop.permute.xlu0 %4724
  %4726 = vrot.lane.b32.xlu0 %v4588, 32
  %v4727 = vpop.permute.xlu0 %4726
  %4728 = vrot.lane.b32.xlu0 %v4589, 32
  %v4729 = vpop.permute.xlu0 %4728
  %4730 = vrot.lane.b32.xlu0 %v4590, 32
  %v4731 = vpop.permute.xlu0 %4730
  %4732 = vrot.lane.b32.xlu0 %v4591, 32
  %v4733 = vpop.permute.xlu0 %4732
  %4734 = vrot.lane.b32.xlu0 %v4592, 32
  %v4735 = vpop.permute.xlu0 %4734
  %4736 = vrot.lane.b32.xlu0 %v4593, 32
  %v4737 = vpop.permute.xlu0 %4736
  %4738 = vrot.lane.b32.xlu0 %v4594, 32
  %v4739 = vpop.permute.xlu0 %4738
  %4740 = vrot.lane.b32.xlu0 %v4595, 32
  %v4741 = vpop.permute.xlu0 %4740
  %4742 = vrot.lane.b32.xlu0 %v4596, 32
  %v4743 = vpop.permute.xlu0 %4742
  %4744 = vrot.lane.b32.xlu0 %v4597, 32
  %v4745 = vpop.permute.xlu0 %4744
  %4746 = vrot.lane.b32.xlu0 %v4598, 32
  %v4747 = vpop.permute.xlu0 %4746
  %4748 = vrot.lane.b32.xlu0 %v4599, 32
  %v4749 = vpop.permute.xlu0 %4748
  %4750 = vrot.lane.b32.xlu0 %v4600, 32
  %v4751 = vpop.permute.xlu0 %4750
  %4752 = vrot.lane.b32.xlu0 %v4601, 32
  %v4753 = vpop.permute.xlu0 %4752
  %4754 = vrot.lane.b32.xlu0 %v4602, 32
  %v4755 = vpop.permute.xlu0 %4754
  %4756 = vrot.lane.b32.xlu0 %v4603, 32
  %v4757 = vpop.permute.xlu0 %4756
  %4758 = vrot.lane.b32.xlu0 %v4604, 32
  %v4759 = vpop.permute.xlu0 %4758
  %4760 = vrot.lane.b32.xlu0 %v4605, 32
  %v4761 = vpop.permute.xlu0 %4760
  %4762 = vrot.lane.b32.xlu0 %v4606, 32
  %v4763 = vpop.permute.xlu0 %4762
  %4764 = vrot.lane.b32.xlu0 %v4607, 32
  %v4765 = vpop.permute.xlu0 %4764
  %4766 = vrot.lane.b32.xlu0 %v4608, 32
  %v4767 = vpop.permute.xlu0 %4766
  %4768 = vrot.lane.b32.xlu0 %v4609, 32
  %v4769 = vpop.permute.xlu0 %4768
  %v4770 = vadd.f32 %v4578, %v4707
  %v4771 = vadd.f32 %v4579, %v4709
  %v4772 = vadd.f32 %v4580, %v4711
  %v4773 = vadd.f32 %v4581, %v4713
  %v4774 = vadd.f32 %v4582, %v4715
  %v4775 = vadd.f32 %v4583, %v4717
  %v4776 = vadd.f32 %v4584, %v4719
  %v4777 = vadd.f32 %v4585, %v4721
  %v4778 = vadd.f32 %v4586, %v4723
  %v4779 = vadd.f32 %v4587, %v4725
  %v4780 = vadd.f32 %v4588, %v4727
  %v4781 = vadd.f32 %v4589, %v4729
  %v4782 = vadd.f32 %v4590, %v4731
  %v4783 = vadd.f32 %v4591, %v4733
  %v4784 = vadd.f32 %v4592, %v4735
  %v4785 = vadd.f32 %v4593, %v4737
  %v4786 = vadd.f32 %v4594, %v4739
  %v4787 = vadd.f32 %v4595, %v4741
  %v4788 = vadd.f32 %v4596, %v4743
  %v4789 = vadd.f32 %v4597, %v4745
  %v4790 = vadd.f32 %v4598, %v4747
  %v4791 = vadd.f32 %v4599, %v4749
  %v4792 = vadd.f32 %v4600, %v4751
  %v4793 = vadd.f32 %v4601, %v4753
  %v4794 = vadd.f32 %v4602, %v4755
  %v4795 = vadd.f32 %v4603, %v4757
  %v4796 = vadd.f32 %v4604, %v4759
  %v4797 = vadd.f32 %v4605, %v4761
  %v4798 = vadd.f32 %v4606, %v4763
  %v4799 = vadd.f32 %v4607, %v4765
  %v4800 = vadd.f32 %v4608, %v4767
  %v4801 = vadd.f32 %v4609, %v4769
  %4802 = vrot.lane.b32.xlu0 %v4674, 64
  %v4803 = vpop.permute.xlu0 %4802
  %4804 = vrot.lane.b32.xlu0 %v4675, 64
  %v4805 = vpop.permute.xlu0 %4804
  %4806 = vrot.lane.b32.xlu0 %v4676, 64
  %v4807 = vpop.permute.xlu0 %4806
  %4808 = vrot.lane.b32.xlu0 %v4677, 64
  %v4809 = vpop.permute.xlu0 %4808
  %4810 = vrot.lane.b32.xlu0 %v4678, 64
  %v4811 = vpop.permute.xlu0 %4810
  %4812 = vrot.lane.b32.xlu0 %v4679, 64
  %v4813 = vpop.permute.xlu0 %4812
  %4814 = vrot.lane.b32.xlu0 %v4680, 64
  %v4815 = vpop.permute.xlu0 %4814
  %4816 = vrot.lane.b32.xlu0 %v4681, 64
  %v4817 = vpop.permute.xlu0 %4816
  %4818 = vrot.lane.b32.xlu0 %v4682, 64
  %v4819 = vpop.permute.xlu0 %4818
  %4820 = vrot.lane.b32.xlu0 %v4683, 64
  %v4821 = vpop.permute.xlu0 %4820
  %4822 = vrot.lane.b32.xlu0 %v4684, 64
  %v4823 = vpop.permute.xlu0 %4822
  %4824 = vrot.lane.b32.xlu0 %v4685, 64
  %v4825 = vpop.permute.xlu0 %4824
  %4826 = vrot.lane.b32.xlu0 %v4686, 64
  %v4827 = vpop.permute.xlu0 %4826
  %4828 = vrot.lane.b32.xlu0 %v4687, 64
  %v4829 = vpop.permute.xlu0 %4828
  %4830 = vrot.lane.b32.xlu0 %v4688, 64
  %v4831 = vpop.permute.xlu0 %4830
  %4832 = vrot.lane.b32.xlu0 %v4689, 64
  %v4833 = vpop.permute.xlu0 %4832
  %4834 = vrot.lane.b32.xlu0 %v4690, 64
  %v4835 = vpop.permute.xlu0 %4834
  %4836 = vrot.lane.b32.xlu0 %v4691, 64
  %v4837 = vpop.permute.xlu0 %4836
  %4838 = vrot.lane.b32.xlu0 %v4692, 64
  %v4839 = vpop.permute.xlu0 %4838
  %4840 = vrot.lane.b32.xlu0 %v4693, 64
  %v4841 = vpop.permute.xlu0 %4840
  %4842 = vrot.lane.b32.xlu0 %v4694, 64
  %v4843 = vpop.permute.xlu0 %4842
  %4844 = vrot.lane.b32.xlu0 %v4695, 64
  %v4845 = vpop.permute.xlu0 %4844
  %4846 = vrot.lane.b32.xlu0 %v4696, 64
  %v4847 = vpop.permute.xlu0 %4846
  %4848 = vrot.lane.b32.xlu0 %v4697, 64
  %v4849 = vpop.permute.xlu0 %4848
  %4850 = vrot.lane.b32.xlu0 %v4698, 64
  %v4851 = vpop.permute.xlu0 %4850
  %4852 = vrot.lane.b32.xlu0 %v4699, 64
  %v4853 = vpop.permute.xlu0 %4852
  %4854 = vrot.lane.b32.xlu0 %v4700, 64
  %v4855 = vpop.permute.xlu0 %4854
  %4856 = vrot.lane.b32.xlu0 %v4701, 64
  %v4857 = vpop.permute.xlu0 %4856
  %4858 = vrot.lane.b32.xlu0 %v4702, 64
  %v4859 = vpop.permute.xlu0 %4858
  %4860 = vrot.lane.b32.xlu0 %v4703, 64
  %v4861 = vpop.permute.xlu0 %4860
  %4862 = vrot.lane.b32.xlu0 %v4704, 64
  %v4863 = vpop.permute.xlu0 %4862
  %4864 = vrot.lane.b32.xlu0 %v4705, 64
  %v4865 = vpop.permute.xlu0 %4864
  %v4866 = vadd.f32 %v4674, %v4803
  %v4867 = vadd.f32 %v4675, %v4805
  %v4868 = vadd.f32 %v4676, %v4807
  %v4869 = vadd.f32 %v4677, %v4809
  %v4870 = vadd.f32 %v4678, %v4811
  %v4871 = vadd.f32 %v4679, %v4813
  %v4872 = vadd.f32 %v4680, %v4815
  %v4873 = vadd.f32 %v4681, %v4817
  %v4874 = vadd.f32 %v4682, %v4819
  %v4875 = vadd.f32 %v4683, %v4821
  %v4876 = vadd.f32 %v4684, %v4823
  %v4877 = vadd.f32 %v4685, %v4825
  %v4878 = vadd.f32 %v4686, %v4827
  %v4879 = vadd.f32 %v4687, %v4829
  %v4880 = vadd.f32 %v4688, %v4831
  %v4881 = vadd.f32 %v4689, %v4833
  %v4882 = vadd.f32 %v4690, %v4835
  %v4883 = vadd.f32 %v4691, %v4837
  %v4884 = vadd.f32 %v4692, %v4839
  %v4885 = vadd.f32 %v4693, %v4841
  %v4886 = vadd.f32 %v4694, %v4843
  %v4887 = vadd.f32 %v4695, %v4845
  %v4888 = vadd.f32 %v4696, %v4847
  %v4889 = vadd.f32 %v4697, %v4849
  %v4890 = vadd.f32 %v4698, %v4851
  %v4891 = vadd.f32 %v4699, %v4853
  %v4892 = vadd.f32 %v4700, %v4855
  %v4893 = vadd.f32 %v4701, %v4857
  %v4894 = vadd.f32 %v4702, %v4859
  %v4895 = vadd.f32 %v4703, %v4861
  %v4896 = vadd.f32 %v4704, %v4863
  %v4897 = vadd.f32 %v4705, %v4865
  %4898 = vrot.lane.b32.xlu0 %v4770, 64
  %v4899 = vpop.permute.xlu0 %4898
  %4900 = vrot.lane.b32.xlu0 %v4771, 64
  %v4901 = vpop.permute.xlu0 %4900
  %4902 = vrot.lane.b32.xlu0 %v4772, 64
  %v4903 = vpop.permute.xlu0 %4902
  %4904 = vrot.lane.b32.xlu0 %v4773, 64
  %v4905 = vpop.permute.xlu0 %4904
  %4906 = vrot.lane.b32.xlu0 %v4774, 64
  %v4907 = vpop.permute.xlu0 %4906
  %4908 = vrot.lane.b32.xlu0 %v4775, 64
  %v4909 = vpop.permute.xlu0 %4908
  %4910 = vrot.lane.b32.xlu0 %v4776, 64
  %v4911 = vpop.permute.xlu0 %4910
  %4912 = vrot.lane.b32.xlu0 %v4777, 64
  %v4913 = vpop.permute.xlu0 %4912
  %4914 = vrot.lane.b32.xlu0 %v4778, 64
  %v4915 = vpop.permute.xlu0 %4914
  %4916 = vrot.lane.b32.xlu0 %v4779, 64
  %v4917 = vpop.permute.xlu0 %4916
  %4918 = vrot.lane.b32.xlu0 %v4780, 64
  %v4919 = vpop.permute.xlu0 %4918
  %4920 = vrot.lane.b32.xlu0 %v4781, 64
  %v4921 = vpop.permute.xlu0 %4920
  %4922 = vrot.lane.b32.xlu0 %v4782, 64
  %v4923 = vpop.permute.xlu0 %4922
  %4924 = vrot.lane.b32.xlu0 %v4783, 64
  %v4925 = vpop.permute.xlu0 %4924
  %4926 = vrot.lane.b32.xlu0 %v4784, 64
  %v4927 = vpop.permute.xlu0 %4926
  %4928 = vrot.lane.b32.xlu0 %v4785, 64
  %v4929 = vpop.permute.xlu0 %4928
  %4930 = vrot.lane.b32.xlu0 %v4786, 64
  %v4931 = vpop.permute.xlu0 %4930
  %4932 = vrot.lane.b32.xlu0 %v4787, 64
  %v4933 = vpop.permute.xlu0 %4932
  %4934 = vrot.lane.b32.xlu0 %v4788, 64
  %v4935 = vpop.permute.xlu0 %4934
  %4936 = vrot.lane.b32.xlu0 %v4789, 64
  %v4937 = vpop.permute.xlu0 %4936
  %4938 = vrot.lane.b32.xlu0 %v4790, 64
  %v4939 = vpop.permute.xlu0 %4938
  %4940 = vrot.lane.b32.xlu0 %v4791, 64
  %v4941 = vpop.permute.xlu0 %4940
  %4942 = vrot.lane.b32.xlu0 %v4792, 64
  %v4943 = vpop.permute.xlu0 %4942
  %4944 = vrot.lane.b32.xlu0 %v4793, 64
  %v4945 = vpop.permute.xlu0 %4944
  %4946 = vrot.lane.b32.xlu0 %v4794, 64
  %v4947 = vpop.permute.xlu0 %4946
  %4948 = vrot.lane.b32.xlu0 %v4795, 64
  %v4949 = vpop.permute.xlu0 %4948
  %4950 = vrot.lane.b32.xlu0 %v4796, 64
  %v4951 = vpop.permute.xlu0 %4950
  %4952 = vrot.lane.b32.xlu0 %v4797, 64
  %v4953 = vpop.permute.xlu0 %4952
  %4954 = vrot.lane.b32.xlu0 %v4798, 64
  %v4955 = vpop.permute.xlu0 %4954
  %4956 = vrot.lane.b32.xlu0 %v4799, 64
  %v4957 = vpop.permute.xlu0 %4956
  %4958 = vrot.lane.b32.xlu0 %v4800, 64
  %v4959 = vpop.permute.xlu0 %4958
  %4960 = vrot.lane.b32.xlu0 %v4801, 64
  %v4961 = vpop.permute.xlu0 %4960
  %v4962 = vadd.f32 %v4770, %v4899
  %v4963 = vadd.f32 %v4771, %v4901
  %v4964 = vadd.f32 %v4772, %v4903
  %v4965 = vadd.f32 %v4773, %v4905
  %v4966 = vadd.f32 %v4774, %v4907
  %v4967 = vadd.f32 %v4775, %v4909
  %v4968 = vadd.f32 %v4776, %v4911
  %v4969 = vadd.f32 %v4777, %v4913
  %v4970 = vadd.f32 %v4778, %v4915
  %v4971 = vadd.f32 %v4779, %v4917
  %v4972 = vadd.f32 %v4780, %v4919
  %v4973 = vadd.f32 %v4781, %v4921
  %v4974 = vadd.f32 %v4782, %v4923
  %v4975 = vadd.f32 %v4783, %v4925
  %v4976 = vadd.f32 %v4784, %v4927
  %v4977 = vadd.f32 %v4785, %v4929
  %v4978 = vadd.f32 %v4786, %v4931
  %v4979 = vadd.f32 %v4787, %v4933
  %v4980 = vadd.f32 %v4788, %v4935
  %v4981 = vadd.f32 %v4789, %v4937
  %v4982 = vadd.f32 %v4790, %v4939
  %v4983 = vadd.f32 %v4791, %v4941
  %v4984 = vadd.f32 %v4792, %v4943
  %v4985 = vadd.f32 %v4793, %v4945
  %v4986 = vadd.f32 %v4794, %v4947
  %v4987 = vadd.f32 %v4795, %v4949
  %v4988 = vadd.f32 %v4796, %v4951
  %v4989 = vadd.f32 %v4797, %v4953
  %v4990 = vadd.f32 %v4798, %v4955
  %v4991 = vadd.f32 %v4799, %v4957
  %v4992 = vadd.f32 %v4800, %v4959
  %v4993 = vadd.f32 %v4801, %v4961
  %v4994 = vrcp.pop %v4866
  %v4995 = vrcp.pop %v4867
  %v4996 = vrcp.pop %v4868
  %v4997 = vrcp.pop %v4869
  %v4998 = vrcp.pop %v4870
  %v4999 = vrcp.pop %v4871
  %v5000 = vrcp.pop %v4872
  %v5001 = vrcp.pop %v4873
  %v5002 = vrcp.pop %v4874
  %v5003 = vrcp.pop %v4875
  %v5004 = vrcp.pop %v4876
  %v5005 = vrcp.pop %v4877
  %v5006 = vrcp.pop %v4878
  %v5007 = vrcp.pop %v4879
  %v5008 = vrcp.pop %v4880
  %v5009 = vrcp.pop %v4881
  %v5010 = vrcp.pop %v4882
  %v5011 = vrcp.pop %v4883
  %v5012 = vrcp.pop %v4884
  %v5013 = vrcp.pop %v4885
  %v5014 = vrcp.pop %v4886
  %v5015 = vrcp.pop %v4887
  %v5016 = vrcp.pop %v4888
  %v5017 = vrcp.pop %v4889
  %v5018 = vrcp.pop %v4890
  %v5019 = vrcp.pop %v4891
  %v5020 = vrcp.pop %v4892
  %v5021 = vrcp.pop %v4893
  %v5022 = vrcp.pop %v4894
  %v5023 = vrcp.pop %v4895
  %v5024 = vrcp.pop %v4896
  %v5025 = vrcp.pop %v4897
  %v5026 = vmul.f32 %v4962, %v4994
  %v5027 = vmul.f32 %v4963, %v4995
  %v5028 = vmul.f32 %v4964, %v4996
  %v5029 = vmul.f32 %v4965, %v4997
  %v5030 = vmul.f32 %v4966, %v4998
  %v5031 = vmul.f32 %v4967, %v4999
  %v5032 = vmul.f32 %v4968, %v5000
  %v5033 = vmul.f32 %v4969, %v5001
  %v5034 = vmul.f32 %v4970, %v5002
  %v5035 = vmul.f32 %v4971, %v5003
  %v5036 = vmul.f32 %v4972, %v5004
  %v5037 = vmul.f32 %v4973, %v5005
  %v5038 = vmul.f32 %v4974, %v5006
  %v5039 = vmul.f32 %v4975, %v5007
  %v5040 = vmul.f32 %v4976, %v5008
  %v5041 = vmul.f32 %v4977, %v5009
  %v5042 = vmul.f32 %v4978, %v5010
  %v5043 = vmul.f32 %v4979, %v5011
  %v5044 = vmul.f32 %v4980, %v5012
  %v5045 = vmul.f32 %v4981, %v5013
  %v5046 = vmul.f32 %v4982, %v5014
  %v5047 = vmul.f32 %v4983, %v5015
  %v5048 = vmul.f32 %v4984, %v5016
  %v5049 = vmul.f32 %v4985, %v5017
  %v5050 = vmul.f32 %v4986, %v5018
  %v5051 = vmul.f32 %v4987, %v5019
  %v5052 = vmul.f32 %v4988, %v5020
  %v5053 = vmul.f32 %v4989, %v5021
  %v5054 = vmul.f32 %v4990, %v5022
  %v5055 = vmul.f32 %v4991, %v5023
  %v5056 = vmul.f32 %v4992, %v5024
  %v5057 = vmul.f32 %v4993, %v5025
  %v5058 = vlaneseq
  %v5059 = vshrl.u32 %v5058, 7
  %v5060 = vsub.s32 0, %v5059
  %v5061 = vrot.slane %v20, %v5060
  %v5063 = vsel %vm77, %v5026, 0
  %v5066 = vsel %vm77, %v5027, 0
  %v5069 = vsel %vm77, %v5028, 0
  %v5072 = vsel %vm77, %v5029, 0
  %v5075 = vsel %vm77, %v5030, 0
  %v5078 = vsel %vm77, %v5031, 0
  %v5081 = vsel %vm77, %v5032, 0
  %v5084 = vsel %vm77, %v5033, 0
  %v5087 = vsel %vm77, %v5034, 0
  %v5090 = vsel %vm77, %v5035, 0
  %v5093 = vsel %vm77, %v5036, 0
  %v5096 = vsel %vm77, %v5037, 0
  %v5099 = vsel %vm77, %v5038, 0
  %v5102 = vsel %vm77, %v5039, 0
  %v5105 = vsel %vm77, %v5040, 0
  %v5108 = vsel %vm77, %v5041, 0
  %v5111 = vsel %vm77, %v5042, 0
  %v5114 = vsel %vm77, %v5043, 0
  %v5117 = vsel %vm77, %v5044, 0
  %v5120 = vsel %vm77, %v5045, 0
  %v5123 = vsel %vm77, %v5046, 0
  %v5126 = vsel %vm77, %v5047, 0
  %v5129 = vsel %vm77, %v5048, 0
  %v5132 = vsel %vm77, %v5049, 0
  %v5135 = vsel %vm77, %v5050, 0
  %v5138 = vsel %vm77, %v5051, 0
  %v5141 = vsel %vm77, %v5052, 0
  %v5144 = vsel %vm77, %v5053, 0
  %v5147 = vsel %vm77, %v5054, 0
  %v5150 = vsel %vm77, %v5055, 0
  %v5153 = vsel %vm77, %v5056, 0
  %v5156 = vsel %vm77, %v5057, 0
  %5158 = vmatprep.subr.mxu0 0.0
  %5159 = vmatpush1.msra.mxu0 %v31
  %5160 = vmatprep.subr.mxu0 0.0
  %5161 = vmatpush1.msra.mxu0 %v32
  %5162 = vmatprep.subr.mxu0 0.0
  %5163 = vmatpush1.msra.mxu0 0.0
  %5164 = vmatprep.subr.mxu0 0.0
  %5165 = vmatpush1.msra.mxu0 0.0
  %5166 = vmatprep.subr.mxu0 0.0
  %5167 = vmatpush1.msra.mxu0 0.0
  %5168 = vmatprep.subr.mxu0 0.0
  %5169 = vmatpush1.msra.mxu0 0.0
  %5170 = vmatprep.subr.mxu0 0.0
  %5171 = vmatpush1.msra.mxu0 0.0
  %5172 = vmatprep.subr.mxu0 0.0
  %5173 = vmatpush1.msra.mxu0 0.0
  %5174 = vmatprep.subr.mxu0 0.0
  %5175 = vmatpush1.msra.mxu0 0.0
  %5176 = vmatprep.subr.mxu0 0.0
  %5177 = vmatpush1.msra.mxu0 0.0
  %5178 = vmatprep.subr.mxu0 0.0
  %5179 = vmatpush1.msra.mxu0 0.0
  %5180 = vmatprep.subr.mxu0 0.0
  %5181 = vmatpush1.msra.mxu0 0.0
  %5182 = vmatprep.subr.mxu0 0.0
  %5183 = vmatpush1.msra.mxu0 0.0
  %5184 = vmatprep.subr.mxu0 0.0
  %5185 = vmatpush1.msra.mxu0 0.0
  %5186 = vmatprep.subr.mxu0 0.0
  %5187 = vmatpush1.msra.mxu0 0.0
  %5188 = vmatprep.subr.mxu0 0.0
  %5189 = vmatpush1.msra.mxu0 0.0
  %5190 = vmatprep.subr.mxu0 0.0
  %5191 = vmatpush1.msra.mxu0 0.0
  %5192 = vmatprep.subr.mxu0 0.0
  %5193 = vmatpush1.msra.mxu0 0.0
  %5194 = vmatprep.subr.mxu0 0.0
  %5195 = vmatpush1.msra.mxu0 0.0
  %5196 = vmatprep.subr.mxu0 0.0
  %5197 = vmatpush1.msra.mxu0 0.0
  %5198 = vmatprep.subr.mxu0 0.0
  %5199 = vmatpush1.msra.mxu0 0.0
  %5200 = vmatprep.subr.mxu0 0.0
  %5201 = vmatpush1.msra.mxu0 0.0
  %5202 = vmatprep.subr.mxu0 0.0
  %5203 = vmatpush1.msra.mxu0 0.0
  %5204 = vmatprep.subr.mxu0 0.0
  %5205 = vmatpush1.msra.mxu0 0.0
  %5206 = vmatprep.subr.mxu0 0.0
  %5207 = vmatpush1.msra.mxu0 0.0
  %5208 = vmatprep.subr.mxu0 0.0
  %5209 = vmatpush1.msra.mxu0 0.0
  %5210 = vmatprep.subr.mxu0 0.0
  %5211 = vmatpush1.msra.mxu0 0.0
  %5212 = vmatprep.subr.mxu0 0.0
  %5213 = vmatpush1.msra.mxu0 0.0
  %5214 = vmatprep.subr.mxu0 0.0
  %5215 = vmatpush1.msra.mxu0 0.0
  %5216 = vmatprep.subr.mxu0 0.0
  %5217 = vmatpush1.msra.mxu0 0.0
  %5218 = vmatprep.subr.mxu0 0.0
  %5219 = vmatpush1.msra.mxu0 0.0
  %5220 = vmatprep.subr.mxu0 0.0
  %5221 = vmatpush1.msra.mxu0 0.0
  %5222 = vmatprep.mubr.f32.mxu0 0.0
  %5223 = vmatmul.mubr.f32.gmra.mrb[0].mxu0 %v5063
  %v5224 = vpop.f32.mrb[0].mxu0
  %v5225 = vadd.f32 %v5061, %v5224
  %v5226 = vpop.f32.mrb[0].mxu0
  %5227 = vmatprep.mubr.f32.mxu0 0.0
  %5228 = vmatmul.mubr.f32.gmra.mrb[0].mxu0 %v5066
  %v5229 = vpop.f32.mrb[0].mxu0
  %v5230 = vadd.f32 %v5061, %v5229
  %v5231 = vpop.f32.mrb[0].mxu0
  %5232 = vmatprep.mubr.f32.mxu0 0.0
  %5233 = vmatmul.mubr.f32.gmra.mrb[0].mxu0 %v5069
  %v5234 = vpop.f32.mrb[0].mxu0
  %v5235 = vadd.f32 %v5061, %v5234
  %v5236 = vpop.f32.mrb[0].mxu0
  %5237 = vmatprep.mubr.f32.mxu0 0.0
  %5238 = vmatmul.mubr.f32.gmra.mrb[0].mxu0 %v5072
  %v5239 = vpop.f32.mrb[0].mxu0
  %v5240 = vadd.f32 %v5061, %v5239
  %v5241 = vpop.f32.mrb[0].mxu0
  %5242 = vmatprep.mubr.f32.mxu0 0.0
  %5243 = vmatmul.mubr.f32.gmra.mrb[0].mxu0 %v5075
  %v5244 = vpop.f32.mrb[0].mxu0
  %v5245 = vadd.f32 %v5061, %v5244
  %v5246 = vpop.f32.mrb[0].mxu0
  %5247 = vmatprep.mubr.f32.mxu0 0.0
  %5248 = vmatmul.mubr.f32.gmra.mrb[0].mxu0 %v5078
  %v5249 = vpop.f32.mrb[0].mxu0
  %v5250 = vadd.f32 %v5061, %v5249
  %v5251 = vpop.f32.mrb[0].mxu0
  %5252 = vmatprep.mubr.f32.mxu0 0.0
  %5253 = vmatmul.mubr.f32.gmra.mrb[0].mxu0 %v5081
  %v5254 = vpop.f32.mrb[0].mxu0
  %v5255 = vadd.f32 %v5061, %v5254
  %v5256 = vpop.f32.mrb[0].mxu0
  %5257 = vmatprep.mubr.f32.mxu0 0.0
  %5258 = vmatmul.mubr.f32.gmra.mrb[0].mxu0 %v5084
  %v5259 = vpop.f32.mrb[0].mxu0
  %v5260 = vadd.f32 %v5061, %v5259
  %v5261 = vpop.f32.mrb[0].mxu0
  %5262 = vmatprep.mubr.f32.mxu0 0.0
  %5263 = vmatmul.mubr.f32.gmra.mrb[0].mxu0 %v5087
  %v5264 = vpop.f32.mrb[0].mxu0
  %v5265 = vadd.f32 %v5061, %v5264
  %v5266 = vpop.f32.mrb[0].mxu0
  %5267 = vmatprep.mubr.f32.mxu0 0.0
  %5268 = vmatmul.mubr.f32.gmra.mrb[0].mxu0 %v5090
  %v5269 = vpop.f32.mrb[0].mxu0
  %v5270 = vadd.f32 %v5061, %v5269
  %v5271 = vpop.f32.mrb[0].mxu0
  %5272 = vmatprep.mubr.f32.mxu0 0.0
  %5273 = vmatmul.mubr.f32.gmra.mrb[0].mxu0 %v5093
  %v5274 = vpop.f32.mrb[0].mxu0
  %v5275 = vadd.f32 %v5061, %v5274
  %v5276 = vpop.f32.mrb[0].mxu0
  %5277 = vmatprep.mubr.f32.mxu0 0.0
  %5278 = vmatmul.mubr.f32.gmra.mrb[0].mxu0 %v5096
  %v5279 = vpop.f32.mrb[0].mxu0
  %v5280 = vadd.f32 %v5061, %v5279
  %v5281 = vpop.f32.mrb[0].mxu0
  %5282 = vmatprep.mubr.f32.mxu0 0.0
  %5283 = vmatmul.mubr.f32.gmra.mrb[0].mxu0 %v5099
  %v5284 = vpop.f32.mrb[0].mxu0
  %v5285 = vadd.f32 %v5061, %v5284
  %v5286 = vpop.f32.mrb[0].mxu0
  %5287 = vmatprep.mubr.f32.mxu0 0.0
  %5288 = vmatmul.mubr.f32.gmra.mrb[0].mxu0 %v5102
  %v5289 = vpop.f32.mrb[0].mxu0
  %v5290 = vadd.f32 %v5061, %v5289
  %v5291 = vpop.f32.mrb[0].mxu0
  %5292 = vmatprep.mubr.f32.mxu0 0.0
  %5293 = vmatmul.mubr.f32.gmra.mrb[0].mxu0 %v5105
  %v5294 = vpop.f32.mrb[0].mxu0
  %v5295 = vadd.f32 %v5061, %v5294
  %v5296 = vpop.f32.mrb[0].mxu0
  %5297 = vmatprep.mubr.f32.mxu0 0.0
  %5298 = vmatmul.mubr.f32.gmra.mrb[0].mxu0 %v5108
  %v5299 = vpop.f32.mrb[0].mxu0
  %v5300 = vadd.f32 %v5061, %v5299
  %v5301 = vpop.f32.mrb[0].mxu0
  %5302 = vmatprep.mubr.f32.mxu0 0.0
  %5303 = vmatmul.mubr.f32.gmra.mrb[0].mxu0 %v5111
  %v5304 = vpop.f32.mrb[0].mxu0
  %v5305 = vadd.f32 %v5061, %v5304
  %v5306 = vpop.f32.mrb[0].mxu0
  %5307 = vmatprep.mubr.f32.mxu0 0.0
  %5308 = vmatmul.mubr.f32.gmra.mrb[0].mxu0 %v5114
  %v5309 = vpop.f32.mrb[0].mxu0
  %v5310 = vadd.f32 %v5061, %v5309
  %v5311 = vpop.f32.mrb[0].mxu0
  %5312 = vmatprep.mubr.f32.mxu0 0.0
  %5313 = vmatmul.mubr.f32.gmra.mrb[0].mxu0 %v5117
  %v5314 = vpop.f32.mrb[0].mxu0
  %v5315 = vadd.f32 %v5061, %v5314
  %v5316 = vpop.f32.mrb[0].mxu0
  %5317 = vmatprep.mubr.f32.mxu0 0.0
  %5318 = vmatmul.mubr.f32.gmra.mrb[0].mxu0 %v5120
  %v5319 = vpop.f32.mrb[0].mxu0
  %v5320 = vadd.f32 %v5061, %v5319
  %v5321 = vpop.f32.mrb[0].mxu0
  %5322 = vmatprep.mubr.f32.mxu0 0.0
  %5323 = vmatmul.mubr.f32.gmra.mrb[0].mxu0 %v5123
  %v5324 = vpop.f32.mrb[0].mxu0
  %v5325 = vadd.f32 %v5061, %v5324
  %v5326 = vpop.f32.mrb[0].mxu0
  %5327 = vmatprep.mubr.f32.mxu0 0.0
  %5328 = vmatmul.mubr.f32.gmra.mrb[0].mxu0 %v5126
  %v5329 = vpop.f32.mrb[0].mxu0
  %v5330 = vadd.f32 %v5061, %v5329
  %v5331 = vpop.f32.mrb[0].mxu0
  %5332 = vmatprep.mubr.f32.mxu0 0.0
  %5333 = vmatmul.mubr.f32.gmra.mrb[0].mxu0 %v5129
  %v5334 = vpop.f32.mrb[0].mxu0
  %v5335 = vadd.f32 %v5061, %v5334
  %v5336 = vpop.f32.mrb[0].mxu0
  %5337 = vmatprep.mubr.f32.mxu0 0.0
  %5338 = vmatmul.mubr.f32.gmra.mrb[0].mxu0 %v5132
  %v5339 = vpop.f32.mrb[0].mxu0
  %v5340 = vadd.f32 %v5061, %v5339
  %v5341 = vpop.f32.mrb[0].mxu0
  %5342 = vmatprep.mubr.f32.mxu0 0.0
  %5343 = vmatmul.mubr.f32.gmra.mrb[0].mxu0 %v5135
  %v5344 = vpop.f32.mrb[0].mxu0
  %v5345 = vadd.f32 %v5061, %v5344
  %v5346 = vpop.f32.mrb[0].mxu0
  %5347 = vmatprep.mubr.f32.mxu0 0.0
  %5348 = vmatmul.mubr.f32.gmra.mrb[0].mxu0 %v5138
  %v5349 = vpop.f32.mrb[0].mxu0
  %v5350 = vadd.f32 %v5061, %v5349
  %v5351 = vpop.f32.mrb[0].mxu0
  %5352 = vmatprep.mubr.f32.mxu0 0.0
  %5353 = vmatmul.mubr.f32.gmra.mrb[0].mxu0 %v5141
  %v5354 = vpop.f32.mrb[0].mxu0
  %v5355 = vadd.f32 %v5061, %v5354
  %v5356 = vpop.f32.mrb[0].mxu0
  %5357 = vmatprep.mubr.f32.mxu0 0.0
  %5358 = vmatmul.mubr.f32.gmra.mrb[0].mxu0 %v5144
  %v5359 = vpop.f32.mrb[0].mxu0
  %v5360 = vadd.f32 %v5061, %v5359
  %v5361 = vpop.f32.mrb[0].mxu0
  %5362 = vmatprep.mubr.f32.mxu0 0.0
  %5363 = vmatmul.mubr.f32.gmra.mrb[0].mxu0 %v5147
  %v5364 = vpop.f32.mrb[0].mxu0
  %v5365 = vadd.f32 %v5061, %v5364
  %v5366 = vpop.f32.mrb[0].mxu0
  %5367 = vmatprep.mubr.f32.mxu0 0.0
  %5368 = vmatmul.mubr.f32.gmra.mrb[0].mxu0 %v5150
  %v5369 = vpop.f32.mrb[0].mxu0
  %v5370 = vadd.f32 %v5061, %v5369
  %v5371 = vpop.f32.mrb[0].mxu0
  %5372 = vmatprep.mubr.f32.mxu0 0.0
  %5373 = vmatmul.mubr.f32.gmra.mrb[0].mxu0 %v5153
  %v5374 = vpop.f32.mrb[0].mxu0
  %v5375 = vadd.f32 %v5061, %v5374
  %v5376 = vpop.f32.mrb[0].mxu0
  %5377 = vmatprep.mubr.f32.mxu0 0.0
  %5378 = vmatmul.mubr.f32.gmra.mrb[0].mxu0 %v5156
  %v5379 = vpop.f32.mrb[0].mxu0
  %v5380 = vadd.f32 %v5061, %v5379
  %v5381 = vpop.f32.mrb[0].mxu0
  %5382 = vdwg.mxu0
  %v5383 = vadd.f32 %v535, %v5225
  %v5384 = vadd.f32 %v536, %v5230
  %v5385 = vadd.f32 %v537, %v5235
  %v5386 = vadd.f32 %v538, %v5240
  %v5387 = vadd.f32 %v539, %v5245
  %v5388 = vadd.f32 %v540, %v5250
  %v5389 = vadd.f32 %v541, %v5255
  %v5390 = vadd.f32 %v542, %v5260
  %v5391 = vadd.f32 %v543, %v5265
  %v5392 = vadd.f32 %v544, %v5270
  %v5393 = vadd.f32 %v545, %v5275
  %v5394 = vadd.f32 %v546, %v5280
  %v5395 = vadd.f32 %v547, %v5285
  %v5396 = vadd.f32 %v548, %v5290
  %v5397 = vadd.f32 %v549, %v5295
  %v5398 = vadd.f32 %v550, %v5300
  %v5399 = vadd.f32 %v551, %v5305
  %v5400 = vadd.f32 %v552, %v5310
  %v5401 = vadd.f32 %v553, %v5315
  %v5402 = vadd.f32 %v554, %v5320
  %v5403 = vadd.f32 %v555, %v5325
  %v5404 = vadd.f32 %v556, %v5330
  %v5405 = vadd.f32 %v557, %v5335
  %v5406 = vadd.f32 %v558, %v5340
  %v5407 = vadd.f32 %v559, %v5345
  %v5408 = vadd.f32 %v560, %v5350
  %v5409 = vadd.f32 %v561, %v5355
  %v5410 = vadd.f32 %v562, %v5360
  %v5411 = vadd.f32 %v563, %v5365
  %v5412 = vadd.f32 %v564, %v5370
  %v5413 = vadd.f32 %v565, %v5375
  %v5414 = vadd.f32 %v566, %v5380
  %v5415 = vsel %vm77, %v5383, 0.0
  %5416 = vadd.xlane.f32.xlu0 %v5415
  %v5417 = vpop.xlane.xlu0 %5416
  %v5418 = vsel %vm77, %v5384, 0.0
  %5419 = vadd.xlane.f32.xlu0 %v5418
  %v5420 = vpop.xlane.xlu0 %5419
  %v5421 = vsel %vm77, %v5385, 0.0
  %5422 = vadd.xlane.f32.xlu0 %v5421
  %v5423 = vpop.xlane.xlu0 %5422
  %v5424 = vsel %vm77, %v5386, 0.0
  %5425 = vadd.xlane.f32.xlu0 %v5424
  %v5426 = vpop.xlane.xlu0 %5425
  %v5427 = vsel %vm77, %v5387, 0.0
  %5428 = vadd.xlane.f32.xlu0 %v5427
  %v5429 = vpop.xlane.xlu0 %5428
  %v5430 = vsel %vm77, %v5388, 0.0
  %5431 = vadd.xlane.f32.xlu0 %v5430
  %v5432 = vpop.xlane.xlu0 %5431
  %v5433 = vsel %vm77, %v5389, 0.0
  %5434 = vadd.xlane.f32.xlu0 %v5433
  %v5435 = vpop.xlane.xlu0 %5434
  %v5436 = vsel %vm77, %v5390, 0.0
  %5437 = vadd.xlane.f32.xlu0 %v5436
  %v5438 = vpop.xlane.xlu0 %5437
  %v5439 = vsel %vm77, %v5391, 0.0
  %5440 = vadd.xlane.f32.xlu0 %v5439
  %v5441 = vpop.xlane.xlu0 %5440
  %v5442 = vsel %vm77, %v5392, 0.0
  %5443 = vadd.xlane.f32.xlu0 %v5442
  %v5444 = vpop.xlane.xlu0 %5443
  %v5445 = vsel %vm77, %v5393, 0.0
  %5446 = vadd.xlane.f32.xlu0 %v5445
  %v5447 = vpop.xlane.xlu0 %5446
  %v5448 = vsel %vm77, %v5394, 0.0
  %5449 = vadd.xlane.f32.xlu0 %v5448
  %v5450 = vpop.xlane.xlu0 %5449
  %v5451 = vsel %vm77, %v5395, 0.0
  %5452 = vadd.xlane.f32.xlu0 %v5451
  %v5453 = vpop.xlane.xlu0 %5452
  %v5454 = vsel %vm77, %v5396, 0.0
  %5455 = vadd.xlane.f32.xlu0 %v5454
  %v5456 = vpop.xlane.xlu0 %5455
  %v5457 = vsel %vm77, %v5397, 0.0
  %5458 = vadd.xlane.f32.xlu0 %v5457
  %v5459 = vpop.xlane.xlu0 %5458
  %v5460 = vsel %vm77, %v5398, 0.0
  %5461 = vadd.xlane.f32.xlu0 %v5460
  %v5462 = vpop.xlane.xlu0 %5461
  %v5463 = vsel %vm77, %v5399, 0.0
  %5464 = vadd.xlane.f32.xlu0 %v5463
  %v5465 = vpop.xlane.xlu0 %5464
  %v5466 = vsel %vm77, %v5400, 0.0
  %5467 = vadd.xlane.f32.xlu0 %v5466
  %v5468 = vpop.xlane.xlu0 %5467
  %v5469 = vsel %vm77, %v5401, 0.0
  %5470 = vadd.xlane.f32.xlu0 %v5469
  %v5471 = vpop.xlane.xlu0 %5470
  %v5472 = vsel %vm77, %v5402, 0.0
  %5473 = vadd.xlane.f32.xlu0 %v5472
  %v5474 = vpop.xlane.xlu0 %5473
  %v5475 = vsel %vm77, %v5403, 0.0
  %5476 = vadd.xlane.f32.xlu0 %v5475
  %v5477 = vpop.xlane.xlu0 %5476
  %v5478 = vsel %vm77, %v5404, 0.0
  %5479 = vadd.xlane.f32.xlu0 %v5478
  %v5480 = vpop.xlane.xlu0 %5479
  %v5481 = vsel %vm77, %v5405, 0.0
  %5482 = vadd.xlane.f32.xlu0 %v5481
  %v5483 = vpop.xlane.xlu0 %5482
  %v5484 = vsel %vm77, %v5406, 0.0
  %5485 = vadd.xlane.f32.xlu0 %v5484
  %v5486 = vpop.xlane.xlu0 %5485
  %v5487 = vsel %vm77, %v5407, 0.0
  %5488 = vadd.xlane.f32.xlu0 %v5487
  %v5489 = vpop.xlane.xlu0 %5488
  %v5490 = vsel %vm77, %v5408, 0.0
  %5491 = vadd.xlane.f32.xlu0 %v5490
  %v5492 = vpop.xlane.xlu0 %5491
  %v5493 = vsel %vm77, %v5409, 0.0
  %5494 = vadd.xlane.f32.xlu0 %v5493
  %v5495 = vpop.xlane.xlu0 %5494
  %v5496 = vsel %vm77, %v5410, 0.0
  %5497 = vadd.xlane.f32.xlu0 %v5496
  %v5498 = vpop.xlane.xlu0 %5497
  %v5499 = vsel %vm77, %v5411, 0.0
  %5500 = vadd.xlane.f32.xlu0 %v5499
  %v5501 = vpop.xlane.xlu0 %5500
  %v5502 = vsel %vm77, %v5412, 0.0
  %5503 = vadd.xlane.f32.xlu0 %v5502
  %v5504 = vpop.xlane.xlu0 %5503
  %v5505 = vsel %vm77, %v5413, 0.0
  %5506 = vadd.xlane.f32.xlu0 %v5505
  %v5507 = vpop.xlane.xlu0 %5506
  %v5508 = vsel %vm77, %v5414, 0.0
  %5509 = vadd.xlane.f32.xlu0 %v5508
  %v5510 = vpop.xlane.xlu0 %5509
  %v5511 = vmul.f32 %v5417, %v174
  %v5512 = vmul.f32 %v5420, %v174
  %v5513 = vmul.f32 %v5423, %v174
  %v5514 = vmul.f32 %v5426, %v174
  %v5515 = vmul.f32 %v5429, %v174
  %v5516 = vmul.f32 %v5432, %v174
  %v5517 = vmul.f32 %v5435, %v174
  %v5518 = vmul.f32 %v5438, %v174
  %v5519 = vmul.f32 %v5441, %v174
  %v5520 = vmul.f32 %v5444, %v174
  %v5521 = vmul.f32 %v5447, %v174
  %v5522 = vmul.f32 %v5450, %v174
  %v5523 = vmul.f32 %v5453, %v174
  %v5524 = vmul.f32 %v5456, %v174
  %v5525 = vmul.f32 %v5459, %v174
  %v5526 = vmul.f32 %v5462, %v174
  %v5527 = vmul.f32 %v5465, %v174
  %v5528 = vmul.f32 %v5468, %v174
  %v5529 = vmul.f32 %v5471, %v174
  %v5530 = vmul.f32 %v5474, %v174
  %v5531 = vmul.f32 %v5477, %v174
  %v5532 = vmul.f32 %v5480, %v174
  %v5533 = vmul.f32 %v5483, %v174
  %v5534 = vmul.f32 %v5486, %v174
  %v5535 = vmul.f32 %v5489, %v174
  %v5536 = vmul.f32 %v5492, %v174
  %v5537 = vmul.f32 %v5495, %v174
  %v5538 = vmul.f32 %v5498, %v174
  %v5539 = vmul.f32 %v5501, %v174
  %v5540 = vmul.f32 %v5504, %v174
  %v5541 = vmul.f32 %v5507, %v174
  %v5542 = vmul.f32 %v5510, %v174
  %v5543 = vsub.f32 %v5383, %v5511
  %v5544 = vsub.f32 %v5384, %v5512
  %v5545 = vsub.f32 %v5385, %v5513
  %v5546 = vsub.f32 %v5386, %v5514
  %v5547 = vsub.f32 %v5387, %v5515
  %v5548 = vsub.f32 %v5388, %v5516
  %v5549 = vsub.f32 %v5389, %v5517
  %v5550 = vsub.f32 %v5390, %v5518
  %v5551 = vsub.f32 %v5391, %v5519
  %v5552 = vsub.f32 %v5392, %v5520
  %v5553 = vsub.f32 %v5393, %v5521
  %v5554 = vsub.f32 %v5394, %v5522
  %v5555 = vsub.f32 %v5395, %v5523
  %v5556 = vsub.f32 %v5396, %v5524
  %v5557 = vsub.f32 %v5397, %v5525
  %v5558 = vsub.f32 %v5398, %v5526
  %v5559 = vsub.f32 %v5399, %v5527
  %v5560 = vsub.f32 %v5400, %v5528
  %v5561 = vsub.f32 %v5401, %v5529
  %v5562 = vsub.f32 %v5402, %v5530
  %v5563 = vsub.f32 %v5403, %v5531
  %v5564 = vsub.f32 %v5404, %v5532
  %v5565 = vsub.f32 %v5405, %v5533
  %v5566 = vsub.f32 %v5406, %v5534
  %v5567 = vsub.f32 %v5407, %v5535
  %v5568 = vsub.f32 %v5408, %v5536
  %v5569 = vsub.f32 %v5409, %v5537
  %v5570 = vsub.f32 %v5410, %v5538
  %v5571 = vsub.f32 %v5411, %v5539
  %v5572 = vsub.f32 %v5412, %v5540
  %v5573 = vsub.f32 %v5413, %v5541
  %v5574 = vsub.f32 %v5414, %v5542
  %v5575 = vmul.f32 %v5543, %v5543
  %v5576 = vmul.f32 %v5544, %v5544
  %v5577 = vmul.f32 %v5545, %v5545
  %v5578 = vmul.f32 %v5546, %v5546
  %v5579 = vmul.f32 %v5547, %v5547
  %v5580 = vmul.f32 %v5548, %v5548
  %v5581 = vmul.f32 %v5549, %v5549
  %v5582 = vmul.f32 %v5550, %v5550
  %v5583 = vmul.f32 %v5551, %v5551
  %v5584 = vmul.f32 %v5552, %v5552
  %v5585 = vmul.f32 %v5553, %v5553
  %v5586 = vmul.f32 %v5554, %v5554
  %v5587 = vmul.f32 %v5555, %v5555
  %v5588 = vmul.f32 %v5556, %v5556
  %v5589 = vmul.f32 %v5557, %v5557
  %v5590 = vmul.f32 %v5558, %v5558
  %v5591 = vmul.f32 %v5559, %v5559
  %v5592 = vmul.f32 %v5560, %v5560
  %v5593 = vmul.f32 %v5561, %v5561
  %v5594 = vmul.f32 %v5562, %v5562
  %v5595 = vmul.f32 %v5563, %v5563
  %v5596 = vmul.f32 %v5564, %v5564
  %v5597 = vmul.f32 %v5565, %v5565
  %v5598 = vmul.f32 %v5566, %v5566
  %v5599 = vmul.f32 %v5567, %v5567
  %v5600 = vmul.f32 %v5568, %v5568
  %v5601 = vmul.f32 %v5569, %v5569
  %v5602 = vmul.f32 %v5570, %v5570
  %v5603 = vmul.f32 %v5571, %v5571
  %v5604 = vmul.f32 %v5572, %v5572
  %v5605 = vmul.f32 %v5573, %v5573
  %v5606 = vmul.f32 %v5574, %v5574
  %v5607 = vsel %vm77, %v5575, 0.0
  %5608 = vadd.xlane.f32.xlu0 %v5607
  %v5609 = vpop.xlane.xlu0 %5608
  %v5610 = vsel %vm77, %v5576, 0.0
  %5611 = vadd.xlane.f32.xlu0 %v5610
  %v5612 = vpop.xlane.xlu0 %5611
  %v5613 = vsel %vm77, %v5577, 0.0
  %5614 = vadd.xlane.f32.xlu0 %v5613
  %v5615 = vpop.xlane.xlu0 %5614
  %v5616 = vsel %vm77, %v5578, 0.0
  %5617 = vadd.xlane.f32.xlu0 %v5616
  %v5618 = vpop.xlane.xlu0 %5617
  %v5619 = vsel %vm77, %v5579, 0.0
  %5620 = vadd.xlane.f32.xlu0 %v5619
  %v5621 = vpop.xlane.xlu0 %5620
  %v5622 = vsel %vm77, %v5580, 0.0
  %5623 = vadd.xlane.f32.xlu0 %v5622
  %v5624 = vpop.xlane.xlu0 %5623
  %v5625 = vsel %vm77, %v5581, 0.0
  %5626 = vadd.xlane.f32.xlu0 %v5625
  %v5627 = vpop.xlane.xlu0 %5626
  %v5628 = vsel %vm77, %v5582, 0.0
  %5629 = vadd.xlane.f32.xlu0 %v5628
  %v5630 = vpop.xlane.xlu0 %5629
  %v5631 = vsel %vm77, %v5583, 0.0
  %5632 = vadd.xlane.f32.xlu0 %v5631
  %v5633 = vpop.xlane.xlu0 %5632
  %v5634 = vsel %vm77, %v5584, 0.0
  %5635 = vadd.xlane.f32.xlu0 %v5634
  %v5636 = vpop.xlane.xlu0 %5635
  %v5637 = vsel %vm77, %v5585, 0.0
  %5638 = vadd.xlane.f32.xlu0 %v5637
  %v5639 = vpop.xlane.xlu0 %5638
  %v5640 = vsel %vm77, %v5586, 0.0
  %5641 = vadd.xlane.f32.xlu0 %v5640
  %v5642 = vpop.xlane.xlu0 %5641
  %v5643 = vsel %vm77, %v5587, 0.0
  %5644 = vadd.xlane.f32.xlu0 %v5643
  %v5645 = vpop.xlane.xlu0 %5644
  %v5646 = vsel %vm77, %v5588, 0.0
  %5647 = vadd.xlane.f32.xlu0 %v5646
  %v5648 = vpop.xlane.xlu0 %5647
  %v5649 = vsel %vm77, %v5589, 0.0
  %5650 = vadd.xlane.f32.xlu0 %v5649
  %v5651 = vpop.xlane.xlu0 %5650
  %v5652 = vsel %vm77, %v5590, 0.0
  %5653 = vadd.xlane.f32.xlu0 %v5652
  %v5654 = vpop.xlane.xlu0 %5653
  %v5655 = vsel %vm77, %v5591, 0.0
  %5656 = vadd.xlane.f32.xlu0 %v5655
  %v5657 = vpop.xlane.xlu0 %5656
  %v5658 = vsel %vm77, %v5592, 0.0
  %5659 = vadd.xlane.f32.xlu0 %v5658
  %v5660 = vpop.xlane.xlu0 %5659
  %v5661 = vsel %vm77, %v5593, 0.0
  %5662 = vadd.xlane.f32.xlu0 %v5661
  %v5663 = vpop.xlane.xlu0 %5662
  %v5664 = vsel %vm77, %v5594, 0.0
  %5665 = vadd.xlane.f32.xlu0 %v5664
  %v5666 = vpop.xlane.xlu0 %5665
  %v5667 = vsel %vm77, %v5595, 0.0
  %5668 = vadd.xlane.f32.xlu0 %v5667
  %v5669 = vpop.xlane.xlu0 %5668
  %v5670 = vsel %vm77, %v5596, 0.0
  %5671 = vadd.xlane.f32.xlu0 %v5670
  %v5672 = vpop.xlane.xlu0 %5671
  %v5673 = vsel %vm77, %v5597, 0.0
  %5674 = vadd.xlane.f32.xlu0 %v5673
  %v5675 = vpop.xlane.xlu0 %5674
  %v5676 = vsel %vm77, %v5598, 0.0
  %5677 = vadd.xlane.f32.xlu0 %v5676
  %v5678 = vpop.xlane.xlu0 %5677
  %v5679 = vsel %vm77, %v5599, 0.0
  %5680 = vadd.xlane.f32.xlu0 %v5679
  %v5681 = vpop.xlane.xlu0 %5680
  %v5682 = vsel %vm77, %v5600, 0.0
  %5683 = vadd.xlane.f32.xlu0 %v5682
  %v5684 = vpop.xlane.xlu0 %5683
  %v5685 = vsel %vm77, %v5601, 0.0
  %5686 = vadd.xlane.f32.xlu0 %v5685
  %v5687 = vpop.xlane.xlu0 %5686
  %v5688 = vsel %vm77, %v5602, 0.0
  %5689 = vadd.xlane.f32.xlu0 %v5688
  %v5690 = vpop.xlane.xlu0 %5689
  %v5691 = vsel %vm77, %v5603, 0.0
  %5692 = vadd.xlane.f32.xlu0 %v5691
  %v5693 = vpop.xlane.xlu0 %5692
  %v5694 = vsel %vm77, %v5604, 0.0
  %5695 = vadd.xlane.f32.xlu0 %v5694
  %v5696 = vpop.xlane.xlu0 %5695
  %v5697 = vsel %vm77, %v5605, 0.0
  %5698 = vadd.xlane.f32.xlu0 %v5697
  %v5699 = vpop.xlane.xlu0 %5698
  %v5700 = vsel %vm77, %v5606, 0.0
  %5701 = vadd.xlane.f32.xlu0 %v5700
  %v5702 = vpop.xlane.xlu0 %5701
  %v5703 = vmul.f32 %v5609, %v174
  %v5704 = vmul.f32 %v5612, %v174
  %v5705 = vmul.f32 %v5615, %v174
  %v5706 = vmul.f32 %v5618, %v174
  %v5707 = vmul.f32 %v5621, %v174
  %v5708 = vmul.f32 %v5624, %v174
  %v5709 = vmul.f32 %v5627, %v174
  %v5710 = vmul.f32 %v5630, %v174
  %v5711 = vmul.f32 %v5633, %v174
  %v5712 = vmul.f32 %v5636, %v174
  %v5713 = vmul.f32 %v5639, %v174
  %v5714 = vmul.f32 %v5642, %v174
  %v5715 = vmul.f32 %v5645, %v174
  %v5716 = vmul.f32 %v5648, %v174
  %v5717 = vmul.f32 %v5651, %v174
  %v5718 = vmul.f32 %v5654, %v174
  %v5719 = vmul.f32 %v5657, %v174
  %v5720 = vmul.f32 %v5660, %v174
  %v5721 = vmul.f32 %v5663, %v174
  %v5722 = vmul.f32 %v5666, %v174
  %v5723 = vmul.f32 %v5669, %v174
  %v5724 = vmul.f32 %v5672, %v174
  %v5725 = vmul.f32 %v5675, %v174
  %v5726 = vmul.f32 %v5678, %v174
  %v5727 = vmul.f32 %v5681, %v174
  %v5728 = vmul.f32 %v5684, %v174
  %v5729 = vmul.f32 %v5687, %v174
  %v5730 = vmul.f32 %v5690, %v174
  %v5731 = vmul.f32 %v5693, %v174
  %v5732 = vmul.f32 %v5696, %v174
  %v5733 = vmul.f32 %v5699, %v174
  %v5734 = vmul.f32 %v5702, %v174
  %v5735 = vadd.f32 %v5703, 1e-05
  %v5736 = vadd.f32 %v5704, 1e-05
  %v5737 = vadd.f32 %v5705, 1e-05
  %v5738 = vadd.f32 %v5706, 1e-05
  %v5739 = vadd.f32 %v5707, 1e-05
  %v5740 = vadd.f32 %v5708, 1e-05
  %v5741 = vadd.f32 %v5709, 1e-05
  %v5742 = vadd.f32 %v5710, 1e-05
  %v5743 = vadd.f32 %v5711, 1e-05
  %v5744 = vadd.f32 %v5712, 1e-05
  %v5745 = vadd.f32 %v5713, 1e-05
  %v5746 = vadd.f32 %v5714, 1e-05
  %v5747 = vadd.f32 %v5715, 1e-05
  %v5748 = vadd.f32 %v5716, 1e-05
  %v5749 = vadd.f32 %v5717, 1e-05
  %v5750 = vadd.f32 %v5718, 1e-05
  %v5751 = vadd.f32 %v5719, 1e-05
  %v5752 = vadd.f32 %v5720, 1e-05
  %v5753 = vadd.f32 %v5721, 1e-05
  %v5754 = vadd.f32 %v5722, 1e-05
  %v5755 = vadd.f32 %v5723, 1e-05
  %v5756 = vadd.f32 %v5724, 1e-05
  %v5757 = vadd.f32 %v5725, 1e-05
  %v5758 = vadd.f32 %v5726, 1e-05
  %v5759 = vadd.f32 %v5727, 1e-05
  %v5760 = vadd.f32 %v5728, 1e-05
  %v5761 = vadd.f32 %v5729, 1e-05
  %v5762 = vadd.f32 %v5730, 1e-05
  %v5763 = vadd.f32 %v5731, 1e-05
  %v5764 = vadd.f32 %v5732, 1e-05
  %v5765 = vadd.f32 %v5733, 1e-05
  %v5766 = vadd.f32 %v5734, 1e-05
  %v5767 = vrsqrt.pop %v5735
  %v5768 = vrsqrt.pop %v5736
  %v5769 = vrsqrt.pop %v5737
  %v5770 = vrsqrt.pop %v5738
  %v5771 = vrsqrt.pop %v5739
  %v5772 = vrsqrt.pop %v5740
  %v5773 = vrsqrt.pop %v5741
  %v5774 = vrsqrt.pop %v5742
  %v5775 = vrsqrt.pop %v5743
  %v5776 = vrsqrt.pop %v5744
  %v5777 = vrsqrt.pop %v5745
  %v5778 = vrsqrt.pop %v5746
  %v5779 = vrsqrt.pop %v5747
  %v5780 = vrsqrt.pop %v5748
  %v5781 = vrsqrt.pop %v5749
  %v5782 = vrsqrt.pop %v5750
  %v5783 = vrsqrt.pop %v5751
  %v5784 = vrsqrt.pop %v5752
  %v5785 = vrsqrt.pop %v5753
  %v5786 = vrsqrt.pop %v5754
  %v5787 = vrsqrt.pop %v5755
  %v5788 = vrsqrt.pop %v5756
  %v5789 = vrsqrt.pop %v5757
  %v5790 = vrsqrt.pop %v5758
  %v5791 = vrsqrt.pop %v5759
  %v5792 = vrsqrt.pop %v5760
  %v5793 = vrsqrt.pop %v5761
  %v5794 = vrsqrt.pop %v5762
  %v5795 = vrsqrt.pop %v5763
  %v5796 = vrsqrt.pop %v5764
  %v5797 = vrsqrt.pop %v5765
  %v5798 = vrsqrt.pop %v5766
  %v5799 = vmul.f32 %v5543, %v5767
  %v5800 = vmul.f32 %v5544, %v5768
  %v5801 = vmul.f32 %v5545, %v5769
  %v5802 = vmul.f32 %v5546, %v5770
  %v5803 = vmul.f32 %v5547, %v5771
  %v5804 = vmul.f32 %v5548, %v5772
  %v5805 = vmul.f32 %v5549, %v5773
  %v5806 = vmul.f32 %v5550, %v5774
  %v5807 = vmul.f32 %v5551, %v5775
  %v5808 = vmul.f32 %v5552, %v5776
  %v5809 = vmul.f32 %v5553, %v5777
  %v5810 = vmul.f32 %v5554, %v5778
  %v5811 = vmul.f32 %v5555, %v5779
  %v5812 = vmul.f32 %v5556, %v5780
  %v5813 = vmul.f32 %v5557, %v5781
  %v5814 = vmul.f32 %v5558, %v5782
  %v5815 = vmul.f32 %v5559, %v5783
  %v5816 = vmul.f32 %v5560, %v5784
  %v5817 = vmul.f32 %v5561, %v5785
  %v5818 = vmul.f32 %v5562, %v5786
  %v5819 = vmul.f32 %v5563, %v5787
  %v5820 = vmul.f32 %v5564, %v5788
  %v5821 = vmul.f32 %v5565, %v5789
  %v5822 = vmul.f32 %v5566, %v5790
  %v5823 = vmul.f32 %v5567, %v5791
  %v5824 = vmul.f32 %v5568, %v5792
  %v5825 = vmul.f32 %v5569, %v5793
  %v5826 = vmul.f32 %v5570, %v5794
  %v5827 = vmul.f32 %v5571, %v5795
  %v5828 = vmul.f32 %v5572, %v5796
  %v5829 = vmul.f32 %v5573, %v5797
  %v5830 = vmul.f32 %v5574, %v5798
  %v5831 = vlaneseq
  %v5832 = vshrl.u32 %v5831, 7
  %v5833 = vsub.s32 0, %v5832
  %v5834 = vrot.slane %v21, %v5833
  %v5835 = vmul.f32 %v5799, %v5834
  %v5836 = vmul.f32 %v5800, %v5834
  %v5837 = vmul.f32 %v5801, %v5834
  %v5838 = vmul.f32 %v5802, %v5834
  %v5839 = vmul.f32 %v5803, %v5834
  %v5840 = vmul.f32 %v5804, %v5834
  %v5841 = vmul.f32 %v5805, %v5834
  %v5842 = vmul.f32 %v5806, %v5834
  %v5843 = vmul.f32 %v5807, %v5834
  %v5844 = vmul.f32 %v5808, %v5834
  %v5845 = vmul.f32 %v5809, %v5834
  %v5846 = vmul.f32 %v5810, %v5834
  %v5847 = vmul.f32 %v5811, %v5834
  %v5848 = vmul.f32 %v5812, %v5834
  %v5849 = vmul.f32 %v5813, %v5834
  %v5850 = vmul.f32 %v5814, %v5834
  %v5851 = vmul.f32 %v5815, %v5834
  %v5852 = vmul.f32 %v5816, %v5834
  %v5853 = vmul.f32 %v5817, %v5834
  %v5854 = vmul.f32 %v5818, %v5834
  %v5855 = vmul.f32 %v5819, %v5834
  %v5856 = vmul.f32 %v5820, %v5834
  %v5857 = vmul.f32 %v5821, %v5834
  %v5858 = vmul.f32 %v5822, %v5834
  %v5859 = vmul.f32 %v5823, %v5834
  %v5860 = vmul.f32 %v5824, %v5834
  %v5861 = vmul.f32 %v5825, %v5834
  %v5862 = vmul.f32 %v5826, %v5834
  %v5863 = vmul.f32 %v5827, %v5834
  %v5864 = vmul.f32 %v5828, %v5834
  %v5865 = vmul.f32 %v5829, %v5834
  %v5866 = vmul.f32 %v5830, %v5834
  %v5867 = vlaneseq
  %v5868 = vshrl.u32 %v5867, 7
  %v5869 = vsub.s32 0, %v5868
  %v5870 = vrot.slane %v22, %v5869
  %v5871 = vadd.f32 %v5835, %v5870
  %v5872 = vadd.f32 %v5836, %v5870
  %v5873 = vadd.f32 %v5837, %v5870
  %v5874 = vadd.f32 %v5838, %v5870
  %v5875 = vadd.f32 %v5839, %v5870
  %v5876 = vadd.f32 %v5840, %v5870
  %v5877 = vadd.f32 %v5841, %v5870
  %v5878 = vadd.f32 %v5842, %v5870
  %v5879 = vadd.f32 %v5843, %v5870
  %v5880 = vadd.f32 %v5844, %v5870
  %v5881 = vadd.f32 %v5845, %v5870
  %v5882 = vadd.f32 %v5846, %v5870
  %v5883 = vadd.f32 %v5847, %v5870
  %v5884 = vadd.f32 %v5848, %v5870
  %v5885 = vadd.f32 %v5849, %v5870
  %v5886 = vadd.f32 %v5850, %v5870
  %v5887 = vadd.f32 %v5851, %v5870
  %v5888 = vadd.f32 %v5852, %v5870
  %v5889 = vadd.f32 %v5853, %v5870
  %v5890 = vadd.f32 %v5854, %v5870
  %v5891 = vadd.f32 %v5855, %v5870
  %v5892 = vadd.f32 %v5856, %v5870
  %v5893 = vadd.f32 %v5857, %v5870
  %v5894 = vadd.f32 %v5858, %v5870
  %v5895 = vadd.f32 %v5859, %v5870
  %v5896 = vadd.f32 %v5860, %v5870
  %v5897 = vadd.f32 %v5861, %v5870
  %v5898 = vadd.f32 %v5862, %v5870
  %v5899 = vadd.f32 %v5863, %v5870
  %v5900 = vadd.f32 %v5864, %v5870
  %v5901 = vadd.f32 %v5865, %v5870
  %v5902 = vadd.f32 %v5866, %v5870
  %v5903 = vlaneseq
  %v5904 = vshrl.u32 %v5903, 7
  %v5905 = vsub.s32 0, %v5904
  %v5906 = vrot.slane %v23, %v5905
  %v5908 = vsel %vm77, %v5871, 0
  %v5911 = vsel %vm77, %v5872, 0
  %v5914 = vsel %vm77, %v5873, 0
  %v5917 = vsel %vm77, %v5874, 0
  %v5920 = vsel %vm77, %v5875, 0
  %v5923 = vsel %vm77, %v5876, 0
  %v5926 = vsel %vm77, %v5877, 0
  %v5929 = vsel %vm77, %v5878, 0
  %v5932 = vsel %vm77, %v5879, 0
  %v5935 = vsel %vm77, %v5880, 0
  %v5938 = vsel %vm77, %v5881, 0
  %v5941 = vsel %vm77, %v5882, 0
  %v5944 = vsel %vm77, %v5883, 0
  %v5947 = vsel %vm77, %v5884, 0
  %v5950 = vsel %vm77, %v5885, 0
  %v5953 = vsel %vm77, %v5886, 0
  %v5956 = vsel %vm77, %v5887, 0
  %v5959 = vsel %vm77, %v5888, 0
  %v5962 = vsel %vm77, %v5889, 0
  %v5965 = vsel %vm77, %v5890, 0
  %v5968 = vsel %vm77, %v5891, 0
  %v5971 = vsel %vm77, %v5892, 0
  %v5974 = vsel %vm77, %v5893, 0
  %v5977 = vsel %vm77, %v5894, 0
  %v5980 = vsel %vm77, %v5895, 0
  %v5983 = vsel %vm77, %v5896, 0
  %v5986 = vsel %vm77, %v5897, 0
  %v5989 = vsel %vm77, %v5898, 0
  %v5992 = vsel %vm77, %v5899, 0
  %v5995 = vsel %vm77, %v5900, 0
  %v5998 = vsel %vm77, %v5901, 0
  %v6001 = vsel %vm77, %v5902, 0
  %6003 = vmatprep.subr.mxu0 0.0
  %6004 = vmatpush1.msra.mxu0 %v35
  %6005 = vmatprep.subr.mxu0 0.0
  %6006 = vmatpush1.msra.mxu0 %v36
  %6007 = vmatprep.subr.mxu0 0.0
  %6008 = vmatpush1.msra.mxu0 0.0
  %6009 = vmatprep.subr.mxu0 0.0
  %6010 = vmatpush1.msra.mxu0 0.0
  %6011 = vmatprep.subr.mxu0 0.0
  %6012 = vmatpush1.msra.mxu0 0.0
  %6013 = vmatprep.subr.mxu0 0.0
  %6014 = vmatpush1.msra.mxu0 0.0
  %6015 = vmatprep.subr.mxu0 0.0
  %6016 = vmatpush1.msra.mxu0 0.0
  %6017 = vmatprep.subr.mxu0 0.0
  %6018 = vmatpush1.msra.mxu0 0.0
  %6019 = vmatprep.subr.mxu0 0.0
  %6020 = vmatpush1.msra.mxu0 0.0
  %6021 = vmatprep.subr.mxu0 0.0
  %6022 = vmatpush1.msra.mxu0 0.0
  %6023 = vmatprep.subr.mxu0 0.0
  %6024 = vmatpush1.msra.mxu0 0.0
  %6025 = vmatprep.subr.mxu0 0.0
  %6026 = vmatpush1.msra.mxu0 0.0
  %6027 = vmatprep.subr.mxu0 0.0
  %6028 = vmatpush1.msra.mxu0 0.0
  %6029 = vmatprep.subr.mxu0 0.0
  %6030 = vmatpush1.msra.mxu0 0.0
  %6031 = vmatprep.subr.mxu0 0.0
  %6032 = vmatpush1.msra.mxu0 0.0
  %6033 = vmatprep.subr.mxu0 0.0
  %6034 = vmatpush1.msra.mxu0 0.0
  %6035 = vmatprep.subr.mxu0 0.0
  %6036 = vmatpush1.msra.mxu0 0.0
  %6037 = vmatprep.subr.mxu0 0.0
  %6038 = vmatpush1.msra.mxu0 0.0
  %6039 = vmatprep.subr.mxu0 0.0
  %6040 = vmatpush1.msra.mxu0 0.0
  %6041 = vmatprep.subr.mxu0 0.0
  %6042 = vmatpush1.msra.mxu0 0.0
  %6043 = vmatprep.subr.mxu0 0.0
  %6044 = vmatpush1.msra.mxu0 0.0
  %6045 = vmatprep.subr.mxu0 0.0
  %6046 = vmatpush1.msra.mxu0 0.0
  %6047 = vmatprep.subr.mxu0 0.0
  %6048 = vmatpush1.msra.mxu0 0.0
  %6049 = vmatprep.subr.mxu0 0.0
  %6050 = vmatpush1.msra.mxu0 0.0
  %6051 = vmatprep.subr.mxu0 0.0
  %6052 = vmatpush1.msra.mxu0 0.0
  %6053 = vmatprep.subr.mxu0 0.0
  %6054 = vmatpush1.msra.mxu0 0.0
  %6055 = vmatprep.subr.mxu0 0.0
  %6056 = vmatpush1.msra.mxu0 0.0
  %6057 = vmatprep.subr.mxu0 0.0
  %6058 = vmatpush1.msra.mxu0 0.0
  %6059 = vmatprep.subr.mxu0 0.0
  %6060 = vmatpush1.msra.mxu0 0.0
  %6061 = vmatprep.subr.mxu0 0.0
  %6062 = vmatpush1.msra.mxu0 0.0
  %6063 = vmatprep.subr.mxu0 0.0
  %6064 = vmatpush1.msra.mxu0 0.0
  %6065 = vmatprep.subr.mxu0 0.0
  %6066 = vmatpush1.msra.mxu0 0.0
  %6067 = vmatprep.mubr.f32.mxu0 0.0
  %6068 = vmatmul.mubr.f32.gmra.mrb[0].mxu0 %v5908
  %v6069 = vpop.f32.mrb[0].mxu0
  %v6070 = vadd.f32 %v5906, %v6069
  %v6071 = vpop.f32.mrb[0].mxu0
  %6072 = vmatprep.mubr.f32.mxu0 0.0
  %6073 = vmatmul.mubr.f32.gmra.mrb[0].mxu0 %v5911
  %v6074 = vpop.f32.mrb[0].mxu0
  %v6075 = vadd.f32 %v5906, %v6074
  %v6076 = vpop.f32.mrb[0].mxu0
  %6077 = vmatprep.mubr.f32.mxu0 0.0
  %6078 = vmatmul.mubr.f32.gmra.mrb[0].mxu0 %v5914
  %v6079 = vpop.f32.mrb[0].mxu0
  %v6080 = vadd.f32 %v5906, %v6079
  %v6081 = vpop.f32.mrb[0].mxu0
  %6082 = vmatprep.mubr.f32.mxu0 0.0
  %6083 = vmatmul.mubr.f32.gmra.mrb[0].mxu0 %v5917
  %v6084 = vpop.f32.mrb[0].mxu0
  %v6085 = vadd.f32 %v5906, %v6084
  %v6086 = vpop.f32.mrb[0].mxu0
  %6087 = vmatprep.mubr.f32.mxu0 0.0
  %6088 = vmatmul.mubr.f32.gmra.mrb[0].mxu0 %v5920
  %v6089 = vpop.f32.mrb[0].mxu0
  %v6090 = vadd.f32 %v5906, %v6089
  %v6091 = vpop.f32.mrb[0].mxu0
  %6092 = vmatprep.mubr.f32.mxu0 0.0
  %6093 = vmatmul.mubr.f32.gmra.mrb[0].mxu0 %v5923
  %v6094 = vpop.f32.mrb[0].mxu0
  %v6095 = vadd.f32 %v5906, %v6094
  %v6096 = vpop.f32.mrb[0].mxu0
  %6097 = vmatprep.mubr.f32.mxu0 0.0
  %6098 = vmatmul.mubr.f32.gmra.mrb[0].mxu0 %v5926
  %v6099 = vpop.f32.mrb[0].mxu0
  %v6100 = vadd.f32 %v5906, %v6099
  %v6101 = vpop.f32.mrb[0].mxu0
  %6102 = vmatprep.mubr.f32.mxu0 0.0
  %6103 = vmatmul.mubr.f32.gmra.mrb[0].mxu0 %v5929
  %v6104 = vpop.f32.mrb[0].mxu0
  %v6105 = vadd.f32 %v5906, %v6104
  %v6106 = vpop.f32.mrb[0].mxu0
  %6107 = vmatprep.mubr.f32.mxu0 0.0
  %6108 = vmatmul.mubr.f32.gmra.mrb[0].mxu0 %v5932
  %v6109 = vpop.f32.mrb[0].mxu0
  %v6110 = vadd.f32 %v5906, %v6109
  %v6111 = vpop.f32.mrb[0].mxu0
  %6112 = vmatprep.mubr.f32.mxu0 0.0
  %6113 = vmatmul.mubr.f32.gmra.mrb[0].mxu0 %v5935
  %v6114 = vpop.f32.mrb[0].mxu0
  %v6115 = vadd.f32 %v5906, %v6114
  %v6116 = vpop.f32.mrb[0].mxu0
  %6117 = vmatprep.mubr.f32.mxu0 0.0
  %6118 = vmatmul.mubr.f32.gmra.mrb[0].mxu0 %v5938
  %v6119 = vpop.f32.mrb[0].mxu0
  %v6120 = vadd.f32 %v5906, %v6119
  %v6121 = vpop.f32.mrb[0].mxu0
  %6122 = vmatprep.mubr.f32.mxu0 0.0
  %6123 = vmatmul.mubr.f32.gmra.mrb[0].mxu0 %v5941
  %v6124 = vpop.f32.mrb[0].mxu0
  %v6125 = vadd.f32 %v5906, %v6124
  %v6126 = vpop.f32.mrb[0].mxu0
  %6127 = vmatprep.mubr.f32.mxu0 0.0
  %6128 = vmatmul.mubr.f32.gmra.mrb[0].mxu0 %v5944
  %v6129 = vpop.f32.mrb[0].mxu0
  %v6130 = vadd.f32 %v5906, %v6129
  %v6131 = vpop.f32.mrb[0].mxu0
  %6132 = vmatprep.mubr.f32.mxu0 0.0
  %6133 = vmatmul.mubr.f32.gmra.mrb[0].mxu0 %v5947
  %v6134 = vpop.f32.mrb[0].mxu0
  %v6135 = vadd.f32 %v5906, %v6134
  %v6136 = vpop.f32.mrb[0].mxu0
  %6137 = vmatprep.mubr.f32.mxu0 0.0
  %6138 = vmatmul.mubr.f32.gmra.mrb[0].mxu0 %v5950
  %v6139 = vpop.f32.mrb[0].mxu0
  %v6140 = vadd.f32 %v5906, %v6139
  %v6141 = vpop.f32.mrb[0].mxu0
  %6142 = vmatprep.mubr.f32.mxu0 0.0
  %6143 = vmatmul.mubr.f32.gmra.mrb[0].mxu0 %v5953
  %v6144 = vpop.f32.mrb[0].mxu0
  %v6145 = vadd.f32 %v5906, %v6144
  %v6146 = vpop.f32.mrb[0].mxu0
  %6147 = vmatprep.mubr.f32.mxu0 0.0
  %6148 = vmatmul.mubr.f32.gmra.mrb[0].mxu0 %v5956
  %v6149 = vpop.f32.mrb[0].mxu0
  %v6150 = vadd.f32 %v5906, %v6149
  %v6151 = vpop.f32.mrb[0].mxu0
  %6152 = vmatprep.mubr.f32.mxu0 0.0
  %6153 = vmatmul.mubr.f32.gmra.mrb[0].mxu0 %v5959
  %v6154 = vpop.f32.mrb[0].mxu0
  %v6155 = vadd.f32 %v5906, %v6154
  %v6156 = vpop.f32.mrb[0].mxu0
  %6157 = vmatprep.mubr.f32.mxu0 0.0
  %6158 = vmatmul.mubr.f32.gmra.mrb[0].mxu0 %v5962
  %v6159 = vpop.f32.mrb[0].mxu0
  %v6160 = vadd.f32 %v5906, %v6159
  %v6161 = vpop.f32.mrb[0].mxu0
  %6162 = vmatprep.mubr.f32.mxu0 0.0
  %6163 = vmatmul.mubr.f32.gmra.mrb[0].mxu0 %v5965
  %v6164 = vpop.f32.mrb[0].mxu0
  %v6165 = vadd.f32 %v5906, %v6164
  %v6166 = vpop.f32.mrb[0].mxu0
  %6167 = vmatprep.mubr.f32.mxu0 0.0
  %6168 = vmatmul.mubr.f32.gmra.mrb[0].mxu0 %v5968
  %v6169 = vpop.f32.mrb[0].mxu0
  %v6170 = vadd.f32 %v5906, %v6169
  %v6171 = vpop.f32.mrb[0].mxu0
  %6172 = vmatprep.mubr.f32.mxu0 0.0
  %6173 = vmatmul.mubr.f32.gmra.mrb[0].mxu0 %v5971
  %v6174 = vpop.f32.mrb[0].mxu0
  %v6175 = vadd.f32 %v5906, %v6174
  %v6176 = vpop.f32.mrb[0].mxu0
  %6177 = vmatprep.mubr.f32.mxu0 0.0
  %6178 = vmatmul.mubr.f32.gmra.mrb[0].mxu0 %v5974
  %v6179 = vpop.f32.mrb[0].mxu0
  %v6180 = vadd.f32 %v5906, %v6179
  %v6181 = vpop.f32.mrb[0].mxu0
  %6182 = vmatprep.mubr.f32.mxu0 0.0
  %6183 = vmatmul.mubr.f32.gmra.mrb[0].mxu0 %v5977
  %v6184 = vpop.f32.mrb[0].mxu0
  %v6185 = vadd.f32 %v5906, %v6184
  %v6186 = vpop.f32.mrb[0].mxu0
  %6187 = vmatprep.mubr.f32.mxu0 0.0
  %6188 = vmatmul.mubr.f32.gmra.mrb[0].mxu0 %v5980
  %v6189 = vpop.f32.mrb[0].mxu0
  %v6190 = vadd.f32 %v5906, %v6189
  %v6191 = vpop.f32.mrb[0].mxu0
  %6192 = vmatprep.mubr.f32.mxu0 0.0
  %6193 = vmatmul.mubr.f32.gmra.mrb[0].mxu0 %v5983
  %v6194 = vpop.f32.mrb[0].mxu0
  %v6195 = vadd.f32 %v5906, %v6194
  %v6196 = vpop.f32.mrb[0].mxu0
  %6197 = vmatprep.mubr.f32.mxu0 0.0
  %6198 = vmatmul.mubr.f32.gmra.mrb[0].mxu0 %v5986
  %v6199 = vpop.f32.mrb[0].mxu0
  %v6200 = vadd.f32 %v5906, %v6199
  %v6201 = vpop.f32.mrb[0].mxu0
  %6202 = vmatprep.mubr.f32.mxu0 0.0
  %6203 = vmatmul.mubr.f32.gmra.mrb[0].mxu0 %v5989
  %v6204 = vpop.f32.mrb[0].mxu0
  %v6205 = vadd.f32 %v5906, %v6204
  %v6206 = vpop.f32.mrb[0].mxu0
  %6207 = vmatprep.mubr.f32.mxu0 0.0
  %6208 = vmatmul.mubr.f32.gmra.mrb[0].mxu0 %v5992
  %v6209 = vpop.f32.mrb[0].mxu0
  %v6210 = vadd.f32 %v5906, %v6209
  %v6211 = vpop.f32.mrb[0].mxu0
  %6212 = vmatprep.mubr.f32.mxu0 0.0
  %6213 = vmatmul.mubr.f32.gmra.mrb[0].mxu0 %v5995
  %v6214 = vpop.f32.mrb[0].mxu0
  %v6215 = vadd.f32 %v5906, %v6214
  %v6216 = vpop.f32.mrb[0].mxu0
  %6217 = vmatprep.mubr.f32.mxu0 0.0
  %6218 = vmatmul.mubr.f32.gmra.mrb[0].mxu0 %v5998
  %v6219 = vpop.f32.mrb[0].mxu0
  %v6220 = vadd.f32 %v5906, %v6219
  %v6221 = vpop.f32.mrb[0].mxu0
  %6222 = vmatprep.mubr.f32.mxu0 0.0
  %6223 = vmatmul.mubr.f32.gmra.mrb[0].mxu0 %v6001
  %v6224 = vpop.f32.mrb[0].mxu0
  %v6225 = vadd.f32 %v5906, %v6224
  %v6226 = vpop.f32.mrb[0].mxu0
  %6227 = vdwg.mxu0
  %v6228 = vmax.f32 %v6070, 0.0
  %v6229 = vmax.f32 %v6075, 0.0
  %v6230 = vmax.f32 %v6080, 0.0
  %v6231 = vmax.f32 %v6085, 0.0
  %v6232 = vmax.f32 %v6090, 0.0
  %v6233 = vmax.f32 %v6095, 0.0
  %v6234 = vmax.f32 %v6100, 0.0
  %v6235 = vmax.f32 %v6105, 0.0
  %v6236 = vmax.f32 %v6110, 0.0
  %v6237 = vmax.f32 %v6115, 0.0
  %v6238 = vmax.f32 %v6120, 0.0
  %v6239 = vmax.f32 %v6125, 0.0
  %v6240 = vmax.f32 %v6130, 0.0
  %v6241 = vmax.f32 %v6135, 0.0
  %v6242 = vmax.f32 %v6140, 0.0
  %v6243 = vmax.f32 %v6145, 0.0
  %v6244 = vmax.f32 %v6150, 0.0
  %v6245 = vmax.f32 %v6155, 0.0
  %v6246 = vmax.f32 %v6160, 0.0
  %v6247 = vmax.f32 %v6165, 0.0
  %v6248 = vmax.f32 %v6170, 0.0
  %v6249 = vmax.f32 %v6175, 0.0
  %v6250 = vmax.f32 %v6180, 0.0
  %v6251 = vmax.f32 %v6185, 0.0
  %v6252 = vmax.f32 %v6190, 0.0
  %v6253 = vmax.f32 %v6195, 0.0
  %v6254 = vmax.f32 %v6200, 0.0
  %v6255 = vmax.f32 %v6205, 0.0
  %v6256 = vmax.f32 %v6210, 0.0
  %v6257 = vmax.f32 %v6215, 0.0
  %v6258 = vmax.f32 %v6220, 0.0
  %v6259 = vmax.f32 %v6225, 0.0
  %v6260 = vlaneseq
  %v6261 = vshrl.u32 %v6260, 7
  %v6262 = vsub.s32 0, %v6261
  %v6263 = vrot.slane %v24, %v6262
  %v6265 = vsel %vm1628, %v6228, 0
  %v6268 = vsel %vm1628, %v6229, 0
  %v6271 = vsel %vm1628, %v6230, 0
  %v6274 = vsel %vm1628, %v6231, 0
  %v6277 = vsel %vm1628, %v6232, 0
  %v6280 = vsel %vm1628, %v6233, 0
  %v6283 = vsel %vm1628, %v6234, 0
  %v6286 = vsel %vm1628, %v6235, 0
  %v6289 = vsel %vm1628, %v6236, 0
  %v6292 = vsel %vm1628, %v6237, 0
  %v6295 = vsel %vm1628, %v6238, 0
  %v6298 = vsel %vm1628, %v6239, 0
  %v6301 = vsel %vm1628, %v6240, 0
  %v6304 = vsel %vm1628, %v6241, 0
  %v6307 = vsel %vm1628, %v6242, 0
  %v6310 = vsel %vm1628, %v6243, 0
  %v6313 = vsel %vm1628, %v6244, 0
  %v6316 = vsel %vm1628, %v6245, 0
  %v6319 = vsel %vm1628, %v6246, 0
  %v6322 = vsel %vm1628, %v6247, 0
  %v6325 = vsel %vm1628, %v6248, 0
  %v6328 = vsel %vm1628, %v6249, 0
  %v6331 = vsel %vm1628, %v6250, 0
  %v6334 = vsel %vm1628, %v6251, 0
  %v6337 = vsel %vm1628, %v6252, 0
  %v6340 = vsel %vm1628, %v6253, 0
  %v6343 = vsel %vm1628, %v6254, 0
  %v6346 = vsel %vm1628, %v6255, 0
  %v6349 = vsel %vm1628, %v6256, 0
  %v6352 = vsel %vm1628, %v6257, 0
  %v6355 = vsel %vm1628, %v6258, 0
  %v6358 = vsel %vm1628, %v6259, 0
  %6360 = vmatprep.subr.mxu0 0.0
  %6361 = vmatpush1.msra.mxu0 %v37
  %6362 = vmatprep.subr.mxu0 0.0
  %6363 = vmatpush1.msra.mxu0 %v38
  %6364 = vmatprep.subr.mxu0 0.0
  %6365 = vmatpush1.msra.mxu0 %v39
  %6366 = vmatprep.subr.mxu0 0.0
  %6367 = vmatpush1.msra.mxu0 %v40
  %6368 = vmatprep.subr.mxu0 0.0
  %6369 = vmatpush1.msra.mxu0 0.0
  %6370 = vmatprep.subr.mxu0 0.0
  %6371 = vmatpush1.msra.mxu0 0.0
  %6372 = vmatprep.subr.mxu0 0.0
  %6373 = vmatpush1.msra.mxu0 0.0
  %6374 = vmatprep.subr.mxu0 0.0
  %6375 = vmatpush1.msra.mxu0 0.0
  %6376 = vmatprep.subr.mxu0 0.0
  %6377 = vmatpush1.msra.mxu0 0.0
  %6378 = vmatprep.subr.mxu0 0.0
  %6379 = vmatpush1.msra.mxu0 0.0
  %6380 = vmatprep.subr.mxu0 0.0
  %6381 = vmatpush1.msra.mxu0 0.0
  %6382 = vmatprep.subr.mxu0 0.0
  %6383 = vmatpush1.msra.mxu0 0.0
  %6384 = vmatprep.subr.mxu0 0.0
  %6385 = vmatpush1.msra.mxu0 0.0
  %6386 = vmatprep.subr.mxu0 0.0
  %6387 = vmatpush1.msra.mxu0 0.0
  %6388 = vmatprep.subr.mxu0 0.0
  %6389 = vmatpush1.msra.mxu0 0.0
  %6390 = vmatprep.subr.mxu0 0.0
  %6391 = vmatpush1.msra.mxu0 0.0
  %6392 = vmatprep.subr.mxu0 0.0
  %6393 = vmatpush1.msra.mxu0 0.0
  %6394 = vmatprep.subr.mxu0 0.0
  %6395 = vmatpush1.msra.mxu0 0.0
  %6396 = vmatprep.subr.mxu0 0.0
  %6397 = vmatpush1.msra.mxu0 0.0
  %6398 = vmatprep.subr.mxu0 0.0
  %6399 = vmatpush1.msra.mxu0 0.0
  %6400 = vmatprep.subr.mxu0 0.0
  %6401 = vmatpush1.msra.mxu0 0.0
  %6402 = vmatprep.subr.mxu0 0.0
  %6403 = vmatpush1.msra.mxu0 0.0
  %6404 = vmatprep.subr.mxu0 0.0
  %6405 = vmatpush1.msra.mxu0 0.0
  %6406 = vmatprep.subr.mxu0 0.0
  %6407 = vmatpush1.msra.mxu0 0.0
  %6408 = vmatprep.subr.mxu0 0.0
  %6409 = vmatpush1.msra.mxu0 0.0
  %6410 = vmatprep.subr.mxu0 0.0
  %6411 = vmatpush1.msra.mxu0 0.0
  %6412 = vmatprep.subr.mxu0 0.0
  %6413 = vmatpush1.msra.mxu0 0.0
  %6414 = vmatprep.subr.mxu0 0.0
  %6415 = vmatpush1.msra.mxu0 0.0
  %6416 = vmatprep.subr.mxu0 0.0
  %6417 = vmatpush1.msra.mxu0 0.0
  %6418 = vmatprep.subr.mxu0 0.0
  %6419 = vmatpush1.msra.mxu0 0.0
  %6420 = vmatprep.subr.mxu0 0.0
  %6421 = vmatpush1.msra.mxu0 0.0
  %6422 = vmatprep.subr.mxu0 0.0
  %6423 = vmatpush1.msra.mxu0 0.0
  %6424 = vmatprep.mubr.f32.mxu0 0.0
  %6425 = vmatmul.mubr.f32.gmra.mrb[0].mxu0 %v6265
  %v6426 = vpop.f32.mrb[0].mxu0
  %v6427 = vadd.f32 %v6263, %v6426
  %v6428 = vpop.f32.mrb[0].mxu0
  %6429 = vmatprep.mubr.f32.mxu0 0.0
  %6430 = vmatmul.mubr.f32.gmra.mrb[0].mxu0 %v6268
  %v6431 = vpop.f32.mrb[0].mxu0
  %v6432 = vadd.f32 %v6263, %v6431
  %v6433 = vpop.f32.mrb[0].mxu0
  %6434 = vmatprep.mubr.f32.mxu0 0.0
  %6435 = vmatmul.mubr.f32.gmra.mrb[0].mxu0 %v6271
  %v6436 = vpop.f32.mrb[0].mxu0
  %v6437 = vadd.f32 %v6263, %v6436
  %v6438 = vpop.f32.mrb[0].mxu0
  %6439 = vmatprep.mubr.f32.mxu0 0.0
  %6440 = vmatmul.mubr.f32.gmra.mrb[0].mxu0 %v6274
  %v6441 = vpop.f32.mrb[0].mxu0
  %v6442 = vadd.f32 %v6263, %v6441
  %v6443 = vpop.f32.mrb[0].mxu0
  %6444 = vmatprep.mubr.f32.mxu0 0.0
  %6445 = vmatmul.mubr.f32.gmra.mrb[0].mxu0 %v6277
  %v6446 = vpop.f32.mrb[0].mxu0
  %v6447 = vadd.f32 %v6263, %v6446
  %v6448 = vpop.f32.mrb[0].mxu0
  %6449 = vmatprep.mubr.f32.mxu0 0.0
  %6450 = vmatmul.mubr.f32.gmra.mrb[0].mxu0 %v6280
  %v6451 = vpop.f32.mrb[0].mxu0
  %v6452 = vadd.f32 %v6263, %v6451
  %v6453 = vpop.f32.mrb[0].mxu0
  %6454 = vmatprep.mubr.f32.mxu0 0.0
  %6455 = vmatmul.mubr.f32.gmra.mrb[0].mxu0 %v6283
  %v6456 = vpop.f32.mrb[0].mxu0
  %v6457 = vadd.f32 %v6263, %v6456
  %v6458 = vpop.f32.mrb[0].mxu0
  %6459 = vmatprep.mubr.f32.mxu0 0.0
  %6460 = vmatmul.mubr.f32.gmra.mrb[0].mxu0 %v6286
  %v6461 = vpop.f32.mrb[0].mxu0
  %v6462 = vadd.f32 %v6263, %v6461
  %v6463 = vpop.f32.mrb[0].mxu0
  %6464 = vmatprep.mubr.f32.mxu0 0.0
  %6465 = vmatmul.mubr.f32.gmra.mrb[0].mxu0 %v6289
  %v6466 = vpop.f32.mrb[0].mxu0
  %v6467 = vadd.f32 %v6263, %v6466
  %v6468 = vpop.f32.mrb[0].mxu0
  %6469 = vmatprep.mubr.f32.mxu0 0.0
  %6470 = vmatmul.mubr.f32.gmra.mrb[0].mxu0 %v6292
  %v6471 = vpop.f32.mrb[0].mxu0
  %v6472 = vadd.f32 %v6263, %v6471
  %v6473 = vpop.f32.mrb[0].mxu0
  %6474 = vmatprep.mubr.f32.mxu0 0.0
  %6475 = vmatmul.mubr.f32.gmra.mrb[0].mxu0 %v6295
  %v6476 = vpop.f32.mrb[0].mxu0
  %v6477 = vadd.f32 %v6263, %v6476
  %v6478 = vpop.f32.mrb[0].mxu0
  %6479 = vmatprep.mubr.f32.mxu0 0.0
  %6480 = vmatmul.mubr.f32.gmra.mrb[0].mxu0 %v6298
  %v6481 = vpop.f32.mrb[0].mxu0
  %v6482 = vadd.f32 %v6263, %v6481
  %v6483 = vpop.f32.mrb[0].mxu0
  %6484 = vmatprep.mubr.f32.mxu0 0.0
  %6485 = vmatmul.mubr.f32.gmra.mrb[0].mxu0 %v6301
  %v6486 = vpop.f32.mrb[0].mxu0
  %v6487 = vadd.f32 %v6263, %v6486
  %v6488 = vpop.f32.mrb[0].mxu0
  %6489 = vmatprep.mubr.f32.mxu0 0.0
  %6490 = vmatmul.mubr.f32.gmra.mrb[0].mxu0 %v6304
  %v6491 = vpop.f32.mrb[0].mxu0
  %v6492 = vadd.f32 %v6263, %v6491
  %v6493 = vpop.f32.mrb[0].mxu0
  %6494 = vmatprep.mubr.f32.mxu0 0.0
  %6495 = vmatmul.mubr.f32.gmra.mrb[0].mxu0 %v6307
  %v6496 = vpop.f32.mrb[0].mxu0
  %v6497 = vadd.f32 %v6263, %v6496
  %v6498 = vpop.f32.mrb[0].mxu0
  %6499 = vmatprep.mubr.f32.mxu0 0.0
  %6500 = vmatmul.mubr.f32.gmra.mrb[0].mxu0 %v6310
  %v6501 = vpop.f32.mrb[0].mxu0
  %v6502 = vadd.f32 %v6263, %v6501
  %v6503 = vpop.f32.mrb[0].mxu0
  %6504 = vmatprep.mubr.f32.mxu0 0.0
  %6505 = vmatmul.mubr.f32.gmra.mrb[0].mxu0 %v6313
  %v6506 = vpop.f32.mrb[0].mxu0
  %v6507 = vadd.f32 %v6263, %v6506
  %v6508 = vpop.f32.mrb[0].mxu0
  %6509 = vmatprep.mubr.f32.mxu0 0.0
  %6510 = vmatmul.mubr.f32.gmra.mrb[0].mxu0 %v6316
  %v6511 = vpop.f32.mrb[0].mxu0
  %v6512 = vadd.f32 %v6263, %v6511
  %v6513 = vpop.f32.mrb[0].mxu0
  %6514 = vmatprep.mubr.f32.mxu0 0.0
  %6515 = vmatmul.mubr.f32.gmra.mrb[0].mxu0 %v6319
  %v6516 = vpop.f32.mrb[0].mxu0
  %v6517 = vadd.f32 %v6263, %v6516
  %v6518 = vpop.f32.mrb[0].mxu0
  %6519 = vmatprep.mubr.f32.mxu0 0.0
  %6520 = vmatmul.mubr.f32.gmra.mrb[0].mxu0 %v6322
  %v6521 = vpop.f32.mrb[0].mxu0
  %v6522 = vadd.f32 %v6263, %v6521
  %v6523 = vpop.f32.mrb[0].mxu0
  %6524 = vmatprep.mubr.f32.mxu0 0.0
  %6525 = vmatmul.mubr.f32.gmra.mrb[0].mxu0 %v6325
  %v6526 = vpop.f32.mrb[0].mxu0
  %v6527 = vadd.f32 %v6263, %v6526
  %v6528 = vpop.f32.mrb[0].mxu0
  %6529 = vmatprep.mubr.f32.mxu0 0.0
  %6530 = vmatmul.mubr.f32.gmra.mrb[0].mxu0 %v6328
  %v6531 = vpop.f32.mrb[0].mxu0
  %v6532 = vadd.f32 %v6263, %v6531
  %v6533 = vpop.f32.mrb[0].mxu0
  %6534 = vmatprep.mubr.f32.mxu0 0.0
  %6535 = vmatmul.mubr.f32.gmra.mrb[0].mxu0 %v6331
  %v6536 = vpop.f32.mrb[0].mxu0
  %v6537 = vadd.f32 %v6263, %v6536
  %v6538 = vpop.f32.mrb[0].mxu0
  %6539 = vmatprep.mubr.f32.mxu0 0.0
  %6540 = vmatmul.mubr.f32.gmra.mrb[0].mxu0 %v6334
  %v6541 = vpop.f32.mrb[0].mxu0
  %v6542 = vadd.f32 %v6263, %v6541
  %v6543 = vpop.f32.mrb[0].mxu0
  %6544 = vmatprep.mubr.f32.mxu0 0.0
  %6545 = vmatmul.mubr.f32.gmra.mrb[0].mxu0 %v6337
  %v6546 = vpop.f32.mrb[0].mxu0
  %v6547 = vadd.f32 %v6263, %v6546
  %v6548 = vpop.f32.mrb[0].mxu0
  %6549 = vmatprep.mubr.f32.mxu0 0.0
  %6550 = vmatmul.mubr.f32.gmra.mrb[0].mxu0 %v6340
  %v6551 = vpop.f32.mrb[0].mxu0
  %v6552 = vadd.f32 %v6263, %v6551
  %v6553 = vpop.f32.mrb[0].mxu0
  %6554 = vmatprep.mubr.f32.mxu0 0.0
  %6555 = vmatmul.mubr.f32.gmra.mrb[0].mxu0 %v6343
  %v6556 = vpop.f32.mrb[0].mxu0
  %v6557 = vadd.f32 %v6263, %v6556
  %v6558 = vpop.f32.mrb[0].mxu0
  %6559 = vmatprep.mubr.f32.mxu0 0.0
  %6560 = vmatmul.mubr.f32.gmra.mrb[0].mxu0 %v6346
  %v6561 = vpop.f32.mrb[0].mxu0
  %v6562 = vadd.f32 %v6263, %v6561
  %v6563 = vpop.f32.mrb[0].mxu0
  %6564 = vmatprep.mubr.f32.mxu0 0.0
  %6565 = vmatmul.mubr.f32.gmra.mrb[0].mxu0 %v6349
  %v6566 = vpop.f32.mrb[0].mxu0
  %v6567 = vadd.f32 %v6263, %v6566
  %v6568 = vpop.f32.mrb[0].mxu0
  %6569 = vmatprep.mubr.f32.mxu0 0.0
  %6570 = vmatmul.mubr.f32.gmra.mrb[0].mxu0 %v6352
  %v6571 = vpop.f32.mrb[0].mxu0
  %v6572 = vadd.f32 %v6263, %v6571
  %v6573 = vpop.f32.mrb[0].mxu0
  %6574 = vmatprep.mubr.f32.mxu0 0.0
  %6575 = vmatmul.mubr.f32.gmra.mrb[0].mxu0 %v6355
  %v6576 = vpop.f32.mrb[0].mxu0
  %v6577 = vadd.f32 %v6263, %v6576
  %v6578 = vpop.f32.mrb[0].mxu0
  %6579 = vmatprep.mubr.f32.mxu0 0.0
  %6580 = vmatmul.mubr.f32.gmra.mrb[0].mxu0 %v6358
  %v6581 = vpop.f32.mrb[0].mxu0
  %v6582 = vadd.f32 %v6263, %v6581
  %v6583 = vpop.f32.mrb[0].mxu0
  %6584 = vdwg.mxu0
  %v6585 = vmax.f32 %v6427, 0.0
  %v6586 = vmax.f32 %v6432, 0.0
  %v6587 = vmax.f32 %v6437, 0.0
  %v6588 = vmax.f32 %v6442, 0.0
  %v6589 = vmax.f32 %v6447, 0.0
  %v6590 = vmax.f32 %v6452, 0.0
  %v6591 = vmax.f32 %v6457, 0.0
  %v6592 = vmax.f32 %v6462, 0.0
  %v6593 = vmax.f32 %v6467, 0.0
  %v6594 = vmax.f32 %v6472, 0.0
  %v6595 = vmax.f32 %v6477, 0.0
  %v6596 = vmax.f32 %v6482, 0.0
  %v6597 = vmax.f32 %v6487, 0.0
  %v6598 = vmax.f32 %v6492, 0.0
  %v6599 = vmax.f32 %v6497, 0.0
  %v6600 = vmax.f32 %v6502, 0.0
  %v6601 = vmax.f32 %v6507, 0.0
  %v6602 = vmax.f32 %v6512, 0.0
  %v6603 = vmax.f32 %v6517, 0.0
  %v6604 = vmax.f32 %v6522, 0.0
  %v6605 = vmax.f32 %v6527, 0.0
  %v6606 = vmax.f32 %v6532, 0.0
  %v6607 = vmax.f32 %v6537, 0.0
  %v6608 = vmax.f32 %v6542, 0.0
  %v6609 = vmax.f32 %v6547, 0.0
  %v6610 = vmax.f32 %v6552, 0.0
  %v6611 = vmax.f32 %v6557, 0.0
  %v6612 = vmax.f32 %v6562, 0.0
  %v6613 = vmax.f32 %v6567, 0.0
  %v6614 = vmax.f32 %v6572, 0.0
  %v6615 = vmax.f32 %v6577, 0.0
  %v6616 = vmax.f32 %v6582, 0.0
  %v6617 = vlaneseq
  %v6618 = vshrl.u32 %v6617, 7
  %v6619 = vsub.s32 0, %v6618
  %v6620 = vrot.slane %v25, %v6619
  %v6622 = vsel %vm1628, %v6585, 0
  %v6625 = vsel %vm1628, %v6586, 0
  %v6628 = vsel %vm1628, %v6587, 0
  %v6631 = vsel %vm1628, %v6588, 0
  %v6634 = vsel %vm1628, %v6589, 0
  %v6637 = vsel %vm1628, %v6590, 0
  %v6640 = vsel %vm1628, %v6591, 0
  %v6643 = vsel %vm1628, %v6592, 0
  %v6646 = vsel %vm1628, %v6593, 0
  %v6649 = vsel %vm1628, %v6594, 0
  %v6652 = vsel %vm1628, %v6595, 0
  %v6655 = vsel %vm1628, %v6596, 0
  %v6658 = vsel %vm1628, %v6597, 0
  %v6661 = vsel %vm1628, %v6598, 0
  %v6664 = vsel %vm1628, %v6599, 0
  %v6667 = vsel %vm1628, %v6600, 0
  %v6670 = vsel %vm1628, %v6601, 0
  %v6673 = vsel %vm1628, %v6602, 0
  %v6676 = vsel %vm1628, %v6603, 0
  %v6679 = vsel %vm1628, %v6604, 0
  %v6682 = vsel %vm1628, %v6605, 0
  %v6685 = vsel %vm1628, %v6606, 0
  %v6688 = vsel %vm1628, %v6607, 0
  %v6691 = vsel %vm1628, %v6608, 0
  %v6694 = vsel %vm1628, %v6609, 0
  %v6697 = vsel %vm1628, %v6610, 0
  %v6700 = vsel %vm1628, %v6611, 0
  %v6703 = vsel %vm1628, %v6612, 0
  %v6706 = vsel %vm1628, %v6613, 0
  %v6709 = vsel %vm1628, %v6614, 0
  %v6712 = vsel %vm1628, %v6615, 0
  %v6715 = vsel %vm1628, %v6616, 0
  %6717 = vmatprep.subr.mxu0 0.0
  %6718 = vmatpush1.msra.mxu0 %v41
  %6719 = vmatprep.subr.mxu0 0.0
  %6720 = vmatpush1.msra.mxu0 %v42
  %6721 = vmatprep.subr.mxu0 0.0
  %6722 = vmatpush1.msra.mxu0 %v43
  %6723 = vmatprep.subr.mxu0 0.0
  %6724 = vmatpush1.msra.mxu0 %v44
  %6725 = vmatprep.subr.mxu0 0.0
  %6726 = vmatpush1.msra.mxu0 0.0
  %6727 = vmatprep.subr.mxu0 0.0
  %6728 = vmatpush1.msra.mxu0 0.0
  %6729 = vmatprep.subr.mxu0 0.0
  %6730 = vmatpush1.msra.mxu0 0.0
  %6731 = vmatprep.subr.mxu0 0.0
  %6732 = vmatpush1.msra.mxu0 0.0
  %6733 = vmatprep.subr.mxu0 0.0
  %6734 = vmatpush1.msra.mxu0 0.0
  %6735 = vmatprep.subr.mxu0 0.0
  %6736 = vmatpush1.msra.mxu0 0.0
  %6737 = vmatprep.subr.mxu0 0.0
  %6738 = vmatpush1.msra.mxu0 0.0
  %6739 = vmatprep.subr.mxu0 0.0
  %6740 = vmatpush1.msra.mxu0 0.0
  %6741 = vmatprep.subr.mxu0 0.0
  %6742 = vmatpush1.msra.mxu0 0.0
  %6743 = vmatprep.subr.mxu0 0.0
  %6744 = vmatpush1.msra.mxu0 0.0
  %6745 = vmatprep.subr.mxu0 0.0
  %6746 = vmatpush1.msra.mxu0 0.0
  %6747 = vmatprep.subr.mxu0 0.0
  %6748 = vmatpush1.msra.mxu0 0.0
  %6749 = vmatprep.subr.mxu0 0.0
  %6750 = vmatpush1.msra.mxu0 0.0
  %6751 = vmatprep.subr.mxu0 0.0
  %6752 = vmatpush1.msra.mxu0 0.0
  %6753 = vmatprep.subr.mxu0 0.0
  %6754 = vmatpush1.msra.mxu0 0.0
  %6755 = vmatprep.subr.mxu0 0.0
  %6756 = vmatpush1.msra.mxu0 0.0
  %6757 = vmatprep.subr.mxu0 0.0
  %6758 = vmatpush1.msra.mxu0 0.0
  %6759 = vmatprep.subr.mxu0 0.0
  %6760 = vmatpush1.msra.mxu0 0.0
  %6761 = vmatprep.subr.mxu0 0.0
  %6762 = vmatpush1.msra.mxu0 0.0
  %6763 = vmatprep.subr.mxu0 0.0
  %6764 = vmatpush1.msra.mxu0 0.0
  %6765 = vmatprep.subr.mxu0 0.0
  %6766 = vmatpush1.msra.mxu0 0.0
  %6767 = vmatprep.subr.mxu0 0.0
  %6768 = vmatpush1.msra.mxu0 0.0
  %6769 = vmatprep.subr.mxu0 0.0
  %6770 = vmatpush1.msra.mxu0 0.0
  %6771 = vmatprep.subr.mxu0 0.0
  %6772 = vmatpush1.msra.mxu0 0.0
  %6773 = vmatprep.subr.mxu0 0.0
  %6774 = vmatpush1.msra.mxu0 0.0
  %6775 = vmatprep.subr.mxu0 0.0
  %6776 = vmatpush1.msra.mxu0 0.0
  %6777 = vmatprep.subr.mxu0 0.0
  %6778 = vmatpush1.msra.mxu0 0.0
  %6779 = vmatprep.subr.mxu0 0.0
  %6780 = vmatpush1.msra.mxu0 0.0
  %6781 = vmatprep.mubr.f32.mxu0 0.0
  %6782 = vmatmul.mubr.f32.gmra.mrb[0].mxu0 %v6622
  %v6783 = vpop.f32.mrb[0].mxu0
  %v6784 = vadd.f32 %v6620, %v6783
  %v6785 = vpop.f32.mrb[0].mxu0
  %6786 = vmatprep.mubr.f32.mxu0 0.0
  %6787 = vmatmul.mubr.f32.gmra.mrb[0].mxu0 %v6625
  %v6788 = vpop.f32.mrb[0].mxu0
  %v6789 = vadd.f32 %v6620, %v6788
  %v6790 = vpop.f32.mrb[0].mxu0
  %6791 = vmatprep.mubr.f32.mxu0 0.0
  %6792 = vmatmul.mubr.f32.gmra.mrb[0].mxu0 %v6628
  %v6793 = vpop.f32.mrb[0].mxu0
  %v6794 = vadd.f32 %v6620, %v6793
  %v6795 = vpop.f32.mrb[0].mxu0
  %6796 = vmatprep.mubr.f32.mxu0 0.0
  %6797 = vmatmul.mubr.f32.gmra.mrb[0].mxu0 %v6631
  %v6798 = vpop.f32.mrb[0].mxu0
  %v6799 = vadd.f32 %v6620, %v6798
  %v6800 = vpop.f32.mrb[0].mxu0
  %6801 = vmatprep.mubr.f32.mxu0 0.0
  %6802 = vmatmul.mubr.f32.gmra.mrb[0].mxu0 %v6634
  %v6803 = vpop.f32.mrb[0].mxu0
  %v6804 = vadd.f32 %v6620, %v6803
  %v6805 = vpop.f32.mrb[0].mxu0
  %6806 = vmatprep.mubr.f32.mxu0 0.0
  %6807 = vmatmul.mubr.f32.gmra.mrb[0].mxu0 %v6637
  %v6808 = vpop.f32.mrb[0].mxu0
  %v6809 = vadd.f32 %v6620, %v6808
  %v6810 = vpop.f32.mrb[0].mxu0
  %6811 = vmatprep.mubr.f32.mxu0 0.0
  %6812 = vmatmul.mubr.f32.gmra.mrb[0].mxu0 %v6640
  %v6813 = vpop.f32.mrb[0].mxu0
  %v6814 = vadd.f32 %v6620, %v6813
  %v6815 = vpop.f32.mrb[0].mxu0
  %6816 = vmatprep.mubr.f32.mxu0 0.0
  %6817 = vmatmul.mubr.f32.gmra.mrb[0].mxu0 %v6643
  %v6818 = vpop.f32.mrb[0].mxu0
  %v6819 = vadd.f32 %v6620, %v6818
  %v6820 = vpop.f32.mrb[0].mxu0
  %6821 = vmatprep.mubr.f32.mxu0 0.0
  %6822 = vmatmul.mubr.f32.gmra.mrb[0].mxu0 %v6646
  %v6823 = vpop.f32.mrb[0].mxu0
  %v6824 = vadd.f32 %v6620, %v6823
  %v6825 = vpop.f32.mrb[0].mxu0
  %6826 = vmatprep.mubr.f32.mxu0 0.0
  %6827 = vmatmul.mubr.f32.gmra.mrb[0].mxu0 %v6649
  %v6828 = vpop.f32.mrb[0].mxu0
  %v6829 = vadd.f32 %v6620, %v6828
  %v6830 = vpop.f32.mrb[0].mxu0
  %6831 = vmatprep.mubr.f32.mxu0 0.0
  %6832 = vmatmul.mubr.f32.gmra.mrb[0].mxu0 %v6652
  %v6833 = vpop.f32.mrb[0].mxu0
  %v6834 = vadd.f32 %v6620, %v6833
  %v6835 = vpop.f32.mrb[0].mxu0
  %6836 = vmatprep.mubr.f32.mxu0 0.0
  %6837 = vmatmul.mubr.f32.gmra.mrb[0].mxu0 %v6655
  %v6838 = vpop.f32.mrb[0].mxu0
  %v6839 = vadd.f32 %v6620, %v6838
  %v6840 = vpop.f32.mrb[0].mxu0
  %6841 = vmatprep.mubr.f32.mxu0 0.0
  %6842 = vmatmul.mubr.f32.gmra.mrb[0].mxu0 %v6658
  %v6843 = vpop.f32.mrb[0].mxu0
  %v6844 = vadd.f32 %v6620, %v6843
  %v6845 = vpop.f32.mrb[0].mxu0
  %6846 = vmatprep.mubr.f32.mxu0 0.0
  %6847 = vmatmul.mubr.f32.gmra.mrb[0].mxu0 %v6661
  %v6848 = vpop.f32.mrb[0].mxu0
  %v6849 = vadd.f32 %v6620, %v6848
  %v6850 = vpop.f32.mrb[0].mxu0
  %6851 = vmatprep.mubr.f32.mxu0 0.0
  %6852 = vmatmul.mubr.f32.gmra.mrb[0].mxu0 %v6664
  %v6853 = vpop.f32.mrb[0].mxu0
  %v6854 = vadd.f32 %v6620, %v6853
  %v6855 = vpop.f32.mrb[0].mxu0
  %6856 = vmatprep.mubr.f32.mxu0 0.0
  %6857 = vmatmul.mubr.f32.gmra.mrb[0].mxu0 %v6667
  %v6858 = vpop.f32.mrb[0].mxu0
  %v6859 = vadd.f32 %v6620, %v6858
  %v6860 = vpop.f32.mrb[0].mxu0
  %6861 = vmatprep.mubr.f32.mxu0 0.0
  %6862 = vmatmul.mubr.f32.gmra.mrb[0].mxu0 %v6670
  %v6863 = vpop.f32.mrb[0].mxu0
  %v6864 = vadd.f32 %v6620, %v6863
  %v6865 = vpop.f32.mrb[0].mxu0
  %6866 = vmatprep.mubr.f32.mxu0 0.0
  %6867 = vmatmul.mubr.f32.gmra.mrb[0].mxu0 %v6673
  %v6868 = vpop.f32.mrb[0].mxu0
  %v6869 = vadd.f32 %v6620, %v6868
  %v6870 = vpop.f32.mrb[0].mxu0
  %6871 = vmatprep.mubr.f32.mxu0 0.0
  %6872 = vmatmul.mubr.f32.gmra.mrb[0].mxu0 %v6676
  %v6873 = vpop.f32.mrb[0].mxu0
  %v6874 = vadd.f32 %v6620, %v6873
  %v6875 = vpop.f32.mrb[0].mxu0
  %6876 = vmatprep.mubr.f32.mxu0 0.0
  %6877 = vmatmul.mubr.f32.gmra.mrb[0].mxu0 %v6679
  %v6878 = vpop.f32.mrb[0].mxu0
  %v6879 = vadd.f32 %v6620, %v6878
  %v6880 = vpop.f32.mrb[0].mxu0
  %6881 = vmatprep.mubr.f32.mxu0 0.0
  %6882 = vmatmul.mubr.f32.gmra.mrb[0].mxu0 %v6682
  %v6883 = vpop.f32.mrb[0].mxu0
  %v6884 = vadd.f32 %v6620, %v6883
  %v6885 = vpop.f32.mrb[0].mxu0
  %6886 = vmatprep.mubr.f32.mxu0 0.0
  %6887 = vmatmul.mubr.f32.gmra.mrb[0].mxu0 %v6685
  %v6888 = vpop.f32.mrb[0].mxu0
  %v6889 = vadd.f32 %v6620, %v6888
  %v6890 = vpop.f32.mrb[0].mxu0
  %6891 = vmatprep.mubr.f32.mxu0 0.0
  %6892 = vmatmul.mubr.f32.gmra.mrb[0].mxu0 %v6688
  %v6893 = vpop.f32.mrb[0].mxu0
  %v6894 = vadd.f32 %v6620, %v6893
  %v6895 = vpop.f32.mrb[0].mxu0
  %6896 = vmatprep.mubr.f32.mxu0 0.0
  %6897 = vmatmul.mubr.f32.gmra.mrb[0].mxu0 %v6691
  %v6898 = vpop.f32.mrb[0].mxu0
  %v6899 = vadd.f32 %v6620, %v6898
  %v6900 = vpop.f32.mrb[0].mxu0
  %6901 = vmatprep.mubr.f32.mxu0 0.0
  %6902 = vmatmul.mubr.f32.gmra.mrb[0].mxu0 %v6694
  %v6903 = vpop.f32.mrb[0].mxu0
  %v6904 = vadd.f32 %v6620, %v6903
  %v6905 = vpop.f32.mrb[0].mxu0
  %6906 = vmatprep.mubr.f32.mxu0 0.0
  %6907 = vmatmul.mubr.f32.gmra.mrb[0].mxu0 %v6697
  %v6908 = vpop.f32.mrb[0].mxu0
  %v6909 = vadd.f32 %v6620, %v6908
  %v6910 = vpop.f32.mrb[0].mxu0
  %6911 = vmatprep.mubr.f32.mxu0 0.0
  %6912 = vmatmul.mubr.f32.gmra.mrb[0].mxu0 %v6700
  %v6913 = vpop.f32.mrb[0].mxu0
  %v6914 = vadd.f32 %v6620, %v6913
  %v6915 = vpop.f32.mrb[0].mxu0
  %6916 = vmatprep.mubr.f32.mxu0 0.0
  %6917 = vmatmul.mubr.f32.gmra.mrb[0].mxu0 %v6703
  %v6918 = vpop.f32.mrb[0].mxu0
  %v6919 = vadd.f32 %v6620, %v6918
  %v6920 = vpop.f32.mrb[0].mxu0
  %6921 = vmatprep.mubr.f32.mxu0 0.0
  %6922 = vmatmul.mubr.f32.gmra.mrb[0].mxu0 %v6706
  %v6923 = vpop.f32.mrb[0].mxu0
  %v6924 = vadd.f32 %v6620, %v6923
  %v6925 = vpop.f32.mrb[0].mxu0
  %6926 = vmatprep.mubr.f32.mxu0 0.0
  %6927 = vmatmul.mubr.f32.gmra.mrb[0].mxu0 %v6709
  %v6928 = vpop.f32.mrb[0].mxu0
  %v6929 = vadd.f32 %v6620, %v6928
  %v6930 = vpop.f32.mrb[0].mxu0
  %6931 = vmatprep.mubr.f32.mxu0 0.0
  %6932 = vmatmul.mubr.f32.gmra.mrb[0].mxu0 %v6712
  %v6933 = vpop.f32.mrb[0].mxu0
  %v6934 = vadd.f32 %v6620, %v6933
  %v6935 = vpop.f32.mrb[0].mxu0
  %6936 = vmatprep.mubr.f32.mxu0 0.0
  %6937 = vmatmul.mubr.f32.gmra.mrb[0].mxu0 %v6715
  %v6938 = vpop.f32.mrb[0].mxu0
  %v6939 = vadd.f32 %v6620, %v6938
  %v6940 = vpop.f32.mrb[0].mxu0
  %6941 = vdwg.mxu0
  %v6942 = vadd.f32 %v5871, %v6784
  %v6943 = vadd.f32 %v5872, %v6789
  %v6944 = vadd.f32 %v5873, %v6794
  %v6945 = vadd.f32 %v5874, %v6799
  %v6946 = vadd.f32 %v5875, %v6804
  %v6947 = vadd.f32 %v5876, %v6809
  %v6948 = vadd.f32 %v5877, %v6814
  %v6949 = vadd.f32 %v5878, %v6819
  %v6950 = vadd.f32 %v5879, %v6824
  %v6951 = vadd.f32 %v5880, %v6829
  %v6952 = vadd.f32 %v5881, %v6834
  %v6953 = vadd.f32 %v5882, %v6839
  %v6954 = vadd.f32 %v5883, %v6844
  %v6955 = vadd.f32 %v5884, %v6849
  %v6956 = vadd.f32 %v5885, %v6854
  %v6957 = vadd.f32 %v5886, %v6859
  %v6958 = vadd.f32 %v5887, %v6864
  %v6959 = vadd.f32 %v5888, %v6869
  %v6960 = vadd.f32 %v5889, %v6874
  %v6961 = vadd.f32 %v5890, %v6879
  %v6962 = vadd.f32 %v5891, %v6884
  %v6963 = vadd.f32 %v5892, %v6889
  %v6964 = vadd.f32 %v5893, %v6894
  %v6965 = vadd.f32 %v5894, %v6899
  %v6966 = vadd.f32 %v5895, %v6904
  %v6967 = vadd.f32 %v5896, %v6909
  %v6968 = vadd.f32 %v5897, %v6914
  %v6969 = vadd.f32 %v5898, %v6919
  %v6970 = vadd.f32 %v5899, %v6924
  %v6971 = vadd.f32 %v5900, %v6929
  %v6972 = vadd.f32 %v5901, %v6934
  %v6973 = vadd.f32 %v5902, %v6939
  %v6974 = vsel %vm77, %v6942, 0.0
  %6975 = vadd.xlane.f32.xlu0 %v6974
  %v6976 = vpop.xlane.xlu0 %6975
  %v6977 = vsel %vm77, %v6943, 0.0
  %6978 = vadd.xlane.f32.xlu0 %v6977
  %v6979 = vpop.xlane.xlu0 %6978
  %v6980 = vsel %vm77, %v6944, 0.0
  %6981 = vadd.xlane.f32.xlu0 %v6980
  %v6982 = vpop.xlane.xlu0 %6981
  %v6983 = vsel %vm77, %v6945, 0.0
  %6984 = vadd.xlane.f32.xlu0 %v6983
  %v6985 = vpop.xlane.xlu0 %6984
  %v6986 = vsel %vm77, %v6946, 0.0
  %6987 = vadd.xlane.f32.xlu0 %v6986
  %v6988 = vpop.xlane.xlu0 %6987
  %v6989 = vsel %vm77, %v6947, 0.0
  %6990 = vadd.xlane.f32.xlu0 %v6989
  %v6991 = vpop.xlane.xlu0 %6990
  %v6992 = vsel %vm77, %v6948, 0.0
  %6993 = vadd.xlane.f32.xlu0 %v6992
  %v6994 = vpop.xlane.xlu0 %6993
  %v6995 = vsel %vm77, %v6949, 0.0
  %6996 = vadd.xlane.f32.xlu0 %v6995
  %v6997 = vpop.xlane.xlu0 %6996
  %v6998 = vsel %vm77, %v6950, 0.0
  %6999 = vadd.xlane.f32.xlu0 %v6998
  %v7000 = vpop.xlane.xlu0 %6999
  %v7001 = vsel %vm77, %v6951, 0.0
  %7002 = vadd.xlane.f32.xlu0 %v7001
  %v7003 = vpop.xlane.xlu0 %7002
  %v7004 = vsel %vm77, %v6952, 0.0
  %7005 = vadd.xlane.f32.xlu0 %v7004
  %v7006 = vpop.xlane.xlu0 %7005
  %v7007 = vsel %vm77, %v6953, 0.0
  %7008 = vadd.xlane.f32.xlu0 %v7007
  %v7009 = vpop.xlane.xlu0 %7008
  %v7010 = vsel %vm77, %v6954, 0.0
  %7011 = vadd.xlane.f32.xlu0 %v7010
  %v7012 = vpop.xlane.xlu0 %7011
  %v7013 = vsel %vm77, %v6955, 0.0
  %7014 = vadd.xlane.f32.xlu0 %v7013
  %v7015 = vpop.xlane.xlu0 %7014
  %v7016 = vsel %vm77, %v6956, 0.0
  %7017 = vadd.xlane.f32.xlu0 %v7016
  %v7018 = vpop.xlane.xlu0 %7017
  %v7019 = vsel %vm77, %v6957, 0.0
  %7020 = vadd.xlane.f32.xlu0 %v7019
  %v7021 = vpop.xlane.xlu0 %7020
  %v7022 = vsel %vm77, %v6958, 0.0
  %7023 = vadd.xlane.f32.xlu0 %v7022
  %v7024 = vpop.xlane.xlu0 %7023
  %v7025 = vsel %vm77, %v6959, 0.0
  %7026 = vadd.xlane.f32.xlu0 %v7025
  %v7027 = vpop.xlane.xlu0 %7026
  %v7028 = vsel %vm77, %v6960, 0.0
  %7029 = vadd.xlane.f32.xlu0 %v7028
  %v7030 = vpop.xlane.xlu0 %7029
  %v7031 = vsel %vm77, %v6961, 0.0
  %7032 = vadd.xlane.f32.xlu0 %v7031
  %v7033 = vpop.xlane.xlu0 %7032
  %v7034 = vsel %vm77, %v6962, 0.0
  %7035 = vadd.xlane.f32.xlu0 %v7034
  %v7036 = vpop.xlane.xlu0 %7035
  %v7037 = vsel %vm77, %v6963, 0.0
  %7038 = vadd.xlane.f32.xlu0 %v7037
  %v7039 = vpop.xlane.xlu0 %7038
  %v7040 = vsel %vm77, %v6964, 0.0
  %7041 = vadd.xlane.f32.xlu0 %v7040
  %v7042 = vpop.xlane.xlu0 %7041
  %v7043 = vsel %vm77, %v6965, 0.0
  %7044 = vadd.xlane.f32.xlu0 %v7043
  %v7045 = vpop.xlane.xlu0 %7044
  %v7046 = vsel %vm77, %v6966, 0.0
  %7047 = vadd.xlane.f32.xlu0 %v7046
  %v7048 = vpop.xlane.xlu0 %7047
  %v7049 = vsel %vm77, %v6967, 0.0
  %7050 = vadd.xlane.f32.xlu0 %v7049
  %v7051 = vpop.xlane.xlu0 %7050
  %v7052 = vsel %vm77, %v6968, 0.0
  %7053 = vadd.xlane.f32.xlu0 %v7052
  %v7054 = vpop.xlane.xlu0 %7053
  %v7055 = vsel %vm77, %v6969, 0.0
  %7056 = vadd.xlane.f32.xlu0 %v7055
  %v7057 = vpop.xlane.xlu0 %7056
  %v7058 = vsel %vm77, %v6970, 0.0
  %7059 = vadd.xlane.f32.xlu0 %v7058
  %v7060 = vpop.xlane.xlu0 %7059
  %v7061 = vsel %vm77, %v6971, 0.0
  %7062 = vadd.xlane.f32.xlu0 %v7061
  %v7063 = vpop.xlane.xlu0 %7062
  %v7064 = vsel %vm77, %v6972, 0.0
  %7065 = vadd.xlane.f32.xlu0 %v7064
  %v7066 = vpop.xlane.xlu0 %7065
  %v7067 = vsel %vm77, %v6973, 0.0
  %7068 = vadd.xlane.f32.xlu0 %v7067
  %v7069 = vpop.xlane.xlu0 %7068
  %v7070 = vmul.f32 %v6976, %v174
  %v7071 = vmul.f32 %v6979, %v174
  %v7072 = vmul.f32 %v6982, %v174
  %v7073 = vmul.f32 %v6985, %v174
  %v7074 = vmul.f32 %v6988, %v174
  %v7075 = vmul.f32 %v6991, %v174
  %v7076 = vmul.f32 %v6994, %v174
  %v7077 = vmul.f32 %v6997, %v174
  %v7078 = vmul.f32 %v7000, %v174
  %v7079 = vmul.f32 %v7003, %v174
  %v7080 = vmul.f32 %v7006, %v174
  %v7081 = vmul.f32 %v7009, %v174
  %v7082 = vmul.f32 %v7012, %v174
  %v7083 = vmul.f32 %v7015, %v174
  %v7084 = vmul.f32 %v7018, %v174
  %v7085 = vmul.f32 %v7021, %v174
  %v7086 = vmul.f32 %v7024, %v174
  %v7087 = vmul.f32 %v7027, %v174
  %v7088 = vmul.f32 %v7030, %v174
  %v7089 = vmul.f32 %v7033, %v174
  %v7090 = vmul.f32 %v7036, %v174
  %v7091 = vmul.f32 %v7039, %v174
  %v7092 = vmul.f32 %v7042, %v174
  %v7093 = vmul.f32 %v7045, %v174
  %v7094 = vmul.f32 %v7048, %v174
  %v7095 = vmul.f32 %v7051, %v174
  %v7096 = vmul.f32 %v7054, %v174
  %v7097 = vmul.f32 %v7057, %v174
  %v7098 = vmul.f32 %v7060, %v174
  %v7099 = vmul.f32 %v7063, %v174
  %v7100 = vmul.f32 %v7066, %v174
  %v7101 = vmul.f32 %v7069, %v174
  %v7102 = vsub.f32 %v6942, %v7070
  %v7103 = vsub.f32 %v6943, %v7071
  %v7104 = vsub.f32 %v6944, %v7072
  %v7105 = vsub.f32 %v6945, %v7073
  %v7106 = vsub.f32 %v6946, %v7074
  %v7107 = vsub.f32 %v6947, %v7075
  %v7108 = vsub.f32 %v6948, %v7076
  %v7109 = vsub.f32 %v6949, %v7077
  %v7110 = vsub.f32 %v6950, %v7078
  %v7111 = vsub.f32 %v6951, %v7079
  %v7112 = vsub.f32 %v6952, %v7080
  %v7113 = vsub.f32 %v6953, %v7081
  %v7114 = vsub.f32 %v6954, %v7082
  %v7115 = vsub.f32 %v6955, %v7083
  %v7116 = vsub.f32 %v6956, %v7084
  %v7117 = vsub.f32 %v6957, %v7085
  %v7118 = vsub.f32 %v6958, %v7086
  %v7119 = vsub.f32 %v6959, %v7087
  %v7120 = vsub.f32 %v6960, %v7088
  %v7121 = vsub.f32 %v6961, %v7089
  %v7122 = vsub.f32 %v6962, %v7090
  %v7123 = vsub.f32 %v6963, %v7091
  %v7124 = vsub.f32 %v6964, %v7092
  %v7125 = vsub.f32 %v6965, %v7093
  %v7126 = vsub.f32 %v6966, %v7094
  %v7127 = vsub.f32 %v6967, %v7095
  %v7128 = vsub.f32 %v6968, %v7096
  %v7129 = vsub.f32 %v6969, %v7097
  %v7130 = vsub.f32 %v6970, %v7098
  %v7131 = vsub.f32 %v6971, %v7099
  %v7132 = vsub.f32 %v6972, %v7100
  %v7133 = vsub.f32 %v6973, %v7101
  %v7134 = vmul.f32 %v7102, %v7102
  %v7135 = vmul.f32 %v7103, %v7103
  %v7136 = vmul.f32 %v7104, %v7104
  %v7137 = vmul.f32 %v7105, %v7105
  %v7138 = vmul.f32 %v7106, %v7106
  %v7139 = vmul.f32 %v7107, %v7107
  %v7140 = vmul.f32 %v7108, %v7108
  %v7141 = vmul.f32 %v7109, %v7109
  %v7142 = vmul.f32 %v7110, %v7110
  %v7143 = vmul.f32 %v7111, %v7111
  %v7144 = vmul.f32 %v7112, %v7112
  %v7145 = vmul.f32 %v7113, %v7113
  %v7146 = vmul.f32 %v7114, %v7114
  %v7147 = vmul.f32 %v7115, %v7115
  %v7148 = vmul.f32 %v7116, %v7116
  %v7149 = vmul.f32 %v7117, %v7117
  %v7150 = vmul.f32 %v7118, %v7118
  %v7151 = vmul.f32 %v7119, %v7119
  %v7152 = vmul.f32 %v7120, %v7120
  %v7153 = vmul.f32 %v7121, %v7121
  %v7154 = vmul.f32 %v7122, %v7122
  %v7155 = vmul.f32 %v7123, %v7123
  %v7156 = vmul.f32 %v7124, %v7124
  %v7157 = vmul.f32 %v7125, %v7125
  %v7158 = vmul.f32 %v7126, %v7126
  %v7159 = vmul.f32 %v7127, %v7127
  %v7160 = vmul.f32 %v7128, %v7128
  %v7161 = vmul.f32 %v7129, %v7129
  %v7162 = vmul.f32 %v7130, %v7130
  %v7163 = vmul.f32 %v7131, %v7131
  %v7164 = vmul.f32 %v7132, %v7132
  %v7165 = vmul.f32 %v7133, %v7133
  %v7166 = vsel %vm77, %v7134, 0.0
  %7167 = vadd.xlane.f32.xlu0 %v7166
  %v7168 = vpop.xlane.xlu0 %7167
  %v7169 = vsel %vm77, %v7135, 0.0
  %7170 = vadd.xlane.f32.xlu0 %v7169
  %v7171 = vpop.xlane.xlu0 %7170
  %v7172 = vsel %vm77, %v7136, 0.0
  %7173 = vadd.xlane.f32.xlu0 %v7172
  %v7174 = vpop.xlane.xlu0 %7173
  %v7175 = vsel %vm77, %v7137, 0.0
  %7176 = vadd.xlane.f32.xlu0 %v7175
  %v7177 = vpop.xlane.xlu0 %7176
  %v7178 = vsel %vm77, %v7138, 0.0
  %7179 = vadd.xlane.f32.xlu0 %v7178
  %v7180 = vpop.xlane.xlu0 %7179
  %v7181 = vsel %vm77, %v7139, 0.0
  %7182 = vadd.xlane.f32.xlu0 %v7181
  %v7183 = vpop.xlane.xlu0 %7182
  %v7184 = vsel %vm77, %v7140, 0.0
  %7185 = vadd.xlane.f32.xlu0 %v7184
  %v7186 = vpop.xlane.xlu0 %7185
  %v7187 = vsel %vm77, %v7141, 0.0
  %7188 = vadd.xlane.f32.xlu0 %v7187
  %v7189 = vpop.xlane.xlu0 %7188
  %v7190 = vsel %vm77, %v7142, 0.0
  %7191 = vadd.xlane.f32.xlu0 %v7190
  %v7192 = vpop.xlane.xlu0 %7191
  %v7193 = vsel %vm77, %v7143, 0.0
  %7194 = vadd.xlane.f32.xlu0 %v7193
  %v7195 = vpop.xlane.xlu0 %7194
  %v7196 = vsel %vm77, %v7144, 0.0
  %7197 = vadd.xlane.f32.xlu0 %v7196
  %v7198 = vpop.xlane.xlu0 %7197
  %v7199 = vsel %vm77, %v7145, 0.0
  %7200 = vadd.xlane.f32.xlu0 %v7199
  %v7201 = vpop.xlane.xlu0 %7200
  %v7202 = vsel %vm77, %v7146, 0.0
  %7203 = vadd.xlane.f32.xlu0 %v7202
  %v7204 = vpop.xlane.xlu0 %7203
  %v7205 = vsel %vm77, %v7147, 0.0
  %7206 = vadd.xlane.f32.xlu0 %v7205
  %v7207 = vpop.xlane.xlu0 %7206
  %v7208 = vsel %vm77, %v7148, 0.0
  %7209 = vadd.xlane.f32.xlu0 %v7208
  %v7210 = vpop.xlane.xlu0 %7209
  %v7211 = vsel %vm77, %v7149, 0.0
  %7212 = vadd.xlane.f32.xlu0 %v7211
  %v7213 = vpop.xlane.xlu0 %7212
  %v7214 = vsel %vm77, %v7150, 0.0
  %7215 = vadd.xlane.f32.xlu0 %v7214
  %v7216 = vpop.xlane.xlu0 %7215
  %v7217 = vsel %vm77, %v7151, 0.0
  %7218 = vadd.xlane.f32.xlu0 %v7217
  %v7219 = vpop.xlane.xlu0 %7218
  %v7220 = vsel %vm77, %v7152, 0.0
  %7221 = vadd.xlane.f32.xlu0 %v7220
  %v7222 = vpop.xlane.xlu0 %7221
  %v7223 = vsel %vm77, %v7153, 0.0
  %7224 = vadd.xlane.f32.xlu0 %v7223
  %v7225 = vpop.xlane.xlu0 %7224
  %v7226 = vsel %vm77, %v7154, 0.0
  %7227 = vadd.xlane.f32.xlu0 %v7226
  %v7228 = vpop.xlane.xlu0 %7227
  %v7229 = vsel %vm77, %v7155, 0.0
  %7230 = vadd.xlane.f32.xlu0 %v7229
  %v7231 = vpop.xlane.xlu0 %7230
  %v7232 = vsel %vm77, %v7156, 0.0
  %7233 = vadd.xlane.f32.xlu0 %v7232
  %v7234 = vpop.xlane.xlu0 %7233
  %v7235 = vsel %vm77, %v7157, 0.0
  %7236 = vadd.xlane.f32.xlu0 %v7235
  %v7237 = vpop.xlane.xlu0 %7236
  %v7238 = vsel %vm77, %v7158, 0.0
  %7239 = vadd.xlane.f32.xlu0 %v7238
  %v7240 = vpop.xlane.xlu0 %7239
  %v7241 = vsel %vm77, %v7159, 0.0
  %7242 = vadd.xlane.f32.xlu0 %v7241
  %v7243 = vpop.xlane.xlu0 %7242
  %v7244 = vsel %vm77, %v7160, 0.0
  %7245 = vadd.xlane.f32.xlu0 %v7244
  %v7246 = vpop.xlane.xlu0 %7245
  %v7247 = vsel %vm77, %v7161, 0.0
  %7248 = vadd.xlane.f32.xlu0 %v7247
  %v7249 = vpop.xlane.xlu0 %7248
  %v7250 = vsel %vm77, %v7162, 0.0
  %7251 = vadd.xlane.f32.xlu0 %v7250
  %v7252 = vpop.xlane.xlu0 %7251
  %v7253 = vsel %vm77, %v7163, 0.0
  %7254 = vadd.xlane.f32.xlu0 %v7253
  %v7255 = vpop.xlane.xlu0 %7254
  %v7256 = vsel %vm77, %v7164, 0.0
  %7257 = vadd.xlane.f32.xlu0 %v7256
  %v7258 = vpop.xlane.xlu0 %7257
  %v7259 = vsel %vm77, %v7165, 0.0
  %7260 = vadd.xlane.f32.xlu0 %v7259
  %v7261 = vpop.xlane.xlu0 %7260
  %v7262 = vmul.f32 %v7168, %v174
  %v7263 = vmul.f32 %v7171, %v174
  %v7264 = vmul.f32 %v7174, %v174
  %v7265 = vmul.f32 %v7177, %v174
  %v7266 = vmul.f32 %v7180, %v174
  %v7267 = vmul.f32 %v7183, %v174
  %v7268 = vmul.f32 %v7186, %v174
  %v7269 = vmul.f32 %v7189, %v174
  %v7270 = vmul.f32 %v7192, %v174
  %v7271 = vmul.f32 %v7195, %v174
  %v7272 = vmul.f32 %v7198, %v174
  %v7273 = vmul.f32 %v7201, %v174
  %v7274 = vmul.f32 %v7204, %v174
  %v7275 = vmul.f32 %v7207, %v174
  %v7276 = vmul.f32 %v7210, %v174
  %v7277 = vmul.f32 %v7213, %v174
  %v7278 = vmul.f32 %v7216, %v174
  %v7279 = vmul.f32 %v7219, %v174
  %v7280 = vmul.f32 %v7222, %v174
  %v7281 = vmul.f32 %v7225, %v174
  %v7282 = vmul.f32 %v7228, %v174
  %v7283 = vmul.f32 %v7231, %v174
  %v7284 = vmul.f32 %v7234, %v174
  %v7285 = vmul.f32 %v7237, %v174
  %v7286 = vmul.f32 %v7240, %v174
  %v7287 = vmul.f32 %v7243, %v174
  %v7288 = vmul.f32 %v7246, %v174
  %v7289 = vmul.f32 %v7249, %v174
  %v7290 = vmul.f32 %v7252, %v174
  %v7291 = vmul.f32 %v7255, %v174
  %v7292 = vmul.f32 %v7258, %v174
  %v7293 = vmul.f32 %v7261, %v174
  %v7294 = vadd.f32 %v7262, 1e-05
  %v7295 = vadd.f32 %v7263, 1e-05
  %v7296 = vadd.f32 %v7264, 1e-05
  %v7297 = vadd.f32 %v7265, 1e-05
  %v7298 = vadd.f32 %v7266, 1e-05
  %v7299 = vadd.f32 %v7267, 1e-05
  %v7300 = vadd.f32 %v7268, 1e-05
  %v7301 = vadd.f32 %v7269, 1e-05
  %v7302 = vadd.f32 %v7270, 1e-05
  %v7303 = vadd.f32 %v7271, 1e-05
  %v7304 = vadd.f32 %v7272, 1e-05
  %v7305 = vadd.f32 %v7273, 1e-05
  %v7306 = vadd.f32 %v7274, 1e-05
  %v7307 = vadd.f32 %v7275, 1e-05
  %v7308 = vadd.f32 %v7276, 1e-05
  %v7309 = vadd.f32 %v7277, 1e-05
  %v7310 = vadd.f32 %v7278, 1e-05
  %v7311 = vadd.f32 %v7279, 1e-05
  %v7312 = vadd.f32 %v7280, 1e-05
  %v7313 = vadd.f32 %v7281, 1e-05
  %v7314 = vadd.f32 %v7282, 1e-05
  %v7315 = vadd.f32 %v7283, 1e-05
  %v7316 = vadd.f32 %v7284, 1e-05
  %v7317 = vadd.f32 %v7285, 1e-05
  %v7318 = vadd.f32 %v7286, 1e-05
  %v7319 = vadd.f32 %v7287, 1e-05
  %v7320 = vadd.f32 %v7288, 1e-05
  %v7321 = vadd.f32 %v7289, 1e-05
  %v7322 = vadd.f32 %v7290, 1e-05
  %v7323 = vadd.f32 %v7291, 1e-05
  %v7324 = vadd.f32 %v7292, 1e-05
  %v7325 = vadd.f32 %v7293, 1e-05
  %v7326 = vrsqrt.pop %v7294
  %v7327 = vrsqrt.pop %v7295
  %v7328 = vrsqrt.pop %v7296
  %v7329 = vrsqrt.pop %v7297
  %v7330 = vrsqrt.pop %v7298
  %v7331 = vrsqrt.pop %v7299
  %v7332 = vrsqrt.pop %v7300
  %v7333 = vrsqrt.pop %v7301
  %v7334 = vrsqrt.pop %v7302
  %v7335 = vrsqrt.pop %v7303
  %v7336 = vrsqrt.pop %v7304
  %v7337 = vrsqrt.pop %v7305
  %v7338 = vrsqrt.pop %v7306
  %v7339 = vrsqrt.pop %v7307
  %v7340 = vrsqrt.pop %v7308
  %v7341 = vrsqrt.pop %v7309
  %v7342 = vrsqrt.pop %v7310
  %v7343 = vrsqrt.pop %v7311
  %v7344 = vrsqrt.pop %v7312
  %v7345 = vrsqrt.pop %v7313
  %v7346 = vrsqrt.pop %v7314
  %v7347 = vrsqrt.pop %v7315
  %v7348 = vrsqrt.pop %v7316
  %v7349 = vrsqrt.pop %v7317
  %v7350 = vrsqrt.pop %v7318
  %v7351 = vrsqrt.pop %v7319
  %v7352 = vrsqrt.pop %v7320
  %v7353 = vrsqrt.pop %v7321
  %v7354 = vrsqrt.pop %v7322
  %v7355 = vrsqrt.pop %v7323
  %v7356 = vrsqrt.pop %v7324
  %v7357 = vrsqrt.pop %v7325
  %v7358 = vmul.f32 %v7102, %v7326
  %v7359 = vmul.f32 %v7103, %v7327
  %v7360 = vmul.f32 %v7104, %v7328
  %v7361 = vmul.f32 %v7105, %v7329
  %v7362 = vmul.f32 %v7106, %v7330
  %v7363 = vmul.f32 %v7107, %v7331
  %v7364 = vmul.f32 %v7108, %v7332
  %v7365 = vmul.f32 %v7109, %v7333
  %v7366 = vmul.f32 %v7110, %v7334
  %v7367 = vmul.f32 %v7111, %v7335
  %v7368 = vmul.f32 %v7112, %v7336
  %v7369 = vmul.f32 %v7113, %v7337
  %v7370 = vmul.f32 %v7114, %v7338
  %v7371 = vmul.f32 %v7115, %v7339
  %v7372 = vmul.f32 %v7116, %v7340
  %v7373 = vmul.f32 %v7117, %v7341
  %v7374 = vmul.f32 %v7118, %v7342
  %v7375 = vmul.f32 %v7119, %v7343
  %v7376 = vmul.f32 %v7120, %v7344
  %v7377 = vmul.f32 %v7121, %v7345
  %v7378 = vmul.f32 %v7122, %v7346
  %v7379 = vmul.f32 %v7123, %v7347
  %v7380 = vmul.f32 %v7124, %v7348
  %v7381 = vmul.f32 %v7125, %v7349
  %v7382 = vmul.f32 %v7126, %v7350
  %v7383 = vmul.f32 %v7127, %v7351
  %v7384 = vmul.f32 %v7128, %v7352
  %v7385 = vmul.f32 %v7129, %v7353
  %v7386 = vmul.f32 %v7130, %v7354
  %v7387 = vmul.f32 %v7131, %v7355
  %v7388 = vmul.f32 %v7132, %v7356
  %v7389 = vmul.f32 %v7133, %v7357
  %v7390 = vlaneseq
  %v7391 = vshrl.u32 %v7390, 7
  %v7392 = vsub.s32 0, %v7391
  %v7393 = vrot.slane %v26, %v7392
  %v7394 = vmul.f32 %v7358, %v7393
  %v7395 = vmul.f32 %v7359, %v7393
  %v7396 = vmul.f32 %v7360, %v7393
  %v7397 = vmul.f32 %v7361, %v7393
  %v7398 = vmul.f32 %v7362, %v7393
  %v7399 = vmul.f32 %v7363, %v7393
  %v7400 = vmul.f32 %v7364, %v7393
  %v7401 = vmul.f32 %v7365, %v7393
  %v7402 = vmul.f32 %v7366, %v7393
  %v7403 = vmul.f32 %v7367, %v7393
  %v7404 = vmul.f32 %v7368, %v7393
  %v7405 = vmul.f32 %v7369, %v7393
  %v7406 = vmul.f32 %v7370, %v7393
  %v7407 = vmul.f32 %v7371, %v7393
  %v7408 = vmul.f32 %v7372, %v7393
  %v7409 = vmul.f32 %v7373, %v7393
  %v7410 = vmul.f32 %v7374, %v7393
  %v7411 = vmul.f32 %v7375, %v7393
  %v7412 = vmul.f32 %v7376, %v7393
  %v7413 = vmul.f32 %v7377, %v7393
  %v7414 = vmul.f32 %v7378, %v7393
  %v7415 = vmul.f32 %v7379, %v7393
  %v7416 = vmul.f32 %v7380, %v7393
  %v7417 = vmul.f32 %v7381, %v7393
  %v7418 = vmul.f32 %v7382, %v7393
  %v7419 = vmul.f32 %v7383, %v7393
  %v7420 = vmul.f32 %v7384, %v7393
  %v7421 = vmul.f32 %v7385, %v7393
  %v7422 = vmul.f32 %v7386, %v7393
  %v7423 = vmul.f32 %v7387, %v7393
  %v7424 = vmul.f32 %v7388, %v7393
  %v7425 = vmul.f32 %v7389, %v7393
  %v7426 = vlaneseq
  %v7427 = vshrl.u32 %v7426, 7
  %v7428 = vsub.s32 0, %v7427
  %v7429 = vrot.slane %v27, %v7428
  %v7430 = vadd.f32 %v7394, %v7429
  %v7431 = vadd.f32 %v7395, %v7429
  %v7432 = vadd.f32 %v7396, %v7429
  %v7433 = vadd.f32 %v7397, %v7429
  %v7434 = vadd.f32 %v7398, %v7429
  %v7435 = vadd.f32 %v7399, %v7429
  %v7436 = vadd.f32 %v7400, %v7429
  %v7437 = vadd.f32 %v7401, %v7429
  %v7438 = vadd.f32 %v7402, %v7429
  %v7439 = vadd.f32 %v7403, %v7429
  %v7440 = vadd.f32 %v7404, %v7429
  %v7441 = vadd.f32 %v7405, %v7429
  %v7442 = vadd.f32 %v7406, %v7429
  %v7443 = vadd.f32 %v7407, %v7429
  %v7444 = vadd.f32 %v7408, %v7429
  %v7445 = vadd.f32 %v7409, %v7429
  %v7446 = vadd.f32 %v7410, %v7429
  %v7447 = vadd.f32 %v7411, %v7429
  %v7448 = vadd.f32 %v7412, %v7429
  %v7449 = vadd.f32 %v7413, %v7429
  %v7450 = vadd.f32 %v7414, %v7429
  %v7451 = vadd.f32 %v7415, %v7429
  %v7452 = vadd.f32 %v7416, %v7429
  %v7453 = vadd.f32 %v7417, %v7429
  %v7454 = vadd.f32 %v7418, %v7429
  %v7455 = vadd.f32 %v7419, %v7429
  %v7456 = vadd.f32 %v7420, %v7429
  %v7457 = vadd.f32 %v7421, %v7429
  %v7458 = vadd.f32 %v7422, %v7429
  %v7459 = vadd.f32 %v7423, %v7429
  %v7460 = vadd.f32 %v7424, %v7429
  %v7461 = vadd.f32 %v7425, %v7429
  %v7462 = vlaneseq
  %v7463 = vshrl.u32 %v7462, 7
  %v7464 = vsub.s32 0, %v7463
  %v7465 = vrot.slane %v28, %v7464
  %v7467 = vsel %vm77, %v7430, 0
  %v7470 = vsel %vm77, %v7431, 0
  %v7473 = vsel %vm77, %v7432, 0
  %v7476 = vsel %vm77, %v7433, 0
  %v7479 = vsel %vm77, %v7434, 0
  %v7482 = vsel %vm77, %v7435, 0
  %v7485 = vsel %vm77, %v7436, 0
  %v7488 = vsel %vm77, %v7437, 0
  %v7491 = vsel %vm77, %v7438, 0
  %v7494 = vsel %vm77, %v7439, 0
  %v7497 = vsel %vm77, %v7440, 0
  %v7500 = vsel %vm77, %v7441, 0
  %v7503 = vsel %vm77, %v7442, 0
  %v7506 = vsel %vm77, %v7443, 0
  %v7509 = vsel %vm77, %v7444, 0
  %v7512 = vsel %vm77, %v7445, 0
  %v7515 = vsel %vm77, %v7446, 0
  %v7518 = vsel %vm77, %v7447, 0
  %v7521 = vsel %vm77, %v7448, 0
  %v7524 = vsel %vm77, %v7449, 0
  %v7527 = vsel %vm77, %v7450, 0
  %v7530 = vsel %vm77, %v7451, 0
  %v7533 = vsel %vm77, %v7452, 0
  %v7536 = vsel %vm77, %v7453, 0
  %v7539 = vsel %vm77, %v7454, 0
  %v7542 = vsel %vm77, %v7455, 0
  %v7545 = vsel %vm77, %v7456, 0
  %v7548 = vsel %vm77, %v7457, 0
  %v7551 = vsel %vm77, %v7458, 0
  %v7554 = vsel %vm77, %v7459, 0
  %v7557 = vsel %vm77, %v7460, 0
  %v7560 = vsel %vm77, %v7461, 0
  %7562 = vmatprep.subr.mxu0 0.0
  %7563 = vmatpush1.msra.mxu0 %v33
  %7564 = vmatprep.subr.mxu0 0.0
  %7565 = vmatpush1.msra.mxu0 %v34
  %7566 = vmatprep.subr.mxu0 0.0
  %7567 = vmatpush1.msra.mxu0 0.0
  %7568 = vmatprep.subr.mxu0 0.0
  %7569 = vmatpush1.msra.mxu0 0.0
  %7570 = vmatprep.subr.mxu0 0.0
  %7571 = vmatpush1.msra.mxu0 0.0
  %7572 = vmatprep.subr.mxu0 0.0
  %7573 = vmatpush1.msra.mxu0 0.0
  %7574 = vmatprep.subr.mxu0 0.0
  %7575 = vmatpush1.msra.mxu0 0.0
  %7576 = vmatprep.subr.mxu0 0.0
  %7577 = vmatpush1.msra.mxu0 0.0
  %7578 = vmatprep.subr.mxu0 0.0
  %7579 = vmatpush1.msra.mxu0 0.0
  %7580 = vmatprep.subr.mxu0 0.0
  %7581 = vmatpush1.msra.mxu0 0.0
  %7582 = vmatprep.subr.mxu0 0.0
  %7583 = vmatpush1.msra.mxu0 0.0
  %7584 = vmatprep.subr.mxu0 0.0
  %7585 = vmatpush1.msra.mxu0 0.0
  %7586 = vmatprep.subr.mxu0 0.0
  %7587 = vmatpush1.msra.mxu0 0.0
  %7588 = vmatprep.subr.mxu0 0.0
  %7589 = vmatpush1.msra.mxu0 0.0
  %7590 = vmatprep.subr.mxu0 0.0
  %7591 = vmatpush1.msra.mxu0 0.0
  %7592 = vmatprep.subr.mxu0 0.0
  %7593 = vmatpush1.msra.mxu0 0.0
  %7594 = vmatprep.subr.mxu0 0.0
  %7595 = vmatpush1.msra.mxu0 0.0
  %7596 = vmatprep.subr.mxu0 0.0
  %7597 = vmatpush1.msra.mxu0 0.0
  %7598 = vmatprep.subr.mxu0 0.0
  %7599 = vmatpush1.msra.mxu0 0.0
  %7600 = vmatprep.subr.mxu0 0.0
  %7601 = vmatpush1.msra.mxu0 0.0
  %7602 = vmatprep.subr.mxu0 0.0
  %7603 = vmatpush1.msra.mxu0 0.0
  %7604 = vmatprep.subr.mxu0 0.0
  %7605 = vmatpush1.msra.mxu0 0.0
  %7606 = vmatprep.subr.mxu0 0.0
  %7607 = vmatpush1.msra.mxu0 0.0
  %7608 = vmatprep.subr.mxu0 0.0
  %7609 = vmatpush1.msra.mxu0 0.0
  %7610 = vmatprep.subr.mxu0 0.0
  %7611 = vmatpush1.msra.mxu0 0.0
  %7612 = vmatprep.subr.mxu0 0.0
  %7613 = vmatpush1.msra.mxu0 0.0
  %7614 = vmatprep.subr.mxu0 0.0
  %7615 = vmatpush1.msra.mxu0 0.0
  %7616 = vmatprep.subr.mxu0 0.0
  %7617 = vmatpush1.msra.mxu0 0.0
  %7618 = vmatprep.subr.mxu0 0.0
  %7619 = vmatpush1.msra.mxu0 0.0
  %7620 = vmatprep.subr.mxu0 0.0
  %7621 = vmatpush1.msra.mxu0 0.0
  %7622 = vmatprep.subr.mxu0 0.0
  %7623 = vmatpush1.msra.mxu0 0.0
  %7624 = vmatprep.subr.mxu0 0.0
  %7625 = vmatpush1.msra.mxu0 0.0
  %7626 = vmatprep.mubr.f32.mxu0 0.0
  %7627 = vmatmul.mubr.f32.gmra.mrb[0].mxu0 %v7467
  %v7628 = vpop.f32.mrb[0].mxu0
  %v7629 = vadd.f32 %v7465, %v7628
  %v7630 = vpop.f32.mrb[0].mxu0
  %7631 = vmatprep.mubr.f32.mxu0 0.0
  %7632 = vmatmul.mubr.f32.gmra.mrb[0].mxu0 %v7470
  %v7633 = vpop.f32.mrb[0].mxu0
  %v7634 = vadd.f32 %v7465, %v7633
  %v7635 = vpop.f32.mrb[0].mxu0
  %7636 = vmatprep.mubr.f32.mxu0 0.0
  %7637 = vmatmul.mubr.f32.gmra.mrb[0].mxu0 %v7473
  %v7638 = vpop.f32.mrb[0].mxu0
  %v7639 = vadd.f32 %v7465, %v7638
  %v7640 = vpop.f32.mrb[0].mxu0
  %7641 = vmatprep.mubr.f32.mxu0 0.0
  %7642 = vmatmul.mubr.f32.gmra.mrb[0].mxu0 %v7476
  %v7643 = vpop.f32.mrb[0].mxu0
  %v7644 = vadd.f32 %v7465, %v7643
  %v7645 = vpop.f32.mrb[0].mxu0
  %7646 = vmatprep.mubr.f32.mxu0 0.0
  %7647 = vmatmul.mubr.f32.gmra.mrb[0].mxu0 %v7479
  %v7648 = vpop.f32.mrb[0].mxu0
  %v7649 = vadd.f32 %v7465, %v7648
  %v7650 = vpop.f32.mrb[0].mxu0
  %7651 = vmatprep.mubr.f32.mxu0 0.0
  %7652 = vmatmul.mubr.f32.gmra.mrb[0].mxu0 %v7482
  %v7653 = vpop.f32.mrb[0].mxu0
  %v7654 = vadd.f32 %v7465, %v7653
  %v7655 = vpop.f32.mrb[0].mxu0
  %7656 = vmatprep.mubr.f32.mxu0 0.0
  %7657 = vmatmul.mubr.f32.gmra.mrb[0].mxu0 %v7485
  %v7658 = vpop.f32.mrb[0].mxu0
  %v7659 = vadd.f32 %v7465, %v7658
  %v7660 = vpop.f32.mrb[0].mxu0
  %7661 = vmatprep.mubr.f32.mxu0 0.0
  %7662 = vmatmul.mubr.f32.gmra.mrb[0].mxu0 %v7488
  %v7663 = vpop.f32.mrb[0].mxu0
  %v7664 = vadd.f32 %v7465, %v7663
  %v7665 = vpop.f32.mrb[0].mxu0
  %7666 = vmatprep.mubr.f32.mxu0 0.0
  %7667 = vmatmul.mubr.f32.gmra.mrb[0].mxu0 %v7491
  %v7668 = vpop.f32.mrb[0].mxu0
  %v7669 = vadd.f32 %v7465, %v7668
  %v7670 = vpop.f32.mrb[0].mxu0
  %7671 = vmatprep.mubr.f32.mxu0 0.0
  %7672 = vmatmul.mubr.f32.gmra.mrb[0].mxu0 %v7494
  %v7673 = vpop.f32.mrb[0].mxu0
  %v7674 = vadd.f32 %v7465, %v7673
  %v7675 = vpop.f32.mrb[0].mxu0
  %7676 = vmatprep.mubr.f32.mxu0 0.0
  %7677 = vmatmul.mubr.f32.gmra.mrb[0].mxu0 %v7497
  %v7678 = vpop.f32.mrb[0].mxu0
  %v7679 = vadd.f32 %v7465, %v7678
  %v7680 = vpop.f32.mrb[0].mxu0
  %7681 = vmatprep.mubr.f32.mxu0 0.0
  %7682 = vmatmul.mubr.f32.gmra.mrb[0].mxu0 %v7500
  %v7683 = vpop.f32.mrb[0].mxu0
  %v7684 = vadd.f32 %v7465, %v7683
  %v7685 = vpop.f32.mrb[0].mxu0
  %7686 = vmatprep.mubr.f32.mxu0 0.0
  %7687 = vmatmul.mubr.f32.gmra.mrb[0].mxu0 %v7503
  %v7688 = vpop.f32.mrb[0].mxu0
  %v7689 = vadd.f32 %v7465, %v7688
  %v7690 = vpop.f32.mrb[0].mxu0
  %7691 = vmatprep.mubr.f32.mxu0 0.0
  %7692 = vmatmul.mubr.f32.gmra.mrb[0].mxu0 %v7506
  %v7693 = vpop.f32.mrb[0].mxu0
  %v7694 = vadd.f32 %v7465, %v7693
  %v7695 = vpop.f32.mrb[0].mxu0
  %7696 = vmatprep.mubr.f32.mxu0 0.0
  %7697 = vmatmul.mubr.f32.gmra.mrb[0].mxu0 %v7509
  %v7698 = vpop.f32.mrb[0].mxu0
  %v7699 = vadd.f32 %v7465, %v7698
  %v7700 = vpop.f32.mrb[0].mxu0
  %7701 = vmatprep.mubr.f32.mxu0 0.0
  %7702 = vmatmul.mubr.f32.gmra.mrb[0].mxu0 %v7512
  %v7703 = vpop.f32.mrb[0].mxu0
  %v7704 = vadd.f32 %v7465, %v7703
  %v7705 = vpop.f32.mrb[0].mxu0
  %7706 = vmatprep.mubr.f32.mxu0 0.0
  %7707 = vmatmul.mubr.f32.gmra.mrb[0].mxu0 %v7515
  %v7708 = vpop.f32.mrb[0].mxu0
  %v7709 = vadd.f32 %v7465, %v7708
  %v7710 = vpop.f32.mrb[0].mxu0
  %7711 = vmatprep.mubr.f32.mxu0 0.0
  %7712 = vmatmul.mubr.f32.gmra.mrb[0].mxu0 %v7518
  %v7713 = vpop.f32.mrb[0].mxu0
  %v7714 = vadd.f32 %v7465, %v7713
  %v7715 = vpop.f32.mrb[0].mxu0
  %7716 = vmatprep.mubr.f32.mxu0 0.0
  %7717 = vmatmul.mubr.f32.gmra.mrb[0].mxu0 %v7521
  %v7718 = vpop.f32.mrb[0].mxu0
  %v7719 = vadd.f32 %v7465, %v7718
  %v7720 = vpop.f32.mrb[0].mxu0
  %7721 = vmatprep.mubr.f32.mxu0 0.0
  %7722 = vmatmul.mubr.f32.gmra.mrb[0].mxu0 %v7524
  %v7723 = vpop.f32.mrb[0].mxu0
  %v7724 = vadd.f32 %v7465, %v7723
  %v7725 = vpop.f32.mrb[0].mxu0
  %7726 = vmatprep.mubr.f32.mxu0 0.0
  %7727 = vmatmul.mubr.f32.gmra.mrb[0].mxu0 %v7527
  %v7728 = vpop.f32.mrb[0].mxu0
  %v7729 = vadd.f32 %v7465, %v7728
  %v7730 = vpop.f32.mrb[0].mxu0
  %7731 = vmatprep.mubr.f32.mxu0 0.0
  %7732 = vmatmul.mubr.f32.gmra.mrb[0].mxu0 %v7530
  %v7733 = vpop.f32.mrb[0].mxu0
  %v7734 = vadd.f32 %v7465, %v7733
  %v7735 = vpop.f32.mrb[0].mxu0
  %7736 = vmatprep.mubr.f32.mxu0 0.0
  %7737 = vmatmul.mubr.f32.gmra.mrb[0].mxu0 %v7533
  %v7738 = vpop.f32.mrb[0].mxu0
  %v7739 = vadd.f32 %v7465, %v7738
  %v7740 = vpop.f32.mrb[0].mxu0
  %7741 = vmatprep.mubr.f32.mxu0 0.0
  %7742 = vmatmul.mubr.f32.gmra.mrb[0].mxu0 %v7536
  %v7743 = vpop.f32.mrb[0].mxu0
  %v7744 = vadd.f32 %v7465, %v7743
  %v7745 = vpop.f32.mrb[0].mxu0
  %7746 = vmatprep.mubr.f32.mxu0 0.0
  %7747 = vmatmul.mubr.f32.gmra.mrb[0].mxu0 %v7539
  %v7748 = vpop.f32.mrb[0].mxu0
  %v7749 = vadd.f32 %v7465, %v7748
  %v7750 = vpop.f32.mrb[0].mxu0
  %7751 = vmatprep.mubr.f32.mxu0 0.0
  %7752 = vmatmul.mubr.f32.gmra.mrb[0].mxu0 %v7542
  %v7753 = vpop.f32.mrb[0].mxu0
  %v7754 = vadd.f32 %v7465, %v7753
  %v7755 = vpop.f32.mrb[0].mxu0
  %7756 = vmatprep.mubr.f32.mxu0 0.0
  %7757 = vmatmul.mubr.f32.gmra.mrb[0].mxu0 %v7545
  %v7758 = vpop.f32.mrb[0].mxu0
  %v7759 = vadd.f32 %v7465, %v7758
  %v7760 = vpop.f32.mrb[0].mxu0
  %7761 = vmatprep.mubr.f32.mxu0 0.0
  %7762 = vmatmul.mubr.f32.gmra.mrb[0].mxu0 %v7548
  %v7763 = vpop.f32.mrb[0].mxu0
  %v7764 = vadd.f32 %v7465, %v7763
  %v7765 = vpop.f32.mrb[0].mxu0
  %7766 = vmatprep.mubr.f32.mxu0 0.0
  %7767 = vmatmul.mubr.f32.gmra.mrb[0].mxu0 %v7551
  %v7768 = vpop.f32.mrb[0].mxu0
  %v7769 = vadd.f32 %v7465, %v7768
  %v7770 = vpop.f32.mrb[0].mxu0
  %7771 = vmatprep.mubr.f32.mxu0 0.0
  %7772 = vmatmul.mubr.f32.gmra.mrb[0].mxu0 %v7554
  %v7773 = vpop.f32.mrb[0].mxu0
  %v7774 = vadd.f32 %v7465, %v7773
  %v7775 = vpop.f32.mrb[0].mxu0
  %7776 = vmatprep.mubr.f32.mxu0 0.0
  %7777 = vmatmul.mubr.f32.gmra.mrb[0].mxu0 %v7557
  %v7778 = vpop.f32.mrb[0].mxu0
  %v7779 = vadd.f32 %v7465, %v7778
  %v7780 = vpop.f32.mrb[0].mxu0
  %7781 = vmatprep.mubr.f32.mxu0 0.0
  %7782 = vmatmul.mubr.f32.gmra.mrb[0].mxu0 %v7560
  %v7783 = vpop.f32.mrb[0].mxu0
  %v7784 = vadd.f32 %v7465, %v7783
  %v7785 = vpop.f32.mrb[0].mxu0
  %7786 = vdwg.mxu0
  %v7787 = vlaneseq
  %v7788 = vand.u32 %v7787, 127
  %vm7789 = vcmp.lt.s32.totalorder %v7788, 4
  %v7790 = vtanh.pop %v7629
  %v7791 = vtanh.pop %v7634
  %v7792 = vtanh.pop %v7639
  %v7793 = vtanh.pop %v7644
  %v7794 = vtanh.pop %v7649
  %v7795 = vtanh.pop %v7654
  %v7796 = vtanh.pop %v7659
  %v7797 = vtanh.pop %v7664
  %v7798 = vtanh.pop %v7669
  %v7799 = vtanh.pop %v7674
  %v7800 = vtanh.pop %v7679
  %v7801 = vtanh.pop %v7684
  %v7802 = vtanh.pop %v7689
  %v7803 = vtanh.pop %v7694
  %v7804 = vtanh.pop %v7699
  %v7805 = vtanh.pop %v7704
  %v7806 = vtanh.pop %v7709
  %v7807 = vtanh.pop %v7714
  %v7808 = vtanh.pop %v7719
  %v7809 = vtanh.pop %v7724
  %v7810 = vtanh.pop %v7729
  %v7811 = vtanh.pop %v7734
  %v7812 = vtanh.pop %v7739
  %v7813 = vtanh.pop %v7744
  %v7814 = vtanh.pop %v7749
  %v7815 = vtanh.pop %v7754
  %v7816 = vtanh.pop %v7759
  %v7817 = vtanh.pop %v7764
  %v7818 = vtanh.pop %v7769
  %v7819 = vtanh.pop %v7774
  %v7820 = vtanh.pop %v7779
  %v7821 = vtanh.pop %v7784
  %v7822 = vsel %vm7789, %v7790, %v7629
  %v7823 = vsel %vm7789, %v7791, %v7634
  %v7824 = vsel %vm7789, %v7792, %v7639
  %v7825 = vsel %vm7789, %v7793, %v7644
  %v7826 = vsel %vm7789, %v7794, %v7649
  %v7827 = vsel %vm7789, %v7795, %v7654
  %v7828 = vsel %vm7789, %v7796, %v7659
  %v7829 = vsel %vm7789, %v7797, %v7664
  %v7830 = vsel %vm7789, %v7798, %v7669
  %v7831 = vsel %vm7789, %v7799, %v7674
  %v7832 = vsel %vm7789, %v7800, %v7679
  %v7833 = vsel %vm7789, %v7801, %v7684
  %v7834 = vsel %vm7789, %v7802, %v7689
  %v7835 = vsel %vm7789, %v7803, %v7694
  %v7836 = vsel %vm7789, %v7804, %v7699
  %v7837 = vsel %vm7789, %v7805, %v7704
  %v7838 = vsel %vm7789, %v7806, %v7709
  %v7839 = vsel %vm7789, %v7807, %v7714
  %v7840 = vsel %vm7789, %v7808, %v7719
  %v7841 = vsel %vm7789, %v7809, %v7724
  %v7842 = vsel %vm7789, %v7810, %v7729
  %v7843 = vsel %vm7789, %v7811, %v7734
  %v7844 = vsel %vm7789, %v7812, %v7739
  %v7845 = vsel %vm7789, %v7813, %v7744
  %v7846 = vsel %vm7789, %v7814, %v7749
  %v7847 = vsel %vm7789, %v7815, %v7754
  %v7848 = vsel %vm7789, %v7816, %v7759
  %v7849 = vsel %vm7789, %v7817, %v7764
  %v7850 = vsel %vm7789, %v7818, %v7769
  %v7851 = vsel %vm7789, %v7819, %v7774
  %v7852 = vsel %vm7789, %v7820, %v7779
  %v7853 = vsel %vm7789, %v7821, %v7784
  %7854 = vst [vmem:[%s4] sm:$0xff] %v7822
  %7855 = vst [vmem:[%s4 + $0x8] sm:$0xff] %v7823
  %7856 = vst [vmem:[%s4 + $0x10] sm:$0xff] %v7824
  %7857 = vst [vmem:[%s4 + $0x18] sm:$0xff] %v7825
  %7858 = vst [vmem:[%s4 + $0x20] sm:$0xff] %v7826
  %7859 = vst [vmem:[%s4 + $0x28] sm:$0xff] %v7827
  %7860 = vst [vmem:[%s4 + $0x30] sm:$0xff] %v7828
  %7861 = vst [vmem:[%s4 + $0x38] sm:$0xff] %v7829
  %7862 = vst [vmem:[%s4 + $0x40] sm:$0xff] %v7830
  %7863 = vst [vmem:[%s4 + $0x48] sm:$0xff] %v7831
  %7864 = vst [vmem:[%s4 + $0x50] sm:$0xff] %v7832
  %7865 = vst [vmem:[%s4 + $0x58] sm:$0xff] %v7833
  %7866 = vst [vmem:[%s4 + $0x60] sm:$0xff] %v7834
  %7867 = vst [vmem:[%s4 + $0x68] sm:$0xff] %v7835
  %7868 = vst [vmem:[%s4 + $0x70] sm:$0xff] %v7836
  %7869 = vst [vmem:[%s4 + $0x78] sm:$0xff] %v7837
  %7870 = vst [vmem:[%s4 + $0x80] sm:$0xff] %v7838
  %7871 = vst [vmem:[%s4 + $0x88] sm:$0xff] %v7839
  %7872 = vst [vmem:[%s4 + $0x90] sm:$0xff] %v7840
  %7873 = vst [vmem:[%s4 + $0x98] sm:$0xff] %v7841
  %7874 = vst [vmem:[%s4 + $0xa0] sm:$0xff] %v7842
  %7875 = vst [vmem:[%s4 + $0xa8] sm:$0xff] %v7843
  %7876 = vst [vmem:[%s4 + $0xb0] sm:$0xff] %v7844
  %7877 = vst [vmem:[%s4 + $0xb8] sm:$0xff] %v7845
  %7878 = vst [vmem:[%s4 + $0xc0] sm:$0xff] %v7846
  %7879 = vst [vmem:[%s4 + $0xc8] sm:$0xff] %v7847
  %7880 = vst [vmem:[%s4 + $0xd0] sm:$0xff] %v7848
  %7881 = vst [vmem:[%s4 + $0xd8] sm:$0xff] %v7849
  %7882 = vst [vmem:[%s4 + $0xe0] sm:$0xff] %v7850
  %7883 = vst [vmem:[%s4 + $0xe8] sm:$0xff] %v7851
  %7884 = vst [vmem:[%s4 + $0xf0] sm:$0xff] %v7852
  %7885 = vst [vmem:[%s4 + $0xf8] sm:$0xff] %v7853
  // Predicated region
  $region18: #{ppo_policy_pred_forward.1} parent=0 // pred_check
    _
  $region19: #{ppo_policy_pred_forward.1} parent=0 // pred_check_branch
    %7887 = sbr.rel (0) target = $region21
  $region20: #{ppo_policy_pred_forward.1} parent=0 // pred_region
    _
  $region21: #{ppo_policy_pred_forward.1} parent=0 // pred_fallthru
    _
  // Predicated region
  $region22: #{ppo_policy_pred_forward.1} parent=0 // pred_check
    _
  $region23: #{ppo_policy_pred_forward.1} parent=0 // pred_check_branch
    %7889 = sbr.rel (0) target = $region25
  $region24: #{ppo_policy_pred_forward.1} parent=0 // pred_region
    _
  $region25: #{ppo_policy_pred_forward.1} parent=0 // pred_fallthru
    _

</llo_original>
